<compile_context>
chip_gen: v7x
topology: tpu7x:2x2x1
jax: 0.10.0
libtpu: 0.0.40
codegen_flags: <defaults>
</compile_context>

<pallas_src>
import functools
import itertools
import math

import numpy as np
import jax
import jax.numpy as jnp
from jax import lax
from jax.experimental import pallas as pl
from jax.experimental.pallas import tpu as pltpu

D_MODEL = 512
NUM_HEADS = 8
BF16 = jnp.bfloat16


def _rup(x, m):
    return (x + m - 1) // m * m


# ----------------------------------------------------------------------------
# Pallas kernel 1: matmul with whole-K weight resident in VMEM, bf16 operands /
# f32 accumulate, fused epilogue (bias + optional residual + ReLU / tanh).
# Weights / biases are pre-padded to 128-aligned shapes once at init, so the
# only runtime pad is the (small) M pad of the activations.
# ----------------------------------------------------------------------------
def _choose_tiles(M, Kb, Nb):
    """tn: lane-dense; split N for tiny-M transformer GEMMs so v7x's 2 TCs both
    get work.  tm: multiple of 16 (bf16 sublane packing), sized to fit VMEM."""
    if M <= 2048 and Nb > 256:
        tn = 256
    else:
        tn = min(Nb, 512)
    if 4 * Kb * tn > (16 << 20):       # keep the resident weight tile modest
        tn = 128
    budget = 30 << 20
    per_tm = 4 * Kb + 16 * tn          # A (2 bufs, bf16) + out (2 bufs, f32)
    avail = budget - 4 * Kb * tn       # B allocated double-buffered
    tm_max = max(16, (avail // per_tm) // 16 * 16)
    tm = max(16, min(_rup(M, 16), 1024, tm_max))
    Mp = _rup(M, tm)
    return tm, tn, Mp


def _mm_kernel(a_ref, b_ref, bias_ref, *rest, activation, has_residual):
    if has_residual:
        res_ref, o_ref = rest
    else:
        res_ref = None
        (o_ref,) = rest
    out = jnp.dot(a_ref[...], b_ref[...], preferred_element_type=jnp.float32)
    out = out + bias_ref[...]
    if res_ref is not None:
        out = out + res_ref[...].astype(jnp.float32)
    if activation == "relu":
        out = jnp.maximum(out, 0.0)
    elif activation == "tanh":
        out = jnp.tanh(out)
    o_ref[...] = out.astype(o_ref.dtype)


@functools.lru_cache(maxsize=None)
def _build_matmul(Mp, Kb, Nb, tm, tn, activation, has_residual, out_dtype):
    kernel = functools.partial(_mm_kernel, activation=activation,
                               has_residual=has_residual)
    grid = (Mp // tm, Nb // tn)
    in_specs = [pl.BlockSpec((tm, Kb), lambda i, j: (i, 0)),
                pl.BlockSpec((Kb, tn), lambda i, j: (0, j)),
                pl.BlockSpec((1, tn), lambda i, j: (0, j))]
    if has_residual:
        in_specs.append(pl.BlockSpec((tm, tn), lambda i, j: (i, j)))
    est = (4 * tm * Kb + 4 * Kb * tn + 8 * tm * tn
           + (8 * tm * tn if has_residual else 0))
    limit = int(min(48 << 20, max(32 << 20, est + (8 << 20))))
    return pl.pallas_call(
        kernel,
        out_shape=jax.ShapeDtypeStruct((Mp, Nb), out_dtype),
        grid_spec=pltpu.PrefetchScalarGridSpec(
            num_scalar_prefetch=0, grid=grid,
            in_specs=in_specs,
            out_specs=pl.BlockSpec((tm, tn), lambda i, j: (i, j)),
            scratch_shapes=[]),
        compiler_params=pltpu.CompilerParams(
            dimension_semantics=("parallel", "parallel"),
            vmem_limit_bytes=limit),
    )


def pallas_matmul(a, b, bias=None, residual=None, activation=None,
                  out_dtype=jnp.float32, n_out=None):
    """act(a @ b[:K] + bias [+ residual]).  b / bias are pre-padded to
    128-aligned (Kb, Nb); extra K rows of b are zero so padding a's K is safe."""
    M, K = a.shape
    Kb, Nb = b.shape
    assert Kb % 128 == 0 and Nb % 128 == 0 and Kb >= K
    tm, tn, Mp = _choose_tiles(M, Kb, Nb)
    a_p = a.astype(BF16)
    if (Mp, Kb) != (M, K):
        a_p = jnp.pad(a_p, ((0, Mp - M), (0, Kb - K)))
    if bias is None:
        bias_p = jnp.zeros((1, Nb), jnp.float32)
    else:
        bias_p = bias.reshape(1, -1).astype(jnp.float32)
        if bias_p.shape[1] != Nb:
            bias_p = jnp.pad(bias_p, ((0, 0), (0, Nb - bias_p.shape[1])))
    args = [a_p, b.astype(BF16), bias_p]
    if residual is not None:
        r = residual
        if r.shape != (Mp, Nb):
            r = jnp.pad(r, ((0, Mp - r.shape[0]), (0, Nb - r.shape[1])))
        args.append(r)
    fn = _build_matmul(Mp, Kb, Nb, tm, tn, activation, residual is not None,
                       out_dtype)
    out = fn(*args)
    n_out = Nb if n_out is None else n_out
    return out[:M, :n_out]


# ----------------------------------------------------------------------------
# Pallas kernel 2: offset-decomposed "same" conv (3x3 / 3x3x3, stride 1, pad 1)
# + folded eval-mode BatchNorm + optional residual + ReLU.  No im2col.
# ----------------------------------------------------------------------------
def _conv_same_kernel(xlo_ref, xhi_ref, mask_ref, w_ref, b_ref, o_ref,
                      xfull_ref, *, C, Cout, deltas, halo, tm, residual):
    # Stage the 2*tm-row window (current tile + next tile) once in VMEM.
    xfull_ref[:tm, :] = xlo_ref[...]
    xfull_ref[tm:, :] = xhi_ref[...]
    mask = mask_ref[...]                                   # (tm, KK) bf16 0/1
    acc = None
    for o, d in enumerate(deltas):
        s = halo + d                                       # static, in [0, 2*halo]
        a = xfull_ref[s:s + tm, :] * mask[:, o:o + 1]      # masked row-shift
        t = jnp.dot(a, w_ref[o * C:(o + 1) * C, :],
                    preferred_element_type=jnp.float32)
        acc = t if acc is None else acc + t
    out = acc + b_ref[...]
    if residual:
        out = out + xfull_ref[halo:halo + tm, :].astype(jnp.float32)
    o_ref[...] = jnp.maximum(out, 0.0).astype(o_ref.dtype)


@functools.lru_cache(maxsize=None)
def _build_conv_same(nM, tm, cin, cout, deltas, halo, residual):
    KK = len(deltas)
    kernel = functools.partial(_conv_same_kernel, C=cin, Cout=cout,
                               deltas=deltas, halo=halo, tm=tm,
                               residual=residual)
    Mp = nM * tm
    est = (2 * KK * cin * cout * 2      # weight (allocated double-buffered)
           + 4 * tm * cin * 2           # two activation views, double-buffered
           + 2 * tm * KK * 2            # mask
           + 2 * tm * cout * 2          # output
           + 2 * tm * cin * 2           # scratch window
           + 8 * tm * cout)             # f32 accumulator temps
    limit = int(min(56 << 20, max(32 << 20, est + (12 << 20))))
    return pl.pallas_call(
        kernel,
        out_shape=jax.ShapeDtypeStruct((Mp, cout), BF16),
        grid_spec=pltpu.PrefetchScalarGridSpec(
            num_scalar_prefetch=0, grid=(nM,),
            in_specs=[pl.BlockSpec((tm, cin), lambda i: (i, 0)),
                      pl.BlockSpec((tm, cin), lambda i: (i + 1, 0)),
                      pl.BlockSpec((tm, KK), lambda i: (i, 0)),
                      pl.BlockSpec((KK * cin, cout), lambda i: (0, 0)),
                      pl.BlockSpec((1, cout), lambda i: (0, 0))],
            out_specs=pl.BlockSpec((tm, cout), lambda i: (i, 0)),
            scratch_shapes=[pltpu.VMEM((2 * tm, cin), BF16)]),
        compiler_params=pltpu.CompilerParams(
            dimension_semantics=("parallel",),
            vmem_limit_bytes=limit),
    )


@functools.partial(jax.jit, static_argnames=("cfg",))
def _conv_block_same(x, w, bias, *, cfg):
    """x: (N, *spatial, cin) channels-last; w: (KK*cin, cout) offset-major bf16
    (BN folded); bias: (1, cout) f32.  Output spatial == input spatial."""
    cin, cout, _k, residual = cfg
    spatial = tuple(int(s) for s in x.shape[1:-1])
    ndim = len(spatial)
    N = x.shape[0]
    M = N * int(np.prod(spatial))
    strides_sp = [int(np.prod(spatial[j + 1:], dtype=np.int64))
                  for j in range(ndim)]
    halo = int(sum(strides_sp))
    offsets = list(itertools.product(*([range(3)] * ndim)))
    deltas = tuple(int(sum((off[j] - 1) * strides_sp[j] for j in range(ndim)))
                   for off in offsets)
    tm_min = _rup(max(2 * halo, 16), 16)
    cap = 1024 if cin <= 128 else (512 if cin <= 256 else 256)
    tm = max(tm_min, min(_rup(M, 16), cap))
    if 2 * halo > tm or tm > 4096:
        raise NotImplementedError("conv_same tile cannot cover the halo")
    nM = -(-M // tm)
    Mp = nM * tm

    # Flattened activations with a zero halo: tile i sees rows
    # [i*tm - halo, (i+2)*tm - halo) of the original (M, cin) matrix.
    x2d = x.reshape(M, cin).astype(BF16)
    x_halo = jnp.pad(x2d, ((halo, (nM + 1) * tm - halo - M), (0, 0)))

    # Per-row, per-offset validity mask: reproduces the conv's zero padding and
    # stops shifts from crossing batch boundaries.
    m = jnp.arange(Mp, dtype=jnp.int32)
    coords = []
    rem = m
    for d in reversed(spatial):
        coords.append(rem % d)
        rem = rem // d
    coords = coords[::-1]
    cols = []
    for off in offsets:
        valid = None
        for j in range(ndim):
            c = coords[j] + (off[j] - 1)
            vj = (c >= 0) & (c < spatial[j])
            valid = vj if valid is None else valid & vj
        cols.append(valid)
    mask = jnp.stack(cols, axis=1).astype(BF16)           # (Mp, KK)

    fn = _build_conv_same(nM, tm, cin, cout, deltas, halo, residual)
    y = fn(x_halo, x_halo, mask, w, bias)
    return y[:M].reshape((N,) + spatial + (cout,))


# ----------------------------------------------------------------------------
# Pallas kernel 3: masked multi-head attention, gridded over (batch*heads),
# bf16 MXU operands, f32 softmax with EUP approximate reciprocal.
# ----------------------------------------------------------------------------
def _attn_kernel(q_ref, k_ref, v_ref, mask_ref, o_ref):
    q = q_ref[0]                                          # (Tq, hd) bf16, pre-scaled
    k = k_ref[0]
    v = v_ref[0]
    s = lax.dot_general(q, k, (((1,), (1,)), ((), ())),
                        preferred_element_type=jnp.float32)   # (Tq, Tk)
    s = s + mask_ref[...]
    m = jnp.max(s, axis=-1, keepdims=True)
    p = jnp.exp(s - m)
    p = p * pl.reciprocal(jnp.sum(p, axis=-1, keepdims=True), approx=True)
    o = jnp.dot(p.astype(v.dtype), v, preferred_element_type=jnp.float32)
    o_ref[0] = o.astype(o_ref.dtype)


@functools.lru_cache(maxsize=None)
def _build_attention(BH, Tq, Tk, hd):
    return pl.pallas_call(
        _attn_kernel,
        out_shape=jax.ShapeDtypeStruct((BH, Tq, hd), BF16),
        grid_spec=pltpu.PrefetchScalarGridSpec(
            num_scalar_prefetch=0, grid=(BH,),
            in_specs=[pl.BlockSpec((1, Tq, hd), lambda b: (b, 0, 0)),
                      pl.BlockSpec((1, Tk, hd), lambda b: (b, 0, 0)),
                      pl.BlockSpec((1, Tk, hd), lambda b: (b, 0, 0)),
                      pl.BlockSpec((Tq, Tk), lambda b: (0, 0))],
            out_specs=pl.BlockSpec((1, Tq, hd), lambda b: (b, 0, 0))),
        compiler_params=pltpu.CompilerParams(
            dimension_semantics=("parallel",),
            vmem_limit_bytes=32 * 1024 * 1024),
    )


# ----------------------------------------------------------------------------
# Pallas kernel 4: LayerNorm (eps=1e-5), gridded over row blocks.
# ----------------------------------------------------------------------------
def _ln_kernel(x_ref, g_ref, b_ref, o_ref):
    x = x_ref[...].astype(jnp.float32)
    mu = jnp.mean(x, axis=-1, keepdims=True)
    xc = x - mu
    var = jnp.mean(xc * xc, axis=-1, keepdims=True)
    o_ref[...] = (xc * lax.rsqrt(var + 1e-5) * g_ref[...]
                  + b_ref[...]).astype(o_ref.dtype)


@functools.lru_cache(maxsize=None)
def _build_layernorm(nR, bR, E, out_dtype):
    return pl.pallas_call(
        _ln_kernel,
        out_shape=jax.ShapeDtypeStruct((nR * bR, E), out_dtype),
        grid_spec=pltpu.PrefetchScalarGridSpec(
            num_scalar_prefetch=0, grid=(nR,),
            in_specs=[pl.BlockSpec((bR, E), lambda i: (i, 0)),
                      pl.BlockSpec((1, E), lambda i: (0, 0)),
                      pl.BlockSpec((1, E), lambda i: (0, 0))],
            out_specs=pl.BlockSpec((bR, E), lambda i: (i, 0))),
        compiler_params=pltpu.CompilerParams(
            dimension_semantics=("parallel",),
            vmem_limit_bytes=32 * 1024 * 1024),
    )


def pallas_layernorm(x2d, g, b, out_dtype=jnp.float32):
    R, E = x2d.shape
    bR = min(_rup(R, 8), 256)
    nR = -(-R // bR)
    Rp = nR * bR
    xp = jnp.pad(x2d, ((0, Rp - R), (0, 0))) if Rp != R else x2d
    y = _build_layernorm(nR, bR, E, out_dtype)(
        xp, g.reshape(1, E).astype(jnp.float32),
        b.reshape(1, E).astype(jnp.float32))
    return y[:R]


# ----------------------------------------------------------------------------
# Pallas kernel 5: max-pool over the time axis (F.max_pool1d with kernel = T)
# ----------------------------------------------------------------------------
def _maxpool_kernel(x_ref, o_ref):
    o_ref[...] = jnp.max(x_ref[...], axis=0, keepdims=True)


@functools.lru_cache(maxsize=None)
def _build_maxpool(T, C):
    return pl.pallas_call(
        _maxpool_kernel, out_shape=jax.ShapeDtypeStruct((1, C), jnp.float32))


# ----------------------------------------------------------------------------
# im2col fallback (strided / k=7 / k=5 / k=1 / odd-pad conv layers only)
# ----------------------------------------------------------------------------
def _im2col(x, ksize, strides, padding):
    nd = len(ksize)
    pads = [(0, 0)] + [(p, p) for p in padding] + [(0, 0)]
    xp = jnp.pad(x, pads)
    out_sp = tuple((x.shape[1 + i] + 2 * padding[i] - ksize[i]) // strides[i] + 1
                   for i in range(nd))
    cols = []
    for off in itertools.product(*[range(k) for k in ksize]):
        idx = (slice(None),) + tuple(
            slice(off[i], off[i] + (out_sp[i] - 1) * strides[i] + 1, strides[i])
            for i in range(nd)) + (slice(None),)
        cols.append(xp[idx])
    patches = jnp.stack(cols, axis=-1)            # (B, *out_sp, C, prod(k))
    return patches.reshape((x.shape[0],) + out_sp + (-1,)), out_sp


@functools.partial(jax.jit, static_argnames=("cfg",))
def _conv_block_im2col(x, w2d, bias, *, cfg):
    cin, cout, ksize, strides, padding = cfg
    patches, out_sp = _im2col(x.astype(BF16), ksize, strides, padding)
    A = patches.reshape(-1, cin * int(np.prod(ksize)))
    y = pallas_matmul(A, w2d, bias, activation="relu", out_dtype=BF16,
                      n_out=cout)
    return y.reshape((x.shape[0],) + out_sp + (cout,))


def run_prenet(prepared, cfgs, x):
    for pr, (cin, cout, k, s, pad, res) in zip(prepared, cfgs):
        if pr["kind"] == "same":
            x = _conv_block_same(x, pr["w"], pr["b"], cfg=(cin, cout, k, res))
        else:
            x = _conv_block_im2col(x, pr["w"], pr["b"],
                                   cfg=(cin, cout, k, s, pad))
    return x


# (cin, cout, kernel, stride, padding, residual)  -- mirrors SyncTransformer.__init__
VID_CFG = [
    (3,   32,  (7, 7, 7), (1, 1, 1), (3, 3, 3), False),
    (32,  64,  (5, 5, 5), (1, 2, 1), (1, 1, 2), False),
    (64,  64,  (3, 3, 3), (1, 1, 1), (1, 1, 1), True),
    (64,  64,  (3, 3, 3), (1, 1, 1), (1, 1, 1), True),
    (64,  128, (3, 3, 3), (2, 2, 1), (1, 1, 1), False),
    (128, 128, (3, 3, 3), (1, 1, 1), (1, 1, 1), True),
    (128, 128, (3, 3, 3), (1, 1, 1), (1, 1, 1), True),
    (128, 128, (3, 3, 3), (1, 1, 1), (1, 1, 1), True),
    (128, 256, (3, 3, 3), (2, 2, 1), (1, 1, 1), False),
    (256, 256, (3, 3, 3), (1, 1, 1), (1, 1, 1), True),
    (256, 256, (3, 3, 3), (1, 1, 1), (1, 1, 1), True),
    (256, 512, (3, 3, 3), (2, 2, 1), (1, 1, 1), False),
    (512, 512, (3, 3, 3), (1, 1, 1), (1, 1, 1), True),
    (512, 512, (3, 3, 3), (1, 1, 1), (1, 1, 1), True),
    (512, 512, (3, 3, 3), (2, 2, 1), (1, 1, 1), False),
    (512, 512, (3, 3, 3), (1, 1, 1), (0, 0, 1), False),
    (512, 512, (1, 1, 1), (1, 1, 1), (0, 0, 0), False),
]
AUD_CFG = [
    (1,   32,  (3, 3), (1, 1), (1, 1), False),
    (32,  32,  (3, 3), (1, 1), (1, 1), True),
    (32,  32,  (3, 3), (1, 1), (1, 1), True),
    (32,  64,  (3, 3), (3, 1), (1, 1), False),
    (64,  64,  (3, 3), (1, 1), (1, 1), True),
    (64,  64,  (3, 3), (1, 1), (1, 1), True),
    (64,  128, (3, 3), (3, 1), (1, 1), False),
    (128, 128, (3, 3), (1, 1), (1, 1), True),
    (128, 128, (3, 3), (1, 1), (1, 1), True),
    (128, 256, (3, 3), (3, 1), (1, 1), False),
    (256, 256, (3, 3), (1, 1), (1, 1), True),
    (256, 256, (3, 3), (1, 1), (1, 1), True),
    (256, 512, (3, 3), (1, 1), (0, 1), False),
    (512, 512, (1, 1), (1, 1), (0, 0), False),
]


def _is_same_conv(k, s, p):
    return all(kk == 3 for kk in k) and all(ss == 1 for ss in s) and \
        all(pp == 1 for pp in p)


# ----------------------------------------------------------------------------
# MulT-style TransformerEncoder (as used by vocalist): pre-norm layers,
# sqrt(d) embed scaling, sinusoidal positions, future mask, final layernorm.
# Key and value streams are always the same tensor -> merged K|V projection.
# ----------------------------------------------------------------------------
@functools.lru_cache(maxsize=None)
def _sin_positions(T, E):
    half = E // 2
    freq = np.exp(np.arange(half) * (-math.log(10000.0) / (half - 1)))
    ang = np.arange(1, T + 1)[:, None] * freq[None, :]   # positions 1..T (padding_idx=0)
    return jnp.asarray(np.concatenate([np.sin(ang), np.cos(ang)], axis=1)
                       .astype(np.float32))


@functools.lru_cache(maxsize=None)
def _future_mask(tq, tk):
    i = np.arange(tq)[:, None]
    j = np.arange(tk)[None, :]
    return jnp.asarray(np.where(j >= i + 1 + abs(tk - tq), -1e9, 0.0)
                       .astype(np.float32))


@functools.partial(jax.jit, static_argnames=("num_heads",))
def _encoder_layer(lp, x, xkv, *, num_heads=NUM_HEADS):
    """One pre-norm MulT encoder layer (eval mode: dropouts are identity)."""
    Tq, B, E = x.shape
    Tk = xkv.shape[0]
    hd = E // num_heads
    x2d = x.reshape(Tq * B, E)
    kv2d = xkv.reshape(Tk * B, E)

    # ln0 applies to q / k / v inputs with the same params -> one fused call
    n = pallas_layernorm(jnp.concatenate([x2d, kv2d], axis=0),
                         lp["ln0_g"], lp["ln0_b"], out_dtype=BF16)
    xn, kvn = n[:Tq * B], n[Tq * B:]

    q = pallas_matmul(xn, lp["q_w"], lp["q_b"], out_dtype=BF16)   # 1/sqrt(hd) folded
    kv = pallas_matmul(kvn, lp["kv_w"], lp["kv_b"], out_dtype=BF16)
    k, v = kv[:, :E], kv[:, E:]

    qh = q.reshape(Tq, B * num_heads, hd).transpose(1, 0, 2)
    kh = k.reshape(Tk, B * num_heads, hd).transpose(1, 0, 2)
    vh = v.reshape(Tk, B * num_heads, hd).transpose(1, 0, 2)
    o = _build_attention(B * num_heads, Tq, Tk, hd)(qh, kh, vh,
                                                    _future_mask(Tq, Tk))
    o2d = o.transpose(1, 0, 2).reshape(Tq * B, E)

    x2d = pallas_matmul(o2d, lp["o_w"], lp["o_b"], residual=x2d)  # residual fused
    h = pallas_layernorm(x2d, lp["ln1_g"], lp["ln1_b"], out_dtype=BF16)
    h = pallas_matmul(h, lp["w1"], lp["b1"], activation="relu", out_dtype=BF16)
    x2d = pallas_matmul(h, lp["w2"], lp["b2"], residual=x2d)      # residual fused
    return x2d.reshape(Tq, B, E)


def transformer_encoder(tp, x_in, xkv_in):
    Tq, B, E = x_in.shape
    Tk = xkv_in.shape[0]
    scale = math.sqrt(E)
    x = scale * x_in.astype(jnp.float32) + _sin_positions(Tq, E)[:, None, :]
    xkv = scale * xkv_in.astype(jnp.float32) + _sin_positions(Tk, E)[:, None, :]
    for lp in tp["layers"]:
        x = _encoder_layer(lp, x, xkv)
    return pallas_layernorm(x.reshape(-1, E), tp["ln_g"], tp["ln_b"]).reshape(Tq, B, E)


# ----------------------------------------------------------------------------
# Full SyncTransformer forward
# ----------------------------------------------------------------------------
def sync_transformer_forward(prepared, frame_seq, mel_seq, pool=False):
    B = frame_seq.shape[0]

    # --- audio prenet ---
    a = jnp.transpose(mel_seq, (0, 2, 3, 1))                      # (B,80,Ta,1) NHWC
    a = run_prenet(prepared["aud"], AUD_CFG, a)                   # (B,1,Ta,512)
    aud_embedding = jnp.transpose(a[:, 0].astype(jnp.float32), (1, 0, 2))  # (Ta,B,512)

    # --- video prenet: all 4 speakers in ONE batched pass (shared weights) ---
    # Deterministic stand-in for the np.random.choice speaker shuffle.
    index = np.random.RandomState(0).permutation(4)
    Tv = frame_seq.shape[2] // 3
    sf = frame_seq[:, index]                                      # (B,4,3Tv,48,96)
    sf = sf.reshape(B * 4, Tv, 3, 48, 96)                         # .view(B,-1,3,48,96)
    sf = jnp.transpose(sf, (0, 3, 4, 1, 2))                       # (4B,48,96,Tv,3) NDHWC
    v = run_prenet(prepared["vid"], VID_CFG, sf)[:, 0, 0]         # (4B,Tv,512)
    v = jnp.transpose(v.astype(jnp.float32).reshape(B, 4, Tv, D_MODEL),
                      (1, 2, 0, 3))                               # (4,Tv,B,512)
    if pool:
        vid_embedding = jnp.mean(v, axis=0)                       # (Tv,B,512)
    else:
        vid_embedding = v.reshape(4 * Tv, B, D_MODEL)             # cat over speakers

    # --- cross-modal transformers (key input == value input) ---
    av = transformer_encoder(prepared["av"], aud_embedding, vid_embedding)
    va = transformer_encoder(prepared["va"], vid_embedding, aud_embedding)
    mem = transformer_encoder(prepared["mem"], av, va)

    # --- temporal max pool + heads ---
    T, Bq, E = mem.shape
    pooled = _build_maxpool(T, Bq * E)(mem.reshape(T, Bq * E)).reshape(Bq, E)
    h = pallas_matmul(pooled, prepared["fc_w"], prepared["fc_b"], activation="tanh")
    logits = pallas_matmul(h, prepared["cls_w"], prepared["cls_b"], n_out=4)
    return logits                    # (B, 4); .squeeze(-1) is a no-op


# ----------------------------------------------------------------------------
# Deterministic parameter init (shapes follow the PyTorch module) + one-time
# prep: fold eval-mode BN, transpose / merge / pad / cast all static weights.
# ----------------------------------------------------------------------------
def _conv_params(key, cfgs):
    ps = []
    for (cin, cout, k, s, p, r) in cfgs:
        key, kw, kb, kg, kbeta = jax.random.split(key, 5)
        fan_in = cin * int(np.prod(k))
        ps.append(dict(
            w=jax.random.normal(kw, (cout, cin) + k, jnp.float32) * (2.0 / fan_in) ** 0.5,
            b=0.01 * jax.random.normal(kb, (cout,), jnp.float32),
            gamma=1.0 + 0.05 * jax.random.normal(kg, (cout,), jnp.float32),
            beta=0.05 * jax.random.normal(kbeta, (cout,), jnp.float32),
            mean=jnp.zeros((cout,), jnp.float32),
            var=jnp.ones((cout,), jnp.float32)))
    return key, ps


def _linear(key, out_dim, in_dim):
    key, kw = jax.random.split(key)
    w = jax.random.normal(kw, (out_dim, in_dim), jnp.float32) * (in_dim ** -0.5)
    return key, w, jnp.zeros((out_dim,), jnp.float32)


def _transformer_params(key, E=D_MODEL, n_layers=4):
    layers = []
    for _ in range(n_layers):
        lp = {}
        for name, (o, i) in [('Wq', (E, E)), ('Wk', (E, E)), ('Wv', (E, E)),
                             ('Wo', (E, E)), ('W1', (4 * E, E)), ('W2', (E, 4 * E))]:
            key, w, b = _linear(key, o, i)
            lp[name] = w
            lp['b' + name[1:].lower()] = b
        lp.update(ln0_g=jnp.ones((E,), jnp.float32), ln0_b=jnp.zeros((E,), jnp.float32),
                  ln1_g=jnp.ones((E,), jnp.float32), ln1_b=jnp.zeros((E,), jnp.float32))
        layers.append(lp)
    return key, dict(layers=layers,
                     ln_g=jnp.ones((E,), jnp.float32), ln_b=jnp.zeros((E,), jnp.float32))


def init_sync_transformer_params(key, d_model=D_MODEL):
    key, vid = _conv_params(key, VID_CFG)
    key, aud = _conv_params(key, AUD_CFG)
    key, av = _transformer_params(key, d_model)
    key, va = _transformer_params(key, d_model)
    key, mem = _transformer_params(key, d_model)
    key, fc_w, fc_b = _linear(key, d_model, d_model)
    key, cls_w, cls_b = _linear(key, 4, d_model)
    return dict(vid=vid, aud=aud, av=av, va=va, mem=mem,
                fc_w=fc_w, fc_b=fc_b, cls_w=cls_w, cls_b=cls_b)


def _pad_linear(w_t, b):
    """Pre-transpose / pre-pad a linear weight to 128-aligned (Kb, Nb) bf16."""
    K, N = w_t.shape
    Kb, Nb = _rup(K, 128), _rup(N, 128)
    w_p = jnp.pad(w_t, ((0, Kb - K), (0, Nb - N))).astype(BF16)
    b_p = jnp.pad(b.reshape(1, N).astype(jnp.float32), ((0, 0), (0, Nb - N)))
    return w_p, b_p


def prepare_params(params, num_heads=NUM_HEADS, d_model=D_MODEL):
    def prep_conv(ps, cfgs):
        out = []
        for p, (cin, cout, k, s, pad, r) in zip(ps, cfgs):
            scale = p["gamma"] / jnp.sqrt(p["var"] + 1e-5)          # fold eval-mode BN
            bias = ((p["b"] - p["mean"]) * scale + p["beta"]).astype(jnp.float32)
            if _is_same_conv(k, s, pad):
                ndim = len(k)
                # (cout, cin, *k) -> (*k, cin, cout) -> (KK*cin, cout), offset-major
                perm = tuple(range(2, 2 + ndim)) + (1, 0)
                w = (jnp.transpose(p["w"], perm).reshape(-1, cout)
                     * scale[None, :]).astype(BF16)
                out.append(dict(kind="same", w=w, b=bias.reshape(1, cout)))
            else:
                K = cin * int(np.prod(k))
                w2d = p["w"].reshape(cout, -1).T * scale[None, :]
                w_p, b_p = _pad_linear(w2d, bias)
                out.append(dict(kind="im2col", w=w_p, b=b_p))
        return out

    def prep_tr(tp):
        hs = (d_model // num_heads) ** -0.5
        layers = []
        for lp in tp["layers"]:
            q_w, q_b = _pad_linear(lp["Wq"].T * hs, lp["bq"] * hs)
            kv_w, kv_b = _pad_linear(
                jnp.concatenate([lp["Wk"].T, lp["Wv"].T], axis=1),
                jnp.concatenate([lp["bk"], lp["bv"]]))
            o_w, o_b = _pad_linear(lp["Wo"].T, lp["bo"])
            w1, b1 = _pad_linear(lp["W1"].T, lp["b1"])
            w2, b2 = _pad_linear(lp["W2"].T, lp["b2"])
            layers.append(dict(
                q_w=q_w, q_b=q_b, kv_w=kv_w, kv_b=kv_b, o_w=o_w, o_b=o_b,
                w1=w1, b1=b1, w2=w2, b2=b2,
                ln0_g=lp["ln0_g"], ln0_b=lp["ln0_b"],
                ln1_g=lp["ln1_g"], ln1_b=lp["ln1_b"]))
        return dict(layers=layers, ln_g=tp["ln_g"], ln_b=tp["ln_b"])

    fc_w, fc_b = _pad_linear(params["fc_w"].T, params["fc_b"])
    cls_w, cls_b = _pad_linear(params["cls_w"].T, params["cls_b"])
    return dict(
        vid=prep_conv(params["vid"], VID_CFG),
        aud=prep_conv(params["aud"], AUD_CFG),
        av=prep_tr(params["av"]), va=prep_tr(params["va"]), mem=prep_tr(params["mem"]),
        fc_w=fc_w, fc_b=fc_b, cls_w=cls_w, cls_b=cls_b)


if __name__ == "__main__":
    key = jax.random.PRNGKey(0)
    params = init_sync_transformer_params(key)
    prepared = prepare_params(params)

    # Shapes dictated by the module: frames are 3x48x96 (view hardcodes 48,96),
    # mel height 80 collapses to 1 through the audio prenet strides.  Small
    # temporal extents keep the run fast.
    B, Tv, Ta, H_MEL = 1, 2, 8, 80
    kf, km = jax.random.split(jax.random.PRNGKey(0), 2)
    frame_seq = jax.random.normal(kf, (B, 4, 3 * Tv, 48, 96), jnp.float32)
    mel_seq = jax.random.normal(km, (B, 1, H_MEL, Ta), jnp.float32)

    logits = sync_transformer_forward(prepared, frame_seq, mel_seq, pool=False)
    logits = jax.block_until_ready(logits)
    assert logits.shape == (B, 4) and bool(jnp.all(jnp.isfinite(logits)))
    print("KERNEL_OK")
</pallas_src>

<mosaic_0001>
module attributes {stable_mosaic.version = 11 : i64} {
  func.func @_conv_same_kernel(%arg0: i32, %arg1: memref<640x1xbf16, #tpu.memory_space<vmem>>, %arg2: memref<640x1xbf16, #tpu.memory_space<vmem>>, %arg3: memref<640x9xbf16, #tpu.memory_space<vmem>>, %arg4: memref<9x32xbf16, #tpu.memory_space<vmem>>, %arg5: memref<1x32xf32, #tpu.memory_space<vmem>>, %arg6: memref<640x32xbf16, #tpu.memory_space<vmem>>, %arg7: memref<1280x1xbf16, #tpu.memory_space<vmem>>) attributes {dimension_semantics = [#tpu.dimension_semantics<parallel>], iteration_bounds = array<i64: 1>, scalar_prefetch = 0 : i64, scratch_operands = 1 : i64, tpu.core_type = #tpu.core_type<tc>, window_params = [{transform_indices = @transform_0, window_bounds = array<i64: 640, 1>}, {transform_indices = @transform_1, window_bounds = array<i64: 640, 1>}, {transform_indices = @transform_2, window_bounds = array<i64: 640, 9>}, {pipeline_mode = #tpu.pipeline_mode<synchronous>, transform_indices = @transform_3, window_bounds = array<i64: 9, 32>}, {pipeline_mode = #tpu.pipeline_mode<synchronous>, transform_indices = @transform_4, window_bounds = array<i64: 1, 32>}, {transform_indices = @transform_5, window_bounds = array<i64: 640, 32>}]} {
    %c0 = arith.constant 0 : index
    %c0_0 = arith.constant 0 : index
    %0 = vector.load %arg1[%c0, %c0_0] : memref<640x1xbf16, #tpu.memory_space<vmem>>, vector<640x1xbf16>
    %c0_1 = arith.constant 0 : index
    %c0_2 = arith.constant 0 : index
    %1 = vector.load %arg7[%c0_1, %c0_2] : memref<1280x1xbf16, #tpu.memory_space<vmem>>, vector<640x1xbf16>
    tpu.vector_store %arg7[%c0_1, %c0_2], %0 {strides = array<i32>} : memref<1280x1xbf16, #tpu.memory_space<vmem>>, vector<640x1xbf16>,
    %c0_3 = arith.constant 0 : index
    %c0_4 = arith.constant 0 : index
    %2 = vector.load %arg2[%c0_3, %c0_4] : memref<640x1xbf16, #tpu.memory_space<vmem>>, vector<640x1xbf16>
    %c640 = arith.constant 640 : index
    %c0_5 = arith.constant 0 : index
    %3 = vector.load %arg7[%c640, %c0_5] : memref<1280x1xbf16, #tpu.memory_space<vmem>>, vector<640x1xbf16>
    tpu.vector_store %arg7[%c640, %c0_5], %2 {strides = array<i32>} : memref<1280x1xbf16, #tpu.memory_space<vmem>>, vector<640x1xbf16>,
    %c0_6 = arith.constant 0 : index
    %c0_7 = arith.constant 0 : index
    %4 = vector.load %arg3[%c0_6, %c0_7] : memref<640x9xbf16, #tpu.memory_space<vmem>>, vector<640x9xbf16>
    %c0_8 = arith.constant 0 : index
    %c0_9 = arith.constant 0 : index
    %5 = vector.load %arg7[%c0_8, %c0_9] : memref<1280x1xbf16, #tpu.memory_space<vmem>>, vector<640x1xbf16>
    %6 = vector.extract_strided_slice %4 {offsets = [0, 0], sizes = [640, 1], strides = [1, 1]} : vector<640x9xbf16> to vector<640x1xbf16>
    %7 = arith.mulf %5, %6 : vector<640x1xbf16>
    %c0_10 = arith.constant 0 : index
    %c0_11 = arith.constant 0 : index
    %8 = vector.load %arg4[%c0_10, %c0_11] : memref<9x32xbf16, #tpu.memory_space<vmem>>, vector<1x32xbf16>
    %cst = arith.constant dense<0.000000e+00> : vector<640x32xf32>
    %9 = tpu.matmul %7, %8, %cst {dimension_numbers = #tpu.dot_dimension_numbers<[1], [0], [0], [1], [0, 0, 1, 1], [], []>} : vector<640x1xbf16>, vector<1x32xbf16>, vector<640x32xf32> -> vector<640x32xf32>
    %c1 = arith.constant 1 : index
    %c0_12 = arith.constant 0 : index
    %10 = vector.load %arg7[%c1, %c0_12] : memref<1280x1xbf16, #tpu.memory_space<vmem>>, vector<640x1xbf16>
    %11 = vector.extract_strided_slice %4 {offsets = [0, 1], sizes = [640, 1], strides = [1, 1]} : vector<640x9xbf16> to vector<640x1xbf16>
    %12 = arith.mulf %10, %11 : vector<640x1xbf16>
    %c1_13 = arith.constant 1 : index
    %c0_14 = arith.constant 0 : index
    %13 = vector.load %arg4[%c1_13, %c0_14] : memref<9x32xbf16, #tpu.memory_space<vmem>>, vector<1x32xbf16>
    %cst_15 = arith.constant dense<0.000000e+00> : vector<640x32xf32>
    %14 = tpu.matmul %12, %13, %cst_15 {dimension_numbers = #tpu.dot_dimension_numbers<[1], [0], [0], [1], [0, 0, 1, 1], [], []>} : vector<640x1xbf16>, vector<1x32xbf16>, vector<640x32xf32> -> vector<640x32xf32>
    %15 = arith.addf %9, %14 : vector<640x32xf32>
    %c2 = arith.constant 2 : index
    %c0_16 = arith.constant 0 : index
    %16 = vector.load %arg7[%c2, %c0_16] : memref<1280x1xbf16, #tpu.memory_space<vmem>>, vector<640x1xbf16>
    %17 = vector.extract_strided_slice %4 {offsets = [0, 2], sizes = [640, 1], strides = [1, 1]} : vector<640x9xbf16> to vector<640x1xbf16>
    %18 = arith.mulf %16, %17 : vector<640x1xbf16>
    %c2_17 = arith.constant 2 : index
    %c0_18 = arith.constant 0 : index
    %19 = vector.load %arg4[%c2_17, %c0_18] : memref<9x32xbf16, #tpu.memory_space<vmem>>, vector<1x32xbf16>
    %cst_19 = arith.constant dense<0.000000e+00> : vector<640x32xf32>
    %20 = tpu.matmul %18, %19, %cst_19 {dimension_numbers = #tpu.dot_dimension_numbers<[1], [0], [0], [1], [0, 0, 1, 1], [], []>} : vector<640x1xbf16>, vector<1x32xbf16>, vector<640x32xf32> -> vector<640x32xf32>
    %21 = arith.addf %15, %20 : vector<640x32xf32>
    %c8 = arith.constant 8 : index
    %c0_20 = arith.constant 0 : index
    %22 = vector.load %arg7[%c8, %c0_20] : memref<1280x1xbf16, #tpu.memory_space<vmem>>, vector<640x1xbf16>
    %23 = vector.extract_strided_slice %4 {offsets = [0, 3], sizes = [640, 1], strides = [1, 1]} : vector<640x9xbf16> to vector<640x1xbf16>
    %24 = arith.mulf %22, %23 : vector<640x1xbf16>
    %c3 = arith.constant 3 : index
    %c0_21 = arith.constant 0 : index
    %25 = vector.load %arg4[%c3, %c0_21] : memref<9x32xbf16, #tpu.memory_space<vmem>>, vector<1x32xbf16>
    %cst_22 = arith.constant dense<0.000000e+00> : vector<640x32xf32>
    %26 = tpu.matmul %24, %25, %cst_22 {dimension_numbers = #tpu.dot_dimension_numbers<[1], [0], [0], [1], [0, 0, 1, 1], [], []>} : vector<640x1xbf16>, vector<1x32xbf16>, vector<640x32xf32> -> vector<640x32xf32>
    %27 = arith.addf %21, %26 : vector<640x32xf32>
    %c9 = arith.constant 9 : index
    %c0_23 = arith.constant 0 : index
    %28 = vector.load %arg7[%c9, %c0_23] : memref<1280x1xbf16, #tpu.memory_space<vmem>>, vector<640x1xbf16>
    %29 = vector.extract_strided_slice %4 {offsets = [0, 4], sizes = [640, 1], strides = [1, 1]} : vector<640x9xbf16> to vector<640x1xbf16>
    %30 = arith.mulf %28, %29 : vector<640x1xbf16>
    %c4 = arith.constant 4 : index
    %c0_24 = arith.constant 0 : index
    %31 = vector.load %arg4[%c4, %c0_24] : memref<9x32xbf16, #tpu.memory_space<vmem>>, vector<1x32xbf16>
    %cst_25 = arith.constant dense<0.000000e+00> : vector<640x32xf32>
    %32 = tpu.matmul %30, %31, %cst_25 {dimension_numbers = #tpu.dot_dimension_numbers<[1], [0], [0], [1], [0, 0, 1, 1], [], []>} : vector<640x1xbf16>, vector<1x32xbf16>, vector<640x32xf32> -> vector<640x32xf32>
    %33 = arith.addf %27, %32 : vector<640x32xf32>
    %c10 = arith.constant 10 : index
    %c0_26 = arith.constant 0 : index
    %34 = vector.load %arg7[%c10, %c0_26] : memref<1280x1xbf16, #tpu.memory_space<vmem>>, vector<640x1xbf16>
    %35 = vector.extract_strided_slice %4 {offsets = [0, 5], sizes = [640, 1], strides = [1, 1]} : vector<640x9xbf16> to vector<640x1xbf16>
    %36 = arith.mulf %34, %35 : vector<640x1xbf16>
    %c5 = arith.constant 5 : index
    %c0_27 = arith.constant 0 : index
    %37 = vector.load %arg4[%c5, %c0_27] : memref<9x32xbf16, #tpu.memory_space<vmem>>, vector<1x32xbf16>
    %cst_28 = arith.constant dense<0.000000e+00> : vector<640x32xf32>
    %38 = tpu.matmul %36, %37, %cst_28 {dimension_numbers = #tpu.dot_dimension_numbers<[1], [0], [0], [1], [0, 0, 1, 1], [], []>} : vector<640x1xbf16>, vector<1x32xbf16>, vector<640x32xf32> -> vector<640x32xf32>
    %39 = arith.addf %33, %38 : vector<640x32xf32>
    %c16 = arith.constant 16 : index
    %c0_29 = arith.constant 0 : index
    %40 = vector.load %arg7[%c16, %c0_29] : memref<1280x1xbf16, #tpu.memory_space<vmem>>, vector<640x1xbf16>
    %41 = vector.extract_strided_slice %4 {offsets = [0, 6], sizes = [640, 1], strides = [1, 1]} : vector<640x9xbf16> to vector<640x1xbf16>
    %42 = arith.mulf %40, %41 : vector<640x1xbf16>
    %c6 = arith.constant 6 : index
    %c0_30 = arith.constant 0 : index
    %43 = vector.load %arg4[%c6, %c0_30] : memref<9x32xbf16, #tpu.memory_space<vmem>>, vector<1x32xbf16>
    %cst_31 = arith.constant dense<0.000000e+00> : vector<640x32xf32>
    %44 = tpu.matmul %42, %43, %cst_31 {dimension_numbers = #tpu.dot_dimension_numbers<[1], [0], [0], [1], [0, 0, 1, 1], [], []>} : vector<640x1xbf16>, vector<1x32xbf16>, vector<640x32xf32> -> vector<640x32xf32>
    %45 = arith.addf %39, %44 : vector<640x32xf32>
    %c17 = arith.constant 17 : index
    %c0_32 = arith.constant 0 : index
    %46 = vector.load %arg7[%c17, %c0_32] : memref<1280x1xbf16, #tpu.memory_space<vmem>>, vector<640x1xbf16>
    %47 = vector.extract_strided_slice %4 {offsets = [0, 7], sizes = [640, 1], strides = [1, 1]} : vector<640x9xbf16> to vector<640x1xbf16>
    %48 = arith.mulf %46, %47 : vector<640x1xbf16>
    %c7 = arith.constant 7 : index
    %c0_33 = arith.constant 0 : index
    %49 = vector.load %arg4[%c7, %c0_33] : memref<9x32xbf16, #tpu.memory_space<vmem>>, vector<1x32xbf16>
    %cst_34 = arith.constant dense<0.000000e+00> : vector<640x32xf32>
    %50 = tpu.matmul %48, %49, %cst_34 {dimension_numbers = #tpu.dot_dimension_numbers<[1], [0], [0], [1], [0, 0, 1, 1], [], []>} : vector<640x1xbf16>, vector<1x32xbf16>, vector<640x32xf32> -> vector<640x32xf32>
    %51 = arith.addf %45, %50 : vector<640x32xf32>
    %c18 = arith.constant 18 : index
    %c0_35 = arith.constant 0 : index
    %52 = vector.load %arg7[%c18, %c0_35] : memref<1280x1xbf16, #tpu.memory_space<vmem>>, vector<640x1xbf16>
    %53 = vector.extract_strided_slice %4 {offsets = [0, 8], sizes = [640, 1], strides = [1, 1]} : vector<640x9xbf16> to vector<640x1xbf16>
    %54 = arith.mulf %52, %53 : vector<640x1xbf16>
    %c8_36 = arith.constant 8 : index
    %c0_37 = arith.constant 0 : index
    %55 = vector.load %arg4[%c8_36, %c0_37] : memref<9x32xbf16, #tpu.memory_space<vmem>>, vector<1x32xbf16>
    %cst_38 = arith.constant dense<0.000000e+00> : vector<640x32xf32>
    %56 = tpu.matmul %54, %55, %cst_38 {dimension_numbers = #tpu.dot_dimension_numbers<[1], [0], [0], [1], [0, 0, 1, 1], [], []>} : vector<640x1xbf16>, vector<1x32xbf16>, vector<640x32xf32> -> vector<640x32xf32>
    %57 = arith.addf %51, %56 : vector<640x32xf32>
    %c0_39 = arith.constant 0 : index
    %c0_40 = arith.constant 0 : index
    %58 = vector.load %arg5[%c0_39, %c0_40] : memref<1x32xf32, #tpu.memory_space<vmem>>, vector<1x32xf32>
    %59 = vector.broadcast %58 : vector<1x32xf32> to vector<640x32xf32>
    %60 = arith.addf %57, %59 : vector<640x32xf32>
    %cst_41 = arith.constant 0.000000e+00 : f32
    %61 = vector.broadcast %cst_41 : f32 to vector<640x32xf32>
    %62 = arith.maximumf %60, %61 : vector<640x32xf32>
    %63 = arith.truncf %62 : vector<640x32xf32> to vector<640x32xbf16>
    %c0_42 = arith.constant 0 : index
    %c0_43 = arith.constant 0 : index
    %64 = vector.load %arg6[%c0_42, %c0_43] : memref<640x32xbf16, #tpu.memory_space<vmem>>, vector<640x32xbf16>
    tpu.vector_store %arg6[%c0_42, %c0_43], %63 {strides = array<i32>} : memref<640x32xbf16, #tpu.memory_space<vmem>>, vector<640x32xbf16>,
    return
  }
  func.func @transform_0(%arg0: i32) -> (i32, i32) {
    %c0_i32 = arith.constant 0 : i32
    %c0_i32_0 = arith.constant 0 : i32
    return %arg0, %c0_i32 : i32, i32
  }
  func.func @transform_1(%arg0: i32) -> (i32, i32) {
    %c1_i32 = arith.constant 1 : i32
    %0 = arith.addi %arg0, %c1_i32 : i32
    %c0_i32 = arith.constant 0 : i32
    %c0_i32_0 = arith.constant 0 : i32
    return %0, %c0_i32 : i32, i32
  }
  func.func @transform_2(%arg0: i32) -> (i32, i32) {
    %c0_i32 = arith.constant 0 : i32
    %c0_i32_0 = arith.constant 0 : i32
    return %arg0, %c0_i32 : i32, i32
  }
  func.func @transform_3(%arg0: i32) -> (i32, i32) {
    %c0_i32 = arith.constant 0 : i32
    %c0_i32_0 = arith.constant 0 : i32
    %c0_i32_1 = arith.constant 0 : i32
    return %c0_i32, %c0_i32_0 : i32, i32
  }
  func.func @transform_4(%arg0: i32) -> (i32, i32) {
    %c0_i32 = arith.constant 0 : i32
    %c0_i32_0 = arith.constant 0 : i32
    %c0_i32_1 = arith.constant 0 : i32
    return %c0_i32, %c0_i32_0 : i32, i32
  }
  func.func @transform_5(%arg0: i32) -> (i32, i32) {
    %c0_i32 = arith.constant 0 : i32
    %c0_i32_0 = arith.constant 0 : i32
    return %arg0, %c0_i32 : i32, i32
  }
}

</mosaic_0001>

<llo_original>
// kernel: _conv_block_same.1
$region0: #{_conv_block_same.1}
  #allocation0 [shape = 'u32[]', space=smem, size = 0x4, offset = 0x4, fixed_abs, tag = 'smem constant byte address 0x4 - core index']
  #allocation1 [shape = 'u32[144,128]{1,0:T(1,128)}', space=vmem, size = 0x12000, scoped, tag = 'internal scratch']
  #allocation2 [shape = 'bf16[1280,1]{1,0:T(16,128)(2,1)}', space=vmem, size = 0x50000, scoped, tag = 'scratch operand']
  %s0 = inlined_call_operand.vmem [shape: bf16[1280,1], index: 0, kind: input, shape index: {}, may-alias: {0,1}]
  %s1 = inlined_call_operand.vmem [shape: bf16[1280,1], index: 1, kind: input, shape index: {}, may-alias: {0,1}]
  %s2 = inlined_call_operand.vmem [shape: bf16[640,9], index: 2, kind: input, shape index: {}]
  %s3 = inlined_call_operand.vmem [shape: bf16[9,32], index: 3, kind: input, shape index: {}]
  %s4 = inlined_call_operand.vmem [shape: f32[1,32], index: 4, kind: input, shape index: {}]
  %s5 = inlined_call_operand.vmem [shape: bf16[640,32], index: 5, kind: output, shape index: {}]
  %s6 = sld [smem:[#allocation0]]
  $region30: #{_conv_block_same.1} parent=0
    _
  %s8 = ssub.s32 1, %s6
  %s9 = scalar_select 0, %s8, %s6
  // Predicated region
  $region2: #{_conv_block_same.1} parent=0 // pred_check
    _
  $region3: #{_conv_block_same.1} parent=0 // pred_check_branch
    %11 = sbr.rel (0) target = $region5
  $region4: #{_conv_block_same.1} parent=0 // pred_region
    _
  $region5: #{_conv_block_same.1} parent=0 // pred_fallthru
    _
  // Predicated region
  $region6: #{_conv_block_same.1} parent=0 // pred_check
    _
  $region7: #{_conv_block_same.1} parent=0 // pred_check_branch
    %13 = sbr.rel (0) target = $region9
  $region8: #{_conv_block_same.1} parent=0 // pred_region
    %s14 = sadd.s32 0, 1
    %s15 = smul.u32 80, %s14
    %p16 = scmp.lt.s32.totalorder %s15, 159
    %s17 = scalar_select %p16, %s15, 159
    %s18 = smul.addr %s17, 4
    %s19 = scalar_lea.vmem %s1, %s18
    %s20 = sadd.s32 0, 1
    %s21 = smul.u32 80, %s20
  $region9: #{_conv_block_same.1} parent=0 // pred_fallthru
    _
  // Predicated region
  $region10: #{_conv_block_same.1} parent=0 // pred_check
    _
  $region11: #{_conv_block_same.1} parent=0 // pred_check_branch
    %23 = sbr.rel (0) target = $region13
  $region12: #{_conv_block_same.1} parent=0 // pred_region
    _
  $region13: #{_conv_block_same.1} parent=0 // pred_fallthru
    _
  // Predicated region
  $region14: #{_conv_block_same.1} parent=0 // pred_check
    _
  $region15: #{_conv_block_same.1} parent=0 // pred_check_branch
    %25 = sbr.rel (0) target = $region17
  $region16: #{_conv_block_same.1} parent=0 // pred_region
    _
  $region17: #{_conv_block_same.1} parent=0 // pred_fallthru
    _
  // Predicated region
  $region18: #{_conv_block_same.1} parent=0 // pred_check
    _
  $region19: #{_conv_block_same.1} parent=0 // pred_check_branch
    %27 = sbr.rel (0) target = $region21
  $region20: #{_conv_block_same.1} parent=0 // pred_region
    _
  $region21: #{_conv_block_same.1} parent=0 // pred_fallthru
    _
  %s28 = sadd.s32 0, 1
  %s29 = smul.u32 80, %s28
  %p30 = scmp.lt.s32.totalorder %s29, 159
  %s31 = scalar_select %p30, %s29, 159
  %s32 = smul.addr %s31, 4
  %s33 = scalar_lea.vmem %s1, %s32
  %s34 = sadd.s32 0, 1
  %s35 = smul.u32 80, %s34
  %p36 = scmp.lt.s32.totalorder %s35, 159
  %s37 = scalar_select %p36, %s35, 159
  %s38 = smul.addr %s37, 4
  %s39 = scalar_lea.vmem %s1, %s38
  %s40 = sadd.s32 0, 1
  %s41 = smul.u32 80, %s40
  %v43 = vld [vmem:[%s0] sm:$0xf]
  %v44 = vld [vmem:[%s0 + $0x4] sm:$0xf]
  %v45 = vld [vmem:[%s0 + $0x8] sm:$0xf]
  %v46 = vld [vmem:[%s0 + $0xc] sm:$0xf]
  %v47 = vld [vmem:[%s0 + $0x10] sm:$0xf]
  %v48 = vld [vmem:[%s0 + $0x14] sm:$0xf]
  %v49 = vld [vmem:[%s0 + $0x18] sm:$0xf]
  %v50 = vld [vmem:[%s0 + $0x1c] sm:$0xf]
  %v51 = vld [vmem:[%s0 + $0x20] sm:$0xf]
  %v52 = vld [vmem:[%s0 + $0x24] sm:$0xf]
  %v53 = vld [vmem:[%s0 + $0x28] sm:$0xf]
  %v54 = vld [vmem:[%s0 + $0x2c] sm:$0xf]
  %v55 = vld [vmem:[%s0 + $0x30] sm:$0xf]
  %v56 = vld [vmem:[%s0 + $0x34] sm:$0xf]
  %v57 = vld [vmem:[%s0 + $0x38] sm:$0xf]
  %v58 = vld [vmem:[%s0 + $0x3c] sm:$0xf]
  %v59 = vld [vmem:[%s0 + $0x40] sm:$0xf]
  %v60 = vld [vmem:[%s0 + $0x44] sm:$0xf]
  %v61 = vld [vmem:[%s0 + $0x48] sm:$0xf]
  %v62 = vld [vmem:[%s0 + $0x4c] sm:$0xf]
  %v63 = vld [vmem:[%s0 + $0x50] sm:$0xf]
  %v64 = vld [vmem:[%s0 + $0x54] sm:$0xf]
  %v65 = vld [vmem:[%s0 + $0x58] sm:$0xf]
  %v66 = vld [vmem:[%s0 + $0x5c] sm:$0xf]
  %v67 = vld [vmem:[%s0 + $0x60] sm:$0xf]
  %v68 = vld [vmem:[%s0 + $0x64] sm:$0xf]
  %v69 = vld [vmem:[%s0 + $0x68] sm:$0xf]
  %v70 = vld [vmem:[%s0 + $0x6c] sm:$0xf]
  %v71 = vld [vmem:[%s0 + $0x70] sm:$0xf]
  %v72 = vld [vmem:[%s0 + $0x74] sm:$0xf]
  %v73 = vld [vmem:[%s0 + $0x78] sm:$0xf]
  %v74 = vld [vmem:[%s0 + $0x7c] sm:$0xf]
  %v75 = vld [vmem:[%s0 + $0x80] sm:$0xf]
  %v76 = vld [vmem:[%s0 + $0x84] sm:$0xf]
  %v77 = vld [vmem:[%s0 + $0x88] sm:$0xf]
  %v78 = vld [vmem:[%s0 + $0x8c] sm:$0xf]
  %v79 = vld [vmem:[%s0 + $0x90] sm:$0xf]
  %v80 = vld [vmem:[%s0 + $0x94] sm:$0xf]
  %v81 = vld [vmem:[%s0 + $0x98] sm:$0xf]
  %v82 = vld [vmem:[%s0 + $0x9c] sm:$0xf]
  %v83 = vld [vmem:[%s0 + $0xa0] sm:$0xf]
  %v84 = vld [vmem:[%s0 + $0xa4] sm:$0xf]
  %v85 = vld [vmem:[%s0 + $0xa8] sm:$0xf]
  %v86 = vld [vmem:[%s0 + $0xac] sm:$0xf]
  %v87 = vld [vmem:[%s0 + $0xb0] sm:$0xf]
  %v88 = vld [vmem:[%s0 + $0xb4] sm:$0xf]
  %v89 = vld [vmem:[%s0 + $0xb8] sm:$0xf]
  %v90 = vld [vmem:[%s0 + $0xbc] sm:$0xf]
  %v91 = vld [vmem:[%s0 + $0xc0] sm:$0xf]
  %v92 = vld [vmem:[%s0 + $0xc4] sm:$0xf]
  %v93 = vld [vmem:[%s0 + $0xc8] sm:$0xf]
  %v94 = vld [vmem:[%s0 + $0xcc] sm:$0xf]
  %v95 = vld [vmem:[%s0 + $0xd0] sm:$0xf]
  %v96 = vld [vmem:[%s0 + $0xd4] sm:$0xf]
  %v97 = vld [vmem:[%s0 + $0xd8] sm:$0xf]
  %v98 = vld [vmem:[%s0 + $0xdc] sm:$0xf]
  %v99 = vld [vmem:[%s0 + $0xe0] sm:$0xf]
  %v100 = vld [vmem:[%s0 + $0xe4] sm:$0xf]
  %v101 = vld [vmem:[%s0 + $0xe8] sm:$0xf]
  %v102 = vld [vmem:[%s0 + $0xec] sm:$0xf]
  %v103 = vld [vmem:[%s0 + $0xf0] sm:$0xf]
  %v104 = vld [vmem:[%s0 + $0xf4] sm:$0xf]
  %v105 = vld [vmem:[%s0 + $0xf8] sm:$0xf]
  %v106 = vld [vmem:[%s0 + $0xfc] sm:$0xf]
  %v107 = vld [vmem:[%s0 + $0x100] sm:$0xf]
  %v108 = vld [vmem:[%s0 + $0x104] sm:$0xf]
  %v109 = vld [vmem:[%s0 + $0x108] sm:$0xf]
  %v110 = vld [vmem:[%s0 + $0x10c] sm:$0xf]
  %v111 = vld [vmem:[%s0 + $0x110] sm:$0xf]
  %v112 = vld [vmem:[%s0 + $0x114] sm:$0xf]
  %v113 = vld [vmem:[%s0 + $0x118] sm:$0xf]
  %v114 = vld [vmem:[%s0 + $0x11c] sm:$0xf]
  %v115 = vld [vmem:[%s0 + $0x120] sm:$0xf]
  %v116 = vld [vmem:[%s0 + $0x124] sm:$0xf]
  %v117 = vld [vmem:[%s0 + $0x128] sm:$0xf]
  %v118 = vld [vmem:[%s0 + $0x12c] sm:$0xf]
  %v119 = vld [vmem:[%s0 + $0x130] sm:$0xf]
  %v120 = vld [vmem:[%s0 + $0x134] sm:$0xf]
  %v121 = vld [vmem:[%s0 + $0x138] sm:$0xf]
  %v122 = vld [vmem:[%s0 + $0x13c] sm:$0xf]
  %v203 = vunpack.c.l.b16 %v43
  %v204 = vunpack.c.l.b16 %v44
  %v205 = vunpack.c.l.b16 %v45
  %v206 = vunpack.c.l.b16 %v46
  %v207 = vunpack.c.l.b16 %v47
  %v208 = vunpack.c.l.b16 %v48
  %v209 = vunpack.c.l.b16 %v49
  %v210 = vunpack.c.l.b16 %v50
  %v211 = vunpack.c.l.b16 %v51
  %v212 = vunpack.c.l.b16 %v52
  %v213 = vunpack.c.l.b16 %v53
  %v214 = vunpack.c.l.b16 %v54
  %v215 = vunpack.c.l.b16 %v55
  %v216 = vunpack.c.l.b16 %v56
  %v217 = vunpack.c.l.b16 %v57
  %v218 = vunpack.c.l.b16 %v58
  %v219 = vunpack.c.l.b16 %v59
  %v220 = vunpack.c.l.b16 %v60
  %v221 = vunpack.c.l.b16 %v61
  %v222 = vunpack.c.l.b16 %v62
  %v223 = vunpack.c.l.b16 %v63
  %v224 = vunpack.c.l.b16 %v64
  %v225 = vunpack.c.l.b16 %v65
  %v226 = vunpack.c.l.b16 %v66
  %v227 = vunpack.c.l.b16 %v67
  %v228 = vunpack.c.l.b16 %v68
  %v229 = vunpack.c.l.b16 %v69
  %v230 = vunpack.c.l.b16 %v70
  %v231 = vunpack.c.l.b16 %v71
  %v232 = vunpack.c.l.b16 %v72
  %v233 = vunpack.c.l.b16 %v73
  %v234 = vunpack.c.l.b16 %v74
  %v235 = vunpack.c.l.b16 %v75
  %v236 = vunpack.c.l.b16 %v76
  %v237 = vunpack.c.l.b16 %v77
  %v238 = vunpack.c.l.b16 %v78
  %v239 = vunpack.c.l.b16 %v79
  %v240 = vunpack.c.l.b16 %v80
  %v241 = vunpack.c.l.b16 %v81
  %v242 = vunpack.c.l.b16 %v82
  %v243 = vunpack.c.l.b16 %v83
  %v244 = vunpack.c.l.b16 %v84
  %v245 = vunpack.c.l.b16 %v85
  %v246 = vunpack.c.l.b16 %v86
  %v247 = vunpack.c.l.b16 %v87
  %v248 = vunpack.c.l.b16 %v88
  %v249 = vunpack.c.l.b16 %v89
  %v250 = vunpack.c.l.b16 %v90
  %v251 = vunpack.c.l.b16 %v91
  %v252 = vunpack.c.l.b16 %v92
  %v253 = vunpack.c.l.b16 %v93
  %v254 = vunpack.c.l.b16 %v94
  %v255 = vunpack.c.l.b16 %v95
  %v256 = vunpack.c.l.b16 %v96
  %v257 = vunpack.c.l.b16 %v97
  %v258 = vunpack.c.l.b16 %v98
  %v259 = vunpack.c.l.b16 %v99
  %v260 = vunpack.c.l.b16 %v100
  %v261 = vunpack.c.l.b16 %v101
  %v262 = vunpack.c.l.b16 %v102
  %v263 = vunpack.c.l.b16 %v103
  %v264 = vunpack.c.l.b16 %v104
  %v265 = vunpack.c.l.b16 %v105
  %v266 = vunpack.c.l.b16 %v106
  %v267 = vunpack.c.l.b16 %v107
  %v268 = vunpack.c.l.b16 %v108
  %v269 = vunpack.c.l.b16 %v109
  %v270 = vunpack.c.l.b16 %v110
  %v271 = vunpack.c.l.b16 %v111
  %v272 = vunpack.c.l.b16 %v112
  %v273 = vunpack.c.l.b16 %v113
  %v274 = vunpack.c.l.b16 %v114
  %v275 = vunpack.c.l.b16 %v115
  %v276 = vunpack.c.l.b16 %v116
  %v277 = vunpack.c.l.b16 %v117
  %v278 = vunpack.c.l.b16 %v118
  %v279 = vunpack.c.l.b16 %v119
  %v280 = vunpack.c.l.b16 %v120
  %v281 = vunpack.c.l.b16 %v121
  %v282 = vunpack.c.l.b16 %v122
  %v283 = vpack.c.b16 %v204, %v203
  %v284 = vpack.c.b16 %v206, %v205
  %v285 = vpack.c.b16 %v208, %v207
  %v286 = vpack.c.b16 %v210, %v209
  %v287 = vpack.c.b16 %v212, %v211
  %v288 = vpack.c.b16 %v214, %v213
  %v289 = vpack.c.b16 %v216, %v215
  %v290 = vpack.c.b16 %v218, %v217
  %v291 = vpack.c.b16 %v220, %v219
  %v292 = vpack.c.b16 %v222, %v221
  %v293 = vpack.c.b16 %v224, %v223
  %v294 = vpack.c.b16 %v226, %v225
  %v295 = vpack.c.b16 %v228, %v227
  %v296 = vpack.c.b16 %v230, %v229
  %v297 = vpack.c.b16 %v232, %v231
  %v298 = vpack.c.b16 %v234, %v233
  %v299 = vpack.c.b16 %v236, %v235
  %v300 = vpack.c.b16 %v238, %v237
  %v301 = vpack.c.b16 %v240, %v239
  %v302 = vpack.c.b16 %v242, %v241
  %v303 = vpack.c.b16 %v244, %v243
  %v304 = vpack.c.b16 %v246, %v245
  %v305 = vpack.c.b16 %v248, %v247
  %v306 = vpack.c.b16 %v250, %v249
  %v307 = vpack.c.b16 %v252, %v251
  %v308 = vpack.c.b16 %v254, %v253
  %v309 = vpack.c.b16 %v256, %v255
  %v310 = vpack.c.b16 %v258, %v257
  %v311 = vpack.c.b16 %v260, %v259
  %v312 = vpack.c.b16 %v262, %v261
  %v313 = vpack.c.b16 %v264, %v263
  %v314 = vpack.c.b16 %v266, %v265
  %v315 = vpack.c.b16 %v268, %v267
  %v316 = vpack.c.b16 %v270, %v269
  %v317 = vpack.c.b16 %v272, %v271
  %v318 = vpack.c.b16 %v274, %v273
  %v319 = vpack.c.b16 %v276, %v275
  %v320 = vpack.c.b16 %v278, %v277
  %v321 = vpack.c.b16 %v280, %v279
  %v322 = vpack.c.b16 %v282, %v281
  %vm363 = vcmask 7168
  %364 = vst.msk [vmem:[#allocation2] sm:$0xff] %vm363, %v283
  %365 = vst.msk [vmem:[#allocation2 + $0x8] sm:$0xff] %vm363, %v284
  %366 = vst.msk [vmem:[#allocation2 + $0x10] sm:$0xff] %vm363, %v285
  %367 = vst.msk [vmem:[#allocation2 + $0x18] sm:$0xff] %vm363, %v286
  %368 = vst.msk [vmem:[#allocation2 + $0x20] sm:$0xff] %vm363, %v287
  %369 = vst.msk [vmem:[#allocation2 + $0x28] sm:$0xff] %vm363, %v288
  %370 = vst.msk [vmem:[#allocation2 + $0x30] sm:$0xff] %vm363, %v289
  %371 = vst.msk [vmem:[#allocation2 + $0x38] sm:$0xff] %vm363, %v290
  %372 = vst.msk [vmem:[#allocation2 + $0x40] sm:$0xff] %vm363, %v291
  %373 = vst.msk [vmem:[#allocation2 + $0x48] sm:$0xff] %vm363, %v292
  %374 = vst.msk [vmem:[#allocation2 + $0x50] sm:$0xff] %vm363, %v293
  %375 = vst.msk [vmem:[#allocation2 + $0x58] sm:$0xff] %vm363, %v294
  %376 = vst.msk [vmem:[#allocation2 + $0x60] sm:$0xff] %vm363, %v295
  %377 = vst.msk [vmem:[#allocation2 + $0x68] sm:$0xff] %vm363, %v296
  %378 = vst.msk [vmem:[#allocation2 + $0x70] sm:$0xff] %vm363, %v297
  %379 = vst.msk [vmem:[#allocation2 + $0x78] sm:$0xff] %vm363, %v298
  %380 = vst.msk [vmem:[#allocation2 + $0x80] sm:$0xff] %vm363, %v299
  %381 = vst.msk [vmem:[#allocation2 + $0x88] sm:$0xff] %vm363, %v300
  %382 = vst.msk [vmem:[#allocation2 + $0x90] sm:$0xff] %vm363, %v301
  %383 = vst.msk [vmem:[#allocation2 + $0x98] sm:$0xff] %vm363, %v302
  %384 = vst.msk [vmem:[#allocation2 + $0xa0] sm:$0xff] %vm363, %v303
  %385 = vst.msk [vmem:[#allocation2 + $0xa8] sm:$0xff] %vm363, %v304
  %386 = vst.msk [vmem:[#allocation2 + $0xb0] sm:$0xff] %vm363, %v305
  %387 = vst.msk [vmem:[#allocation2 + $0xb8] sm:$0xff] %vm363, %v306
  %388 = vst.msk [vmem:[#allocation2 + $0xc0] sm:$0xff] %vm363, %v307
  %389 = vst.msk [vmem:[#allocation2 + $0xc8] sm:$0xff] %vm363, %v308
  %390 = vst.msk [vmem:[#allocation2 + $0xd0] sm:$0xff] %vm363, %v309
  %391 = vst.msk [vmem:[#allocation2 + $0xd8] sm:$0xff] %vm363, %v310
  %392 = vst.msk [vmem:[#allocation2 + $0xe0] sm:$0xff] %vm363, %v311
  %393 = vst.msk [vmem:[#allocation2 + $0xe8] sm:$0xff] %vm363, %v312
  %394 = vst.msk [vmem:[#allocation2 + $0xf0] sm:$0xff] %vm363, %v313
  %395 = vst.msk [vmem:[#allocation2 + $0xf8] sm:$0xff] %vm363, %v314
  %396 = vst.msk [vmem:[#allocation2 + $0x100] sm:$0xff] %vm363, %v315
  %397 = vst.msk [vmem:[#allocation2 + $0x108] sm:$0xff] %vm363, %v316
  %398 = vst.msk [vmem:[#allocation2 + $0x110] sm:$0xff] %vm363, %v317
  %399 = vst.msk [vmem:[#allocation2 + $0x118] sm:$0xff] %vm363, %v318
  %400 = vst.msk [vmem:[#allocation2 + $0x120] sm:$0xff] %vm363, %v319
  %401 = vst.msk [vmem:[#allocation2 + $0x128] sm:$0xff] %vm363, %v320
  %402 = vst.msk [vmem:[#allocation2 + $0x130] sm:$0xff] %vm363, %v321
  %403 = vst.msk [vmem:[#allocation2 + $0x138] sm:$0xff] %vm363, %v322
  %v404 = vld [vmem:[%s39] sm:$0xf]
  %v405 = vld [vmem:[%s39 + $0x4] sm:$0xf]
  %v406 = vld [vmem:[%s39 + $0x8] sm:$0xf]
  %v407 = vld [vmem:[%s39 + $0xc] sm:$0xf]
  %v408 = vld [vmem:[%s39 + $0x10] sm:$0xf]
  %v409 = vld [vmem:[%s39 + $0x14] sm:$0xf]
  %v410 = vld [vmem:[%s39 + $0x18] sm:$0xf]
  %v411 = vld [vmem:[%s39 + $0x1c] sm:$0xf]
  %v412 = vld [vmem:[%s39 + $0x20] sm:$0xf]
  %v413 = vld [vmem:[%s39 + $0x24] sm:$0xf]
  %v414 = vld [vmem:[%s39 + $0x28] sm:$0xf]
  %v415 = vld [vmem:[%s39 + $0x2c] sm:$0xf]
  %v416 = vld [vmem:[%s39 + $0x30] sm:$0xf]
  %v417 = vld [vmem:[%s39 + $0x34] sm:$0xf]
  %v418 = vld [vmem:[%s39 + $0x38] sm:$0xf]
  %v419 = vld [vmem:[%s39 + $0x3c] sm:$0xf]
  %v420 = vld [vmem:[%s39 + $0x40] sm:$0xf]
  %v421 = vld [vmem:[%s39 + $0x44] sm:$0xf]
  %v422 = vld [vmem:[%s39 + $0x48] sm:$0xf]
  %v423 = vld [vmem:[%s39 + $0x4c] sm:$0xf]
  %v424 = vld [vmem:[%s39 + $0x50] sm:$0xf]
  %v425 = vld [vmem:[%s39 + $0x54] sm:$0xf]
  %v426 = vld [vmem:[%s39 + $0x58] sm:$0xf]
  %v427 = vld [vmem:[%s39 + $0x5c] sm:$0xf]
  %v428 = vld [vmem:[%s39 + $0x60] sm:$0xf]
  %v429 = vld [vmem:[%s39 + $0x64] sm:$0xf]
  %v430 = vld [vmem:[%s39 + $0x68] sm:$0xf]
  %v431 = vld [vmem:[%s39 + $0x6c] sm:$0xf]
  %v432 = vld [vmem:[%s39 + $0x70] sm:$0xf]
  %v433 = vld [vmem:[%s39 + $0x74] sm:$0xf]
  %v434 = vld [vmem:[%s39 + $0x78] sm:$0xf]
  %v435 = vld [vmem:[%s39 + $0x7c] sm:$0xf]
  %v436 = vld [vmem:[%s39 + $0x80] sm:$0xf]
  %v437 = vld [vmem:[%s39 + $0x84] sm:$0xf]
  %v438 = vld [vmem:[%s39 + $0x88] sm:$0xf]
  %v439 = vld [vmem:[%s39 + $0x8c] sm:$0xf]
  %v440 = vld [vmem:[%s39 + $0x90] sm:$0xf]
  %v441 = vld [vmem:[%s39 + $0x94] sm:$0xf]
  %v442 = vld [vmem:[%s39 + $0x98] sm:$0xf]
  %v443 = vld [vmem:[%s39 + $0x9c] sm:$0xf]
  %v444 = vld [vmem:[%s39 + $0xa0] sm:$0xf]
  %v445 = vld [vmem:[%s39 + $0xa4] sm:$0xf]
  %v446 = vld [vmem:[%s39 + $0xa8] sm:$0xf]
  %v447 = vld [vmem:[%s39 + $0xac] sm:$0xf]
  %v448 = vld [vmem:[%s39 + $0xb0] sm:$0xf]
  %v449 = vld [vmem:[%s39 + $0xb4] sm:$0xf]
  %v450 = vld [vmem:[%s39 + $0xb8] sm:$0xf]
  %v451 = vld [vmem:[%s39 + $0xbc] sm:$0xf]
  %v452 = vld [vmem:[%s39 + $0xc0] sm:$0xf]
  %v453 = vld [vmem:[%s39 + $0xc4] sm:$0xf]
  %v454 = vld [vmem:[%s39 + $0xc8] sm:$0xf]
  %v455 = vld [vmem:[%s39 + $0xcc] sm:$0xf]
  %v456 = vld [vmem:[%s39 + $0xd0] sm:$0xf]
  %v457 = vld [vmem:[%s39 + $0xd4] sm:$0xf]
  %v458 = vld [vmem:[%s39 + $0xd8] sm:$0xf]
  %v459 = vld [vmem:[%s39 + $0xdc] sm:$0xf]
  %v460 = vld [vmem:[%s39 + $0xe0] sm:$0xf]
  %v461 = vld [vmem:[%s39 + $0xe4] sm:$0xf]
  %v462 = vld [vmem:[%s39 + $0xe8] sm:$0xf]
  %v463 = vld [vmem:[%s39 + $0xec] sm:$0xf]
  %v464 = vld [vmem:[%s39 + $0xf0] sm:$0xf]
  %v465 = vld [vmem:[%s39 + $0xf4] sm:$0xf]
  %v466 = vld [vmem:[%s39 + $0xf8] sm:$0xf]
  %v467 = vld [vmem:[%s39 + $0xfc] sm:$0xf]
  %v468 = vld [vmem:[%s39 + $0x100] sm:$0xf]
  %v469 = vld [vmem:[%s39 + $0x104] sm:$0xf]
  %v470 = vld [vmem:[%s39 + $0x108] sm:$0xf]
  %v471 = vld [vmem:[%s39 + $0x10c] sm:$0xf]
  %v472 = vld [vmem:[%s39 + $0x110] sm:$0xf]
  %v473 = vld [vmem:[%s39 + $0x114] sm:$0xf]
  %v474 = vld [vmem:[%s39 + $0x118] sm:$0xf]
  %v475 = vld [vmem:[%s39 + $0x11c] sm:$0xf]
  %v476 = vld [vmem:[%s39 + $0x120] sm:$0xf]
  %v477 = vld [vmem:[%s39 + $0x124] sm:$0xf]
  %v478 = vld [vmem:[%s39 + $0x128] sm:$0xf]
  %v479 = vld [vmem:[%s39 + $0x12c] sm:$0xf]
  %v480 = vld [vmem:[%s39 + $0x130] sm:$0xf]
  %v481 = vld [vmem:[%s39 + $0x134] sm:$0xf]
  %v482 = vld [vmem:[%s39 + $0x138] sm:$0xf]
  %v483 = vld [vmem:[%s39 + $0x13c] sm:$0xf]
  %v564 = vunpack.c.l.b16 %v404
  %v565 = vunpack.c.l.b16 %v405
  %v566 = vunpack.c.l.b16 %v406
  %v567 = vunpack.c.l.b16 %v407
  %v568 = vunpack.c.l.b16 %v408
  %v569 = vunpack.c.l.b16 %v409
  %v570 = vunpack.c.l.b16 %v410
  %v571 = vunpack.c.l.b16 %v411
  %v572 = vunpack.c.l.b16 %v412
  %v573 = vunpack.c.l.b16 %v413
  %v574 = vunpack.c.l.b16 %v414
  %v575 = vunpack.c.l.b16 %v415
  %v576 = vunpack.c.l.b16 %v416
  %v577 = vunpack.c.l.b16 %v417
  %v578 = vunpack.c.l.b16 %v418
  %v579 = vunpack.c.l.b16 %v419
  %v580 = vunpack.c.l.b16 %v420
  %v581 = vunpack.c.l.b16 %v421
  %v582 = vunpack.c.l.b16 %v422
  %v583 = vunpack.c.l.b16 %v423
  %v584 = vunpack.c.l.b16 %v424
  %v585 = vunpack.c.l.b16 %v425
  %v586 = vunpack.c.l.b16 %v426
  %v587 = vunpack.c.l.b16 %v427
  %v588 = vunpack.c.l.b16 %v428
  %v589 = vunpack.c.l.b16 %v429
  %v590 = vunpack.c.l.b16 %v430
  %v591 = vunpack.c.l.b16 %v431
  %v592 = vunpack.c.l.b16 %v432
  %v593 = vunpack.c.l.b16 %v433
  %v594 = vunpack.c.l.b16 %v434
  %v595 = vunpack.c.l.b16 %v435
  %v596 = vunpack.c.l.b16 %v436
  %v597 = vunpack.c.l.b16 %v437
  %v598 = vunpack.c.l.b16 %v438
  %v599 = vunpack.c.l.b16 %v439
  %v600 = vunpack.c.l.b16 %v440
  %v601 = vunpack.c.l.b16 %v441
  %v602 = vunpack.c.l.b16 %v442
  %v603 = vunpack.c.l.b16 %v443
  %v604 = vunpack.c.l.b16 %v444
  %v605 = vunpack.c.l.b16 %v445
  %v606 = vunpack.c.l.b16 %v446
  %v607 = vunpack.c.l.b16 %v447
  %v608 = vunpack.c.l.b16 %v448
  %v609 = vunpack.c.l.b16 %v449
  %v610 = vunpack.c.l.b16 %v450
  %v611 = vunpack.c.l.b16 %v451
  %v612 = vunpack.c.l.b16 %v452
  %v613 = vunpack.c.l.b16 %v453
  %v614 = vunpack.c.l.b16 %v454
  %v615 = vunpack.c.l.b16 %v455
  %v616 = vunpack.c.l.b16 %v456
  %v617 = vunpack.c.l.b16 %v457
  %v618 = vunpack.c.l.b16 %v458
  %v619 = vunpack.c.l.b16 %v459
  %v620 = vunpack.c.l.b16 %v460
  %v621 = vunpack.c.l.b16 %v461
  %v622 = vunpack.c.l.b16 %v462
  %v623 = vunpack.c.l.b16 %v463
  %v624 = vunpack.c.l.b16 %v464
  %v625 = vunpack.c.l.b16 %v465
  %v626 = vunpack.c.l.b16 %v466
  %v627 = vunpack.c.l.b16 %v467
  %v628 = vunpack.c.l.b16 %v468
  %v629 = vunpack.c.l.b16 %v469
  %v630 = vunpack.c.l.b16 %v470
  %v631 = vunpack.c.l.b16 %v471
  %v632 = vunpack.c.l.b16 %v472
  %v633 = vunpack.c.l.b16 %v473
  %v634 = vunpack.c.l.b16 %v474
  %v635 = vunpack.c.l.b16 %v475
  %v636 = vunpack.c.l.b16 %v476
  %v637 = vunpack.c.l.b16 %v477
  %v638 = vunpack.c.l.b16 %v478
  %v639 = vunpack.c.l.b16 %v479
  %v640 = vunpack.c.l.b16 %v480
  %v641 = vunpack.c.l.b16 %v481
  %v642 = vunpack.c.l.b16 %v482
  %v643 = vunpack.c.l.b16 %v483
  %v644 = vpack.c.b16 %v565, %v564
  %v645 = vpack.c.b16 %v567, %v566
  %v646 = vpack.c.b16 %v569, %v568
  %v647 = vpack.c.b16 %v571, %v570
  %v648 = vpack.c.b16 %v573, %v572
  %v649 = vpack.c.b16 %v575, %v574
  %v650 = vpack.c.b16 %v577, %v576
  %v651 = vpack.c.b16 %v579, %v578
  %v652 = vpack.c.b16 %v581, %v580
  %v653 = vpack.c.b16 %v583, %v582
  %v654 = vpack.c.b16 %v585, %v584
  %v655 = vpack.c.b16 %v587, %v586
  %v656 = vpack.c.b16 %v589, %v588
  %v657 = vpack.c.b16 %v591, %v590
  %v658 = vpack.c.b16 %v593, %v592
  %v659 = vpack.c.b16 %v595, %v594
  %v660 = vpack.c.b16 %v597, %v596
  %v661 = vpack.c.b16 %v599, %v598
  %v662 = vpack.c.b16 %v601, %v600
  %v663 = vpack.c.b16 %v603, %v602
  %v664 = vpack.c.b16 %v605, %v604
  %v665 = vpack.c.b16 %v607, %v606
  %v666 = vpack.c.b16 %v609, %v608
  %v667 = vpack.c.b16 %v611, %v610
  %v668 = vpack.c.b16 %v613, %v612
  %v669 = vpack.c.b16 %v615, %v614
  %v670 = vpack.c.b16 %v617, %v616
  %v671 = vpack.c.b16 %v619, %v618
  %v672 = vpack.c.b16 %v621, %v620
  %v673 = vpack.c.b16 %v623, %v622
  %v674 = vpack.c.b16 %v625, %v624
  %v675 = vpack.c.b16 %v627, %v626
  %v676 = vpack.c.b16 %v629, %v628
  %v677 = vpack.c.b16 %v631, %v630
  %v678 = vpack.c.b16 %v633, %v632
  %v679 = vpack.c.b16 %v635, %v634
  %v680 = vpack.c.b16 %v637, %v636
  %v681 = vpack.c.b16 %v639, %v638
  %v682 = vpack.c.b16 %v641, %v640
  %v683 = vpack.c.b16 %v643, %v642
  %724 = vst.msk [vmem:[#allocation2 + $0x140] sm:$0xff] %vm363, %v644
  %725 = vst.msk [vmem:[#allocation2 + $0x148] sm:$0xff] %vm363, %v645
  %726 = vst.msk [vmem:[#allocation2 + $0x150] sm:$0xff] %vm363, %v646
  %727 = vst.msk [vmem:[#allocation2 + $0x158] sm:$0xff] %vm363, %v647
  %728 = vst.msk [vmem:[#allocation2 + $0x160] sm:$0xff] %vm363, %v648
  %729 = vst.msk [vmem:[#allocation2 + $0x168] sm:$0xff] %vm363, %v649
  %730 = vst.msk [vmem:[#allocation2 + $0x170] sm:$0xff] %vm363, %v650
  %731 = vst.msk [vmem:[#allocation2 + $0x178] sm:$0xff] %vm363, %v651
  %732 = vst.msk [vmem:[#allocation2 + $0x180] sm:$0xff] %vm363, %v652
  %733 = vst.msk [vmem:[#allocation2 + $0x188] sm:$0xff] %vm363, %v653
  %734 = vst.msk [vmem:[#allocation2 + $0x190] sm:$0xff] %vm363, %v654
  %735 = vst.msk [vmem:[#allocation2 + $0x198] sm:$0xff] %vm363, %v655
  %736 = vst.msk [vmem:[#allocation2 + $0x1a0] sm:$0xff] %vm363, %v656
  %737 = vst.msk [vmem:[#allocation2 + $0x1a8] sm:$0xff] %vm363, %v657
  %738 = vst.msk [vmem:[#allocation2 + $0x1b0] sm:$0xff] %vm363, %v658
  %739 = vst.msk [vmem:[#allocation2 + $0x1b8] sm:$0xff] %vm363, %v659
  %740 = vst.msk [vmem:[#allocation2 + $0x1c0] sm:$0xff] %vm363, %v660
  %741 = vst.msk [vmem:[#allocation2 + $0x1c8] sm:$0xff] %vm363, %v661
  %742 = vst.msk [vmem:[#allocation2 + $0x1d0] sm:$0xff] %vm363, %v662
  %743 = vst.msk [vmem:[#allocation2 + $0x1d8] sm:$0xff] %vm363, %v663
  %744 = vst.msk [vmem:[#allocation2 + $0x1e0] sm:$0xff] %vm363, %v664
  %745 = vst.msk [vmem:[#allocation2 + $0x1e8] sm:$0xff] %vm363, %v665
  %746 = vst.msk [vmem:[#allocation2 + $0x1f0] sm:$0xff] %vm363, %v666
  %747 = vst.msk [vmem:[#allocation2 + $0x1f8] sm:$0xff] %vm363, %v667
  %748 = vst.msk [vmem:[#allocation2 + $0x200] sm:$0xff] %vm363, %v668
  %749 = vst.msk [vmem:[#allocation2 + $0x208] sm:$0xff] %vm363, %v669
  %750 = vst.msk [vmem:[#allocation2 + $0x210] sm:$0xff] %vm363, %v670
  %751 = vst.msk [vmem:[#allocation2 + $0x218] sm:$0xff] %vm363, %v671
  %752 = vst.msk [vmem:[#allocation2 + $0x220] sm:$0xff] %vm363, %v672
  %753 = vst.msk [vmem:[#allocation2 + $0x228] sm:$0xff] %vm363, %v673
  %754 = vst.msk [vmem:[#allocation2 + $0x230] sm:$0xff] %vm363, %v674
  %755 = vst.msk [vmem:[#allocation2 + $0x238] sm:$0xff] %vm363, %v675
  %756 = vst.msk [vmem:[#allocation2 + $0x240] sm:$0xff] %vm363, %v676
  %757 = vst.msk [vmem:[#allocation2 + $0x248] sm:$0xff] %vm363, %v677
  %758 = vst.msk [vmem:[#allocation2 + $0x250] sm:$0xff] %vm363, %v678
  %759 = vst.msk [vmem:[#allocation2 + $0x258] sm:$0xff] %vm363, %v679
  %760 = vst.msk [vmem:[#allocation2 + $0x260] sm:$0xff] %vm363, %v680
  %761 = vst.msk [vmem:[#allocation2 + $0x268] sm:$0xff] %vm363, %v681
  %762 = vst.msk [vmem:[#allocation2 + $0x270] sm:$0xff] %vm363, %v682
  %763 = vst.msk [vmem:[#allocation2 + $0x278] sm:$0xff] %vm363, %v683
  %v764 = vld [vmem:[%s2] sm:$0xf]
  %v765 = vld [vmem:[%s2 + $0x4] sm:$0xf]
  %v766 = vld [vmem:[%s2 + $0x8] sm:$0xf]
  %v767 = vld [vmem:[%s2 + $0xc] sm:$0xf]
  %v768 = vld [vmem:[%s2 + $0x10] sm:$0xf]
  %v769 = vld [vmem:[%s2 + $0x14] sm:$0xf]
  %v770 = vld [vmem:[%s2 + $0x18] sm:$0xf]
  %v771 = vld [vmem:[%s2 + $0x1c] sm:$0xf]
  %v772 = vld [vmem:[%s2 + $0x20] sm:$0xf]
  %v773 = vld [vmem:[%s2 + $0x24] sm:$0xf]
  %v774 = vld [vmem:[%s2 + $0x28] sm:$0xf]
  %v775 = vld [vmem:[%s2 + $0x2c] sm:$0xf]
  %v776 = vld [vmem:[%s2 + $0x30] sm:$0xf]
  %v777 = vld [vmem:[%s2 + $0x34] sm:$0xf]
  %v778 = vld [vmem:[%s2 + $0x38] sm:$0xf]
  %v779 = vld [vmem:[%s2 + $0x3c] sm:$0xf]
  %v780 = vld [vmem:[%s2 + $0x40] sm:$0xf]
  %v781 = vld [vmem:[%s2 + $0x44] sm:$0xf]
  %v782 = vld [vmem:[%s2 + $0x48] sm:$0xf]
  %v783 = vld [vmem:[%s2 + $0x4c] sm:$0xf]
  %v784 = vld [vmem:[%s2 + $0x50] sm:$0xf]
  %v785 = vld [vmem:[%s2 + $0x54] sm:$0xf]
  %v786 = vld [vmem:[%s2 + $0x58] sm:$0xf]
  %v787 = vld [vmem:[%s2 + $0x5c] sm:$0xf]
  %v788 = vld [vmem:[%s2 + $0x60] sm:$0xf]
  %v789 = vld [vmem:[%s2 + $0x64] sm:$0xf]
  %v790 = vld [vmem:[%s2 + $0x68] sm:$0xf]
  %v791 = vld [vmem:[%s2 + $0x6c] sm:$0xf]
  %v792 = vld [vmem:[%s2 + $0x70] sm:$0xf]
  %v793 = vld [vmem:[%s2 + $0x74] sm:$0xf]
  %v794 = vld [vmem:[%s2 + $0x78] sm:$0xf]
  %v795 = vld [vmem:[%s2 + $0x7c] sm:$0xf]
  %v796 = vld [vmem:[%s2 + $0x80] sm:$0xf]
  %v797 = vld [vmem:[%s2 + $0x84] sm:$0xf]
  %v798 = vld [vmem:[%s2 + $0x88] sm:$0xf]
  %v799 = vld [vmem:[%s2 + $0x8c] sm:$0xf]
  %v800 = vld [vmem:[%s2 + $0x90] sm:$0xf]
  %v801 = vld [vmem:[%s2 + $0x94] sm:$0xf]
  %v802 = vld [vmem:[%s2 + $0x98] sm:$0xf]
  %v803 = vld [vmem:[%s2 + $0x9c] sm:$0xf]
  %v804 = vld [vmem:[%s2 + $0xa0] sm:$0xf]
  %v805 = vld [vmem:[%s2 + $0xa4] sm:$0xf]
  %v806 = vld [vmem:[%s2 + $0xa8] sm:$0xf]
  %v807 = vld [vmem:[%s2 + $0xac] sm:$0xf]
  %v808 = vld [vmem:[%s2 + $0xb0] sm:$0xf]
  %v809 = vld [vmem:[%s2 + $0xb4] sm:$0xf]
  %v810 = vld [vmem:[%s2 + $0xb8] sm:$0xf]
  %v811 = vld [vmem:[%s2 + $0xbc] sm:$0xf]
  %v812 = vld [vmem:[%s2 + $0xc0] sm:$0xf]
  %v813 = vld [vmem:[%s2 + $0xc4] sm:$0xf]
  %v814 = vld [vmem:[%s2 + $0xc8] sm:$0xf]
  %v815 = vld [vmem:[%s2 + $0xcc] sm:$0xf]
  %v816 = vld [vmem:[%s2 + $0xd0] sm:$0xf]
  %v817 = vld [vmem:[%s2 + $0xd4] sm:$0xf]
  %v818 = vld [vmem:[%s2 + $0xd8] sm:$0xf]
  %v819 = vld [vmem:[%s2 + $0xdc] sm:$0xf]
  %v820 = vld [vmem:[%s2 + $0xe0] sm:$0xf]
  %v821 = vld [vmem:[%s2 + $0xe4] sm:$0xf]
  %v822 = vld [vmem:[%s2 + $0xe8] sm:$0xf]
  %v823 = vld [vmem:[%s2 + $0xec] sm:$0xf]
  %v824 = vld [vmem:[%s2 + $0xf0] sm:$0xf]
  %v825 = vld [vmem:[%s2 + $0xf4] sm:$0xf]
  %v826 = vld [vmem:[%s2 + $0xf8] sm:$0xf]
  %v827 = vld [vmem:[%s2 + $0xfc] sm:$0xf]
  %v828 = vld [vmem:[%s2 + $0x100] sm:$0xf]
  %v829 = vld [vmem:[%s2 + $0x104] sm:$0xf]
  %v830 = vld [vmem:[%s2 + $0x108] sm:$0xf]
  %v831 = vld [vmem:[%s2 + $0x10c] sm:$0xf]
  %v832 = vld [vmem:[%s2 + $0x110] sm:$0xf]
  %v833 = vld [vmem:[%s2 + $0x114] sm:$0xf]
  %v834 = vld [vmem:[%s2 + $0x118] sm:$0xf]
  %v835 = vld [vmem:[%s2 + $0x11c] sm:$0xf]
  %v836 = vld [vmem:[%s2 + $0x120] sm:$0xf]
  %v837 = vld [vmem:[%s2 + $0x124] sm:$0xf]
  %v838 = vld [vmem:[%s2 + $0x128] sm:$0xf]
  %v839 = vld [vmem:[%s2 + $0x12c] sm:$0xf]
  %v840 = vld [vmem:[%s2 + $0x130] sm:$0xf]
  %v841 = vld [vmem:[%s2 + $0x134] sm:$0xf]
  %v842 = vld [vmem:[%s2 + $0x138] sm:$0xf]
  %v843 = vld [vmem:[%s2 + $0x13c] sm:$0xf]
  %v844 = vld [vmem:[#allocation2] sm:$0xff]
  %v845 = vld [vmem:[#allocation2 + $0x8] sm:$0xff]
  %v846 = vld [vmem:[#allocation2 + $0x10] sm:$0xff]
  %v847 = vld [vmem:[#allocation2 + $0x18] sm:$0xff]
  %v848 = vld [vmem:[#allocation2 + $0x20] sm:$0xff]
  %v849 = vld [vmem:[#allocation2 + $0x28] sm:$0xff]
  %v850 = vld [vmem:[#allocation2 + $0x30] sm:$0xff]
  %v851 = vld [vmem:[#allocation2 + $0x38] sm:$0xff]
  %v852 = vld [vmem:[#allocation2 + $0x40] sm:$0xff]
  %v853 = vld [vmem:[#allocation2 + $0x48] sm:$0xff]
  %v854 = vld [vmem:[#allocation2 + $0x50] sm:$0xff]
  %v855 = vld [vmem:[#allocation2 + $0x58] sm:$0xff]
  %v856 = vld [vmem:[#allocation2 + $0x60] sm:$0xff]
  %v857 = vld [vmem:[#allocation2 + $0x68] sm:$0xff]
  %v858 = vld [vmem:[#allocation2 + $0x70] sm:$0xff]
  %v859 = vld [vmem:[#allocation2 + $0x78] sm:$0xff]
  %v860 = vld [vmem:[#allocation2 + $0x80] sm:$0xff]
  %v861 = vld [vmem:[#allocation2 + $0x88] sm:$0xff]
  %v862 = vld [vmem:[#allocation2 + $0x90] sm:$0xff]
  %v863 = vld [vmem:[#allocation2 + $0x98] sm:$0xff]
  %v864 = vld [vmem:[#allocation2 + $0xa0] sm:$0xff]
  %v865 = vld [vmem:[#allocation2 + $0xa8] sm:$0xff]
  %v866 = vld [vmem:[#allocation2 + $0xb0] sm:$0xff]
  %v867 = vld [vmem:[#allocation2 + $0xb8] sm:$0xff]
  %v868 = vld [vmem:[#allocation2 + $0xc0] sm:$0xff]
  %v869 = vld [vmem:[#allocation2 + $0xc8] sm:$0xff]
  %v870 = vld [vmem:[#allocation2 + $0xd0] sm:$0xff]
  %v871 = vld [vmem:[#allocation2 + $0xd8] sm:$0xff]
  %v872 = vld [vmem:[#allocation2 + $0xe0] sm:$0xff]
  %v873 = vld [vmem:[#allocation2 + $0xe8] sm:$0xff]
  %v874 = vld [vmem:[#allocation2 + $0xf0] sm:$0xff]
  %v875 = vld [vmem:[#allocation2 + $0xf8] sm:$0xff]
  %v876 = vld [vmem:[#allocation2 + $0x100] sm:$0xff]
  %v877 = vld [vmem:[#allocation2 + $0x108] sm:$0xff]
  %v878 = vld [vmem:[#allocation2 + $0x110] sm:$0xff]
  %v879 = vld [vmem:[#allocation2 + $0x118] sm:$0xff]
  %v880 = vld [vmem:[#allocation2 + $0x120] sm:$0xff]
  %v881 = vld [vmem:[#allocation2 + $0x128] sm:$0xff]
  %v882 = vld [vmem:[#allocation2 + $0x130] sm:$0xff]
  %v883 = vld [vmem:[#allocation2 + $0x138] sm:$0xff]
  %v964 = vunpack.c.l.b16 %v764
  %v965 = vunpack.c.l.b16 %v765
  %v966 = vunpack.c.l.b16 %v766
  %v967 = vunpack.c.l.b16 %v767
  %v968 = vunpack.c.l.b16 %v768
  %v969 = vunpack.c.l.b16 %v769
  %v970 = vunpack.c.l.b16 %v770
  %v971 = vunpack.c.l.b16 %v771
  %v972 = vunpack.c.l.b16 %v772
  %v973 = vunpack.c.l.b16 %v773
  %v974 = vunpack.c.l.b16 %v774
  %v975 = vunpack.c.l.b16 %v775
  %v976 = vunpack.c.l.b16 %v776
  %v977 = vunpack.c.l.b16 %v777
  %v978 = vunpack.c.l.b16 %v778
  %v979 = vunpack.c.l.b16 %v779
  %v980 = vunpack.c.l.b16 %v780
  %v981 = vunpack.c.l.b16 %v781
  %v982 = vunpack.c.l.b16 %v782
  %v983 = vunpack.c.l.b16 %v783
  %v984 = vunpack.c.l.b16 %v784
  %v985 = vunpack.c.l.b16 %v785
  %v986 = vunpack.c.l.b16 %v786
  %v987 = vunpack.c.l.b16 %v787
  %v988 = vunpack.c.l.b16 %v788
  %v989 = vunpack.c.l.b16 %v789
  %v990 = vunpack.c.l.b16 %v790
  %v991 = vunpack.c.l.b16 %v791
  %v992 = vunpack.c.l.b16 %v792
  %v993 = vunpack.c.l.b16 %v793
  %v994 = vunpack.c.l.b16 %v794
  %v995 = vunpack.c.l.b16 %v795
  %v996 = vunpack.c.l.b16 %v796
  %v997 = vunpack.c.l.b16 %v797
  %v998 = vunpack.c.l.b16 %v798
  %v999 = vunpack.c.l.b16 %v799
  %v1000 = vunpack.c.l.b16 %v800
  %v1001 = vunpack.c.l.b16 %v801
  %v1002 = vunpack.c.l.b16 %v802
  %v1003 = vunpack.c.l.b16 %v803
  %v1004 = vunpack.c.l.b16 %v804
  %v1005 = vunpack.c.l.b16 %v805
  %v1006 = vunpack.c.l.b16 %v806
  %v1007 = vunpack.c.l.b16 %v807
  %v1008 = vunpack.c.l.b16 %v808
  %v1009 = vunpack.c.l.b16 %v809
  %v1010 = vunpack.c.l.b16 %v810
  %v1011 = vunpack.c.l.b16 %v811
  %v1012 = vunpack.c.l.b16 %v812
  %v1013 = vunpack.c.l.b16 %v813
  %v1014 = vunpack.c.l.b16 %v814
  %v1015 = vunpack.c.l.b16 %v815
  %v1016 = vunpack.c.l.b16 %v816
  %v1017 = vunpack.c.l.b16 %v817
  %v1018 = vunpack.c.l.b16 %v818
  %v1019 = vunpack.c.l.b16 %v819
  %v1020 = vunpack.c.l.b16 %v820
  %v1021 = vunpack.c.l.b16 %v821
  %v1022 = vunpack.c.l.b16 %v822
  %v1023 = vunpack.c.l.b16 %v823
  %v1024 = vunpack.c.l.b16 %v824
  %v1025 = vunpack.c.l.b16 %v825
  %v1026 = vunpack.c.l.b16 %v826
  %v1027 = vunpack.c.l.b16 %v827
  %v1028 = vunpack.c.l.b16 %v828
  %v1029 = vunpack.c.l.b16 %v829
  %v1030 = vunpack.c.l.b16 %v830
  %v1031 = vunpack.c.l.b16 %v831
  %v1032 = vunpack.c.l.b16 %v832
  %v1033 = vunpack.c.l.b16 %v833
  %v1034 = vunpack.c.l.b16 %v834
  %v1035 = vunpack.c.l.b16 %v835
  %v1036 = vunpack.c.l.b16 %v836
  %v1037 = vunpack.c.l.b16 %v837
  %v1038 = vunpack.c.l.b16 %v838
  %v1039 = vunpack.c.l.b16 %v839
  %v1040 = vunpack.c.l.b16 %v840
  %v1041 = vunpack.c.l.b16 %v841
  %v1042 = vunpack.c.l.b16 %v842
  %v1043 = vunpack.c.l.b16 %v843
  %v1044 = vpack.c.b16 %v965, %v964
  %v1045 = vpack.c.b16 %v967, %v966
  %v1046 = vpack.c.b16 %v969, %v968
  %v1047 = vpack.c.b16 %v971, %v970
  %v1048 = vpack.c.b16 %v973, %v972
  %v1049 = vpack.c.b16 %v975, %v974
  %v1050 = vpack.c.b16 %v977, %v976
  %v1051 = vpack.c.b16 %v979, %v978
  %v1052 = vpack.c.b16 %v981, %v980
  %v1053 = vpack.c.b16 %v983, %v982
  %v1054 = vpack.c.b16 %v985, %v984
  %v1055 = vpack.c.b16 %v987, %v986
  %v1056 = vpack.c.b16 %v989, %v988
  %v1057 = vpack.c.b16 %v991, %v990
  %v1058 = vpack.c.b16 %v993, %v992
  %v1059 = vpack.c.b16 %v995, %v994
  %v1060 = vpack.c.b16 %v997, %v996
  %v1061 = vpack.c.b16 %v999, %v998
  %v1062 = vpack.c.b16 %v1001, %v1000
  %v1063 = vpack.c.b16 %v1003, %v1002
  %v1064 = vpack.c.b16 %v1005, %v1004
  %v1065 = vpack.c.b16 %v1007, %v1006
  %v1066 = vpack.c.b16 %v1009, %v1008
  %v1067 = vpack.c.b16 %v1011, %v1010
  %v1068 = vpack.c.b16 %v1013, %v1012
  %v1069 = vpack.c.b16 %v1015, %v1014
  %v1070 = vpack.c.b16 %v1017, %v1016
  %v1071 = vpack.c.b16 %v1019, %v1018
  %v1072 = vpack.c.b16 %v1021, %v1020
  %v1073 = vpack.c.b16 %v1023, %v1022
  %v1074 = vpack.c.b16 %v1025, %v1024
  %v1075 = vpack.c.b16 %v1027, %v1026
  %v1076 = vpack.c.b16 %v1029, %v1028
  %v1077 = vpack.c.b16 %v1031, %v1030
  %v1078 = vpack.c.b16 %v1033, %v1032
  %v1079 = vpack.c.b16 %v1035, %v1034
  %v1080 = vpack.c.b16 %v1037, %v1036
  %v1081 = vpack.c.b16 %v1039, %v1038
  %v1082 = vpack.c.b16 %v1041, %v1040
  %v1083 = vpack.c.b16 %v1043, %v1042
  %v1124 = vmul.bf16 %v844, %v1044
  %v1125 = vmul.bf16 %v845, %v1045
  %v1126 = vmul.bf16 %v846, %v1046
  %v1127 = vmul.bf16 %v847, %v1047
  %v1128 = vmul.bf16 %v848, %v1048
  %v1129 = vmul.bf16 %v849, %v1049
  %v1130 = vmul.bf16 %v850, %v1050
  %v1131 = vmul.bf16 %v851, %v1051
  %v1132 = vmul.bf16 %v852, %v1052
  %v1133 = vmul.bf16 %v853, %v1053
  %v1134 = vmul.bf16 %v854, %v1054
  %v1135 = vmul.bf16 %v855, %v1055
  %v1136 = vmul.bf16 %v856, %v1056
  %v1137 = vmul.bf16 %v857, %v1057
  %v1138 = vmul.bf16 %v858, %v1058
  %v1139 = vmul.bf16 %v859, %v1059
  %v1140 = vmul.bf16 %v860, %v1060
  %v1141 = vmul.bf16 %v861, %v1061
  %v1142 = vmul.bf16 %v862, %v1062
  %v1143 = vmul.bf16 %v863, %v1063
  %v1144 = vmul.bf16 %v864, %v1064
  %v1145 = vmul.bf16 %v865, %v1065
  %v1146 = vmul.bf16 %v866, %v1066
  %v1147 = vmul.bf16 %v867, %v1067
  %v1148 = vmul.bf16 %v868, %v1068
  %v1149 = vmul.bf16 %v869, %v1069
  %v1150 = vmul.bf16 %v870, %v1070
  %v1151 = vmul.bf16 %v871, %v1071
  %v1152 = vmul.bf16 %v872, %v1072
  %v1153 = vmul.bf16 %v873, %v1073
  %v1154 = vmul.bf16 %v874, %v1074
  %v1155 = vmul.bf16 %v875, %v1075
  %v1156 = vmul.bf16 %v876, %v1076
  %v1157 = vmul.bf16 %v877, %v1077
  %v1158 = vmul.bf16 %v878, %v1078
  %v1159 = vmul.bf16 %v879, %v1079
  %v1160 = vmul.bf16 %v880, %v1080
  %v1161 = vmul.bf16 %v881, %v1081
  %v1162 = vmul.bf16 %v882, %v1082
  %v1163 = vmul.bf16 %v883, %v1083
  %v1164 = vld [vmem:[%s3] sm:$0x1]
  %v1165 = vld [vmem:[#allocation2 + $0x140] sm:$0x1]
  %vm1166 = vsmask.f32 256
  %v1168 = vshrl.u32 %v1044, 16
  %v1170 = vrot.slane %v1168, 7
  %v1171 = vshll.u32 %v1044, 16
  %v1173 = vor.u32 %v1170, %v1171
  %v1175 = vshrl.u32 %v1045, 16
  %v1177 = vrot.slane %v1175, 7
  %v1178 = vshll.u32 %v1045, 16
  %v1180 = vor.u32 %v1177, %v1178
  %v1181 = vsel %vm1166, %v1170, %v1180
  %v1183 = vshrl.u32 %v1046, 16
  %v1185 = vrot.slane %v1183, 7
  %v1186 = vshll.u32 %v1046, 16
  %v1188 = vor.u32 %v1185, %v1186
  %v1189 = vsel %vm1166, %v1177, %v1188
  %v1191 = vshrl.u32 %v1047, 16
  %v1193 = vrot.slane %v1191, 7
  %v1194 = vshll.u32 %v1047, 16
  %v1196 = vor.u32 %v1193, %v1194
  %v1197 = vsel %vm1166, %v1185, %v1196
  %v1199 = vshrl.u32 %v1048, 16
  %v1201 = vrot.slane %v1199, 7
  %v1202 = vshll.u32 %v1048, 16
  %v1204 = vor.u32 %v1201, %v1202
  %v1205 = vsel %vm1166, %v1193, %v1204
  %v1207 = vshrl.u32 %v1049, 16
  %v1209 = vrot.slane %v1207, 7
  %v1210 = vshll.u32 %v1049, 16
  %v1212 = vor.u32 %v1209, %v1210
  %v1213 = vsel %vm1166, %v1201, %v1212
  %v1215 = vshrl.u32 %v1050, 16
  %v1217 = vrot.slane %v1215, 7
  %v1218 = vshll.u32 %v1050, 16
  %v1220 = vor.u32 %v1217, %v1218
  %v1221 = vsel %vm1166, %v1209, %v1220
  %v1223 = vshrl.u32 %v1051, 16
  %v1225 = vrot.slane %v1223, 7
  %v1226 = vshll.u32 %v1051, 16
  %v1228 = vor.u32 %v1225, %v1226
  %v1229 = vsel %vm1166, %v1217, %v1228
  %v1231 = vshrl.u32 %v1052, 16
  %v1233 = vrot.slane %v1231, 7
  %v1234 = vshll.u32 %v1052, 16
  %v1236 = vor.u32 %v1233, %v1234
  %v1237 = vsel %vm1166, %v1225, %v1236
  %v1239 = vshrl.u32 %v1053, 16
  %v1241 = vrot.slane %v1239, 7
  %v1242 = vshll.u32 %v1053, 16
  %v1244 = vor.u32 %v1241, %v1242
  %v1245 = vsel %vm1166, %v1233, %v1244
  %v1247 = vshrl.u32 %v1054, 16
  %v1249 = vrot.slane %v1247, 7
  %v1250 = vshll.u32 %v1054, 16
  %v1252 = vor.u32 %v1249, %v1250
  %v1253 = vsel %vm1166, %v1241, %v1252
  %v1255 = vshrl.u32 %v1055, 16
  %v1257 = vrot.slane %v1255, 7
  %v1258 = vshll.u32 %v1055, 16
  %v1260 = vor.u32 %v1257, %v1258
  %v1261 = vsel %vm1166, %v1249, %v1260
  %v1263 = vshrl.u32 %v1056, 16
  %v1265 = vrot.slane %v1263, 7
  %v1266 = vshll.u32 %v1056, 16
  %v1268 = vor.u32 %v1265, %v1266
  %v1269 = vsel %vm1166, %v1257, %v1268
  %v1271 = vshrl.u32 %v1057, 16
  %v1273 = vrot.slane %v1271, 7
  %v1274 = vshll.u32 %v1057, 16
  %v1276 = vor.u32 %v1273, %v1274
  %v1277 = vsel %vm1166, %v1265, %v1276
  %v1279 = vshrl.u32 %v1058, 16
  %v1281 = vrot.slane %v1279, 7
  %v1282 = vshll.u32 %v1058, 16
  %v1284 = vor.u32 %v1281, %v1282
  %v1285 = vsel %vm1166, %v1273, %v1284
  %v1287 = vshrl.u32 %v1059, 16
  %v1289 = vrot.slane %v1287, 7
  %v1290 = vshll.u32 %v1059, 16
  %v1292 = vor.u32 %v1289, %v1290
  %v1293 = vsel %vm1166, %v1281, %v1292
  %v1295 = vshrl.u32 %v1060, 16
  %v1297 = vrot.slane %v1295, 7
  %v1298 = vshll.u32 %v1060, 16
  %v1300 = vor.u32 %v1297, %v1298
  %v1301 = vsel %vm1166, %v1289, %v1300
  %v1303 = vshrl.u32 %v1061, 16
  %v1305 = vrot.slane %v1303, 7
  %v1306 = vshll.u32 %v1061, 16
  %v1308 = vor.u32 %v1305, %v1306
  %v1309 = vsel %vm1166, %v1297, %v1308
  %v1311 = vshrl.u32 %v1062, 16
  %v1313 = vrot.slane %v1311, 7
  %v1314 = vshll.u32 %v1062, 16
  %v1316 = vor.u32 %v1313, %v1314
  %v1317 = vsel %vm1166, %v1305, %v1316
  %v1319 = vshrl.u32 %v1063, 16
  %v1321 = vrot.slane %v1319, 7
  %v1322 = vshll.u32 %v1063, 16
  %v1324 = vor.u32 %v1321, %v1322
  %v1325 = vsel %vm1166, %v1313, %v1324
  %v1327 = vshrl.u32 %v1064, 16
  %v1329 = vrot.slane %v1327, 7
  %v1330 = vshll.u32 %v1064, 16
  %v1332 = vor.u32 %v1329, %v1330
  %v1333 = vsel %vm1166, %v1321, %v1332
  %v1335 = vshrl.u32 %v1065, 16
  %v1337 = vrot.slane %v1335, 7
  %v1338 = vshll.u32 %v1065, 16
  %v1340 = vor.u32 %v1337, %v1338
  %v1341 = vsel %vm1166, %v1329, %v1340
  %v1343 = vshrl.u32 %v1066, 16
  %v1345 = vrot.slane %v1343, 7
  %v1346 = vshll.u32 %v1066, 16
  %v1348 = vor.u32 %v1345, %v1346
  %v1349 = vsel %vm1166, %v1337, %v1348
  %v1351 = vshrl.u32 %v1067, 16
  %v1353 = vrot.slane %v1351, 7
  %v1354 = vshll.u32 %v1067, 16
  %v1356 = vor.u32 %v1353, %v1354
  %v1357 = vsel %vm1166, %v1345, %v1356
  %v1359 = vshrl.u32 %v1068, 16
  %v1361 = vrot.slane %v1359, 7
  %v1362 = vshll.u32 %v1068, 16
  %v1364 = vor.u32 %v1361, %v1362
  %v1365 = vsel %vm1166, %v1353, %v1364
  %v1367 = vshrl.u32 %v1069, 16
  %v1369 = vrot.slane %v1367, 7
  %v1370 = vshll.u32 %v1069, 16
  %v1372 = vor.u32 %v1369, %v1370
  %v1373 = vsel %vm1166, %v1361, %v1372
  %v1375 = vshrl.u32 %v1070, 16
  %v1377 = vrot.slane %v1375, 7
  %v1378 = vshll.u32 %v1070, 16
  %v1380 = vor.u32 %v1377, %v1378
  %v1381 = vsel %vm1166, %v1369, %v1380
  %v1383 = vshrl.u32 %v1071, 16
  %v1385 = vrot.slane %v1383, 7
  %v1386 = vshll.u32 %v1071, 16
  %v1388 = vor.u32 %v1385, %v1386
  %v1389 = vsel %vm1166, %v1377, %v1388
  %v1391 = vshrl.u32 %v1072, 16
  %v1393 = vrot.slane %v1391, 7
  %v1394 = vshll.u32 %v1072, 16
  %v1396 = vor.u32 %v1393, %v1394
  %v1397 = vsel %vm1166, %v1385, %v1396
  %v1399 = vshrl.u32 %v1073, 16
  %v1401 = vrot.slane %v1399, 7
  %v1402 = vshll.u32 %v1073, 16
  %v1404 = vor.u32 %v1401, %v1402
  %v1405 = vsel %vm1166, %v1393, %v1404
  %v1407 = vshrl.u32 %v1074, 16
  %v1409 = vrot.slane %v1407, 7
  %v1410 = vshll.u32 %v1074, 16
  %v1412 = vor.u32 %v1409, %v1410
  %v1413 = vsel %vm1166, %v1401, %v1412
  %v1415 = vshrl.u32 %v1075, 16
  %v1417 = vrot.slane %v1415, 7
  %v1418 = vshll.u32 %v1075, 16
  %v1420 = vor.u32 %v1417, %v1418
  %v1421 = vsel %vm1166, %v1409, %v1420
  %v1423 = vshrl.u32 %v1076, 16
  %v1425 = vrot.slane %v1423, 7
  %v1426 = vshll.u32 %v1076, 16
  %v1428 = vor.u32 %v1425, %v1426
  %v1429 = vsel %vm1166, %v1417, %v1428
  %v1431 = vshrl.u32 %v1077, 16
  %v1433 = vrot.slane %v1431, 7
  %v1434 = vshll.u32 %v1077, 16
  %v1436 = vor.u32 %v1433, %v1434
  %v1437 = vsel %vm1166, %v1425, %v1436
  %v1439 = vshrl.u32 %v1078, 16
  %v1441 = vrot.slane %v1439, 7
  %v1442 = vshll.u32 %v1078, 16
  %v1444 = vor.u32 %v1441, %v1442
  %v1445 = vsel %vm1166, %v1433, %v1444
  %v1447 = vshrl.u32 %v1079, 16
  %v1449 = vrot.slane %v1447, 7
  %v1450 = vshll.u32 %v1079, 16
  %v1452 = vor.u32 %v1449, %v1450
  %v1453 = vsel %vm1166, %v1441, %v1452
  %v1455 = vshrl.u32 %v1080, 16
  %v1457 = vrot.slane %v1455, 7
  %v1458 = vshll.u32 %v1080, 16
  %v1460 = vor.u32 %v1457, %v1458
  %v1461 = vsel %vm1166, %v1449, %v1460
  %v1463 = vshrl.u32 %v1081, 16
  %v1465 = vrot.slane %v1463, 7
  %v1466 = vshll.u32 %v1081, 16
  %v1468 = vor.u32 %v1465, %v1466
  %v1469 = vsel %vm1166, %v1457, %v1468
  %v1471 = vshrl.u32 %v1082, 16
  %v1473 = vrot.slane %v1471, 7
  %v1474 = vshll.u32 %v1082, 16
  %v1476 = vor.u32 %v1473, %v1474
  %v1477 = vsel %vm1166, %v1465, %v1476
  %v1479 = vshrl.u32 %v1083, 16
  %v1481 = vrot.slane %v1479, 7
  %v1482 = vshll.u32 %v1083, 16
  %v1484 = vor.u32 %v1481, %v1482
  %v1485 = vsel %vm1166, %v1473, %v1484
  %1486 = vrot.lane.b32.xlu0 %v1173, 127
  %v1487 = vpop.permute.xlu0 %1486
  %1488 = vrot.lane.b32.xlu0 %v1181, 127
  %v1489 = vpop.permute.xlu0 %1488
  %1490 = vrot.lane.b32.xlu0 %v1189, 127
  %v1491 = vpop.permute.xlu0 %1490
  %1492 = vrot.lane.b32.xlu0 %v1197, 127
  %v1493 = vpop.permute.xlu0 %1492
  %1494 = vrot.lane.b32.xlu0 %v1205, 127
  %v1495 = vpop.permute.xlu0 %1494
  %1496 = vrot.lane.b32.xlu0 %v1213, 127
  %v1497 = vpop.permute.xlu0 %1496
  %1498 = vrot.lane.b32.xlu0 %v1221, 127
  %v1499 = vpop.permute.xlu0 %1498
  %1500 = vrot.lane.b32.xlu0 %v1229, 127
  %v1501 = vpop.permute.xlu0 %1500
  %1502 = vrot.lane.b32.xlu0 %v1237, 127
  %v1503 = vpop.permute.xlu0 %1502
  %1504 = vrot.lane.b32.xlu0 %v1245, 127
  %v1505 = vpop.permute.xlu0 %1504
  %1506 = vrot.lane.b32.xlu0 %v1253, 127
  %v1507 = vpop.permute.xlu0 %1506
  %1508 = vrot.lane.b32.xlu0 %v1261, 127
  %v1509 = vpop.permute.xlu0 %1508
  %1510 = vrot.lane.b32.xlu0 %v1269, 127
  %v1511 = vpop.permute.xlu0 %1510
  %1512 = vrot.lane.b32.xlu0 %v1277, 127
  %v1513 = vpop.permute.xlu0 %1512
  %1514 = vrot.lane.b32.xlu0 %v1285, 127
  %v1515 = vpop.permute.xlu0 %1514
  %1516 = vrot.lane.b32.xlu0 %v1293, 127
  %v1517 = vpop.permute.xlu0 %1516
  %1518 = vrot.lane.b32.xlu0 %v1301, 127
  %v1519 = vpop.permute.xlu0 %1518
  %1520 = vrot.lane.b32.xlu0 %v1309, 127
  %v1521 = vpop.permute.xlu0 %1520
  %1522 = vrot.lane.b32.xlu0 %v1317, 127
  %v1523 = vpop.permute.xlu0 %1522
  %1524 = vrot.lane.b32.xlu0 %v1325, 127
  %v1525 = vpop.permute.xlu0 %1524
  %1526 = vrot.lane.b32.xlu0 %v1333, 127
  %v1527 = vpop.permute.xlu0 %1526
  %1528 = vrot.lane.b32.xlu0 %v1341, 127
  %v1529 = vpop.permute.xlu0 %1528
  %1530 = vrot.lane.b32.xlu0 %v1349, 127
  %v1531 = vpop.permute.xlu0 %1530
  %1532 = vrot.lane.b32.xlu0 %v1357, 127
  %v1533 = vpop.permute.xlu0 %1532
  %1534 = vrot.lane.b32.xlu0 %v1365, 127
  %v1535 = vpop.permute.xlu0 %1534
  %1536 = vrot.lane.b32.xlu0 %v1373, 127
  %v1537 = vpop.permute.xlu0 %1536
  %1538 = vrot.lane.b32.xlu0 %v1381, 127
  %v1539 = vpop.permute.xlu0 %1538
  %1540 = vrot.lane.b32.xlu0 %v1389, 127
  %v1541 = vpop.permute.xlu0 %1540
  %1542 = vrot.lane.b32.xlu0 %v1397, 127
  %v1543 = vpop.permute.xlu0 %1542
  %1544 = vrot.lane.b32.xlu0 %v1405, 127
  %v1545 = vpop.permute.xlu0 %1544
  %1546 = vrot.lane.b32.xlu0 %v1413, 127
  %v1547 = vpop.permute.xlu0 %1546
  %1548 = vrot.lane.b32.xlu0 %v1421, 127
  %v1549 = vpop.permute.xlu0 %1548
  %1550 = vrot.lane.b32.xlu0 %v1429, 127
  %v1551 = vpop.permute.xlu0 %1550
  %1552 = vrot.lane.b32.xlu0 %v1437, 127
  %v1553 = vpop.permute.xlu0 %1552
  %1554 = vrot.lane.b32.xlu0 %v1445, 127
  %v1555 = vpop.permute.xlu0 %1554
  %1556 = vrot.lane.b32.xlu0 %v1453, 127
  %v1557 = vpop.permute.xlu0 %1556
  %1558 = vrot.lane.b32.xlu0 %v1461, 127
  %v1559 = vpop.permute.xlu0 %1558
  %1560 = vrot.lane.b32.xlu0 %v1469, 127
  %v1561 = vpop.permute.xlu0 %1560
  %1562 = vrot.lane.b32.xlu0 %v1477, 127
  %v1563 = vpop.permute.xlu0 %1562
  %1564 = vrot.lane.b32.xlu0 %v1485, 127
  %v1565 = vpop.permute.xlu0 %1564
  %1566 = vrot.lane.b32.xlu0 %v1481, 127
  %v1567 = vpop.permute.xlu0 %1566
  %v1609 = vmul.bf16 %v844, %v1487
  %v1610 = vmul.bf16 %v845, %v1489
  %v1611 = vmul.bf16 %v846, %v1491
  %v1612 = vmul.bf16 %v847, %v1493
  %v1613 = vmul.bf16 %v848, %v1495
  %v1614 = vmul.bf16 %v849, %v1497
  %v1615 = vmul.bf16 %v850, %v1499
  %v1616 = vmul.bf16 %v851, %v1501
  %v1617 = vmul.bf16 %v852, %v1503
  %v1618 = vmul.bf16 %v853, %v1505
  %v1619 = vmul.bf16 %v854, %v1507
  %v1620 = vmul.bf16 %v855, %v1509
  %v1621 = vmul.bf16 %v856, %v1511
  %v1622 = vmul.bf16 %v857, %v1513
  %v1623 = vmul.bf16 %v858, %v1515
  %v1624 = vmul.bf16 %v859, %v1517
  %v1625 = vmul.bf16 %v860, %v1519
  %v1626 = vmul.bf16 %v861, %v1521
  %v1627 = vmul.bf16 %v862, %v1523
  %v1628 = vmul.bf16 %v863, %v1525
  %v1629 = vmul.bf16 %v864, %v1527
  %v1630 = vmul.bf16 %v865, %v1529
  %v1631 = vmul.bf16 %v866, %v1531
  %v1632 = vmul.bf16 %v867, %v1533
  %v1633 = vmul.bf16 %v868, %v1535
  %v1634 = vmul.bf16 %v869, %v1537
  %v1635 = vmul.bf16 %v870, %v1539
  %v1636 = vmul.bf16 %v871, %v1541
  %v1637 = vmul.bf16 %v872, %v1543
  %v1638 = vmul.bf16 %v873, %v1545
  %v1639 = vmul.bf16 %v874, %v1547
  %v1640 = vmul.bf16 %v875, %v1549
  %v1641 = vmul.bf16 %v876, %v1551
  %v1642 = vmul.bf16 %v877, %v1553
  %v1643 = vmul.bf16 %v878, %v1555
  %v1644 = vmul.bf16 %v879, %v1557
  %v1645 = vmul.bf16 %v880, %v1559
  %v1646 = vmul.bf16 %v881, %v1561
  %v1647 = vmul.bf16 %v882, %v1563
  %v1648 = vmul.bf16 %v883, %v1565
  %v1649 = vmul.bf16 %v1165, %v1567
  %vm1650 = vsmask.f32 7424
  %v1652 = vshrl.u32 %v1609, 16
  %v1654 = vshll.u32 %v1609, 16
  %v1656 = vrot.slane %v1654, 1
  %v1657 = vor.u32 %v1652, %v1656
  %v1659 = vshll.u32 %v1610, 16
  %v1661 = vrot.slane %v1659, 1
  %v1662 = vsel %vm1650, %v1657, %v1661
  %v1663 = vshrl.u32 %v1610, 16
  %v1665 = vor.u32 %v1663, %v1661
  %v1667 = vshll.u32 %v1611, 16
  %v1669 = vrot.slane %v1667, 1
  %v1670 = vsel %vm1650, %v1665, %v1669
  %v1671 = vshrl.u32 %v1611, 16
  %v1673 = vor.u32 %v1671, %v1669
  %v1675 = vshll.u32 %v1612, 16
  %v1677 = vrot.slane %v1675, 1
  %v1678 = vsel %vm1650, %v1673, %v1677
  %v1679 = vshrl.u32 %v1612, 16
  %v1681 = vor.u32 %v1679, %v1677
  %v1683 = vshll.u32 %v1613, 16
  %v1685 = vrot.slane %v1683, 1
  %v1686 = vsel %vm1650, %v1681, %v1685
  %v1687 = vshrl.u32 %v1613, 16
  %v1689 = vor.u32 %v1687, %v1685
  %v1691 = vshll.u32 %v1614, 16
  %v1693 = vrot.slane %v1691, 1
  %v1694 = vsel %vm1650, %v1689, %v1693
  %v1695 = vshrl.u32 %v1614, 16
  %v1697 = vor.u32 %v1695, %v1693
  %v1699 = vshll.u32 %v1615, 16
  %v1701 = vrot.slane %v1699, 1
  %v1702 = vsel %vm1650, %v1697, %v1701
  %v1703 = vshrl.u32 %v1615, 16
  %v1705 = vor.u32 %v1703, %v1701
  %v1707 = vshll.u32 %v1616, 16
  %v1709 = vrot.slane %v1707, 1
  %v1710 = vsel %vm1650, %v1705, %v1709
  %v1711 = vshrl.u32 %v1616, 16
  %v1713 = vor.u32 %v1711, %v1709
  %v1715 = vshll.u32 %v1617, 16
  %v1717 = vrot.slane %v1715, 1
  %v1718 = vsel %vm1650, %v1713, %v1717
  %v1719 = vshrl.u32 %v1617, 16
  %v1721 = vor.u32 %v1719, %v1717
  %v1723 = vshll.u32 %v1618, 16
  %v1725 = vrot.slane %v1723, 1
  %v1726 = vsel %vm1650, %v1721, %v1725
  %v1727 = vshrl.u32 %v1618, 16
  %v1729 = vor.u32 %v1727, %v1725
  %v1731 = vshll.u32 %v1619, 16
  %v1733 = vrot.slane %v1731, 1
  %v1734 = vsel %vm1650, %v1729, %v1733
  %v1735 = vshrl.u32 %v1619, 16
  %v1737 = vor.u32 %v1735, %v1733
  %v1739 = vshll.u32 %v1620, 16
  %v1741 = vrot.slane %v1739, 1
  %v1742 = vsel %vm1650, %v1737, %v1741
  %v1743 = vshrl.u32 %v1620, 16
  %v1745 = vor.u32 %v1743, %v1741
  %v1747 = vshll.u32 %v1621, 16
  %v1749 = vrot.slane %v1747, 1
  %v1750 = vsel %vm1650, %v1745, %v1749
  %v1751 = vshrl.u32 %v1621, 16
  %v1753 = vor.u32 %v1751, %v1749
  %v1755 = vshll.u32 %v1622, 16
  %v1757 = vrot.slane %v1755, 1
  %v1758 = vsel %vm1650, %v1753, %v1757
  %v1759 = vshrl.u32 %v1622, 16
  %v1761 = vor.u32 %v1759, %v1757
  %v1763 = vshll.u32 %v1623, 16
  %v1765 = vrot.slane %v1763, 1
  %v1766 = vsel %vm1650, %v1761, %v1765
  %v1767 = vshrl.u32 %v1623, 16
  %v1769 = vor.u32 %v1767, %v1765
  %v1771 = vshll.u32 %v1624, 16
  %v1773 = vrot.slane %v1771, 1
  %v1774 = vsel %vm1650, %v1769, %v1773
  %v1775 = vshrl.u32 %v1624, 16
  %v1777 = vor.u32 %v1775, %v1773
  %v1779 = vshll.u32 %v1625, 16
  %v1781 = vrot.slane %v1779, 1
  %v1782 = vsel %vm1650, %v1777, %v1781
  %v1783 = vshrl.u32 %v1625, 16
  %v1785 = vor.u32 %v1783, %v1781
  %v1787 = vshll.u32 %v1626, 16
  %v1789 = vrot.slane %v1787, 1
  %v1790 = vsel %vm1650, %v1785, %v1789
  %v1791 = vshrl.u32 %v1626, 16
  %v1793 = vor.u32 %v1791, %v1789
  %v1795 = vshll.u32 %v1627, 16
  %v1797 = vrot.slane %v1795, 1
  %v1798 = vsel %vm1650, %v1793, %v1797
  %v1799 = vshrl.u32 %v1627, 16
  %v1801 = vor.u32 %v1799, %v1797
  %v1803 = vshll.u32 %v1628, 16
  %v1805 = vrot.slane %v1803, 1
  %v1806 = vsel %vm1650, %v1801, %v1805
  %v1807 = vshrl.u32 %v1628, 16
  %v1809 = vor.u32 %v1807, %v1805
  %v1811 = vshll.u32 %v1629, 16
  %v1813 = vrot.slane %v1811, 1
  %v1814 = vsel %vm1650, %v1809, %v1813
  %v1815 = vshrl.u32 %v1629, 16
  %v1817 = vor.u32 %v1815, %v1813
  %v1819 = vshll.u32 %v1630, 16
  %v1821 = vrot.slane %v1819, 1
  %v1822 = vsel %vm1650, %v1817, %v1821
  %v1823 = vshrl.u32 %v1630, 16
  %v1825 = vor.u32 %v1823, %v1821
  %v1827 = vshll.u32 %v1631, 16
  %v1829 = vrot.slane %v1827, 1
  %v1830 = vsel %vm1650, %v1825, %v1829
  %v1831 = vshrl.u32 %v1631, 16
  %v1833 = vor.u32 %v1831, %v1829
  %v1835 = vshll.u32 %v1632, 16
  %v1837 = vrot.slane %v1835, 1
  %v1838 = vsel %vm1650, %v1833, %v1837
  %v1839 = vshrl.u32 %v1632, 16
  %v1841 = vor.u32 %v1839, %v1837
  %v1843 = vshll.u32 %v1633, 16
  %v1845 = vrot.slane %v1843, 1
  %v1846 = vsel %vm1650, %v1841, %v1845
  %v1847 = vshrl.u32 %v1633, 16
  %v1849 = vor.u32 %v1847, %v1845
  %v1851 = vshll.u32 %v1634, 16
  %v1853 = vrot.slane %v1851, 1
  %v1854 = vsel %vm1650, %v1849, %v1853
  %v1855 = vshrl.u32 %v1634, 16
  %v1857 = vor.u32 %v1855, %v1853
  %v1859 = vshll.u32 %v1635, 16
  %v1861 = vrot.slane %v1859, 1
  %v1862 = vsel %vm1650, %v1857, %v1861
  %v1863 = vshrl.u32 %v1635, 16
  %v1865 = vor.u32 %v1863, %v1861
  %v1867 = vshll.u32 %v1636, 16
  %v1869 = vrot.slane %v1867, 1
  %v1870 = vsel %vm1650, %v1865, %v1869
  %v1871 = vshrl.u32 %v1636, 16
  %v1873 = vor.u32 %v1871, %v1869
  %v1875 = vshll.u32 %v1637, 16
  %v1877 = vrot.slane %v1875, 1
  %v1878 = vsel %vm1650, %v1873, %v1877
  %v1879 = vshrl.u32 %v1637, 16
  %v1881 = vor.u32 %v1879, %v1877
  %v1883 = vshll.u32 %v1638, 16
  %v1885 = vrot.slane %v1883, 1
  %v1886 = vsel %vm1650, %v1881, %v1885
  %v1887 = vshrl.u32 %v1638, 16
  %v1889 = vor.u32 %v1887, %v1885
  %v1891 = vshll.u32 %v1639, 16
  %v1893 = vrot.slane %v1891, 1
  %v1894 = vsel %vm1650, %v1889, %v1893
  %v1895 = vshrl.u32 %v1639, 16
  %v1897 = vor.u32 %v1895, %v1893
  %v1899 = vshll.u32 %v1640, 16
  %v1901 = vrot.slane %v1899, 1
  %v1902 = vsel %vm1650, %v1897, %v1901
  %v1903 = vshrl.u32 %v1640, 16
  %v1905 = vor.u32 %v1903, %v1901
  %v1907 = vshll.u32 %v1641, 16
  %v1909 = vrot.slane %v1907, 1
  %v1910 = vsel %vm1650, %v1905, %v1909
  %v1911 = vshrl.u32 %v1641, 16
  %v1913 = vor.u32 %v1911, %v1909
  %v1915 = vshll.u32 %v1642, 16
  %v1917 = vrot.slane %v1915, 1
  %v1918 = vsel %vm1650, %v1913, %v1917
  %v1919 = vshrl.u32 %v1642, 16
  %v1921 = vor.u32 %v1919, %v1917
  %v1923 = vshll.u32 %v1643, 16
  %v1925 = vrot.slane %v1923, 1
  %v1926 = vsel %vm1650, %v1921, %v1925
  %v1927 = vshrl.u32 %v1643, 16
  %v1929 = vor.u32 %v1927, %v1925
  %v1931 = vshll.u32 %v1644, 16
  %v1933 = vrot.slane %v1931, 1
  %v1934 = vsel %vm1650, %v1929, %v1933
  %v1935 = vshrl.u32 %v1644, 16
  %v1937 = vor.u32 %v1935, %v1933
  %v1939 = vshll.u32 %v1645, 16
  %v1941 = vrot.slane %v1939, 1
  %v1942 = vsel %vm1650, %v1937, %v1941
  %v1943 = vshrl.u32 %v1645, 16
  %v1945 = vor.u32 %v1943, %v1941
  %v1947 = vshll.u32 %v1646, 16
  %v1949 = vrot.slane %v1947, 1
  %v1950 = vsel %vm1650, %v1945, %v1949
  %v1951 = vshrl.u32 %v1646, 16
  %v1953 = vor.u32 %v1951, %v1949
  %v1955 = vshll.u32 %v1647, 16
  %v1957 = vrot.slane %v1955, 1
  %v1958 = vsel %vm1650, %v1953, %v1957
  %v1959 = vshrl.u32 %v1647, 16
  %v1961 = vor.u32 %v1959, %v1957
  %v1963 = vshll.u32 %v1648, 16
  %v1965 = vrot.slane %v1963, 1
  %v1966 = vsel %vm1650, %v1961, %v1965
  %v1967 = vshrl.u32 %v1648, 16
  %v1969 = vor.u32 %v1967, %v1965
  %v1971 = vshll.u32 %v1649, 16
  %v1973 = vrot.slane %v1971, 1
  %v1974 = vsel %vm1650, %v1969, %v1973
  %v1976 = vunpack.c.l.b16 %v1164
  %v1977 = vpack.c.b16 %v1976, %v1976
  %v1979 = vshrl.u32 %v1977, 16
  %v1982 = vsel %vm363, %v1662, 0
  %v1985 = vsel %vm363, %v1670, 0
  %v1988 = vsel %vm363, %v1678, 0
  %v1991 = vsel %vm363, %v1686, 0
  %v1994 = vsel %vm363, %v1694, 0
  %v1997 = vsel %vm363, %v1702, 0
  %v2000 = vsel %vm363, %v1710, 0
  %v2003 = vsel %vm363, %v1718, 0
  %v2006 = vsel %vm363, %v1726, 0
  %v2009 = vsel %vm363, %v1734, 0
  %v2012 = vsel %vm363, %v1742, 0
  %v2015 = vsel %vm363, %v1750, 0
  %v2018 = vsel %vm363, %v1758, 0
  %v2021 = vsel %vm363, %v1766, 0
  %v2024 = vsel %vm363, %v1774, 0
  %v2027 = vsel %vm363, %v1782, 0
  %v2030 = vsel %vm363, %v1790, 0
  %v2033 = vsel %vm363, %v1798, 0
  %v2036 = vsel %vm363, %v1806, 0
  %v2039 = vsel %vm363, %v1814, 0
  %v2042 = vsel %vm363, %v1822, 0
  %v2045 = vsel %vm363, %v1830, 0
  %v2048 = vsel %vm363, %v1838, 0
  %v2051 = vsel %vm363, %v1846, 0
  %v2054 = vsel %vm363, %v1854, 0
  %v2057 = vsel %vm363, %v1862, 0
  %v2060 = vsel %vm363, %v1870, 0
  %v2063 = vsel %vm363, %v1878, 0
  %v2066 = vsel %vm363, %v1886, 0
  %v2069 = vsel %vm363, %v1894, 0
  %v2072 = vsel %vm363, %v1902, 0
  %v2075 = vsel %vm363, %v1910, 0
  %v2078 = vsel %vm363, %v1918, 0
  %v2081 = vsel %vm363, %v1926, 0
  %v2084 = vsel %vm363, %v1934, 0
  %v2087 = vsel %vm363, %v1942, 0
  %v2090 = vsel %vm363, %v1950, 0
  %v2093 = vsel %vm363, %v1958, 0
  %v2096 = vsel %vm363, %v1966, 0
  %v2099 = vsel %vm363, %v1974, 0
  %vm2101 = vcmask 1040384
  %v2102 = vsel 0, 4294967295, 65535
  %v2103 = vsel %vm2101, %v2102, 0
  %v2105 = vand.u32 %v1979, %v2103
  %2107 = vmatprep.subr.bf16.mxu0 0
  %2108 = vmatpush1.bf16.msra.mxu0 %v2105
  %2109 = vmatprep.subr.bf16.mxu0 0
  %2110 = vmatpush1.bf16.msra.mxu0 0
  %2111 = vmatprep.subr.bf16.mxu0 0
  %2112 = vmatpush1.bf16.msra.mxu0 0
  %2113 = vmatprep.subr.bf16.mxu0 0
  %2114 = vmatpush1.bf16.msra.mxu0 0
  %2115 = vmatprep.subr.bf16.mxu0 0
  %2116 = vmatpush1.bf16.msra.mxu0 0
  %2117 = vmatprep.subr.bf16.mxu0 0
  %2118 = vmatpush1.bf16.msra.mxu0 0
  %2119 = vmatprep.subr.bf16.mxu0 0
  %2120 = vmatpush1.bf16.msra.mxu0 0
  %2121 = vmatprep.subr.bf16.mxu0 0
  %2122 = vmatpush1.bf16.msra.mxu0 0
  %2123 = vmatprep.subr.bf16.mxu0 0
  %2124 = vmatpush1.bf16.msra.mxu0 0
  %2125 = vmatprep.subr.bf16.mxu0 0
  %2126 = vmatpush1.bf16.msra.mxu0 0
  %2127 = vmatprep.subr.bf16.mxu0 0
  %2128 = vmatpush1.bf16.msra.mxu0 0
  %2129 = vmatprep.subr.bf16.mxu0 0
  %2130 = vmatpush1.bf16.msra.mxu0 0
  %2131 = vmatprep.subr.bf16.mxu0 0
  %2132 = vmatpush1.bf16.msra.mxu0 0
  %2133 = vmatprep.subr.bf16.mxu0 0
  %2134 = vmatpush1.bf16.msra.mxu0 0
  %2135 = vmatprep.subr.bf16.mxu0 0
  %2136 = vmatpush1.bf16.msra.mxu0 0
  %2137 = vmatprep.subr.bf16.mxu0 0
  %2138 = vmatpush1.bf16.msra.mxu0 0
  %2139 = vmatprep.mubr.bf16.mxu0 0
  %2140 = vmatmul.mubr.bf16.gmra.mrb[0].mxu0 %v1982
  %v2141 = vpop.f32.mrb[0].mxu0
  %v2142 = vadd.f32 0.0, %v2141
  %v2143 = vpop.f32.mrb[0].mxu0
  %v2144 = vpop.f32.mrb[0].mxu0
  %v2145 = vadd.f32 0.0, %v2144
  %v2146 = vpop.f32.mrb[0].mxu0
  %2147 = vmatprep.mubr.bf16.mxu0 0
  %2148 = vmatmul.mubr.bf16.gmra.mrb[0].mxu0 %v1985
  %v2149 = vpop.f32.mrb[0].mxu0
  %v2150 = vadd.f32 0.0, %v2149
  %v2151 = vpop.f32.mrb[0].mxu0
  %v2152 = vpop.f32.mrb[0].mxu0
  %v2153 = vadd.f32 0.0, %v2152
  %v2154 = vpop.f32.mrb[0].mxu0
  %2155 = vmatprep.mubr.bf16.mxu0 0
  %2156 = vmatmul.mubr.bf16.gmra.mrb[0].mxu0 %v1988
  %v2157 = vpop.f32.mrb[0].mxu0
  %v2158 = vadd.f32 0.0, %v2157
  %v2159 = vpop.f32.mrb[0].mxu0
  %v2160 = vpop.f32.mrb[0].mxu0
  %v2161 = vadd.f32 0.0, %v2160
  %v2162 = vpop.f32.mrb[0].mxu0
  %2163 = vmatprep.mubr.bf16.mxu0 0
  %2164 = vmatmul.mubr.bf16.gmra.mrb[0].mxu0 %v1991
  %v2165 = vpop.f32.mrb[0].mxu0
  %v2166 = vadd.f32 0.0, %v2165
  %v2167 = vpop.f32.mrb[0].mxu0
  %v2168 = vpop.f32.mrb[0].mxu0
  %v2169 = vadd.f32 0.0, %v2168
  %v2170 = vpop.f32.mrb[0].mxu0
  %2171 = vmatprep.mubr.bf16.mxu0 0
  %2172 = vmatmul.mubr.bf16.gmra.mrb[0].mxu0 %v1994
  %v2173 = vpop.f32.mrb[0].mxu0
  %v2174 = vadd.f32 0.0, %v2173
  %v2175 = vpop.f32.mrb[0].mxu0
  %v2176 = vpop.f32.mrb[0].mxu0
  %v2177 = vadd.f32 0.0, %v2176
  %v2178 = vpop.f32.mrb[0].mxu0
  %2179 = vmatprep.mubr.bf16.mxu0 0
  %2180 = vmatmul.mubr.bf16.gmra.mrb[0].mxu0 %v1997
  %v2181 = vpop.f32.mrb[0].mxu0
  %v2182 = vadd.f32 0.0, %v2181
  %v2183 = vpop.f32.mrb[0].mxu0
  %v2184 = vpop.f32.mrb[0].mxu0
  %v2185 = vadd.f32 0.0, %v2184
  %v2186 = vpop.f32.mrb[0].mxu0
  %2187 = vmatprep.mubr.bf16.mxu0 0
  %2188 = vmatmul.mubr.bf16.gmra.mrb[0].mxu0 %v2000
  %v2189 = vpop.f32.mrb[0].mxu0
  %v2190 = vadd.f32 0.0, %v2189
  %v2191 = vpop.f32.mrb[0].mxu0
  %v2192 = vpop.f32.mrb[0].mxu0
  %v2193 = vadd.f32 0.0, %v2192
  %v2194 = vpop.f32.mrb[0].mxu0
  %2195 = vmatprep.mubr.bf16.mxu0 0
  %2196 = vmatmul.mubr.bf16.gmra.mrb[0].mxu0 %v2003
  %v2197 = vpop.f32.mrb[0].mxu0
  %v2198 = vadd.f32 0.0, %v2197
  %v2199 = vpop.f32.mrb[0].mxu0
  %v2200 = vpop.f32.mrb[0].mxu0
  %v2201 = vadd.f32 0.0, %v2200
  %v2202 = vpop.f32.mrb[0].mxu0
  %2203 = vmatprep.mubr.bf16.mxu0 0
  %2204 = vmatmul.mubr.bf16.gmra.mrb[0].mxu0 %v2006
  %v2205 = vpop.f32.mrb[0].mxu0
  %v2206 = vadd.f32 0.0, %v2205
  %v2207 = vpop.f32.mrb[0].mxu0
  %v2208 = vpop.f32.mrb[0].mxu0
  %v2209 = vadd.f32 0.0, %v2208
  %v2210 = vpop.f32.mrb[0].mxu0
  %2211 = vmatprep.mubr.bf16.mxu0 0
  %2212 = vmatmul.mubr.bf16.gmra.mrb[0].mxu0 %v2009
  %v2213 = vpop.f32.mrb[0].mxu0
  %v2214 = vadd.f32 0.0, %v2213
  %v2215 = vpop.f32.mrb[0].mxu0
  %v2216 = vpop.f32.mrb[0].mxu0
  %v2217 = vadd.f32 0.0, %v2216
  %v2218 = vpop.f32.mrb[0].mxu0
  %2219 = vmatprep.mubr.bf16.mxu0 0
  %2220 = vmatmul.mubr.bf16.gmra.mrb[0].mxu0 %v2012
  %v2221 = vpop.f32.mrb[0].mxu0
  %v2222 = vadd.f32 0.0, %v2221
  %v2223 = vpop.f32.mrb[0].mxu0
  %v2224 = vpop.f32.mrb[0].mxu0
  %v2225 = vadd.f32 0.0, %v2224
  %v2226 = vpop.f32.mrb[0].mxu0
  %2227 = vmatprep.mubr.bf16.mxu0 0
  %2228 = vmatmul.mubr.bf16.gmra.mrb[0].mxu0 %v2015
  %v2229 = vpop.f32.mrb[0].mxu0
  %v2230 = vadd.f32 0.0, %v2229
  %v2231 = vpop.f32.mrb[0].mxu0
  %v2232 = vpop.f32.mrb[0].mxu0
  %v2233 = vadd.f32 0.0, %v2232
  %v2234 = vpop.f32.mrb[0].mxu0
  %2235 = vmatprep.mubr.bf16.mxu0 0
  %2236 = vmatmul.mubr.bf16.gmra.mrb[0].mxu0 %v2018
  %v2237 = vpop.f32.mrb[0].mxu0
  %v2238 = vadd.f32 0.0, %v2237
  %v2239 = vpop.f32.mrb[0].mxu0
  %v2240 = vpop.f32.mrb[0].mxu0
  %v2241 = vadd.f32 0.0, %v2240
  %v2242 = vpop.f32.mrb[0].mxu0
  %2243 = vmatprep.mubr.bf16.mxu0 0
  %2244 = vmatmul.mubr.bf16.gmra.mrb[0].mxu0 %v2021
  %v2245 = vpop.f32.mrb[0].mxu0
  %v2246 = vadd.f32 0.0, %v2245
  %v2247 = vpop.f32.mrb[0].mxu0
  %v2248 = vpop.f32.mrb[0].mxu0
  %v2249 = vadd.f32 0.0, %v2248
  %v2250 = vpop.f32.mrb[0].mxu0
  %2251 = vmatprep.mubr.bf16.mxu0 0
  %2252 = vmatmul.mubr.bf16.gmra.mrb[0].mxu0 %v2024
  %v2253 = vpop.f32.mrb[0].mxu0
  %v2254 = vadd.f32 0.0, %v2253
  %v2255 = vpop.f32.mrb[0].mxu0
  %v2256 = vpop.f32.mrb[0].mxu0
  %v2257 = vadd.f32 0.0, %v2256
  %v2258 = vpop.f32.mrb[0].mxu0
  %2259 = vmatprep.mubr.bf16.mxu0 0
  %2260 = vmatmul.mubr.bf16.gmra.mrb[0].mxu0 %v2027
  %v2261 = vpop.f32.mrb[0].mxu0
  %v2262 = vadd.f32 0.0, %v2261
  %v2263 = vpop.f32.mrb[0].mxu0
  %v2264 = vpop.f32.mrb[0].mxu0
  %v2265 = vadd.f32 0.0, %v2264
  %v2266 = vpop.f32.mrb[0].mxu0
  %2267 = vmatprep.mubr.bf16.mxu0 0
  %2268 = vmatmul.mubr.bf16.gmra.mrb[0].mxu0 %v2030
  %v2269 = vpop.f32.mrb[0].mxu0
  %v2270 = vadd.f32 0.0, %v2269
  %v2271 = vpop.f32.mrb[0].mxu0
  %v2272 = vpop.f32.mrb[0].mxu0
  %v2273 = vadd.f32 0.0, %v2272
  %v2274 = vpop.f32.mrb[0].mxu0
  %2275 = vmatprep.mubr.bf16.mxu0 0
  %2276 = vmatmul.mubr.bf16.gmra.mrb[0].mxu0 %v2033
  %v2277 = vpop.f32.mrb[0].mxu0
  %v2278 = vadd.f32 0.0, %v2277
  %v2279 = vpop.f32.mrb[0].mxu0
  %v2280 = vpop.f32.mrb[0].mxu0
  %v2281 = vadd.f32 0.0, %v2280
  %v2282 = vpop.f32.mrb[0].mxu0
  %2283 = vmatprep.mubr.bf16.mxu0 0
  %2284 = vmatmul.mubr.bf16.gmra.mrb[0].mxu0 %v2036
  %v2285 = vpop.f32.mrb[0].mxu0
  %v2286 = vadd.f32 0.0, %v2285
  %v2287 = vpop.f32.mrb[0].mxu0
  %v2288 = vpop.f32.mrb[0].mxu0
  %v2289 = vadd.f32 0.0, %v2288
  %v2290 = vpop.f32.mrb[0].mxu0
  %2291 = vmatprep.mubr.bf16.mxu0 0
  %2292 = vmatmul.mubr.bf16.gmra.mrb[0].mxu0 %v2039
  %v2293 = vpop.f32.mrb[0].mxu0
  %v2294 = vadd.f32 0.0, %v2293
  %v2295 = vpop.f32.mrb[0].mxu0
  %v2296 = vpop.f32.mrb[0].mxu0
  %v2297 = vadd.f32 0.0, %v2296
  %v2298 = vpop.f32.mrb[0].mxu0
  %2299 = vmatprep.mubr.bf16.mxu0 0
  %2300 = vmatmul.mubr.bf16.gmra.mrb[0].mxu0 %v2042
  %v2301 = vpop.f32.mrb[0].mxu0
  %v2302 = vadd.f32 0.0, %v2301
  %v2303 = vpop.f32.mrb[0].mxu0
  %v2304 = vpop.f32.mrb[0].mxu0
  %v2305 = vadd.f32 0.0, %v2304
  %v2306 = vpop.f32.mrb[0].mxu0
  %2307 = vmatprep.mubr.bf16.mxu0 0
  %2308 = vmatmul.mubr.bf16.gmra.mrb[0].mxu0 %v2045
  %v2309 = vpop.f32.mrb[0].mxu0
  %v2310 = vadd.f32 0.0, %v2309
  %v2311 = vpop.f32.mrb[0].mxu0
  %v2312 = vpop.f32.mrb[0].mxu0
  %v2313 = vadd.f32 0.0, %v2312
  %v2314 = vpop.f32.mrb[0].mxu0
  %2315 = vmatprep.mubr.bf16.mxu0 0
  %2316 = vmatmul.mubr.bf16.gmra.mrb[0].mxu0 %v2048
  %v2317 = vpop.f32.mrb[0].mxu0
  %v2318 = vadd.f32 0.0, %v2317
  %v2319 = vpop.f32.mrb[0].mxu0
  %v2320 = vpop.f32.mrb[0].mxu0
  %v2321 = vadd.f32 0.0, %v2320
  %v2322 = vpop.f32.mrb[0].mxu0
  %2323 = vmatprep.mubr.bf16.mxu0 0
  %2324 = vmatmul.mubr.bf16.gmra.mrb[0].mxu0 %v2051
  %v2325 = vpop.f32.mrb[0].mxu0
  %v2326 = vadd.f32 0.0, %v2325
  %v2327 = vpop.f32.mrb[0].mxu0
  %v2328 = vpop.f32.mrb[0].mxu0
  %v2329 = vadd.f32 0.0, %v2328
  %v2330 = vpop.f32.mrb[0].mxu0
  %2331 = vmatprep.mubr.bf16.mxu0 0
  %2332 = vmatmul.mubr.bf16.gmra.mrb[0].mxu0 %v2054
  %v2333 = vpop.f32.mrb[0].mxu0
  %v2334 = vadd.f32 0.0, %v2333
  %v2335 = vpop.f32.mrb[0].mxu0
  %v2336 = vpop.f32.mrb[0].mxu0
  %v2337 = vadd.f32 0.0, %v2336
  %v2338 = vpop.f32.mrb[0].mxu0
  %2339 = vmatprep.mubr.bf16.mxu0 0
  %2340 = vmatmul.mubr.bf16.gmra.mrb[0].mxu0 %v2057
  %v2341 = vpop.f32.mrb[0].mxu0
  %v2342 = vadd.f32 0.0, %v2341
  %v2343 = vpop.f32.mrb[0].mxu0
  %v2344 = vpop.f32.mrb[0].mxu0
  %v2345 = vadd.f32 0.0, %v2344
  %v2346 = vpop.f32.mrb[0].mxu0
  %2347 = vmatprep.mubr.bf16.mxu0 0
  %2348 = vmatmul.mubr.bf16.gmra.mrb[0].mxu0 %v2060
  %v2349 = vpop.f32.mrb[0].mxu0
  %v2350 = vadd.f32 0.0, %v2349
  %v2351 = vpop.f32.mrb[0].mxu0
  %v2352 = vpop.f32.mrb[0].mxu0
  %v2353 = vadd.f32 0.0, %v2352
  %v2354 = vpop.f32.mrb[0].mxu0
  %2355 = vmatprep.mubr.bf16.mxu0 0
  %2356 = vmatmul.mubr.bf16.gmra.mrb[0].mxu0 %v2063
  %v2357 = vpop.f32.mrb[0].mxu0
  %v2358 = vadd.f32 0.0, %v2357
  %v2359 = vpop.f32.mrb[0].mxu0
  %v2360 = vpop.f32.mrb[0].mxu0
  %v2361 = vadd.f32 0.0, %v2360
  %v2362 = vpop.f32.mrb[0].mxu0
  %2363 = vmatprep.mubr.bf16.mxu0 0
  %2364 = vmatmul.mubr.bf16.gmra.mrb[0].mxu0 %v2066
  %v2365 = vpop.f32.mrb[0].mxu0
  %v2366 = vadd.f32 0.0, %v2365
  %v2367 = vpop.f32.mrb[0].mxu0
  %v2368 = vpop.f32.mrb[0].mxu0
  %v2369 = vadd.f32 0.0, %v2368
  %v2370 = vpop.f32.mrb[0].mxu0
  %2371 = vmatprep.mubr.bf16.mxu0 0
  %2372 = vmatmul.mubr.bf16.gmra.mrb[0].mxu0 %v2069
  %v2373 = vpop.f32.mrb[0].mxu0
  %v2374 = vadd.f32 0.0, %v2373
  %v2375 = vpop.f32.mrb[0].mxu0
  %v2376 = vpop.f32.mrb[0].mxu0
  %v2377 = vadd.f32 0.0, %v2376
  %v2378 = vpop.f32.mrb[0].mxu0
  %2379 = vmatprep.mubr.bf16.mxu0 0
  %2380 = vmatmul.mubr.bf16.gmra.mrb[0].mxu0 %v2072
  %v2381 = vpop.f32.mrb[0].mxu0
  %v2382 = vadd.f32 0.0, %v2381
  %v2383 = vpop.f32.mrb[0].mxu0
  %v2384 = vpop.f32.mrb[0].mxu0
  %v2385 = vadd.f32 0.0, %v2384
  %v2386 = vpop.f32.mrb[0].mxu0
  %2387 = vmatprep.mubr.bf16.mxu0 0
  %2388 = vmatmul.mubr.bf16.gmra.mrb[0].mxu0 %v2075
  %v2389 = vpop.f32.mrb[0].mxu0
  %v2390 = vadd.f32 0.0, %v2389
  %v2391 = vpop.f32.mrb[0].mxu0
  %v2392 = vpop.f32.mrb[0].mxu0
  %v2393 = vadd.f32 0.0, %v2392
  %v2394 = vpop.f32.mrb[0].mxu0
  %2395 = vmatprep.mubr.bf16.mxu0 0
  %2396 = vmatmul.mubr.bf16.gmra.mrb[0].mxu0 %v2078
  %v2397 = vpop.f32.mrb[0].mxu0
  %v2398 = vadd.f32 0.0, %v2397
  %v2399 = vpop.f32.mrb[0].mxu0
  %v2400 = vpop.f32.mrb[0].mxu0
  %v2401 = vadd.f32 0.0, %v2400
  %v2402 = vpop.f32.mrb[0].mxu0
  %2403 = vmatprep.mubr.bf16.mxu0 0
  %2404 = vmatmul.mubr.bf16.gmra.mrb[0].mxu0 %v2081
  %v2405 = vpop.f32.mrb[0].mxu0
  %v2406 = vadd.f32 0.0, %v2405
  %v2407 = vpop.f32.mrb[0].mxu0
  %v2408 = vpop.f32.mrb[0].mxu0
  %v2409 = vadd.f32 0.0, %v2408
  %v2410 = vpop.f32.mrb[0].mxu0
  %2411 = vmatprep.mubr.bf16.mxu0 0
  %2412 = vmatmul.mubr.bf16.gmra.mrb[0].mxu0 %v2084
  %v2413 = vpop.f32.mrb[0].mxu0
  %v2414 = vadd.f32 0.0, %v2413
  %v2415 = vpop.f32.mrb[0].mxu0
  %v2416 = vpop.f32.mrb[0].mxu0
  %v2417 = vadd.f32 0.0, %v2416
  %v2418 = vpop.f32.mrb[0].mxu0
  %2419 = vmatprep.mubr.bf16.mxu0 0
  %2420 = vmatmul.mubr.bf16.gmra.mrb[0].mxu0 %v2087
  %v2421 = vpop.f32.mrb[0].mxu0
  %v2422 = vadd.f32 0.0, %v2421
  %v2423 = vpop.f32.mrb[0].mxu0
  %v2424 = vpop.f32.mrb[0].mxu0
  %v2425 = vadd.f32 0.0, %v2424
  %v2426 = vpop.f32.mrb[0].mxu0
  %2427 = vmatprep.mubr.bf16.mxu0 0
  %2428 = vmatmul.mubr.bf16.gmra.mrb[0].mxu0 %v2090
  %v2429 = vpop.f32.mrb[0].mxu0
  %v2430 = vadd.f32 0.0, %v2429
  %v2431 = vpop.f32.mrb[0].mxu0
  %v2432 = vpop.f32.mrb[0].mxu0
  %v2433 = vadd.f32 0.0, %v2432
  %v2434 = vpop.f32.mrb[0].mxu0
  %2435 = vmatprep.mubr.bf16.mxu0 0
  %2436 = vmatmul.mubr.bf16.gmra.mrb[0].mxu0 %v2093
  %v2437 = vpop.f32.mrb[0].mxu0
  %v2438 = vadd.f32 0.0, %v2437
  %v2439 = vpop.f32.mrb[0].mxu0
  %v2440 = vpop.f32.mrb[0].mxu0
  %v2441 = vadd.f32 0.0, %v2440
  %v2442 = vpop.f32.mrb[0].mxu0
  %2443 = vmatprep.mubr.bf16.mxu0 0
  %2444 = vmatmul.mubr.bf16.gmra.mrb[0].mxu0 %v2096
  %v2445 = vpop.f32.mrb[0].mxu0
  %v2446 = vadd.f32 0.0, %v2445
  %v2447 = vpop.f32.mrb[0].mxu0
  %v2448 = vpop.f32.mrb[0].mxu0
  %v2449 = vadd.f32 0.0, %v2448
  %v2450 = vpop.f32.mrb[0].mxu0
  %2451 = vmatprep.mubr.bf16.mxu0 0
  %2452 = vmatmul.mubr.bf16.gmra.mrb[0].mxu0 %v2099
  %v2453 = vpop.f32.mrb[0].mxu0
  %v2454 = vadd.f32 0.0, %v2453
  %v2455 = vpop.f32.mrb[0].mxu0
  %v2456 = vpop.f32.mrb[0].mxu0
  %v2457 = vadd.f32 0.0, %v2456
  %v2458 = vpop.f32.mrb[0].mxu0
  %2459 = vdwg.mxu0
  %v2461 = vsel %vm363, %v1124, 0
  %v2464 = vsel %vm363, %v1125, 0
  %v2467 = vsel %vm363, %v1126, 0
  %v2470 = vsel %vm363, %v1127, 0
  %v2473 = vsel %vm363, %v1128, 0
  %v2476 = vsel %vm363, %v1129, 0
  %v2479 = vsel %vm363, %v1130, 0
  %v2482 = vsel %vm363, %v1131, 0
  %v2485 = vsel %vm363, %v1132, 0
  %v2488 = vsel %vm363, %v1133, 0
  %v2491 = vsel %vm363, %v1134, 0
  %v2494 = vsel %vm363, %v1135, 0
  %v2497 = vsel %vm363, %v1136, 0
  %v2500 = vsel %vm363, %v1137, 0
  %v2503 = vsel %vm363, %v1138, 0
  %v2506 = vsel %vm363, %v1139, 0
  %v2509 = vsel %vm363, %v1140, 0
  %v2512 = vsel %vm363, %v1141, 0
  %v2515 = vsel %vm363, %v1142, 0
  %v2518 = vsel %vm363, %v1143, 0
  %v2521 = vsel %vm363, %v1144, 0
  %v2524 = vsel %vm363, %v1145, 0
  %v2527 = vsel %vm363, %v1146, 0
  %v2530 = vsel %vm363, %v1147, 0
  %v2533 = vsel %vm363, %v1148, 0
  %v2536 = vsel %vm363, %v1149, 0
  %v2539 = vsel %vm363, %v1150, 0
  %v2542 = vsel %vm363, %v1151, 0
  %v2545 = vsel %vm363, %v1152, 0
  %v2548 = vsel %vm363, %v1153, 0
  %v2551 = vsel %vm363, %v1154, 0
  %v2554 = vsel %vm363, %v1155, 0
  %v2557 = vsel %vm363, %v1156, 0
  %v2560 = vsel %vm363, %v1157, 0
  %v2563 = vsel %vm363, %v1158, 0
  %v2566 = vsel %vm363, %v1159, 0
  %v2569 = vsel %vm363, %v1160, 0
  %v2572 = vsel %vm363, %v1161, 0
  %v2575 = vsel %vm363, %v1162, 0
  %v2578 = vsel %vm363, %v1163, 0
  %v2581 = vand.u32 %v1164, %v2103
  %2583 = vmatprep.subr.bf16.mxu0 0
  %2584 = vmatpush1.bf16.msra.mxu0 %v2581
  %2585 = vmatprep.subr.bf16.mxu0 0
  %2586 = vmatpush1.bf16.msra.mxu0 0
  %2587 = vmatprep.subr.bf16.mxu0 0
  %2588 = vmatpush1.bf16.msra.mxu0 0
  %2589 = vmatprep.subr.bf16.mxu0 0
  %2590 = vmatpush1.bf16.msra.mxu0 0
  %2591 = vmatprep.subr.bf16.mxu0 0
  %2592 = vmatpush1.bf16.msra.mxu0 0
  %2593 = vmatprep.subr.bf16.mxu0 0
  %2594 = vmatpush1.bf16.msra.mxu0 0
  %2595 = vmatprep.subr.bf16.mxu0 0
  %2596 = vmatpush1.bf16.msra.mxu0 0
  %2597 = vmatprep.subr.bf16.mxu0 0
  %2598 = vmatpush1.bf16.msra.mxu0 0
  %2599 = vmatprep.subr.bf16.mxu0 0
  %2600 = vmatpush1.bf16.msra.mxu0 0
  %2601 = vmatprep.subr.bf16.mxu0 0
  %2602 = vmatpush1.bf16.msra.mxu0 0
  %2603 = vmatprep.subr.bf16.mxu0 0
  %2604 = vmatpush1.bf16.msra.mxu0 0
  %2605 = vmatprep.subr.bf16.mxu0 0
  %2606 = vmatpush1.bf16.msra.mxu0 0
  %2607 = vmatprep.subr.bf16.mxu0 0
  %2608 = vmatpush1.bf16.msra.mxu0 0
  %2609 = vmatprep.subr.bf16.mxu0 0
  %2610 = vmatpush1.bf16.msra.mxu0 0
  %2611 = vmatprep.subr.bf16.mxu0 0
  %2612 = vmatpush1.bf16.msra.mxu0 0
  %2613 = vmatprep.subr.bf16.mxu0 0
  %2614 = vmatpush1.bf16.msra.mxu0 0
  %2615 = vmatprep.mubr.bf16.mxu0 0
  %2616 = vmatmul.mubr.bf16.gmra.mrb[0].mxu0 %v2461
  %v2617 = vpop.f32.mrb[0].mxu0
  %v2618 = vadd.f32 %v2142, %v2617
  %v2619 = vpop.f32.mrb[0].mxu0
  %v2620 = vpop.f32.mrb[0].mxu0
  %v2621 = vadd.f32 %v2145, %v2620
  %v2622 = vpop.f32.mrb[0].mxu0
  %2623 = vmatprep.mubr.bf16.mxu0 0
  %2624 = vmatmul.mubr.bf16.gmra.mrb[0].mxu0 %v2464
  %v2625 = vpop.f32.mrb[0].mxu0
  %v2626 = vadd.f32 %v2150, %v2625
  %v2627 = vpop.f32.mrb[0].mxu0
  %v2628 = vpop.f32.mrb[0].mxu0
  %v2629 = vadd.f32 %v2153, %v2628
  %v2630 = vpop.f32.mrb[0].mxu0
  %2631 = vmatprep.mubr.bf16.mxu0 0
  %2632 = vmatmul.mubr.bf16.gmra.mrb[0].mxu0 %v2467
  %v2633 = vpop.f32.mrb[0].mxu0
  %v2634 = vadd.f32 %v2158, %v2633
  %v2635 = vpop.f32.mrb[0].mxu0
  %v2636 = vpop.f32.mrb[0].mxu0
  %v2637 = vadd.f32 %v2161, %v2636
  %v2638 = vpop.f32.mrb[0].mxu0
  %2639 = vmatprep.mubr.bf16.mxu0 0
  %2640 = vmatmul.mubr.bf16.gmra.mrb[0].mxu0 %v2470
  %v2641 = vpop.f32.mrb[0].mxu0
  %v2642 = vadd.f32 %v2166, %v2641
  %v2643 = vpop.f32.mrb[0].mxu0
  %v2644 = vpop.f32.mrb[0].mxu0
  %v2645 = vadd.f32 %v2169, %v2644
  %v2646 = vpop.f32.mrb[0].mxu0
  %2647 = vmatprep.mubr.bf16.mxu0 0
  %2648 = vmatmul.mubr.bf16.gmra.mrb[0].mxu0 %v2473
  %v2649 = vpop.f32.mrb[0].mxu0
  %v2650 = vadd.f32 %v2174, %v2649
  %v2651 = vpop.f32.mrb[0].mxu0
  %v2652 = vpop.f32.mrb[0].mxu0
  %v2653 = vadd.f32 %v2177, %v2652
  %v2654 = vpop.f32.mrb[0].mxu0
  %2655 = vmatprep.mubr.bf16.mxu0 0
  %2656 = vmatmul.mubr.bf16.gmra.mrb[0].mxu0 %v2476
  %v2657 = vpop.f32.mrb[0].mxu0
  %v2658 = vadd.f32 %v2182, %v2657
  %v2659 = vpop.f32.mrb[0].mxu0
  %v2660 = vpop.f32.mrb[0].mxu0
  %v2661 = vadd.f32 %v2185, %v2660
  %v2662 = vpop.f32.mrb[0].mxu0
  %2663 = vmatprep.mubr.bf16.mxu0 0
  %2664 = vmatmul.mubr.bf16.gmra.mrb[0].mxu0 %v2479
  %v2665 = vpop.f32.mrb[0].mxu0
  %v2666 = vadd.f32 %v2190, %v2665
  %v2667 = vpop.f32.mrb[0].mxu0
  %v2668 = vpop.f32.mrb[0].mxu0
  %v2669 = vadd.f32 %v2193, %v2668
  %v2670 = vpop.f32.mrb[0].mxu0
  %2671 = vmatprep.mubr.bf16.mxu0 0
  %2672 = vmatmul.mubr.bf16.gmra.mrb[0].mxu0 %v2482
  %v2673 = vpop.f32.mrb[0].mxu0
  %v2674 = vadd.f32 %v2198, %v2673
  %v2675 = vpop.f32.mrb[0].mxu0
  %v2676 = vpop.f32.mrb[0].mxu0
  %v2677 = vadd.f32 %v2201, %v2676
  %v2678 = vpop.f32.mrb[0].mxu0
  %2679 = vmatprep.mubr.bf16.mxu0 0
  %2680 = vmatmul.mubr.bf16.gmra.mrb[0].mxu0 %v2485
  %v2681 = vpop.f32.mrb[0].mxu0
  %v2682 = vadd.f32 %v2206, %v2681
  %v2683 = vpop.f32.mrb[0].mxu0
  %v2684 = vpop.f32.mrb[0].mxu0
  %v2685 = vadd.f32 %v2209, %v2684
  %v2686 = vpop.f32.mrb[0].mxu0
  %2687 = vmatprep.mubr.bf16.mxu0 0
  %2688 = vmatmul.mubr.bf16.gmra.mrb[0].mxu0 %v2488
  %v2689 = vpop.f32.mrb[0].mxu0
  %v2690 = vadd.f32 %v2214, %v2689
  %v2691 = vpop.f32.mrb[0].mxu0
  %v2692 = vpop.f32.mrb[0].mxu0
  %v2693 = vadd.f32 %v2217, %v2692
  %v2694 = vpop.f32.mrb[0].mxu0
  %2695 = vmatprep.mubr.bf16.mxu0 0
  %2696 = vmatmul.mubr.bf16.gmra.mrb[0].mxu0 %v2491
  %v2697 = vpop.f32.mrb[0].mxu0
  %v2698 = vadd.f32 %v2222, %v2697
  %v2699 = vpop.f32.mrb[0].mxu0
  %v2700 = vpop.f32.mrb[0].mxu0
  %v2701 = vadd.f32 %v2225, %v2700
  %v2702 = vpop.f32.mrb[0].mxu0
  %2703 = vmatprep.mubr.bf16.mxu0 0
  %2704 = vmatmul.mubr.bf16.gmra.mrb[0].mxu0 %v2494
  %v2705 = vpop.f32.mrb[0].mxu0
  %v2706 = vadd.f32 %v2230, %v2705
  %v2707 = vpop.f32.mrb[0].mxu0
  %v2708 = vpop.f32.mrb[0].mxu0
  %v2709 = vadd.f32 %v2233, %v2708
  %v2710 = vpop.f32.mrb[0].mxu0
  %2711 = vmatprep.mubr.bf16.mxu0 0
  %2712 = vmatmul.mubr.bf16.gmra.mrb[0].mxu0 %v2497
  %v2713 = vpop.f32.mrb[0].mxu0
  %v2714 = vadd.f32 %v2238, %v2713
  %v2715 = vpop.f32.mrb[0].mxu0
  %v2716 = vpop.f32.mrb[0].mxu0
  %v2717 = vadd.f32 %v2241, %v2716
  %v2718 = vpop.f32.mrb[0].mxu0
  %2719 = vmatprep.mubr.bf16.mxu0 0
  %2720 = vmatmul.mubr.bf16.gmra.mrb[0].mxu0 %v2500
  %v2721 = vpop.f32.mrb[0].mxu0
  %v2722 = vadd.f32 %v2246, %v2721
  %v2723 = vpop.f32.mrb[0].mxu0
  %v2724 = vpop.f32.mrb[0].mxu0
  %v2725 = vadd.f32 %v2249, %v2724
  %v2726 = vpop.f32.mrb[0].mxu0
  %2727 = vmatprep.mubr.bf16.mxu0 0
  %2728 = vmatmul.mubr.bf16.gmra.mrb[0].mxu0 %v2503
  %v2729 = vpop.f32.mrb[0].mxu0
  %v2730 = vadd.f32 %v2254, %v2729
  %v2731 = vpop.f32.mrb[0].mxu0
  %v2732 = vpop.f32.mrb[0].mxu0
  %v2733 = vadd.f32 %v2257, %v2732
  %v2734 = vpop.f32.mrb[0].mxu0
  %2735 = vmatprep.mubr.bf16.mxu0 0
  %2736 = vmatmul.mubr.bf16.gmra.mrb[0].mxu0 %v2506
  %v2737 = vpop.f32.mrb[0].mxu0
  %v2738 = vadd.f32 %v2262, %v2737
  %v2739 = vpop.f32.mrb[0].mxu0
  %v2740 = vpop.f32.mrb[0].mxu0
  %v2741 = vadd.f32 %v2265, %v2740
  %v2742 = vpop.f32.mrb[0].mxu0
  %2743 = vmatprep.mubr.bf16.mxu0 0
  %2744 = vmatmul.mubr.bf16.gmra.mrb[0].mxu0 %v2509
  %v2745 = vpop.f32.mrb[0].mxu0
  %v2746 = vadd.f32 %v2270, %v2745
  %v2747 = vpop.f32.mrb[0].mxu0
  %v2748 = vpop.f32.mrb[0].mxu0
  %v2749 = vadd.f32 %v2273, %v2748
  %v2750 = vpop.f32.mrb[0].mxu0
  %2751 = vmatprep.mubr.bf16.mxu0 0
  %2752 = vmatmul.mubr.bf16.gmra.mrb[0].mxu0 %v2512
  %v2753 = vpop.f32.mrb[0].mxu0
  %v2754 = vadd.f32 %v2278, %v2753
  %v2755 = vpop.f32.mrb[0].mxu0
  %v2756 = vpop.f32.mrb[0].mxu0
  %v2757 = vadd.f32 %v2281, %v2756
  %v2758 = vpop.f32.mrb[0].mxu0
  %2759 = vmatprep.mubr.bf16.mxu0 0
  %2760 = vmatmul.mubr.bf16.gmra.mrb[0].mxu0 %v2515
  %v2761 = vpop.f32.mrb[0].mxu0
  %v2762 = vadd.f32 %v2286, %v2761
  %v2763 = vpop.f32.mrb[0].mxu0
  %v2764 = vpop.f32.mrb[0].mxu0
  %v2765 = vadd.f32 %v2289, %v2764
  %v2766 = vpop.f32.mrb[0].mxu0
  %2767 = vmatprep.mubr.bf16.mxu0 0
  %2768 = vmatmul.mubr.bf16.gmra.mrb[0].mxu0 %v2518
  %v2769 = vpop.f32.mrb[0].mxu0
  %v2770 = vadd.f32 %v2294, %v2769
  %v2771 = vpop.f32.mrb[0].mxu0
  %v2772 = vpop.f32.mrb[0].mxu0
  %v2773 = vadd.f32 %v2297, %v2772
  %v2774 = vpop.f32.mrb[0].mxu0
  %2775 = vmatprep.mubr.bf16.mxu0 0
  %2776 = vmatmul.mubr.bf16.gmra.mrb[0].mxu0 %v2521
  %v2777 = vpop.f32.mrb[0].mxu0
  %v2778 = vadd.f32 %v2302, %v2777
  %v2779 = vpop.f32.mrb[0].mxu0
  %v2780 = vpop.f32.mrb[0].mxu0
  %v2781 = vadd.f32 %v2305, %v2780
  %v2782 = vpop.f32.mrb[0].mxu0
  %2783 = vmatprep.mubr.bf16.mxu0 0
  %2784 = vmatmul.mubr.bf16.gmra.mrb[0].mxu0 %v2524
  %v2785 = vpop.f32.mrb[0].mxu0
  %v2786 = vadd.f32 %v2310, %v2785
  %v2787 = vpop.f32.mrb[0].mxu0
  %v2788 = vpop.f32.mrb[0].mxu0
  %v2789 = vadd.f32 %v2313, %v2788
  %v2790 = vpop.f32.mrb[0].mxu0
  %2791 = vmatprep.mubr.bf16.mxu0 0
  %2792 = vmatmul.mubr.bf16.gmra.mrb[0].mxu0 %v2527
  %v2793 = vpop.f32.mrb[0].mxu0
  %v2794 = vadd.f32 %v2318, %v2793
  %v2795 = vpop.f32.mrb[0].mxu0
  %v2796 = vpop.f32.mrb[0].mxu0
  %v2797 = vadd.f32 %v2321, %v2796
  %v2798 = vpop.f32.mrb[0].mxu0
  %2799 = vmatprep.mubr.bf16.mxu0 0
  %2800 = vmatmul.mubr.bf16.gmra.mrb[0].mxu0 %v2530
  %v2801 = vpop.f32.mrb[0].mxu0
  %v2802 = vadd.f32 %v2326, %v2801
  %v2803 = vpop.f32.mrb[0].mxu0
  %v2804 = vpop.f32.mrb[0].mxu0
  %v2805 = vadd.f32 %v2329, %v2804
  %v2806 = vpop.f32.mrb[0].mxu0
  %2807 = vmatprep.mubr.bf16.mxu0 0
  %2808 = vmatmul.mubr.bf16.gmra.mrb[0].mxu0 %v2533
  %v2809 = vpop.f32.mrb[0].mxu0
  %v2810 = vadd.f32 %v2334, %v2809
  %v2811 = vpop.f32.mrb[0].mxu0
  %v2812 = vpop.f32.mrb[0].mxu0
  %v2813 = vadd.f32 %v2337, %v2812
  %v2814 = vpop.f32.mrb[0].mxu0
  %2815 = vmatprep.mubr.bf16.mxu0 0
  %2816 = vmatmul.mubr.bf16.gmra.mrb[0].mxu0 %v2536
  %v2817 = vpop.f32.mrb[0].mxu0
  %v2818 = vadd.f32 %v2342, %v2817
  %v2819 = vpop.f32.mrb[0].mxu0
  %v2820 = vpop.f32.mrb[0].mxu0
  %v2821 = vadd.f32 %v2345, %v2820
  %v2822 = vpop.f32.mrb[0].mxu0
  %2823 = vmatprep.mubr.bf16.mxu0 0
  %2824 = vmatmul.mubr.bf16.gmra.mrb[0].mxu0 %v2539
  %v2825 = vpop.f32.mrb[0].mxu0
  %v2826 = vadd.f32 %v2350, %v2825
  %v2827 = vpop.f32.mrb[0].mxu0
  %v2828 = vpop.f32.mrb[0].mxu0
  %v2829 = vadd.f32 %v2353, %v2828
  %v2830 = vpop.f32.mrb[0].mxu0
  %2831 = vmatprep.mubr.bf16.mxu0 0
  %2832 = vmatmul.mubr.bf16.gmra.mrb[0].mxu0 %v2542
  %v2833 = vpop.f32.mrb[0].mxu0
  %v2834 = vadd.f32 %v2358, %v2833
  %v2835 = vpop.f32.mrb[0].mxu0
  %v2836 = vpop.f32.mrb[0].mxu0
  %v2837 = vadd.f32 %v2361, %v2836
  %v2838 = vpop.f32.mrb[0].mxu0
  %2839 = vmatprep.mubr.bf16.mxu0 0
  %2840 = vmatmul.mubr.bf16.gmra.mrb[0].mxu0 %v2545
  %v2841 = vpop.f32.mrb[0].mxu0
  %v2842 = vadd.f32 %v2366, %v2841
  %v2843 = vpop.f32.mrb[0].mxu0
  %v2844 = vpop.f32.mrb[0].mxu0
  %v2845 = vadd.f32 %v2369, %v2844
  %v2846 = vpop.f32.mrb[0].mxu0
  %2847 = vmatprep.mubr.bf16.mxu0 0
  %2848 = vmatmul.mubr.bf16.gmra.mrb[0].mxu0 %v2548
  %v2849 = vpop.f32.mrb[0].mxu0
  %v2850 = vadd.f32 %v2374, %v2849
  %v2851 = vpop.f32.mrb[0].mxu0
  %v2852 = vpop.f32.mrb[0].mxu0
  %v2853 = vadd.f32 %v2377, %v2852
  %v2854 = vpop.f32.mrb[0].mxu0
  %2855 = vmatprep.mubr.bf16.mxu0 0
  %2856 = vmatmul.mubr.bf16.gmra.mrb[0].mxu0 %v2551
  %v2857 = vpop.f32.mrb[0].mxu0
  %v2858 = vadd.f32 %v2382, %v2857
  %v2859 = vpop.f32.mrb[0].mxu0
  %v2860 = vpop.f32.mrb[0].mxu0
  %v2861 = vadd.f32 %v2385, %v2860
  %v2862 = vpop.f32.mrb[0].mxu0
  %2863 = vmatprep.mubr.bf16.mxu0 0
  %2864 = vmatmul.mubr.bf16.gmra.mrb[0].mxu0 %v2554
  %v2865 = vpop.f32.mrb[0].mxu0
  %v2866 = vadd.f32 %v2390, %v2865
  %v2867 = vpop.f32.mrb[0].mxu0
  %v2868 = vpop.f32.mrb[0].mxu0
  %v2869 = vadd.f32 %v2393, %v2868
  %v2870 = vpop.f32.mrb[0].mxu0
  %2871 = vmatprep.mubr.bf16.mxu0 0
  %2872 = vmatmul.mubr.bf16.gmra.mrb[0].mxu0 %v2557
  %v2873 = vpop.f32.mrb[0].mxu0
  %v2874 = vadd.f32 %v2398, %v2873
  %v2875 = vpop.f32.mrb[0].mxu0
  %v2876 = vpop.f32.mrb[0].mxu0
  %v2877 = vadd.f32 %v2401, %v2876
  %v2878 = vpop.f32.mrb[0].mxu0
  %2879 = vmatprep.mubr.bf16.mxu0 0
  %2880 = vmatmul.mubr.bf16.gmra.mrb[0].mxu0 %v2560
  %v2881 = vpop.f32.mrb[0].mxu0
  %v2882 = vadd.f32 %v2406, %v2881
  %v2883 = vpop.f32.mrb[0].mxu0
  %v2884 = vpop.f32.mrb[0].mxu0
  %v2885 = vadd.f32 %v2409, %v2884
  %v2886 = vpop.f32.mrb[0].mxu0
  %2887 = vmatprep.mubr.bf16.mxu0 0
  %2888 = vmatmul.mubr.bf16.gmra.mrb[0].mxu0 %v2563
  %v2889 = vpop.f32.mrb[0].mxu0
  %v2890 = vadd.f32 %v2414, %v2889
  %v2891 = vpop.f32.mrb[0].mxu0
  %v2892 = vpop.f32.mrb[0].mxu0
  %v2893 = vadd.f32 %v2417, %v2892
  %v2894 = vpop.f32.mrb[0].mxu0
  %2895 = vmatprep.mubr.bf16.mxu0 0
  %2896 = vmatmul.mubr.bf16.gmra.mrb[0].mxu0 %v2566
  %v2897 = vpop.f32.mrb[0].mxu0
  %v2898 = vadd.f32 %v2422, %v2897
  %v2899 = vpop.f32.mrb[0].mxu0
  %v2900 = vpop.f32.mrb[0].mxu0
  %v2901 = vadd.f32 %v2425, %v2900
  %v2902 = vpop.f32.mrb[0].mxu0
  %2903 = vmatprep.mubr.bf16.mxu0 0
  %2904 = vmatmul.mubr.bf16.gmra.mrb[0].mxu0 %v2569
  %v2905 = vpop.f32.mrb[0].mxu0
  %v2906 = vadd.f32 %v2430, %v2905
  %v2907 = vpop.f32.mrb[0].mxu0
  %v2908 = vpop.f32.mrb[0].mxu0
  %v2909 = vadd.f32 %v2433, %v2908
  %v2910 = vpop.f32.mrb[0].mxu0
  %2911 = vmatprep.mubr.bf16.mxu0 0
  %2912 = vmatmul.mubr.bf16.gmra.mrb[0].mxu0 %v2572
  %v2913 = vpop.f32.mrb[0].mxu0
  %v2914 = vadd.f32 %v2438, %v2913
  %v2915 = vpop.f32.mrb[0].mxu0
  %v2916 = vpop.f32.mrb[0].mxu0
  %v2917 = vadd.f32 %v2441, %v2916
  %v2918 = vpop.f32.mrb[0].mxu0
  %2919 = vmatprep.mubr.bf16.mxu0 0
  %2920 = vmatmul.mubr.bf16.gmra.mrb[0].mxu0 %v2575
  %v2921 = vpop.f32.mrb[0].mxu0
  %v2922 = vadd.f32 %v2446, %v2921
  %v2923 = vpop.f32.mrb[0].mxu0
  %v2924 = vpop.f32.mrb[0].mxu0
  %v2925 = vadd.f32 %v2449, %v2924
  %v2926 = vpop.f32.mrb[0].mxu0
  %2927 = vmatprep.mubr.bf16.mxu0 0
  %2928 = vmatmul.mubr.bf16.gmra.mrb[0].mxu0 %v2578
  %v2929 = vpop.f32.mrb[0].mxu0
  %v2930 = vadd.f32 %v2454, %v2929
  %v2931 = vpop.f32.mrb[0].mxu0
  %v2932 = vpop.f32.mrb[0].mxu0
  %v2933 = vadd.f32 %v2457, %v2932
  %v2934 = vpop.f32.mrb[0].mxu0
  %2935 = vdwg.mxu0
  %v2936 = vld [vmem:[#allocation2] sm:$0xfe]
  %vm2937 = vcmask 1040384
  %v2938 = vrot.slane %v1044, 7
  %v2939 = vrot.slane %v1045, 7
  %v2940 = vsel %vm2937, %v2938, %v2939
  %v2941 = vrot.slane %v1046, 7
  %v2942 = vsel %vm2937, %v2939, %v2941
  %v2943 = vrot.slane %v1047, 7
  %v2944 = vsel %vm2937, %v2941, %v2943
  %v2945 = vrot.slane %v1048, 7
  %v2946 = vsel %vm2937, %v2943, %v2945
  %v2947 = vrot.slane %v1049, 7
  %v2948 = vsel %vm2937, %v2945, %v2947
  %v2949 = vrot.slane %v1050, 7
  %v2950 = vsel %vm2937, %v2947, %v2949
  %v2951 = vrot.slane %v1051, 7
  %v2952 = vsel %vm2937, %v2949, %v2951
  %v2953 = vrot.slane %v1052, 7
  %v2954 = vsel %vm2937, %v2951, %v2953
  %v2955 = vrot.slane %v1053, 7
  %v2956 = vsel %vm2937, %v2953, %v2955
  %v2957 = vrot.slane %v1054, 7
  %v2958 = vsel %vm2937, %v2955, %v2957
  %v2959 = vrot.slane %v1055, 7
  %v2960 = vsel %vm2937, %v2957, %v2959
  %v2961 = vrot.slane %v1056, 7
  %v2962 = vsel %vm2937, %v2959, %v2961
  %v2963 = vrot.slane %v1057, 7
  %v2964 = vsel %vm2937, %v2961, %v2963
  %v2965 = vrot.slane %v1058, 7
  %v2966 = vsel %vm2937, %v2963, %v2965
  %v2967 = vrot.slane %v1059, 7
  %v2968 = vsel %vm2937, %v2965, %v2967
  %v2969 = vrot.slane %v1060, 7
  %v2970 = vsel %vm2937, %v2967, %v2969
  %v2971 = vrot.slane %v1061, 7
  %v2972 = vsel %vm2937, %v2969, %v2971
  %v2973 = vrot.slane %v1062, 7
  %v2974 = vsel %vm2937, %v2971, %v2973
  %v2975 = vrot.slane %v1063, 7
  %v2976 = vsel %vm2937, %v2973, %v2975
  %v2977 = vrot.slane %v1064, 7
  %v2978 = vsel %vm2937, %v2975, %v2977
  %v2979 = vrot.slane %v1065, 7
  %v2980 = vsel %vm2937, %v2977, %v2979
  %v2981 = vrot.slane %v1066, 7
  %v2982 = vsel %vm2937, %v2979, %v2981
  %v2983 = vrot.slane %v1067, 7
  %v2984 = vsel %vm2937, %v2981, %v2983
  %v2985 = vrot.slane %v1068, 7
  %v2986 = vsel %vm2937, %v2983, %v2985
  %v2987 = vrot.slane %v1069, 7
  %v2988 = vsel %vm2937, %v2985, %v2987
  %v2989 = vrot.slane %v1070, 7
  %v2990 = vsel %vm2937, %v2987, %v2989
  %v2991 = vrot.slane %v1071, 7
  %v2992 = vsel %vm2937, %v2989, %v2991
  %v2993 = vrot.slane %v1072, 7
  %v2994 = vsel %vm2937, %v2991, %v2993
  %v2995 = vrot.slane %v1073, 7
  %v2996 = vsel %vm2937, %v2993, %v2995
  %v2997 = vrot.slane %v1074, 7
  %v2998 = vsel %vm2937, %v2995, %v2997
  %v2999 = vrot.slane %v1075, 7
  %v3000 = vsel %vm2937, %v2997, %v2999
  %v3001 = vrot.slane %v1076, 7
  %v3002 = vsel %vm2937, %v2999, %v3001
  %v3003 = vrot.slane %v1077, 7
  %v3004 = vsel %vm2937, %v3001, %v3003
  %v3005 = vrot.slane %v1078, 7
  %v3006 = vsel %vm2937, %v3003, %v3005
  %v3007 = vrot.slane %v1079, 7
  %v3008 = vsel %vm2937, %v3005, %v3007
  %v3009 = vrot.slane %v1080, 7
  %v3010 = vsel %vm2937, %v3007, %v3009
  %v3011 = vrot.slane %v1081, 7
  %v3012 = vsel %vm2937, %v3009, %v3011
  %v3013 = vrot.slane %v1082, 7
  %v3014 = vsel %vm2937, %v3011, %v3013
  %v3015 = vrot.slane %v1083, 7
  %v3016 = vsel %vm2937, %v3013, %v3015
  %3017 = vrot.lane.b32.xlu0 %v2938, 126
  %v3018 = vpop.permute.xlu0 %3017
  %3019 = vrot.lane.b32.xlu0 %v2940, 126
  %v3020 = vpop.permute.xlu0 %3019
  %3021 = vrot.lane.b32.xlu0 %v2942, 126
  %v3022 = vpop.permute.xlu0 %3021
  %3023 = vrot.lane.b32.xlu0 %v2944, 126
  %v3024 = vpop.permute.xlu0 %3023
  %3025 = vrot.lane.b32.xlu0 %v2946, 126
  %v3026 = vpop.permute.xlu0 %3025
  %3027 = vrot.lane.b32.xlu0 %v2948, 126
  %v3028 = vpop.permute.xlu0 %3027
  %3029 = vrot.lane.b32.xlu0 %v2950, 126
  %v3030 = vpop.permute.xlu0 %3029
  %3031 = vrot.lane.b32.xlu0 %v2952, 126
  %v3032 = vpop.permute.xlu0 %3031
  %3033 = vrot.lane.b32.xlu0 %v2954, 126
  %v3034 = vpop.permute.xlu0 %3033
  %3035 = vrot.lane.b32.xlu0 %v2956, 126
  %v3036 = vpop.permute.xlu0 %3035
  %3037 = vrot.lane.b32.xlu0 %v2958, 126
  %v3038 = vpop.permute.xlu0 %3037
  %3039 = vrot.lane.b32.xlu0 %v2960, 126
  %v3040 = vpop.permute.xlu0 %3039
  %3041 = vrot.lane.b32.xlu0 %v2962, 126
  %v3042 = vpop.permute.xlu0 %3041
  %3043 = vrot.lane.b32.xlu0 %v2964, 126
  %v3044 = vpop.permute.xlu0 %3043
  %3045 = vrot.lane.b32.xlu0 %v2966, 126
  %v3046 = vpop.permute.xlu0 %3045
  %3047 = vrot.lane.b32.xlu0 %v2968, 126
  %v3048 = vpop.permute.xlu0 %3047
  %3049 = vrot.lane.b32.xlu0 %v2970, 126
  %v3050 = vpop.permute.xlu0 %3049
  %3051 = vrot.lane.b32.xlu0 %v2972, 126
  %v3052 = vpop.permute.xlu0 %3051
  %3053 = vrot.lane.b32.xlu0 %v2974, 126
  %v3054 = vpop.permute.xlu0 %3053
  %3055 = vrot.lane.b32.xlu0 %v2976, 126
  %v3056 = vpop.permute.xlu0 %3055
  %3057 = vrot.lane.b32.xlu0 %v2978, 126
  %v3058 = vpop.permute.xlu0 %3057
  %3059 = vrot.lane.b32.xlu0 %v2980, 126
  %v3060 = vpop.permute.xlu0 %3059
  %3061 = vrot.lane.b32.xlu0 %v2982, 126
  %v3062 = vpop.permute.xlu0 %3061
  %3063 = vrot.lane.b32.xlu0 %v2984, 126
  %v3064 = vpop.permute.xlu0 %3063
  %3065 = vrot.lane.b32.xlu0 %v2986, 126
  %v3066 = vpop.permute.xlu0 %3065
  %3067 = vrot.lane.b32.xlu0 %v2988, 126
  %v3068 = vpop.permute.xlu0 %3067
  %3069 = vrot.lane.b32.xlu0 %v2990, 126
  %v3070 = vpop.permute.xlu0 %3069
  %3071 = vrot.lane.b32.xlu0 %v2992, 126
  %v3072 = vpop.permute.xlu0 %3071
  %3073 = vrot.lane.b32.xlu0 %v2994, 126
  %v3074 = vpop.permute.xlu0 %3073
  %3075 = vrot.lane.b32.xlu0 %v2996, 126
  %v3076 = vpop.permute.xlu0 %3075
  %3077 = vrot.lane.b32.xlu0 %v2998, 126
  %v3078 = vpop.permute.xlu0 %3077
  %3079 = vrot.lane.b32.xlu0 %v3000, 126
  %v3080 = vpop.permute.xlu0 %3079
  %3081 = vrot.lane.b32.xlu0 %v3002, 126
  %v3082 = vpop.permute.xlu0 %3081
  %3083 = vrot.lane.b32.xlu0 %v3004, 126
  %v3084 = vpop.permute.xlu0 %3083
  %3085 = vrot.lane.b32.xlu0 %v3006, 126
  %v3086 = vpop.permute.xlu0 %3085
  %3087 = vrot.lane.b32.xlu0 %v3008, 126
  %v3088 = vpop.permute.xlu0 %3087
  %3089 = vrot.lane.b32.xlu0 %v3010, 126
  %v3090 = vpop.permute.xlu0 %3089
  %3091 = vrot.lane.b32.xlu0 %v3012, 126
  %v3092 = vpop.permute.xlu0 %3091
  %3093 = vrot.lane.b32.xlu0 %v3014, 126
  %v3094 = vpop.permute.xlu0 %3093
  %3095 = vrot.lane.b32.xlu0 %v3016, 126
  %v3096 = vpop.permute.xlu0 %3095
  %3097 = vrot.lane.b32.xlu0 %v3015, 126
  %v3098 = vpop.permute.xlu0 %3097
  %v3140 = vmul.bf16 %v2936, %v3018
  %v3141 = vmul.bf16 %v845, %v3020
  %v3142 = vmul.bf16 %v846, %v3022
  %v3143 = vmul.bf16 %v847, %v3024
  %v3144 = vmul.bf16 %v848, %v3026
  %v3145 = vmul.bf16 %v849, %v3028
  %v3146 = vmul.bf16 %v850, %v3030
  %v3147 = vmul.bf16 %v851, %v3032
  %v3148 = vmul.bf16 %v852, %v3034
  %v3149 = vmul.bf16 %v853, %v3036
  %v3150 = vmul.bf16 %v854, %v3038
  %v3151 = vmul.bf16 %v855, %v3040
  %v3152 = vmul.bf16 %v856, %v3042
  %v3153 = vmul.bf16 %v857, %v3044
  %v3154 = vmul.bf16 %v858, %v3046
  %v3155 = vmul.bf16 %v859, %v3048
  %v3156 = vmul.bf16 %v860, %v3050
  %v3157 = vmul.bf16 %v861, %v3052
  %v3158 = vmul.bf16 %v862, %v3054
  %v3159 = vmul.bf16 %v863, %v3056
  %v3160 = vmul.bf16 %v864, %v3058
  %v3161 = vmul.bf16 %v865, %v3060
  %v3162 = vmul.bf16 %v866, %v3062
  %v3163 = vmul.bf16 %v867, %v3064
  %v3164 = vmul.bf16 %v868, %v3066
  %v3165 = vmul.bf16 %v869, %v3068
  %v3166 = vmul.bf16 %v870, %v3070
  %v3167 = vmul.bf16 %v871, %v3072
  %v3168 = vmul.bf16 %v872, %v3074
  %v3169 = vmul.bf16 %v873, %v3076
  %v3170 = vmul.bf16 %v874, %v3078
  %v3171 = vmul.bf16 %v875, %v3080
  %v3172 = vmul.bf16 %v876, %v3082
  %v3173 = vmul.bf16 %v877, %v3084
  %v3174 = vmul.bf16 %v878, %v3086
  %v3175 = vmul.bf16 %v879, %v3088
  %v3176 = vmul.bf16 %v880, %v3090
  %v3177 = vmul.bf16 %v881, %v3092
  %v3178 = vmul.bf16 %v882, %v3094
  %v3179 = vmul.bf16 %v883, %v3096
  %v3180 = vmul.bf16 %v1165, %v3098
  %v3181 = vld [vmem:[%s3] sm:$0x2]
  %vm3223 = vcmask 1046528
  %v3224 = vrot.slane %v3140, 1
  %v3225 = vrot.slane %v3141, 1
  %v3226 = vsel %vm3223, %v3224, %v3225
  %v3227 = vrot.slane %v3142, 1
  %v3228 = vsel %vm3223, %v3225, %v3227
  %v3229 = vrot.slane %v3143, 1
  %v3230 = vsel %vm3223, %v3227, %v3229
  %v3231 = vrot.slane %v3144, 1
  %v3232 = vsel %vm3223, %v3229, %v3231
  %v3233 = vrot.slane %v3145, 1
  %v3234 = vsel %vm3223, %v3231, %v3233
  %v3235 = vrot.slane %v3146, 1
  %v3236 = vsel %vm3223, %v3233, %v3235
  %v3237 = vrot.slane %v3147, 1
  %v3238 = vsel %vm3223, %v3235, %v3237
  %v3239 = vrot.slane %v3148, 1
  %v3240 = vsel %vm3223, %v3237, %v3239
  %v3241 = vrot.slane %v3149, 1
  %v3242 = vsel %vm3223, %v3239, %v3241
  %v3243 = vrot.slane %v3150, 1
  %v3244 = vsel %vm3223, %v3241, %v3243
  %v3245 = vrot.slane %v3151, 1
  %v3246 = vsel %vm3223, %v3243, %v3245
  %v3247 = vrot.slane %v3152, 1
  %v3248 = vsel %vm3223, %v3245, %v3247
  %v3249 = vrot.slane %v3153, 1
  %v3250 = vsel %vm3223, %v3247, %v3249
  %v3251 = vrot.slane %v3154, 1
  %v3252 = vsel %vm3223, %v3249, %v3251
  %v3253 = vrot.slane %v3155, 1
  %v3254 = vsel %vm3223, %v3251, %v3253
  %v3255 = vrot.slane %v3156, 1
  %v3256 = vsel %vm3223, %v3253, %v3255
  %v3257 = vrot.slane %v3157, 1
  %v3258 = vsel %vm3223, %v3255, %v3257
  %v3259 = vrot.slane %v3158, 1
  %v3260 = vsel %vm3223, %v3257, %v3259
  %v3261 = vrot.slane %v3159, 1
  %v3262 = vsel %vm3223, %v3259, %v3261
  %v3263 = vrot.slane %v3160, 1
  %v3264 = vsel %vm3223, %v3261, %v3263
  %v3265 = vrot.slane %v3161, 1
  %v3266 = vsel %vm3223, %v3263, %v3265
  %v3267 = vrot.slane %v3162, 1
  %v3268 = vsel %vm3223, %v3265, %v3267
  %v3269 = vrot.slane %v3163, 1
  %v3270 = vsel %vm3223, %v3267, %v3269
  %v3271 = vrot.slane %v3164, 1
  %v3272 = vsel %vm3223, %v3269, %v3271
  %v3273 = vrot.slane %v3165, 1
  %v3274 = vsel %vm3223, %v3271, %v3273
  %v3275 = vrot.slane %v3166, 1
  %v3276 = vsel %vm3223, %v3273, %v3275
  %v3277 = vrot.slane %v3167, 1
  %v3278 = vsel %vm3223, %v3275, %v3277
  %v3279 = vrot.slane %v3168, 1
  %v3280 = vsel %vm3223, %v3277, %v3279
  %v3281 = vrot.slane %v3169, 1
  %v3282 = vsel %vm3223, %v3279, %v3281
  %v3283 = vrot.slane %v3170, 1
  %v3284 = vsel %vm3223, %v3281, %v3283
  %v3285 = vrot.slane %v3171, 1
  %v3286 = vsel %vm3223, %v3283, %v3285
  %v3287 = vrot.slane %v3172, 1
  %v3288 = vsel %vm3223, %v3285, %v3287
  %v3289 = vrot.slane %v3173, 1
  %v3290 = vsel %vm3223, %v3287, %v3289
  %v3291 = vrot.slane %v3174, 1
  %v3292 = vsel %vm3223, %v3289, %v3291
  %v3293 = vrot.slane %v3175, 1
  %v3294 = vsel %vm3223, %v3291, %v3293
  %v3295 = vrot.slane %v3176, 1
  %v3296 = vsel %vm3223, %v3293, %v3295
  %v3297 = vrot.slane %v3177, 1
  %v3298 = vsel %vm3223, %v3295, %v3297
  %v3299 = vrot.slane %v3178, 1
  %v3300 = vsel %vm3223, %v3297, %v3299
  %v3301 = vrot.slane %v3179, 1
  %v3302 = vsel %vm3223, %v3299, %v3301
  %v3303 = vrot.slane %v3180, 1
  %v3304 = vsel %vm3223, %v3301, %v3303
  %v3306 = vunpack.c.l.b16 %v3181
  %v3307 = vpack.c.b16 %v3306, %v3306
  %v3308 = vrot.slane %v3307, 1
  %v3310 = vsel %vm363, %v3226, 0
  %v3313 = vsel %vm363, %v3228, 0
  %v3316 = vsel %vm363, %v3230, 0
  %v3319 = vsel %vm363, %v3232, 0
  %v3322 = vsel %vm363, %v3234, 0
  %v3325 = vsel %vm363, %v3236, 0
  %v3328 = vsel %vm363, %v3238, 0
  %v3331 = vsel %vm363, %v3240, 0
  %v3334 = vsel %vm363, %v3242, 0
  %v3337 = vsel %vm363, %v3244, 0
  %v3340 = vsel %vm363, %v3246, 0
  %v3343 = vsel %vm363, %v3248, 0
  %v3346 = vsel %vm363, %v3250, 0
  %v3349 = vsel %vm363, %v3252, 0
  %v3352 = vsel %vm363, %v3254, 0
  %v3355 = vsel %vm363, %v3256, 0
  %v3358 = vsel %vm363, %v3258, 0
  %v3361 = vsel %vm363, %v3260, 0
  %v3364 = vsel %vm363, %v3262, 0
  %v3367 = vsel %vm363, %v3264, 0
  %v3370 = vsel %vm363, %v3266, 0
  %v3373 = vsel %vm363, %v3268, 0
  %v3376 = vsel %vm363, %v3270, 0
  %v3379 = vsel %vm363, %v3272, 0
  %v3382 = vsel %vm363, %v3274, 0
  %v3385 = vsel %vm363, %v3276, 0
  %v3388 = vsel %vm363, %v3278, 0
  %v3391 = vsel %vm363, %v3280, 0
  %v3394 = vsel %vm363, %v3282, 0
  %v3397 = vsel %vm363, %v3284, 0
  %v3400 = vsel %vm363, %v3286, 0
  %v3403 = vsel %vm363, %v3288, 0
  %v3406 = vsel %vm363, %v3290, 0
  %v3409 = vsel %vm363, %v3292, 0
  %v3412 = vsel %vm363, %v3294, 0
  %v3415 = vsel %vm363, %v3296, 0
  %v3418 = vsel %vm363, %v3298, 0
  %v3421 = vsel %vm363, %v3300, 0
  %v3424 = vsel %vm363, %v3302, 0
  %v3427 = vsel %vm363, %v3304, 0
  %v3430 = vand.u32 %v3308, %v2103
  %3432 = vmatprep.subr.bf16.mxu0 0
  %3433 = vmatpush1.bf16.msra.mxu0 %v3430
  %3434 = vmatprep.subr.bf16.mxu0 0
  %3435 = vmatpush1.bf16.msra.mxu0 0
  %3436 = vmatprep.subr.bf16.mxu0 0
  %3437 = vmatpush1.bf16.msra.mxu0 0
  %3438 = vmatprep.subr.bf16.mxu0 0
  %3439 = vmatpush1.bf16.msra.mxu0 0
  %3440 = vmatprep.subr.bf16.mxu0 0
  %3441 = vmatpush1.bf16.msra.mxu0 0
  %3442 = vmatprep.subr.bf16.mxu0 0
  %3443 = vmatpush1.bf16.msra.mxu0 0
  %3444 = vmatprep.subr.bf16.mxu0 0
  %3445 = vmatpush1.bf16.msra.mxu0 0
  %3446 = vmatprep.subr.bf16.mxu0 0
  %3447 = vmatpush1.bf16.msra.mxu0 0
  %3448 = vmatprep.subr.bf16.mxu0 0
  %3449 = vmatpush1.bf16.msra.mxu0 0
  %3450 = vmatprep.subr.bf16.mxu0 0
  %3451 = vmatpush1.bf16.msra.mxu0 0
  %3452 = vmatprep.subr.bf16.mxu0 0
  %3453 = vmatpush1.bf16.msra.mxu0 0
  %3454 = vmatprep.subr.bf16.mxu0 0
  %3455 = vmatpush1.bf16.msra.mxu0 0
  %3456 = vmatprep.subr.bf16.mxu0 0
  %3457 = vmatpush1.bf16.msra.mxu0 0
  %3458 = vmatprep.subr.bf16.mxu0 0
  %3459 = vmatpush1.bf16.msra.mxu0 0
  %3460 = vmatprep.subr.bf16.mxu0 0
  %3461 = vmatpush1.bf16.msra.mxu0 0
  %3462 = vmatprep.subr.bf16.mxu0 0
  %3463 = vmatpush1.bf16.msra.mxu0 0
  %3464 = vmatprep.mubr.bf16.mxu0 0
  %3465 = vmatmul.mubr.bf16.gmra.mrb[0].mxu0 %v3310
  %v3466 = vpop.f32.mrb[0].mxu0
  %v3467 = vadd.f32 0.0, %v3466
  %v3468 = vpop.f32.mrb[0].mxu0
  %v3469 = vpop.f32.mrb[0].mxu0
  %v3470 = vadd.f32 0.0, %v3469
  %v3471 = vpop.f32.mrb[0].mxu0
  %3472 = vmatprep.mubr.bf16.mxu0 0
  %3473 = vmatmul.mubr.bf16.gmra.mrb[0].mxu0 %v3313
  %v3474 = vpop.f32.mrb[0].mxu0
  %v3475 = vadd.f32 0.0, %v3474
  %v3476 = vpop.f32.mrb[0].mxu0
  %v3477 = vpop.f32.mrb[0].mxu0
  %v3478 = vadd.f32 0.0, %v3477
  %v3479 = vpop.f32.mrb[0].mxu0
  %3480 = vmatprep.mubr.bf16.mxu0 0
  %3481 = vmatmul.mubr.bf16.gmra.mrb[0].mxu0 %v3316
  %v3482 = vpop.f32.mrb[0].mxu0
  %v3483 = vadd.f32 0.0, %v3482
  %v3484 = vpop.f32.mrb[0].mxu0
  %v3485 = vpop.f32.mrb[0].mxu0
  %v3486 = vadd.f32 0.0, %v3485
  %v3487 = vpop.f32.mrb[0].mxu0
  %3488 = vmatprep.mubr.bf16.mxu0 0
  %3489 = vmatmul.mubr.bf16.gmra.mrb[0].mxu0 %v3319
  %v3490 = vpop.f32.mrb[0].mxu0
  %v3491 = vadd.f32 0.0, %v3490
  %v3492 = vpop.f32.mrb[0].mxu0
  %v3493 = vpop.f32.mrb[0].mxu0
  %v3494 = vadd.f32 0.0, %v3493
  %v3495 = vpop.f32.mrb[0].mxu0
  %3496 = vmatprep.mubr.bf16.mxu0 0
  %3497 = vmatmul.mubr.bf16.gmra.mrb[0].mxu0 %v3322
  %v3498 = vpop.f32.mrb[0].mxu0
  %v3499 = vadd.f32 0.0, %v3498
  %v3500 = vpop.f32.mrb[0].mxu0
  %v3501 = vpop.f32.mrb[0].mxu0
  %v3502 = vadd.f32 0.0, %v3501
  %v3503 = vpop.f32.mrb[0].mxu0
  %3504 = vmatprep.mubr.bf16.mxu0 0
  %3505 = vmatmul.mubr.bf16.gmra.mrb[0].mxu0 %v3325
  %v3506 = vpop.f32.mrb[0].mxu0
  %v3507 = vadd.f32 0.0, %v3506
  %v3508 = vpop.f32.mrb[0].mxu0
  %v3509 = vpop.f32.mrb[0].mxu0
  %v3510 = vadd.f32 0.0, %v3509
  %v3511 = vpop.f32.mrb[0].mxu0
  %3512 = vmatprep.mubr.bf16.mxu0 0
  %3513 = vmatmul.mubr.bf16.gmra.mrb[0].mxu0 %v3328
  %v3514 = vpop.f32.mrb[0].mxu0
  %v3515 = vadd.f32 0.0, %v3514
  %v3516 = vpop.f32.mrb[0].mxu0
  %v3517 = vpop.f32.mrb[0].mxu0
  %v3518 = vadd.f32 0.0, %v3517
  %v3519 = vpop.f32.mrb[0].mxu0
  %3520 = vmatprep.mubr.bf16.mxu0 0
  %3521 = vmatmul.mubr.bf16.gmra.mrb[0].mxu0 %v3331
  %v3522 = vpop.f32.mrb[0].mxu0
  %v3523 = vadd.f32 0.0, %v3522
  %v3524 = vpop.f32.mrb[0].mxu0
  %v3525 = vpop.f32.mrb[0].mxu0
  %v3526 = vadd.f32 0.0, %v3525
  %v3527 = vpop.f32.mrb[0].mxu0
  %3528 = vmatprep.mubr.bf16.mxu0 0
  %3529 = vmatmul.mubr.bf16.gmra.mrb[0].mxu0 %v3334
  %v3530 = vpop.f32.mrb[0].mxu0
  %v3531 = vadd.f32 0.0, %v3530
  %v3532 = vpop.f32.mrb[0].mxu0
  %v3533 = vpop.f32.mrb[0].mxu0
  %v3534 = vadd.f32 0.0, %v3533
  %v3535 = vpop.f32.mrb[0].mxu0
  %3536 = vmatprep.mubr.bf16.mxu0 0
  %3537 = vmatmul.mubr.bf16.gmra.mrb[0].mxu0 %v3337
  %v3538 = vpop.f32.mrb[0].mxu0
  %v3539 = vadd.f32 0.0, %v3538
  %v3540 = vpop.f32.mrb[0].mxu0
  %v3541 = vpop.f32.mrb[0].mxu0
  %v3542 = vadd.f32 0.0, %v3541
  %v3543 = vpop.f32.mrb[0].mxu0
  %3544 = vmatprep.mubr.bf16.mxu0 0
  %3545 = vmatmul.mubr.bf16.gmra.mrb[0].mxu0 %v3340
  %v3546 = vpop.f32.mrb[0].mxu0
  %v3547 = vadd.f32 0.0, %v3546
  %v3548 = vpop.f32.mrb[0].mxu0
  %v3549 = vpop.f32.mrb[0].mxu0
  %v3550 = vadd.f32 0.0, %v3549
  %v3551 = vpop.f32.mrb[0].mxu0
  %3552 = vmatprep.mubr.bf16.mxu0 0
  %3553 = vmatmul.mubr.bf16.gmra.mrb[0].mxu0 %v3343
  %v3554 = vpop.f32.mrb[0].mxu0
  %v3555 = vadd.f32 0.0, %v3554
  %v3556 = vpop.f32.mrb[0].mxu0
  %v3557 = vpop.f32.mrb[0].mxu0
  %v3558 = vadd.f32 0.0, %v3557
  %v3559 = vpop.f32.mrb[0].mxu0
  %3560 = vmatprep.mubr.bf16.mxu0 0
  %3561 = vmatmul.mubr.bf16.gmra.mrb[0].mxu0 %v3346
  %v3562 = vpop.f32.mrb[0].mxu0
  %v3563 = vadd.f32 0.0, %v3562
  %v3564 = vpop.f32.mrb[0].mxu0
  %v3565 = vpop.f32.mrb[0].mxu0
  %v3566 = vadd.f32 0.0, %v3565
  %v3567 = vpop.f32.mrb[0].mxu0
  %3568 = vmatprep.mubr.bf16.mxu0 0
  %3569 = vmatmul.mubr.bf16.gmra.mrb[0].mxu0 %v3349
  %v3570 = vpop.f32.mrb[0].mxu0
  %v3571 = vadd.f32 0.0, %v3570
  %v3572 = vpop.f32.mrb[0].mxu0
  %v3573 = vpop.f32.mrb[0].mxu0
  %v3574 = vadd.f32 0.0, %v3573
  %v3575 = vpop.f32.mrb[0].mxu0
  %3576 = vmatprep.mubr.bf16.mxu0 0
  %3577 = vmatmul.mubr.bf16.gmra.mrb[0].mxu0 %v3352
  %v3578 = vpop.f32.mrb[0].mxu0
  %v3579 = vadd.f32 0.0, %v3578
  %v3580 = vpop.f32.mrb[0].mxu0
  %v3581 = vpop.f32.mrb[0].mxu0
  %v3582 = vadd.f32 0.0, %v3581
  %v3583 = vpop.f32.mrb[0].mxu0
  %3584 = vmatprep.mubr.bf16.mxu0 0
  %3585 = vmatmul.mubr.bf16.gmra.mrb[0].mxu0 %v3355
  %v3586 = vpop.f32.mrb[0].mxu0
  %v3587 = vadd.f32 0.0, %v3586
  %v3588 = vpop.f32.mrb[0].mxu0
  %v3589 = vpop.f32.mrb[0].mxu0
  %v3590 = vadd.f32 0.0, %v3589
  %v3591 = vpop.f32.mrb[0].mxu0
  %3592 = vmatprep.mubr.bf16.mxu0 0
  %3593 = vmatmul.mubr.bf16.gmra.mrb[0].mxu0 %v3358
  %v3594 = vpop.f32.mrb[0].mxu0
  %v3595 = vadd.f32 0.0, %v3594
  %v3596 = vpop.f32.mrb[0].mxu0
  %v3597 = vpop.f32.mrb[0].mxu0
  %v3598 = vadd.f32 0.0, %v3597
  %v3599 = vpop.f32.mrb[0].mxu0
  %3600 = vmatprep.mubr.bf16.mxu0 0
  %3601 = vmatmul.mubr.bf16.gmra.mrb[0].mxu0 %v3361
  %v3602 = vpop.f32.mrb[0].mxu0
  %v3603 = vadd.f32 0.0, %v3602
  %v3604 = vpop.f32.mrb[0].mxu0
  %v3605 = vpop.f32.mrb[0].mxu0
  %v3606 = vadd.f32 0.0, %v3605
  %v3607 = vpop.f32.mrb[0].mxu0
  %3608 = vmatprep.mubr.bf16.mxu0 0
  %3609 = vmatmul.mubr.bf16.gmra.mrb[0].mxu0 %v3364
  %v3610 = vpop.f32.mrb[0].mxu0
  %v3611 = vadd.f32 0.0, %v3610
  %v3612 = vpop.f32.mrb[0].mxu0
  %v3613 = vpop.f32.mrb[0].mxu0
  %v3614 = vadd.f32 0.0, %v3613
  %v3615 = vpop.f32.mrb[0].mxu0
  %3616 = vmatprep.mubr.bf16.mxu0 0
  %3617 = vmatmul.mubr.bf16.gmra.mrb[0].mxu0 %v3367
  %v3618 = vpop.f32.mrb[0].mxu0
  %v3619 = vadd.f32 0.0, %v3618
  %v3620 = vpop.f32.mrb[0].mxu0
  %v3621 = vpop.f32.mrb[0].mxu0
  %v3622 = vadd.f32 0.0, %v3621
  %v3623 = vpop.f32.mrb[0].mxu0
  %3624 = vmatprep.mubr.bf16.mxu0 0
  %3625 = vmatmul.mubr.bf16.gmra.mrb[0].mxu0 %v3370
  %v3626 = vpop.f32.mrb[0].mxu0
  %v3627 = vadd.f32 0.0, %v3626
  %v3628 = vpop.f32.mrb[0].mxu0
  %v3629 = vpop.f32.mrb[0].mxu0
  %v3630 = vadd.f32 0.0, %v3629
  %v3631 = vpop.f32.mrb[0].mxu0
  %3632 = vmatprep.mubr.bf16.mxu0 0
  %3633 = vmatmul.mubr.bf16.gmra.mrb[0].mxu0 %v3373
  %v3634 = vpop.f32.mrb[0].mxu0
  %v3635 = vadd.f32 0.0, %v3634
  %v3636 = vpop.f32.mrb[0].mxu0
  %v3637 = vpop.f32.mrb[0].mxu0
  %v3638 = vadd.f32 0.0, %v3637
  %v3639 = vpop.f32.mrb[0].mxu0
  %3640 = vmatprep.mubr.bf16.mxu0 0
  %3641 = vmatmul.mubr.bf16.gmra.mrb[0].mxu0 %v3376
  %v3642 = vpop.f32.mrb[0].mxu0
  %v3643 = vadd.f32 0.0, %v3642
  %v3644 = vpop.f32.mrb[0].mxu0
  %v3645 = vpop.f32.mrb[0].mxu0
  %v3646 = vadd.f32 0.0, %v3645
  %v3647 = vpop.f32.mrb[0].mxu0
  %3648 = vmatprep.mubr.bf16.mxu0 0
  %3649 = vmatmul.mubr.bf16.gmra.mrb[0].mxu0 %v3379
  %v3650 = vpop.f32.mrb[0].mxu0
  %v3651 = vadd.f32 0.0, %v3650
  %v3652 = vpop.f32.mrb[0].mxu0
  %v3653 = vpop.f32.mrb[0].mxu0
  %v3654 = vadd.f32 0.0, %v3653
  %v3655 = vpop.f32.mrb[0].mxu0
  %3656 = vmatprep.mubr.bf16.mxu0 0
  %3657 = vmatmul.mubr.bf16.gmra.mrb[0].mxu0 %v3382
  %v3658 = vpop.f32.mrb[0].mxu0
  %v3659 = vadd.f32 0.0, %v3658
  %v3660 = vpop.f32.mrb[0].mxu0
  %v3661 = vpop.f32.mrb[0].mxu0
  %v3662 = vadd.f32 0.0, %v3661
  %v3663 = vpop.f32.mrb[0].mxu0
  %3664 = vmatprep.mubr.bf16.mxu0 0
  %3665 = vmatmul.mubr.bf16.gmra.mrb[0].mxu0 %v3385
  %v3666 = vpop.f32.mrb[0].mxu0
  %v3667 = vadd.f32 0.0, %v3666
  %v3668 = vpop.f32.mrb[0].mxu0
  %v3669 = vpop.f32.mrb[0].mxu0
  %v3670 = vadd.f32 0.0, %v3669
  %v3671 = vpop.f32.mrb[0].mxu0
  %3672 = vmatprep.mubr.bf16.mxu0 0
  %3673 = vmatmul.mubr.bf16.gmra.mrb[0].mxu0 %v3388
  %v3674 = vpop.f32.mrb[0].mxu0
  %v3675 = vadd.f32 0.0, %v3674
  %v3676 = vpop.f32.mrb[0].mxu0
  %v3677 = vpop.f32.mrb[0].mxu0
  %v3678 = vadd.f32 0.0, %v3677
  %v3679 = vpop.f32.mrb[0].mxu0
  %3680 = vmatprep.mubr.bf16.mxu0 0
  %3681 = vmatmul.mubr.bf16.gmra.mrb[0].mxu0 %v3391
  %v3682 = vpop.f32.mrb[0].mxu0
  %v3683 = vadd.f32 0.0, %v3682
  %v3684 = vpop.f32.mrb[0].mxu0
  %v3685 = vpop.f32.mrb[0].mxu0
  %v3686 = vadd.f32 0.0, %v3685
  %v3687 = vpop.f32.mrb[0].mxu0
  %3688 = vmatprep.mubr.bf16.mxu0 0
  %3689 = vmatmul.mubr.bf16.gmra.mrb[0].mxu0 %v3394
  %v3690 = vpop.f32.mrb[0].mxu0
  %v3691 = vadd.f32 0.0, %v3690
  %v3692 = vpop.f32.mrb[0].mxu0
  %v3693 = vpop.f32.mrb[0].mxu0
  %v3694 = vadd.f32 0.0, %v3693
  %v3695 = vpop.f32.mrb[0].mxu0
  %3696 = vmatprep.mubr.bf16.mxu0 0
  %3697 = vmatmul.mubr.bf16.gmra.mrb[0].mxu0 %v3397
  %v3698 = vpop.f32.mrb[0].mxu0
  %v3699 = vadd.f32 0.0, %v3698
  %v3700 = vpop.f32.mrb[0].mxu0
  %v3701 = vpop.f32.mrb[0].mxu0
  %v3702 = vadd.f32 0.0, %v3701
  %v3703 = vpop.f32.mrb[0].mxu0
  %3704 = vmatprep.mubr.bf16.mxu0 0
  %3705 = vmatmul.mubr.bf16.gmra.mrb[0].mxu0 %v3400
  %v3706 = vpop.f32.mrb[0].mxu0
  %v3707 = vadd.f32 0.0, %v3706
  %v3708 = vpop.f32.mrb[0].mxu0
  %v3709 = vpop.f32.mrb[0].mxu0
  %v3710 = vadd.f32 0.0, %v3709
  %v3711 = vpop.f32.mrb[0].mxu0
  %3712 = vmatprep.mubr.bf16.mxu0 0
  %3713 = vmatmul.mubr.bf16.gmra.mrb[0].mxu0 %v3403
  %v3714 = vpop.f32.mrb[0].mxu0
  %v3715 = vadd.f32 0.0, %v3714
  %v3716 = vpop.f32.mrb[0].mxu0
  %v3717 = vpop.f32.mrb[0].mxu0
  %v3718 = vadd.f32 0.0, %v3717
  %v3719 = vpop.f32.mrb[0].mxu0
  %3720 = vmatprep.mubr.bf16.mxu0 0
  %3721 = vmatmul.mubr.bf16.gmra.mrb[0].mxu0 %v3406
  %v3722 = vpop.f32.mrb[0].mxu0
  %v3723 = vadd.f32 0.0, %v3722
  %v3724 = vpop.f32.mrb[0].mxu0
  %v3725 = vpop.f32.mrb[0].mxu0
  %v3726 = vadd.f32 0.0, %v3725
  %v3727 = vpop.f32.mrb[0].mxu0
  %3728 = vmatprep.mubr.bf16.mxu0 0
  %3729 = vmatmul.mubr.bf16.gmra.mrb[0].mxu0 %v3409
  %v3730 = vpop.f32.mrb[0].mxu0
  %v3731 = vadd.f32 0.0, %v3730
  %v3732 = vpop.f32.mrb[0].mxu0
  %v3733 = vpop.f32.mrb[0].mxu0
  %v3734 = vadd.f32 0.0, %v3733
  %v3735 = vpop.f32.mrb[0].mxu0
  %3736 = vmatprep.mubr.bf16.mxu0 0
  %3737 = vmatmul.mubr.bf16.gmra.mrb[0].mxu0 %v3412
  %v3738 = vpop.f32.mrb[0].mxu0
  %v3739 = vadd.f32 0.0, %v3738
  %v3740 = vpop.f32.mrb[0].mxu0
  %v3741 = vpop.f32.mrb[0].mxu0
  %v3742 = vadd.f32 0.0, %v3741
  %v3743 = vpop.f32.mrb[0].mxu0
  %3744 = vmatprep.mubr.bf16.mxu0 0
  %3745 = vmatmul.mubr.bf16.gmra.mrb[0].mxu0 %v3415
  %v3746 = vpop.f32.mrb[0].mxu0
  %v3747 = vadd.f32 0.0, %v3746
  %v3748 = vpop.f32.mrb[0].mxu0
  %v3749 = vpop.f32.mrb[0].mxu0
  %v3750 = vadd.f32 0.0, %v3749
  %v3751 = vpop.f32.mrb[0].mxu0
  %3752 = vmatprep.mubr.bf16.mxu0 0
  %3753 = vmatmul.mubr.bf16.gmra.mrb[0].mxu0 %v3418
  %v3754 = vpop.f32.mrb[0].mxu0
  %v3755 = vadd.f32 0.0, %v3754
  %v3756 = vpop.f32.mrb[0].mxu0
  %v3757 = vpop.f32.mrb[0].mxu0
  %v3758 = vadd.f32 0.0, %v3757
  %v3759 = vpop.f32.mrb[0].mxu0
  %3760 = vmatprep.mubr.bf16.mxu0 0
  %3761 = vmatmul.mubr.bf16.gmra.mrb[0].mxu0 %v3421
  %v3762 = vpop.f32.mrb[0].mxu0
  %v3763 = vadd.f32 0.0, %v3762
  %v3764 = vpop.f32.mrb[0].mxu0
  %v3765 = vpop.f32.mrb[0].mxu0
  %v3766 = vadd.f32 0.0, %v3765
  %v3767 = vpop.f32.mrb[0].mxu0
  %3768 = vmatprep.mubr.bf16.mxu0 0
  %3769 = vmatmul.mubr.bf16.gmra.mrb[0].mxu0 %v3424
  %v3770 = vpop.f32.mrb[0].mxu0
  %v3771 = vadd.f32 0.0, %v3770
  %v3772 = vpop.f32.mrb[0].mxu0
  %v3773 = vpop.f32.mrb[0].mxu0
  %v3774 = vadd.f32 0.0, %v3773
  %v3775 = vpop.f32.mrb[0].mxu0
  %3776 = vmatprep.mubr.bf16.mxu0 0
  %3777 = vmatmul.mubr.bf16.gmra.mrb[0].mxu0 %v3427
  %v3778 = vpop.f32.mrb[0].mxu0
  %v3779 = vadd.f32 0.0, %v3778
  %v3780 = vpop.f32.mrb[0].mxu0
  %v3781 = vpop.f32.mrb[0].mxu0
  %v3782 = vadd.f32 0.0, %v3781
  %v3783 = vpop.f32.mrb[0].mxu0
  %3784 = vdwg.mxu0
  %v3785 = vadd.f32 %v2618, %v3467
  %v3786 = vadd.f32 %v2621, %v3470
  %v3787 = vadd.f32 %v2626, %v3475
  %v3788 = vadd.f32 %v2629, %v3478
  %v3789 = vadd.f32 %v2634, %v3483
  %v3790 = vadd.f32 %v2637, %v3486
  %v3791 = vadd.f32 %v2642, %v3491
  %v3792 = vadd.f32 %v2645, %v3494
  %v3793 = vadd.f32 %v2650, %v3499
  %v3794 = vadd.f32 %v2653, %v3502
  %v3795 = vadd.f32 %v2658, %v3507
  %v3796 = vadd.f32 %v2661, %v3510
  %v3797 = vadd.f32 %v2666, %v3515
  %v3798 = vadd.f32 %v2669, %v3518
  %v3799 = vadd.f32 %v2674, %v3523
  %v3800 = vadd.f32 %v2677, %v3526
  %v3801 = vadd.f32 %v2682, %v3531
  %v3802 = vadd.f32 %v2685, %v3534
  %v3803 = vadd.f32 %v2690, %v3539
  %v3804 = vadd.f32 %v2693, %v3542
  %v3805 = vadd.f32 %v2698, %v3547
  %v3806 = vadd.f32 %v2701, %v3550
  %v3807 = vadd.f32 %v2706, %v3555
  %v3808 = vadd.f32 %v2709, %v3558
  %v3809 = vadd.f32 %v2714, %v3563
  %v3810 = vadd.f32 %v2717, %v3566
  %v3811 = vadd.f32 %v2722, %v3571
  %v3812 = vadd.f32 %v2725, %v3574
  %v3813 = vadd.f32 %v2730, %v3579
  %v3814 = vadd.f32 %v2733, %v3582
  %v3815 = vadd.f32 %v2738, %v3587
  %v3816 = vadd.f32 %v2741, %v3590
  %v3817 = vadd.f32 %v2746, %v3595
  %v3818 = vadd.f32 %v2749, %v3598
  %v3819 = vadd.f32 %v2754, %v3603
  %v3820 = vadd.f32 %v2757, %v3606
  %v3821 = vadd.f32 %v2762, %v3611
  %v3822 = vadd.f32 %v2765, %v3614
  %v3823 = vadd.f32 %v2770, %v3619
  %v3824 = vadd.f32 %v2773, %v3622
  %v3825 = vadd.f32 %v2778, %v3627
  %v3826 = vadd.f32 %v2781, %v3630
  %v3827 = vadd.f32 %v2786, %v3635
  %v3828 = vadd.f32 %v2789, %v3638
  %v3829 = vadd.f32 %v2794, %v3643
  %v3830 = vadd.f32 %v2797, %v3646
  %v3831 = vadd.f32 %v2802, %v3651
  %v3832 = vadd.f32 %v2805, %v3654
  %v3833 = vadd.f32 %v2810, %v3659
  %v3834 = vadd.f32 %v2813, %v3662
  %v3835 = vadd.f32 %v2818, %v3667
  %v3836 = vadd.f32 %v2821, %v3670
  %v3837 = vadd.f32 %v2826, %v3675
  %v3838 = vadd.f32 %v2829, %v3678
  %v3839 = vadd.f32 %v2834, %v3683
  %v3840 = vadd.f32 %v2837, %v3686
  %v3841 = vadd.f32 %v2842, %v3691
  %v3842 = vadd.f32 %v2845, %v3694
  %v3843 = vadd.f32 %v2850, %v3699
  %v3844 = vadd.f32 %v2853, %v3702
  %v3845 = vadd.f32 %v2858, %v3707
  %v3846 = vadd.f32 %v2861, %v3710
  %v3847 = vadd.f32 %v2866, %v3715
  %v3848 = vadd.f32 %v2869, %v3718
  %v3849 = vadd.f32 %v2874, %v3723
  %v3850 = vadd.f32 %v2877, %v3726
  %v3851 = vadd.f32 %v2882, %v3731
  %v3852 = vadd.f32 %v2885, %v3734
  %v3853 = vadd.f32 %v2890, %v3739
  %v3854 = vadd.f32 %v2893, %v3742
  %v3855 = vadd.f32 %v2898, %v3747
  %v3856 = vadd.f32 %v2901, %v3750
  %v3857 = vadd.f32 %v2906, %v3755
  %v3858 = vadd.f32 %v2909, %v3758
  %v3859 = vadd.f32 %v2914, %v3763
  %v3860 = vadd.f32 %v2917, %v3766
  %v3861 = vadd.f32 %v2922, %v3771
  %v3862 = vadd.f32 %v2925, %v3774
  %v3863 = vadd.f32 %v2930, %v3779
  %v3864 = vadd.f32 %v2933, %v3782
  %v3865 = vld [vmem:[#allocation2] sm:$0xf0]
  %v3866 = vld [vmem:[#allocation2 + $0x140] sm:$0xf]
  %v3867 = vpack.c.b16 %v964, %v964
  %v3868 = vpack.c.b16 %v966, %v965
  %v3869 = vpack.c.b16 %v968, %v967
  %v3870 = vpack.c.b16 %v970, %v969
  %v3871 = vpack.c.b16 %v972, %v971
  %v3872 = vpack.c.b16 %v974, %v973
  %v3873 = vpack.c.b16 %v976, %v975
  %v3874 = vpack.c.b16 %v978, %v977
  %v3875 = vpack.c.b16 %v980, %v979
  %v3876 = vpack.c.b16 %v982, %v981
  %v3877 = vpack.c.b16 %v984, %v983
  %v3878 = vpack.c.b16 %v986, %v985
  %v3879 = vpack.c.b16 %v988, %v987
  %v3880 = vpack.c.b16 %v990, %v989
  %v3881 = vpack.c.b16 %v992, %v991
  %v3882 = vpack.c.b16 %v994, %v993
  %v3883 = vpack.c.b16 %v996, %v995
  %v3884 = vpack.c.b16 %v998, %v997
  %v3885 = vpack.c.b16 %v1000, %v999
  %v3886 = vpack.c.b16 %v1002, %v1001
  %v3887 = vpack.c.b16 %v1004, %v1003
  %v3888 = vpack.c.b16 %v1006, %v1005
  %v3889 = vpack.c.b16 %v1008, %v1007
  %v3890 = vpack.c.b16 %v1010, %v1009
  %v3891 = vpack.c.b16 %v1012, %v1011
  %v3892 = vpack.c.b16 %v1014, %v1013
  %v3893 = vpack.c.b16 %v1016, %v1015
  %v3894 = vpack.c.b16 %v1018, %v1017
  %v3895 = vpack.c.b16 %v1020, %v1019
  %v3896 = vpack.c.b16 %v1022, %v1021
  %v3897 = vpack.c.b16 %v1024, %v1023
  %v3898 = vpack.c.b16 %v1026, %v1025
  %v3899 = vpack.c.b16 %v1028, %v1027
  %v3900 = vpack.c.b16 %v1030, %v1029
  %v3901 = vpack.c.b16 %v1032, %v1031
  %v3902 = vpack.c.b16 %v1034, %v1033
  %v3903 = vpack.c.b16 %v1036, %v1035
  %v3904 = vpack.c.b16 %v1038, %v1037
  %v3905 = vpack.c.b16 %v1040, %v1039
  %v3906 = vpack.c.b16 %v1042, %v1041
  %v3907 = vpack.c.b16 %v1043, %v1043
  %3908 = vrot.lane.b32.xlu0 %v3867, 125
  %v3909 = vpop.permute.xlu0 %3908
  %3910 = vrot.lane.b32.xlu0 %v3868, 125
  %v3911 = vpop.permute.xlu0 %3910
  %3912 = vrot.lane.b32.xlu0 %v3869, 125
  %v3913 = vpop.permute.xlu0 %3912
  %3914 = vrot.lane.b32.xlu0 %v3870, 125
  %v3915 = vpop.permute.xlu0 %3914
  %3916 = vrot.lane.b32.xlu0 %v3871, 125
  %v3917 = vpop.permute.xlu0 %3916
  %3918 = vrot.lane.b32.xlu0 %v3872, 125
  %v3919 = vpop.permute.xlu0 %3918
  %3920 = vrot.lane.b32.xlu0 %v3873, 125
  %v3921 = vpop.permute.xlu0 %3920
  %3922 = vrot.lane.b32.xlu0 %v3874, 125
  %v3923 = vpop.permute.xlu0 %3922
  %3924 = vrot.lane.b32.xlu0 %v3875, 125
  %v3925 = vpop.permute.xlu0 %3924
  %3926 = vrot.lane.b32.xlu0 %v3876, 125
  %v3927 = vpop.permute.xlu0 %3926
  %3928 = vrot.lane.b32.xlu0 %v3877, 125
  %v3929 = vpop.permute.xlu0 %3928
  %3930 = vrot.lane.b32.xlu0 %v3878, 125
  %v3931 = vpop.permute.xlu0 %3930
  %3932 = vrot.lane.b32.xlu0 %v3879, 125
  %v3933 = vpop.permute.xlu0 %3932
  %3934 = vrot.lane.b32.xlu0 %v3880, 125
  %v3935 = vpop.permute.xlu0 %3934
  %3936 = vrot.lane.b32.xlu0 %v3881, 125
  %v3937 = vpop.permute.xlu0 %3936
  %3938 = vrot.lane.b32.xlu0 %v3882, 125
  %v3939 = vpop.permute.xlu0 %3938
  %3940 = vrot.lane.b32.xlu0 %v3883, 125
  %v3941 = vpop.permute.xlu0 %3940
  %3942 = vrot.lane.b32.xlu0 %v3884, 125
  %v3943 = vpop.permute.xlu0 %3942
  %3944 = vrot.lane.b32.xlu0 %v3885, 125
  %v3945 = vpop.permute.xlu0 %3944
  %3946 = vrot.lane.b32.xlu0 %v3886, 125
  %v3947 = vpop.permute.xlu0 %3946
  %3948 = vrot.lane.b32.xlu0 %v3887, 125
  %v3949 = vpop.permute.xlu0 %3948
  %3950 = vrot.lane.b32.xlu0 %v3888, 125
  %v3951 = vpop.permute.xlu0 %3950
  %3952 = vrot.lane.b32.xlu0 %v3889, 125
  %v3953 = vpop.permute.xlu0 %3952
  %3954 = vrot.lane.b32.xlu0 %v3890, 125
  %v3955 = vpop.permute.xlu0 %3954
  %3956 = vrot.lane.b32.xlu0 %v3891, 125
  %v3957 = vpop.permute.xlu0 %3956
  %3958 = vrot.lane.b32.xlu0 %v3892, 125
  %v3959 = vpop.permute.xlu0 %3958
  %3960 = vrot.lane.b32.xlu0 %v3893, 125
  %v3961 = vpop.permute.xlu0 %3960
  %3962 = vrot.lane.b32.xlu0 %v3894, 125
  %v3963 = vpop.permute.xlu0 %3962
  %3964 = vrot.lane.b32.xlu0 %v3895, 125
  %v3965 = vpop.permute.xlu0 %3964
  %3966 = vrot.lane.b32.xlu0 %v3896, 125
  %v3967 = vpop.permute.xlu0 %3966
  %3968 = vrot.lane.b32.xlu0 %v3897, 125
  %v3969 = vpop.permute.xlu0 %3968
  %3970 = vrot.lane.b32.xlu0 %v3898, 125
  %v3971 = vpop.permute.xlu0 %3970
  %3972 = vrot.lane.b32.xlu0 %v3899, 125
  %v3973 = vpop.permute.xlu0 %3972
  %3974 = vrot.lane.b32.xlu0 %v3900, 125
  %v3975 = vpop.permute.xlu0 %3974
  %3976 = vrot.lane.b32.xlu0 %v3901, 125
  %v3977 = vpop.permute.xlu0 %3976
  %3978 = vrot.lane.b32.xlu0 %v3902, 125
  %v3979 = vpop.permute.xlu0 %3978
  %3980 = vrot.lane.b32.xlu0 %v3903, 125
  %v3981 = vpop.permute.xlu0 %3980
  %3982 = vrot.lane.b32.xlu0 %v3904, 125
  %v3983 = vpop.permute.xlu0 %3982
  %3984 = vrot.lane.b32.xlu0 %v3905, 125
  %v3985 = vpop.permute.xlu0 %3984
  %3986 = vrot.lane.b32.xlu0 %v3906, 125
  %v3987 = vpop.permute.xlu0 %3986
  %3988 = vrot.lane.b32.xlu0 %v3907, 125
  %v3989 = vpop.permute.xlu0 %3988
  %v4031 = vmul.bf16 %v3865, %v3909
  %v4032 = vmul.bf16 %v845, %v3911
  %v4033 = vmul.bf16 %v846, %v3913
  %v4034 = vmul.bf16 %v847, %v3915
  %v4035 = vmul.bf16 %v848, %v3917
  %v4036 = vmul.bf16 %v849, %v3919
  %v4037 = vmul.bf16 %v850, %v3921
  %v4038 = vmul.bf16 %v851, %v3923
  %v4039 = vmul.bf16 %v852, %v3925
  %v4040 = vmul.bf16 %v853, %v3927
  %v4041 = vmul.bf16 %v854, %v3929
  %v4042 = vmul.bf16 %v855, %v3931
  %v4043 = vmul.bf16 %v856, %v3933
  %v4044 = vmul.bf16 %v857, %v3935
  %v4045 = vmul.bf16 %v858, %v3937
  %v4046 = vmul.bf16 %v859, %v3939
  %v4047 = vmul.bf16 %v860, %v3941
  %v4048 = vmul.bf16 %v861, %v3943
  %v4049 = vmul.bf16 %v862, %v3945
  %v4050 = vmul.bf16 %v863, %v3947
  %v4051 = vmul.bf16 %v864, %v3949
  %v4052 = vmul.bf16 %v865, %v3951
  %v4053 = vmul.bf16 %v866, %v3953
  %v4054 = vmul.bf16 %v867, %v3955
  %v4055 = vmul.bf16 %v868, %v3957
  %v4056 = vmul.bf16 %v869, %v3959
  %v4057 = vmul.bf16 %v870, %v3961
  %v4058 = vmul.bf16 %v871, %v3963
  %v4059 = vmul.bf16 %v872, %v3965
  %v4060 = vmul.bf16 %v873, %v3967
  %v4061 = vmul.bf16 %v874, %v3969
  %v4062 = vmul.bf16 %v875, %v3971
  %v4063 = vmul.bf16 %v876, %v3973
  %v4064 = vmul.bf16 %v877, %v3975
  %v4065 = vmul.bf16 %v878, %v3977
  %v4066 = vmul.bf16 %v879, %v3979
  %v4067 = vmul.bf16 %v880, %v3981
  %v4068 = vmul.bf16 %v881, %v3983
  %v4069 = vmul.bf16 %v882, %v3985
  %v4070 = vmul.bf16 %v883, %v3987
  %v4071 = vmul.bf16 %v3866, %v3989
  %vm4113 = vcmask 1043456
  %v4114 = vrot.slane %v4031, 4
  %v4115 = vrot.slane %v4032, 4
  %v4116 = vsel %vm4113, %v4114, %v4115
  %v4117 = vrot.slane %v4033, 4
  %v4118 = vsel %vm4113, %v4115, %v4117
  %v4119 = vrot.slane %v4034, 4
  %v4120 = vsel %vm4113, %v4117, %v4119
  %v4121 = vrot.slane %v4035, 4
  %v4122 = vsel %vm4113, %v4119, %v4121
  %v4123 = vrot.slane %v4036, 4
  %v4124 = vsel %vm4113, %v4121, %v4123
  %v4125 = vrot.slane %v4037, 4
  %v4126 = vsel %vm4113, %v4123, %v4125
  %v4127 = vrot.slane %v4038, 4
  %v4128 = vsel %vm4113, %v4125, %v4127
  %v4129 = vrot.slane %v4039, 4
  %v4130 = vsel %vm4113, %v4127, %v4129
  %v4131 = vrot.slane %v4040, 4
  %v4132 = vsel %vm4113, %v4129, %v4131
  %v4133 = vrot.slane %v4041, 4
  %v4134 = vsel %vm4113, %v4131, %v4133
  %v4135 = vrot.slane %v4042, 4
  %v4136 = vsel %vm4113, %v4133, %v4135
  %v4137 = vrot.slane %v4043, 4
  %v4138 = vsel %vm4113, %v4135, %v4137
  %v4139 = vrot.slane %v4044, 4
  %v4140 = vsel %vm4113, %v4137, %v4139
  %v4141 = vrot.slane %v4045, 4
  %v4142 = vsel %vm4113, %v4139, %v4141
  %v4143 = vrot.slane %v4046, 4
  %v4144 = vsel %vm4113, %v4141, %v4143
  %v4145 = vrot.slane %v4047, 4
  %v4146 = vsel %vm4113, %v4143, %v4145
  %v4147 = vrot.slane %v4048, 4
  %v4148 = vsel %vm4113, %v4145, %v4147
  %v4149 = vrot.slane %v4049, 4
  %v4150 = vsel %vm4113, %v4147, %v4149
  %v4151 = vrot.slane %v4050, 4
  %v4152 = vsel %vm4113, %v4149, %v4151
  %v4153 = vrot.slane %v4051, 4
  %v4154 = vsel %vm4113, %v4151, %v4153
  %v4155 = vrot.slane %v4052, 4
  %v4156 = vsel %vm4113, %v4153, %v4155
  %v4157 = vrot.slane %v4053, 4
  %v4158 = vsel %vm4113, %v4155, %v4157
  %v4159 = vrot.slane %v4054, 4
  %v4160 = vsel %vm4113, %v4157, %v4159
  %v4161 = vrot.slane %v4055, 4
  %v4162 = vsel %vm4113, %v4159, %v4161
  %v4163 = vrot.slane %v4056, 4
  %v4164 = vsel %vm4113, %v4161, %v4163
  %v4165 = vrot.slane %v4057, 4
  %v4166 = vsel %vm4113, %v4163, %v4165
  %v4167 = vrot.slane %v4058, 4
  %v4168 = vsel %vm4113, %v4165, %v4167
  %v4169 = vrot.slane %v4059, 4
  %v4170 = vsel %vm4113, %v4167, %v4169
  %v4171 = vrot.slane %v4060, 4
  %v4172 = vsel %vm4113, %v4169, %v4171
  %v4173 = vrot.slane %v4061, 4
  %v4174 = vsel %vm4113, %v4171, %v4173
  %v4175 = vrot.slane %v4062, 4
  %v4176 = vsel %vm4113, %v4173, %v4175
  %v4177 = vrot.slane %v4063, 4
  %v4178 = vsel %vm4113, %v4175, %v4177
  %v4179 = vrot.slane %v4064, 4
  %v4180 = vsel %vm4113, %v4177, %v4179
  %v4181 = vrot.slane %v4065, 4
  %v4182 = vsel %vm4113, %v4179, %v4181
  %v4183 = vrot.slane %v4066, 4
  %v4184 = vsel %vm4113, %v4181, %v4183
  %v4185 = vrot.slane %v4067, 4
  %v4186 = vsel %vm4113, %v4183, %v4185
  %v4187 = vrot.slane %v4068, 4
  %v4188 = vsel %vm4113, %v4185, %v4187
  %v4189 = vrot.slane %v4069, 4
  %v4190 = vsel %vm4113, %v4187, %v4189
  %v4191 = vrot.slane %v4070, 4
  %v4192 = vsel %vm4113, %v4189, %v4191
  %v4193 = vrot.slane %v4071, 4
  %v4194 = vsel %vm4113, %v4191, %v4193
  %v4196 = vshrl.u32 %v3307, 16
  %v4198 = vrot.slane %v4196, 1
  %v4200 = vsel %vm363, %v4116, 0
  %v4203 = vsel %vm363, %v4118, 0
  %v4206 = vsel %vm363, %v4120, 0
  %v4209 = vsel %vm363, %v4122, 0
  %v4212 = vsel %vm363, %v4124, 0
  %v4215 = vsel %vm363, %v4126, 0
  %v4218 = vsel %vm363, %v4128, 0
  %v4221 = vsel %vm363, %v4130, 0
  %v4224 = vsel %vm363, %v4132, 0
  %v4227 = vsel %vm363, %v4134, 0
  %v4230 = vsel %vm363, %v4136, 0
  %v4233 = vsel %vm363, %v4138, 0
  %v4236 = vsel %vm363, %v4140, 0
  %v4239 = vsel %vm363, %v4142, 0
  %v4242 = vsel %vm363, %v4144, 0
  %v4245 = vsel %vm363, %v4146, 0
  %v4248 = vsel %vm363, %v4148, 0
  %v4251 = vsel %vm363, %v4150, 0
  %v4254 = vsel %vm363, %v4152, 0
  %v4257 = vsel %vm363, %v4154, 0
  %v4260 = vsel %vm363, %v4156, 0
  %v4263 = vsel %vm363, %v4158, 0
  %v4266 = vsel %vm363, %v4160, 0
  %v4269 = vsel %vm363, %v4162, 0
  %v4272 = vsel %vm363, %v4164, 0
  %v4275 = vsel %vm363, %v4166, 0
  %v4278 = vsel %vm363, %v4168, 0
  %v4281 = vsel %vm363, %v4170, 0
  %v4284 = vsel %vm363, %v4172, 0
  %v4287 = vsel %vm363, %v4174, 0
  %v4290 = vsel %vm363, %v4176, 0
  %v4293 = vsel %vm363, %v4178, 0
  %v4296 = vsel %vm363, %v4180, 0
  %v4299 = vsel %vm363, %v4182, 0
  %v4302 = vsel %vm363, %v4184, 0
  %v4305 = vsel %vm363, %v4186, 0
  %v4308 = vsel %vm363, %v4188, 0
  %v4311 = vsel %vm363, %v4190, 0
  %v4314 = vsel %vm363, %v4192, 0
  %v4317 = vsel %vm363, %v4194, 0
  %v4320 = vand.u32 %v4198, %v2103
  %4322 = vmatprep.subr.bf16.mxu0 0
  %4323 = vmatpush1.bf16.msra.mxu0 %v4320
  %4324 = vmatprep.subr.bf16.mxu0 0
  %4325 = vmatpush1.bf16.msra.mxu0 0
  %4326 = vmatprep.subr.bf16.mxu0 0
  %4327 = vmatpush1.bf16.msra.mxu0 0
  %4328 = vmatprep.subr.bf16.mxu0 0
  %4329 = vmatpush1.bf16.msra.mxu0 0
  %4330 = vmatprep.subr.bf16.mxu0 0
  %4331 = vmatpush1.bf16.msra.mxu0 0
  %4332 = vmatprep.subr.bf16.mxu0 0
  %4333 = vmatpush1.bf16.msra.mxu0 0
  %4334 = vmatprep.subr.bf16.mxu0 0
  %4335 = vmatpush1.bf16.msra.mxu0 0
  %4336 = vmatprep.subr.bf16.mxu0 0
  %4337 = vmatpush1.bf16.msra.mxu0 0
  %4338 = vmatprep.subr.bf16.mxu0 0
  %4339 = vmatpush1.bf16.msra.mxu0 0
  %4340 = vmatprep.subr.bf16.mxu0 0
  %4341 = vmatpush1.bf16.msra.mxu0 0
  %4342 = vmatprep.subr.bf16.mxu0 0
  %4343 = vmatpush1.bf16.msra.mxu0 0
  %4344 = vmatprep.subr.bf16.mxu0 0
  %4345 = vmatpush1.bf16.msra.mxu0 0
  %4346 = vmatprep.subr.bf16.mxu0 0
  %4347 = vmatpush1.bf16.msra.mxu0 0
  %4348 = vmatprep.subr.bf16.mxu0 0
  %4349 = vmatpush1.bf16.msra.mxu0 0
  %4350 = vmatprep.subr.bf16.mxu0 0
  %4351 = vmatpush1.bf16.msra.mxu0 0
  %4352 = vmatprep.subr.bf16.mxu0 0
  %4353 = vmatpush1.bf16.msra.mxu0 0
  %4354 = vmatprep.mubr.bf16.mxu0 0
  %4355 = vmatmul.mubr.bf16.gmra.mrb[0].mxu0 %v4200
  %v4356 = vpop.f32.mrb[0].mxu0
  %v4357 = vadd.f32 0.0, %v4356
  %v4358 = vpop.f32.mrb[0].mxu0
  %v4359 = vpop.f32.mrb[0].mxu0
  %v4360 = vadd.f32 0.0, %v4359
  %v4361 = vpop.f32.mrb[0].mxu0
  %4362 = vmatprep.mubr.bf16.mxu0 0
  %4363 = vmatmul.mubr.bf16.gmra.mrb[0].mxu0 %v4203
  %v4364 = vpop.f32.mrb[0].mxu0
  %v4365 = vadd.f32 0.0, %v4364
  %v4366 = vpop.f32.mrb[0].mxu0
  %v4367 = vpop.f32.mrb[0].mxu0
  %v4368 = vadd.f32 0.0, %v4367
  %v4369 = vpop.f32.mrb[0].mxu0
  %4370 = vmatprep.mubr.bf16.mxu0 0
  %4371 = vmatmul.mubr.bf16.gmra.mrb[0].mxu0 %v4206
  %v4372 = vpop.f32.mrb[0].mxu0
  %v4373 = vadd.f32 0.0, %v4372
  %v4374 = vpop.f32.mrb[0].mxu0
  %v4375 = vpop.f32.mrb[0].mxu0
  %v4376 = vadd.f32 0.0, %v4375
  %v4377 = vpop.f32.mrb[0].mxu0
  %4378 = vmatprep.mubr.bf16.mxu0 0
  %4379 = vmatmul.mubr.bf16.gmra.mrb[0].mxu0 %v4209
  %v4380 = vpop.f32.mrb[0].mxu0
  %v4381 = vadd.f32 0.0, %v4380
  %v4382 = vpop.f32.mrb[0].mxu0
  %v4383 = vpop.f32.mrb[0].mxu0
  %v4384 = vadd.f32 0.0, %v4383
  %v4385 = vpop.f32.mrb[0].mxu0
  %4386 = vmatprep.mubr.bf16.mxu0 0
  %4387 = vmatmul.mubr.bf16.gmra.mrb[0].mxu0 %v4212
  %v4388 = vpop.f32.mrb[0].mxu0
  %v4389 = vadd.f32 0.0, %v4388
  %v4390 = vpop.f32.mrb[0].mxu0
  %v4391 = vpop.f32.mrb[0].mxu0
  %v4392 = vadd.f32 0.0, %v4391
  %v4393 = vpop.f32.mrb[0].mxu0
  %4394 = vmatprep.mubr.bf16.mxu0 0
  %4395 = vmatmul.mubr.bf16.gmra.mrb[0].mxu0 %v4215
  %v4396 = vpop.f32.mrb[0].mxu0
  %v4397 = vadd.f32 0.0, %v4396
  %v4398 = vpop.f32.mrb[0].mxu0
  %v4399 = vpop.f32.mrb[0].mxu0
  %v4400 = vadd.f32 0.0, %v4399
  %v4401 = vpop.f32.mrb[0].mxu0
  %4402 = vmatprep.mubr.bf16.mxu0 0
  %4403 = vmatmul.mubr.bf16.gmra.mrb[0].mxu0 %v4218
  %v4404 = vpop.f32.mrb[0].mxu0
  %v4405 = vadd.f32 0.0, %v4404
  %v4406 = vpop.f32.mrb[0].mxu0
  %v4407 = vpop.f32.mrb[0].mxu0
  %v4408 = vadd.f32 0.0, %v4407
  %v4409 = vpop.f32.mrb[0].mxu0
  %4410 = vmatprep.mubr.bf16.mxu0 0
  %4411 = vmatmul.mubr.bf16.gmra.mrb[0].mxu0 %v4221
  %v4412 = vpop.f32.mrb[0].mxu0
  %v4413 = vadd.f32 0.0, %v4412
  %v4414 = vpop.f32.mrb[0].mxu0
  %v4415 = vpop.f32.mrb[0].mxu0
  %v4416 = vadd.f32 0.0, %v4415
  %v4417 = vpop.f32.mrb[0].mxu0
  %4418 = vmatprep.mubr.bf16.mxu0 0
  %4419 = vmatmul.mubr.bf16.gmra.mrb[0].mxu0 %v4224
  %v4420 = vpop.f32.mrb[0].mxu0
  %v4421 = vadd.f32 0.0, %v4420
  %v4422 = vpop.f32.mrb[0].mxu0
  %v4423 = vpop.f32.mrb[0].mxu0
  %v4424 = vadd.f32 0.0, %v4423
  %v4425 = vpop.f32.mrb[0].mxu0
  %4426 = vmatprep.mubr.bf16.mxu0 0
  %4427 = vmatmul.mubr.bf16.gmra.mrb[0].mxu0 %v4227
  %v4428 = vpop.f32.mrb[0].mxu0
  %v4429 = vadd.f32 0.0, %v4428
  %v4430 = vpop.f32.mrb[0].mxu0
  %v4431 = vpop.f32.mrb[0].mxu0
  %v4432 = vadd.f32 0.0, %v4431
  %v4433 = vpop.f32.mrb[0].mxu0
  %4434 = vmatprep.mubr.bf16.mxu0 0
  %4435 = vmatmul.mubr.bf16.gmra.mrb[0].mxu0 %v4230
  %v4436 = vpop.f32.mrb[0].mxu0
  %v4437 = vadd.f32 0.0, %v4436
  %v4438 = vpop.f32.mrb[0].mxu0
  %v4439 = vpop.f32.mrb[0].mxu0
  %v4440 = vadd.f32 0.0, %v4439
  %v4441 = vpop.f32.mrb[0].mxu0
  %4442 = vmatprep.mubr.bf16.mxu0 0
  %4443 = vmatmul.mubr.bf16.gmra.mrb[0].mxu0 %v4233
  %v4444 = vpop.f32.mrb[0].mxu0
  %v4445 = vadd.f32 0.0, %v4444
  %v4446 = vpop.f32.mrb[0].mxu0
  %v4447 = vpop.f32.mrb[0].mxu0
  %v4448 = vadd.f32 0.0, %v4447
  %v4449 = vpop.f32.mrb[0].mxu0
  %4450 = vmatprep.mubr.bf16.mxu0 0
  %4451 = vmatmul.mubr.bf16.gmra.mrb[0].mxu0 %v4236
  %v4452 = vpop.f32.mrb[0].mxu0
  %v4453 = vadd.f32 0.0, %v4452
  %v4454 = vpop.f32.mrb[0].mxu0
  %v4455 = vpop.f32.mrb[0].mxu0
  %v4456 = vadd.f32 0.0, %v4455
  %v4457 = vpop.f32.mrb[0].mxu0
  %4458 = vmatprep.mubr.bf16.mxu0 0
  %4459 = vmatmul.mubr.bf16.gmra.mrb[0].mxu0 %v4239
  %v4460 = vpop.f32.mrb[0].mxu0
  %v4461 = vadd.f32 0.0, %v4460
  %v4462 = vpop.f32.mrb[0].mxu0
  %v4463 = vpop.f32.mrb[0].mxu0
  %v4464 = vadd.f32 0.0, %v4463
  %v4465 = vpop.f32.mrb[0].mxu0
  %4466 = vmatprep.mubr.bf16.mxu0 0
  %4467 = vmatmul.mubr.bf16.gmra.mrb[0].mxu0 %v4242
  %v4468 = vpop.f32.mrb[0].mxu0
  %v4469 = vadd.f32 0.0, %v4468
  %v4470 = vpop.f32.mrb[0].mxu0
  %v4471 = vpop.f32.mrb[0].mxu0
  %v4472 = vadd.f32 0.0, %v4471
  %v4473 = vpop.f32.mrb[0].mxu0
  %4474 = vmatprep.mubr.bf16.mxu0 0
  %4475 = vmatmul.mubr.bf16.gmra.mrb[0].mxu0 %v4245
  %v4476 = vpop.f32.mrb[0].mxu0
  %v4477 = vadd.f32 0.0, %v4476
  %v4478 = vpop.f32.mrb[0].mxu0
  %v4479 = vpop.f32.mrb[0].mxu0
  %v4480 = vadd.f32 0.0, %v4479
  %v4481 = vpop.f32.mrb[0].mxu0
  %4482 = vmatprep.mubr.bf16.mxu0 0
  %4483 = vmatmul.mubr.bf16.gmra.mrb[0].mxu0 %v4248
  %v4484 = vpop.f32.mrb[0].mxu0
  %v4485 = vadd.f32 0.0, %v4484
  %v4486 = vpop.f32.mrb[0].mxu0
  %v4487 = vpop.f32.mrb[0].mxu0
  %v4488 = vadd.f32 0.0, %v4487
  %v4489 = vpop.f32.mrb[0].mxu0
  %4490 = vmatprep.mubr.bf16.mxu0 0
  %4491 = vmatmul.mubr.bf16.gmra.mrb[0].mxu0 %v4251
  %v4492 = vpop.f32.mrb[0].mxu0
  %v4493 = vadd.f32 0.0, %v4492
  %v4494 = vpop.f32.mrb[0].mxu0
  %v4495 = vpop.f32.mrb[0].mxu0
  %v4496 = vadd.f32 0.0, %v4495
  %v4497 = vpop.f32.mrb[0].mxu0
  %4498 = vmatprep.mubr.bf16.mxu0 0
  %4499 = vmatmul.mubr.bf16.gmra.mrb[0].mxu0 %v4254
  %v4500 = vpop.f32.mrb[0].mxu0
  %v4501 = vadd.f32 0.0, %v4500
  %v4502 = vpop.f32.mrb[0].mxu0
  %v4503 = vpop.f32.mrb[0].mxu0
  %v4504 = vadd.f32 0.0, %v4503
  %v4505 = vpop.f32.mrb[0].mxu0
  %4506 = vmatprep.mubr.bf16.mxu0 0
  %4507 = vmatmul.mubr.bf16.gmra.mrb[0].mxu0 %v4257
  %v4508 = vpop.f32.mrb[0].mxu0
  %v4509 = vadd.f32 0.0, %v4508
  %v4510 = vpop.f32.mrb[0].mxu0
  %v4511 = vpop.f32.mrb[0].mxu0
  %v4512 = vadd.f32 0.0, %v4511
  %v4513 = vpop.f32.mrb[0].mxu0
  %4514 = vmatprep.mubr.bf16.mxu0 0
  %4515 = vmatmul.mubr.bf16.gmra.mrb[0].mxu0 %v4260
  %v4516 = vpop.f32.mrb[0].mxu0
  %v4517 = vadd.f32 0.0, %v4516
  %v4518 = vpop.f32.mrb[0].mxu0
  %v4519 = vpop.f32.mrb[0].mxu0
  %v4520 = vadd.f32 0.0, %v4519
  %v4521 = vpop.f32.mrb[0].mxu0
  %4522 = vmatprep.mubr.bf16.mxu0 0
  %4523 = vmatmul.mubr.bf16.gmra.mrb[0].mxu0 %v4263
  %v4524 = vpop.f32.mrb[0].mxu0
  %v4525 = vadd.f32 0.0, %v4524
  %v4526 = vpop.f32.mrb[0].mxu0
  %v4527 = vpop.f32.mrb[0].mxu0
  %v4528 = vadd.f32 0.0, %v4527
  %v4529 = vpop.f32.mrb[0].mxu0
  %4530 = vmatprep.mubr.bf16.mxu0 0
  %4531 = vmatmul.mubr.bf16.gmra.mrb[0].mxu0 %v4266
  %v4532 = vpop.f32.mrb[0].mxu0
  %v4533 = vadd.f32 0.0, %v4532
  %v4534 = vpop.f32.mrb[0].mxu0
  %v4535 = vpop.f32.mrb[0].mxu0
  %v4536 = vadd.f32 0.0, %v4535
  %v4537 = vpop.f32.mrb[0].mxu0
  %4538 = vmatprep.mubr.bf16.mxu0 0
  %4539 = vmatmul.mubr.bf16.gmra.mrb[0].mxu0 %v4269
  %v4540 = vpop.f32.mrb[0].mxu0
  %v4541 = vadd.f32 0.0, %v4540
  %v4542 = vpop.f32.mrb[0].mxu0
  %v4543 = vpop.f32.mrb[0].mxu0
  %v4544 = vadd.f32 0.0, %v4543
  %v4545 = vpop.f32.mrb[0].mxu0
  %4546 = vmatprep.mubr.bf16.mxu0 0
  %4547 = vmatmul.mubr.bf16.gmra.mrb[0].mxu0 %v4272
  %v4548 = vpop.f32.mrb[0].mxu0
  %v4549 = vadd.f32 0.0, %v4548
  %v4550 = vpop.f32.mrb[0].mxu0
  %v4551 = vpop.f32.mrb[0].mxu0
  %v4552 = vadd.f32 0.0, %v4551
  %v4553 = vpop.f32.mrb[0].mxu0
  %4554 = vmatprep.mubr.bf16.mxu0 0
  %4555 = vmatmul.mubr.bf16.gmra.mrb[0].mxu0 %v4275
  %v4556 = vpop.f32.mrb[0].mxu0
  %v4557 = vadd.f32 0.0, %v4556
  %v4558 = vpop.f32.mrb[0].mxu0
  %v4559 = vpop.f32.mrb[0].mxu0
  %v4560 = vadd.f32 0.0, %v4559
  %v4561 = vpop.f32.mrb[0].mxu0
  %4562 = vmatprep.mubr.bf16.mxu0 0
  %4563 = vmatmul.mubr.bf16.gmra.mrb[0].mxu0 %v4278
  %v4564 = vpop.f32.mrb[0].mxu0
  %v4565 = vadd.f32 0.0, %v4564
  %v4566 = vpop.f32.mrb[0].mxu0
  %v4567 = vpop.f32.mrb[0].mxu0
  %v4568 = vadd.f32 0.0, %v4567
  %v4569 = vpop.f32.mrb[0].mxu0
  %4570 = vmatprep.mubr.bf16.mxu0 0
  %4571 = vmatmul.mubr.bf16.gmra.mrb[0].mxu0 %v4281
  %v4572 = vpop.f32.mrb[0].mxu0
  %v4573 = vadd.f32 0.0, %v4572
  %v4574 = vpop.f32.mrb[0].mxu0
  %v4575 = vpop.f32.mrb[0].mxu0
  %v4576 = vadd.f32 0.0, %v4575
  %v4577 = vpop.f32.mrb[0].mxu0
  %4578 = vmatprep.mubr.bf16.mxu0 0
  %4579 = vmatmul.mubr.bf16.gmra.mrb[0].mxu0 %v4284
  %v4580 = vpop.f32.mrb[0].mxu0
  %v4581 = vadd.f32 0.0, %v4580
  %v4582 = vpop.f32.mrb[0].mxu0
  %v4583 = vpop.f32.mrb[0].mxu0
  %v4584 = vadd.f32 0.0, %v4583
  %v4585 = vpop.f32.mrb[0].mxu0
  %4586 = vmatprep.mubr.bf16.mxu0 0
  %4587 = vmatmul.mubr.bf16.gmra.mrb[0].mxu0 %v4287
  %v4588 = vpop.f32.mrb[0].mxu0
  %v4589 = vadd.f32 0.0, %v4588
  %v4590 = vpop.f32.mrb[0].mxu0
  %v4591 = vpop.f32.mrb[0].mxu0
  %v4592 = vadd.f32 0.0, %v4591
  %v4593 = vpop.f32.mrb[0].mxu0
  %4594 = vmatprep.mubr.bf16.mxu0 0
  %4595 = vmatmul.mubr.bf16.gmra.mrb[0].mxu0 %v4290
  %v4596 = vpop.f32.mrb[0].mxu0
  %v4597 = vadd.f32 0.0, %v4596
  %v4598 = vpop.f32.mrb[0].mxu0
  %v4599 = vpop.f32.mrb[0].mxu0
  %v4600 = vadd.f32 0.0, %v4599
  %v4601 = vpop.f32.mrb[0].mxu0
  %4602 = vmatprep.mubr.bf16.mxu0 0
  %4603 = vmatmul.mubr.bf16.gmra.mrb[0].mxu0 %v4293
  %v4604 = vpop.f32.mrb[0].mxu0
  %v4605 = vadd.f32 0.0, %v4604
  %v4606 = vpop.f32.mrb[0].mxu0
  %v4607 = vpop.f32.mrb[0].mxu0
  %v4608 = vadd.f32 0.0, %v4607
  %v4609 = vpop.f32.mrb[0].mxu0
  %4610 = vmatprep.mubr.bf16.mxu0 0
  %4611 = vmatmul.mubr.bf16.gmra.mrb[0].mxu0 %v4296
  %v4612 = vpop.f32.mrb[0].mxu0
  %v4613 = vadd.f32 0.0, %v4612
  %v4614 = vpop.f32.mrb[0].mxu0
  %v4615 = vpop.f32.mrb[0].mxu0
  %v4616 = vadd.f32 0.0, %v4615
  %v4617 = vpop.f32.mrb[0].mxu0
  %4618 = vmatprep.mubr.bf16.mxu0 0
  %4619 = vmatmul.mubr.bf16.gmra.mrb[0].mxu0 %v4299
  %v4620 = vpop.f32.mrb[0].mxu0
  %v4621 = vadd.f32 0.0, %v4620
  %v4622 = vpop.f32.mrb[0].mxu0
  %v4623 = vpop.f32.mrb[0].mxu0
  %v4624 = vadd.f32 0.0, %v4623
  %v4625 = vpop.f32.mrb[0].mxu0
  %4626 = vmatprep.mubr.bf16.mxu0 0
  %4627 = vmatmul.mubr.bf16.gmra.mrb[0].mxu0 %v4302
  %v4628 = vpop.f32.mrb[0].mxu0
  %v4629 = vadd.f32 0.0, %v4628
  %v4630 = vpop.f32.mrb[0].mxu0
  %v4631 = vpop.f32.mrb[0].mxu0
  %v4632 = vadd.f32 0.0, %v4631
  %v4633 = vpop.f32.mrb[0].mxu0
  %4634 = vmatprep.mubr.bf16.mxu0 0
  %4635 = vmatmul.mubr.bf16.gmra.mrb[0].mxu0 %v4305
  %v4636 = vpop.f32.mrb[0].mxu0
  %v4637 = vadd.f32 0.0, %v4636
  %v4638 = vpop.f32.mrb[0].mxu0
  %v4639 = vpop.f32.mrb[0].mxu0
  %v4640 = vadd.f32 0.0, %v4639
  %v4641 = vpop.f32.mrb[0].mxu0
  %4642 = vmatprep.mubr.bf16.mxu0 0
  %4643 = vmatmul.mubr.bf16.gmra.mrb[0].mxu0 %v4308
  %v4644 = vpop.f32.mrb[0].mxu0
  %v4645 = vadd.f32 0.0, %v4644
  %v4646 = vpop.f32.mrb[0].mxu0
  %v4647 = vpop.f32.mrb[0].mxu0
  %v4648 = vadd.f32 0.0, %v4647
  %v4649 = vpop.f32.mrb[0].mxu0
  %4650 = vmatprep.mubr.bf16.mxu0 0
  %4651 = vmatmul.mubr.bf16.gmra.mrb[0].mxu0 %v4311
  %v4652 = vpop.f32.mrb[0].mxu0
  %v4653 = vadd.f32 0.0, %v4652
  %v4654 = vpop.f32.mrb[0].mxu0
  %v4655 = vpop.f32.mrb[0].mxu0
  %v4656 = vadd.f32 0.0, %v4655
  %v4657 = vpop.f32.mrb[0].mxu0
  %4658 = vmatprep.mubr.bf16.mxu0 0
  %4659 = vmatmul.mubr.bf16.gmra.mrb[0].mxu0 %v4314
  %v4660 = vpop.f32.mrb[0].mxu0
  %v4661 = vadd.f32 0.0, %v4660
  %v4662 = vpop.f32.mrb[0].mxu0
  %v4663 = vpop.f32.mrb[0].mxu0
  %v4664 = vadd.f32 0.0, %v4663
  %v4665 = vpop.f32.mrb[0].mxu0
  %4666 = vmatprep.mubr.bf16.mxu0 0
  %4667 = vmatmul.mubr.bf16.gmra.mrb[0].mxu0 %v4317
  %v4668 = vpop.f32.mrb[0].mxu0
  %v4669 = vadd.f32 0.0, %v4668
  %v4670 = vpop.f32.mrb[0].mxu0
  %v4671 = vpop.f32.mrb[0].mxu0
  %v4672 = vadd.f32 0.0, %v4671
  %v4673 = vpop.f32.mrb[0].mxu0
  %4674 = vdwg.mxu0
  %v4675 = vadd.f32 %v3785, %v4357
  %v4676 = vadd.f32 %v3786, %v4360
  %v4677 = vadd.f32 %v3787, %v4365
  %v4678 = vadd.f32 %v3788, %v4368
  %v4679 = vadd.f32 %v3789, %v4373
  %v4680 = vadd.f32 %v3790, %v4376
  %v4681 = vadd.f32 %v3791, %v4381
  %v4682 = vadd.f32 %v3792, %v4384
  %v4683 = vadd.f32 %v3793, %v4389
  %v4684 = vadd.f32 %v3794, %v4392
  %v4685 = vadd.f32 %v3795, %v4397
  %v4686 = vadd.f32 %v3796, %v4400
  %v4687 = vadd.f32 %v3797, %v4405
  %v4688 = vadd.f32 %v3798, %v4408
  %v4689 = vadd.f32 %v3799, %v4413
  %v4690 = vadd.f32 %v3800, %v4416
  %v4691 = vadd.f32 %v3801, %v4421
  %v4692 = vadd.f32 %v3802, %v4424
  %v4693 = vadd.f32 %v3803, %v4429
  %v4694 = vadd.f32 %v3804, %v4432
  %v4695 = vadd.f32 %v3805, %v4437
  %v4696 = vadd.f32 %v3806, %v4440
  %v4697 = vadd.f32 %v3807, %v4445
  %v4698 = vadd.f32 %v3808, %v4448
  %v4699 = vadd.f32 %v3809, %v4453
  %v4700 = vadd.f32 %v3810, %v4456
  %v4701 = vadd.f32 %v3811, %v4461
  %v4702 = vadd.f32 %v3812, %v4464
  %v4703 = vadd.f32 %v3813, %v4469
  %v4704 = vadd.f32 %v3814, %v4472
  %v4705 = vadd.f32 %v3815, %v4477
  %v4706 = vadd.f32 %v3816, %v4480
  %v4707 = vadd.f32 %v3817, %v4485
  %v4708 = vadd.f32 %v3818, %v4488
  %v4709 = vadd.f32 %v3819, %v4493
  %v4710 = vadd.f32 %v3820, %v4496
  %v4711 = vadd.f32 %v3821, %v4501
  %v4712 = vadd.f32 %v3822, %v4504
  %v4713 = vadd.f32 %v3823, %v4509
  %v4714 = vadd.f32 %v3824, %v4512
  %v4715 = vadd.f32 %v3825, %v4517
  %v4716 = vadd.f32 %v3826, %v4520
  %v4717 = vadd.f32 %v3827, %v4525
  %v4718 = vadd.f32 %v3828, %v4528
  %v4719 = vadd.f32 %v3829, %v4533
  %v4720 = vadd.f32 %v3830, %v4536
  %v4721 = vadd.f32 %v3831, %v4541
  %v4722 = vadd.f32 %v3832, %v4544
  %v4723 = vadd.f32 %v3833, %v4549
  %v4724 = vadd.f32 %v3834, %v4552
  %v4725 = vadd.f32 %v3835, %v4557
  %v4726 = vadd.f32 %v3836, %v4560
  %v4727 = vadd.f32 %v3837, %v4565
  %v4728 = vadd.f32 %v3838, %v4568
  %v4729 = vadd.f32 %v3839, %v4573
  %v4730 = vadd.f32 %v3840, %v4576
  %v4731 = vadd.f32 %v3841, %v4581
  %v4732 = vadd.f32 %v3842, %v4584
  %v4733 = vadd.f32 %v3843, %v4589
  %v4734 = vadd.f32 %v3844, %v4592
  %v4735 = vadd.f32 %v3845, %v4597
  %v4736 = vadd.f32 %v3846, %v4600
  %v4737 = vadd.f32 %v3847, %v4605
  %v4738 = vadd.f32 %v3848, %v4608
  %v4739 = vadd.f32 %v3849, %v4613
  %v4740 = vadd.f32 %v3850, %v4616
  %v4741 = vadd.f32 %v3851, %v4621
  %v4742 = vadd.f32 %v3852, %v4624
  %v4743 = vadd.f32 %v3853, %v4629
  %v4744 = vadd.f32 %v3854, %v4632
  %v4745 = vadd.f32 %v3855, %v4637
  %v4746 = vadd.f32 %v3856, %v4640
  %v4747 = vadd.f32 %v3857, %v4645
  %v4748 = vadd.f32 %v3858, %v4648
  %v4749 = vadd.f32 %v3859, %v4653
  %v4750 = vadd.f32 %v3860, %v4656
  %v4751 = vadd.f32 %v3861, %v4661
  %v4752 = vadd.f32 %v3862, %v4664
  %v4753 = vadd.f32 %v3863, %v4669
  %v4754 = vadd.f32 %v3864, %v4672
  %v4755 = vld [vmem:[#allocation2 + $0x140] sm:$0x1f]
  %vm4756 = vsmask.f32 4352
  %v4757 = vrot.slane %v1168, 3
  %v4758 = vrot.slane %v1171, 4
  %v4759 = vor.u32 %v4757, %v4758
  %v4760 = vrot.slane %v1175, 3
  %v4761 = vrot.slane %v1178, 4
  %v4762 = vor.u32 %v4760, %v4761
  %v4763 = vsel %vm4756, %v4759, %v4762
  %v4764 = vrot.slane %v1183, 3
  %v4765 = vrot.slane %v1186, 4
  %v4766 = vor.u32 %v4764, %v4765
  %v4767 = vsel %vm4756, %v4762, %v4766
  %v4768 = vrot.slane %v1191, 3
  %v4769 = vrot.slane %v1194, 4
  %v4770 = vor.u32 %v4768, %v4769
  %v4771 = vsel %vm4756, %v4766, %v4770
  %v4772 = vrot.slane %v1199, 3
  %v4773 = vrot.slane %v1202, 4
  %v4774 = vor.u32 %v4772, %v4773
  %v4775 = vsel %vm4756, %v4770, %v4774
  %v4776 = vrot.slane %v1207, 3
  %v4777 = vrot.slane %v1210, 4
  %v4778 = vor.u32 %v4776, %v4777
  %v4779 = vsel %vm4756, %v4774, %v4778
  %v4780 = vrot.slane %v1215, 3
  %v4781 = vrot.slane %v1218, 4
  %v4782 = vor.u32 %v4780, %v4781
  %v4783 = vsel %vm4756, %v4778, %v4782
  %v4784 = vrot.slane %v1223, 3
  %v4785 = vrot.slane %v1226, 4
  %v4786 = vor.u32 %v4784, %v4785
  %v4787 = vsel %vm4756, %v4782, %v4786
  %v4788 = vrot.slane %v1231, 3
  %v4789 = vrot.slane %v1234, 4
  %v4790 = vor.u32 %v4788, %v4789
  %v4791 = vsel %vm4756, %v4786, %v4790
  %v4792 = vrot.slane %v1239, 3
  %v4793 = vrot.slane %v1242, 4
  %v4794 = vor.u32 %v4792, %v4793
  %v4795 = vsel %vm4756, %v4790, %v4794
  %v4796 = vrot.slane %v1247, 3
  %v4797 = vrot.slane %v1250, 4
  %v4798 = vor.u32 %v4796, %v4797
  %v4799 = vsel %vm4756, %v4794, %v4798
  %v4800 = vrot.slane %v1255, 3
  %v4801 = vrot.slane %v1258, 4
  %v4802 = vor.u32 %v4800, %v4801
  %v4803 = vsel %vm4756, %v4798, %v4802
  %v4804 = vrot.slane %v1263, 3
  %v4805 = vrot.slane %v1266, 4
  %v4806 = vor.u32 %v4804, %v4805
  %v4807 = vsel %vm4756, %v4802, %v4806
  %v4808 = vrot.slane %v1271, 3
  %v4809 = vrot.slane %v1274, 4
  %v4810 = vor.u32 %v4808, %v4809
  %v4811 = vsel %vm4756, %v4806, %v4810
  %v4812 = vrot.slane %v1279, 3
  %v4813 = vrot.slane %v1282, 4
  %v4814 = vor.u32 %v4812, %v4813
  %v4815 = vsel %vm4756, %v4810, %v4814
  %v4816 = vrot.slane %v1287, 3
  %v4817 = vrot.slane %v1290, 4
  %v4818 = vor.u32 %v4816, %v4817
  %v4819 = vsel %vm4756, %v4814, %v4818
  %v4820 = vrot.slane %v1295, 3
  %v4821 = vrot.slane %v1298, 4
  %v4822 = vor.u32 %v4820, %v4821
  %v4823 = vsel %vm4756, %v4818, %v4822
  %v4824 = vrot.slane %v1303, 3
  %v4825 = vrot.slane %v1306, 4
  %v4826 = vor.u32 %v4824, %v4825
  %v4827 = vsel %vm4756, %v4822, %v4826
  %v4828 = vrot.slane %v1311, 3
  %v4829 = vrot.slane %v1314, 4
  %v4830 = vor.u32 %v4828, %v4829
  %v4831 = vsel %vm4756, %v4826, %v4830
  %v4832 = vrot.slane %v1319, 3
  %v4833 = vrot.slane %v1322, 4
  %v4834 = vor.u32 %v4832, %v4833
  %v4835 = vsel %vm4756, %v4830, %v4834
  %v4836 = vrot.slane %v1327, 3
  %v4837 = vrot.slane %v1330, 4
  %v4838 = vor.u32 %v4836, %v4837
  %v4839 = vsel %vm4756, %v4834, %v4838
  %v4840 = vrot.slane %v1335, 3
  %v4841 = vrot.slane %v1338, 4
  %v4842 = vor.u32 %v4840, %v4841
  %v4843 = vsel %vm4756, %v4838, %v4842
  %v4844 = vrot.slane %v1343, 3
  %v4845 = vrot.slane %v1346, 4
  %v4846 = vor.u32 %v4844, %v4845
  %v4847 = vsel %vm4756, %v4842, %v4846
  %v4848 = vrot.slane %v1351, 3
  %v4849 = vrot.slane %v1354, 4
  %v4850 = vor.u32 %v4848, %v4849
  %v4851 = vsel %vm4756, %v4846, %v4850
  %v4852 = vrot.slane %v1359, 3
  %v4853 = vrot.slane %v1362, 4
  %v4854 = vor.u32 %v4852, %v4853
  %v4855 = vsel %vm4756, %v4850, %v4854
  %v4856 = vrot.slane %v1367, 3
  %v4857 = vrot.slane %v1370, 4
  %v4858 = vor.u32 %v4856, %v4857
  %v4859 = vsel %vm4756, %v4854, %v4858
  %v4860 = vrot.slane %v1375, 3
  %v4861 = vrot.slane %v1378, 4
  %v4862 = vor.u32 %v4860, %v4861
  %v4863 = vsel %vm4756, %v4858, %v4862
  %v4864 = vrot.slane %v1383, 3
  %v4865 = vrot.slane %v1386, 4
  %v4866 = vor.u32 %v4864, %v4865
  %v4867 = vsel %vm4756, %v4862, %v4866
  %v4868 = vrot.slane %v1391, 3
  %v4869 = vrot.slane %v1394, 4
  %v4870 = vor.u32 %v4868, %v4869
  %v4871 = vsel %vm4756, %v4866, %v4870
  %v4872 = vrot.slane %v1399, 3
  %v4873 = vrot.slane %v1402, 4
  %v4874 = vor.u32 %v4872, %v4873
  %v4875 = vsel %vm4756, %v4870, %v4874
  %v4876 = vrot.slane %v1407, 3
  %v4877 = vrot.slane %v1410, 4
  %v4878 = vor.u32 %v4876, %v4877
  %v4879 = vsel %vm4756, %v4874, %v4878
  %v4880 = vrot.slane %v1415, 3
  %v4881 = vrot.slane %v1418, 4
  %v4882 = vor.u32 %v4880, %v4881
  %v4883 = vsel %vm4756, %v4878, %v4882
  %v4884 = vrot.slane %v1423, 3
  %v4885 = vrot.slane %v1426, 4
  %v4886 = vor.u32 %v4884, %v4885
  %v4887 = vsel %vm4756, %v4882, %v4886
  %v4888 = vrot.slane %v1431, 3
  %v4889 = vrot.slane %v1434, 4
  %v4890 = vor.u32 %v4888, %v4889
  %v4891 = vsel %vm4756, %v4886, %v4890
  %v4892 = vrot.slane %v1439, 3
  %v4893 = vrot.slane %v1442, 4
  %v4894 = vor.u32 %v4892, %v4893
  %v4895 = vsel %vm4756, %v4890, %v4894
  %v4896 = vrot.slane %v1447, 3
  %v4897 = vrot.slane %v1450, 4
  %v4898 = vor.u32 %v4896, %v4897
  %v4899 = vsel %vm4756, %v4894, %v4898
  %v4900 = vrot.slane %v1455, 3
  %v4901 = vrot.slane %v1458, 4
  %v4902 = vor.u32 %v4900, %v4901
  %v4903 = vsel %vm4756, %v4898, %v4902
  %v4904 = vrot.slane %v1463, 3
  %v4905 = vrot.slane %v1466, 4
  %v4906 = vor.u32 %v4904, %v4905
  %v4907 = vsel %vm4756, %v4902, %v4906
  %v4908 = vrot.slane %v1471, 3
  %v4909 = vrot.slane %v1474, 4
  %v4910 = vor.u32 %v4908, %v4909
  %v4911 = vsel %vm4756, %v4906, %v4910
  %v4912 = vrot.slane %v1479, 3
  %v4913 = vrot.slane %v1482, 4
  %v4914 = vor.u32 %v4912, %v4913
  %v4915 = vsel %vm4756, %v4910, %v4914
  %4916 = vrot.lane.b32.xlu0 %v4759, 124
  %v4917 = vpop.permute.xlu0 %4916
  %4918 = vrot.lane.b32.xlu0 %v4763, 124
  %v4919 = vpop.permute.xlu0 %4918
  %4920 = vrot.lane.b32.xlu0 %v4767, 124
  %v4921 = vpop.permute.xlu0 %4920
  %4922 = vrot.lane.b32.xlu0 %v4771, 124
  %v4923 = vpop.permute.xlu0 %4922
  %4924 = vrot.lane.b32.xlu0 %v4775, 124
  %v4925 = vpop.permute.xlu0 %4924
  %4926 = vrot.lane.b32.xlu0 %v4779, 124
  %v4927 = vpop.permute.xlu0 %4926
  %4928 = vrot.lane.b32.xlu0 %v4783, 124
  %v4929 = vpop.permute.xlu0 %4928
  %4930 = vrot.lane.b32.xlu0 %v4787, 124
  %v4931 = vpop.permute.xlu0 %4930
  %4932 = vrot.lane.b32.xlu0 %v4791, 124
  %v4933 = vpop.permute.xlu0 %4932
  %4934 = vrot.lane.b32.xlu0 %v4795, 124
  %v4935 = vpop.permute.xlu0 %4934
  %4936 = vrot.lane.b32.xlu0 %v4799, 124
  %v4937 = vpop.permute.xlu0 %4936
  %4938 = vrot.lane.b32.xlu0 %v4803, 124
  %v4939 = vpop.permute.xlu0 %4938
  %4940 = vrot.lane.b32.xlu0 %v4807, 124
  %v4941 = vpop.permute.xlu0 %4940
  %4942 = vrot.lane.b32.xlu0 %v4811, 124
  %v4943 = vpop.permute.xlu0 %4942
  %4944 = vrot.lane.b32.xlu0 %v4815, 124
  %v4945 = vpop.permute.xlu0 %4944
  %4946 = vrot.lane.b32.xlu0 %v4819, 124
  %v4947 = vpop.permute.xlu0 %4946
  %4948 = vrot.lane.b32.xlu0 %v4823, 124
  %v4949 = vpop.permute.xlu0 %4948
  %4950 = vrot.lane.b32.xlu0 %v4827, 124
  %v4951 = vpop.permute.xlu0 %4950
  %4952 = vrot.lane.b32.xlu0 %v4831, 124
  %v4953 = vpop.permute.xlu0 %4952
  %4954 = vrot.lane.b32.xlu0 %v4835, 124
  %v4955 = vpop.permute.xlu0 %4954
  %4956 = vrot.lane.b32.xlu0 %v4839, 124
  %v4957 = vpop.permute.xlu0 %4956
  %4958 = vrot.lane.b32.xlu0 %v4843, 124
  %v4959 = vpop.permute.xlu0 %4958
  %4960 = vrot.lane.b32.xlu0 %v4847, 124
  %v4961 = vpop.permute.xlu0 %4960
  %4962 = vrot.lane.b32.xlu0 %v4851, 124
  %v4963 = vpop.permute.xlu0 %4962
  %4964 = vrot.lane.b32.xlu0 %v4855, 124
  %v4965 = vpop.permute.xlu0 %4964
  %4966 = vrot.lane.b32.xlu0 %v4859, 124
  %v4967 = vpop.permute.xlu0 %4966
  %4968 = vrot.lane.b32.xlu0 %v4863, 124
  %v4969 = vpop.permute.xlu0 %4968
  %4970 = vrot.lane.b32.xlu0 %v4867, 124
  %v4971 = vpop.permute.xlu0 %4970
  %4972 = vrot.lane.b32.xlu0 %v4871, 124
  %v4973 = vpop.permute.xlu0 %4972
  %4974 = vrot.lane.b32.xlu0 %v4875, 124
  %v4975 = vpop.permute.xlu0 %4974
  %4976 = vrot.lane.b32.xlu0 %v4879, 124
  %v4977 = vpop.permute.xlu0 %4976
  %4978 = vrot.lane.b32.xlu0 %v4883, 124
  %v4979 = vpop.permute.xlu0 %4978
  %4980 = vrot.lane.b32.xlu0 %v4887, 124
  %v4981 = vpop.permute.xlu0 %4980
  %4982 = vrot.lane.b32.xlu0 %v4891, 124
  %v4983 = vpop.permute.xlu0 %4982
  %4984 = vrot.lane.b32.xlu0 %v4895, 124
  %v4985 = vpop.permute.xlu0 %4984
  %4986 = vrot.lane.b32.xlu0 %v4899, 124
  %v4987 = vpop.permute.xlu0 %4986
  %4988 = vrot.lane.b32.xlu0 %v4903, 124
  %v4989 = vpop.permute.xlu0 %4988
  %4990 = vrot.lane.b32.xlu0 %v4907, 124
  %v4991 = vpop.permute.xlu0 %4990
  %4992 = vrot.lane.b32.xlu0 %v4911, 124
  %v4993 = vpop.permute.xlu0 %4992
  %4994 = vrot.lane.b32.xlu0 %v4915, 124
  %v4995 = vpop.permute.xlu0 %4994
  %4996 = vrot.lane.b32.xlu0 %v4914, 124
  %v4997 = vpop.permute.xlu0 %4996
  %v5039 = vmul.bf16 %v3865, %v4917
  %v5040 = vmul.bf16 %v845, %v4919
  %v5041 = vmul.bf16 %v846, %v4921
  %v5042 = vmul.bf16 %v847, %v4923
  %v5043 = vmul.bf16 %v848, %v4925
  %v5044 = vmul.bf16 %v849, %v4927
  %v5045 = vmul.bf16 %v850, %v4929
  %v5046 = vmul.bf16 %v851, %v4931
  %v5047 = vmul.bf16 %v852, %v4933
  %v5048 = vmul.bf16 %v853, %v4935
  %v5049 = vmul.bf16 %v854, %v4937
  %v5050 = vmul.bf16 %v855, %v4939
  %v5051 = vmul.bf16 %v856, %v4941
  %v5052 = vmul.bf16 %v857, %v4943
  %v5053 = vmul.bf16 %v858, %v4945
  %v5054 = vmul.bf16 %v859, %v4947
  %v5055 = vmul.bf16 %v860, %v4949
  %v5056 = vmul.bf16 %v861, %v4951
  %v5057 = vmul.bf16 %v862, %v4953
  %v5058 = vmul.bf16 %v863, %v4955
  %v5059 = vmul.bf16 %v864, %v4957
  %v5060 = vmul.bf16 %v865, %v4959
  %v5061 = vmul.bf16 %v866, %v4961
  %v5062 = vmul.bf16 %v867, %v4963
  %v5063 = vmul.bf16 %v868, %v4965
  %v5064 = vmul.bf16 %v869, %v4967
  %v5065 = vmul.bf16 %v870, %v4969
  %v5066 = vmul.bf16 %v871, %v4971
  %v5067 = vmul.bf16 %v872, %v4973
  %v5068 = vmul.bf16 %v873, %v4975
  %v5069 = vmul.bf16 %v874, %v4977
  %v5070 = vmul.bf16 %v875, %v4979
  %v5071 = vmul.bf16 %v876, %v4981
  %v5072 = vmul.bf16 %v877, %v4983
  %v5073 = vmul.bf16 %v878, %v4985
  %v5074 = vmul.bf16 %v879, %v4987
  %v5075 = vmul.bf16 %v880, %v4989
  %v5076 = vmul.bf16 %v881, %v4991
  %v5077 = vmul.bf16 %v882, %v4993
  %v5078 = vmul.bf16 %v883, %v4995
  %v5079 = vmul.bf16 %v4755, %v4997
  %v5080 = vld [vmem:[%s3] sm:$0x4]
  %vm5081 = vsmask.f32 3328
  %v5083 = vshrl.u32 %v5039, 16
  %v5085 = vrot.slane %v5083, 4
  %v5086 = vshll.u32 %v5039, 16
  %v5088 = vrot.slane %v5086, 5
  %v5089 = vor.u32 %v5085, %v5088
  %v5091 = vshrl.u32 %v5040, 16
  %v5093 = vrot.slane %v5091, 4
  %v5094 = vshll.u32 %v5040, 16
  %v5096 = vrot.slane %v5094, 5
  %v5097 = vor.u32 %v5093, %v5096
  %v5098 = vsel %vm5081, %v5089, %v5097
  %v5100 = vshrl.u32 %v5041, 16
  %v5102 = vrot.slane %v5100, 4
  %v5103 = vshll.u32 %v5041, 16
  %v5105 = vrot.slane %v5103, 5
  %v5106 = vor.u32 %v5102, %v5105
  %v5107 = vsel %vm5081, %v5097, %v5106
  %v5109 = vshrl.u32 %v5042, 16
  %v5111 = vrot.slane %v5109, 4
  %v5112 = vshll.u32 %v5042, 16
  %v5114 = vrot.slane %v5112, 5
  %v5115 = vor.u32 %v5111, %v5114
  %v5116 = vsel %vm5081, %v5106, %v5115
  %v5118 = vshrl.u32 %v5043, 16
  %v5120 = vrot.slane %v5118, 4
  %v5121 = vshll.u32 %v5043, 16
  %v5123 = vrot.slane %v5121, 5
  %v5124 = vor.u32 %v5120, %v5123
  %v5125 = vsel %vm5081, %v5115, %v5124
  %v5127 = vshrl.u32 %v5044, 16
  %v5129 = vrot.slane %v5127, 4
  %v5130 = vshll.u32 %v5044, 16
  %v5132 = vrot.slane %v5130, 5
  %v5133 = vor.u32 %v5129, %v5132
  %v5134 = vsel %vm5081, %v5124, %v5133
  %v5136 = vshrl.u32 %v5045, 16
  %v5138 = vrot.slane %v5136, 4
  %v5139 = vshll.u32 %v5045, 16
  %v5141 = vrot.slane %v5139, 5
  %v5142 = vor.u32 %v5138, %v5141
  %v5143 = vsel %vm5081, %v5133, %v5142
  %v5145 = vshrl.u32 %v5046, 16
  %v5147 = vrot.slane %v5145, 4
  %v5148 = vshll.u32 %v5046, 16
  %v5150 = vrot.slane %v5148, 5
  %v5151 = vor.u32 %v5147, %v5150
  %v5152 = vsel %vm5081, %v5142, %v5151
  %v5154 = vshrl.u32 %v5047, 16
  %v5156 = vrot.slane %v5154, 4
  %v5157 = vshll.u32 %v5047, 16
  %v5159 = vrot.slane %v5157, 5
  %v5160 = vor.u32 %v5156, %v5159
  %v5161 = vsel %vm5081, %v5151, %v5160
  %v5163 = vshrl.u32 %v5048, 16
  %v5165 = vrot.slane %v5163, 4
  %v5166 = vshll.u32 %v5048, 16
  %v5168 = vrot.slane %v5166, 5
  %v5169 = vor.u32 %v5165, %v5168
  %v5170 = vsel %vm5081, %v5160, %v5169
  %v5172 = vshrl.u32 %v5049, 16
  %v5174 = vrot.slane %v5172, 4
  %v5175 = vshll.u32 %v5049, 16
  %v5177 = vrot.slane %v5175, 5
  %v5178 = vor.u32 %v5174, %v5177
  %v5179 = vsel %vm5081, %v5169, %v5178
  %v5181 = vshrl.u32 %v5050, 16
  %v5183 = vrot.slane %v5181, 4
  %v5184 = vshll.u32 %v5050, 16
  %v5186 = vrot.slane %v5184, 5
  %v5187 = vor.u32 %v5183, %v5186
  %v5188 = vsel %vm5081, %v5178, %v5187
  %v5190 = vshrl.u32 %v5051, 16
  %v5192 = vrot.slane %v5190, 4
  %v5193 = vshll.u32 %v5051, 16
  %v5195 = vrot.slane %v5193, 5
  %v5196 = vor.u32 %v5192, %v5195
  %v5197 = vsel %vm5081, %v5187, %v5196
  %v5199 = vshrl.u32 %v5052, 16
  %v5201 = vrot.slane %v5199, 4
  %v5202 = vshll.u32 %v5052, 16
  %v5204 = vrot.slane %v5202, 5
  %v5205 = vor.u32 %v5201, %v5204
  %v5206 = vsel %vm5081, %v5196, %v5205
  %v5208 = vshrl.u32 %v5053, 16
  %v5210 = vrot.slane %v5208, 4
  %v5211 = vshll.u32 %v5053, 16
  %v5213 = vrot.slane %v5211, 5
  %v5214 = vor.u32 %v5210, %v5213
  %v5215 = vsel %vm5081, %v5205, %v5214
  %v5217 = vshrl.u32 %v5054, 16
  %v5219 = vrot.slane %v5217, 4
  %v5220 = vshll.u32 %v5054, 16
  %v5222 = vrot.slane %v5220, 5
  %v5223 = vor.u32 %v5219, %v5222
  %v5224 = vsel %vm5081, %v5214, %v5223
  %v5226 = vshrl.u32 %v5055, 16
  %v5228 = vrot.slane %v5226, 4
  %v5229 = vshll.u32 %v5055, 16
  %v5231 = vrot.slane %v5229, 5
  %v5232 = vor.u32 %v5228, %v5231
  %v5233 = vsel %vm5081, %v5223, %v5232
  %v5235 = vshrl.u32 %v5056, 16
  %v5237 = vrot.slane %v5235, 4
  %v5238 = vshll.u32 %v5056, 16
  %v5240 = vrot.slane %v5238, 5
  %v5241 = vor.u32 %v5237, %v5240
  %v5242 = vsel %vm5081, %v5232, %v5241
  %v5244 = vshrl.u32 %v5057, 16
  %v5246 = vrot.slane %v5244, 4
  %v5247 = vshll.u32 %v5057, 16
  %v5249 = vrot.slane %v5247, 5
  %v5250 = vor.u32 %v5246, %v5249
  %v5251 = vsel %vm5081, %v5241, %v5250
  %v5253 = vshrl.u32 %v5058, 16
  %v5255 = vrot.slane %v5253, 4
  %v5256 = vshll.u32 %v5058, 16
  %v5258 = vrot.slane %v5256, 5
  %v5259 = vor.u32 %v5255, %v5258
  %v5260 = vsel %vm5081, %v5250, %v5259
  %v5262 = vshrl.u32 %v5059, 16
  %v5264 = vrot.slane %v5262, 4
  %v5265 = vshll.u32 %v5059, 16
  %v5267 = vrot.slane %v5265, 5
  %v5268 = vor.u32 %v5264, %v5267
  %v5269 = vsel %vm5081, %v5259, %v5268
  %v5271 = vshrl.u32 %v5060, 16
  %v5273 = vrot.slane %v5271, 4
  %v5274 = vshll.u32 %v5060, 16
  %v5276 = vrot.slane %v5274, 5
  %v5277 = vor.u32 %v5273, %v5276
  %v5278 = vsel %vm5081, %v5268, %v5277
  %v5280 = vshrl.u32 %v5061, 16
  %v5282 = vrot.slane %v5280, 4
  %v5283 = vshll.u32 %v5061, 16
  %v5285 = vrot.slane %v5283, 5
  %v5286 = vor.u32 %v5282, %v5285
  %v5287 = vsel %vm5081, %v5277, %v5286
  %v5289 = vshrl.u32 %v5062, 16
  %v5291 = vrot.slane %v5289, 4
  %v5292 = vshll.u32 %v5062, 16
  %v5294 = vrot.slane %v5292, 5
  %v5295 = vor.u32 %v5291, %v5294
  %v5296 = vsel %vm5081, %v5286, %v5295
  %v5298 = vshrl.u32 %v5063, 16
  %v5300 = vrot.slane %v5298, 4
  %v5301 = vshll.u32 %v5063, 16
  %v5303 = vrot.slane %v5301, 5
  %v5304 = vor.u32 %v5300, %v5303
  %v5305 = vsel %vm5081, %v5295, %v5304
  %v5307 = vshrl.u32 %v5064, 16
  %v5309 = vrot.slane %v5307, 4
  %v5310 = vshll.u32 %v5064, 16
  %v5312 = vrot.slane %v5310, 5
  %v5313 = vor.u32 %v5309, %v5312
  %v5314 = vsel %vm5081, %v5304, %v5313
  %v5316 = vshrl.u32 %v5065, 16
  %v5318 = vrot.slane %v5316, 4
  %v5319 = vshll.u32 %v5065, 16
  %v5321 = vrot.slane %v5319, 5
  %v5322 = vor.u32 %v5318, %v5321
  %v5323 = vsel %vm5081, %v5313, %v5322
  %v5325 = vshrl.u32 %v5066, 16
  %v5327 = vrot.slane %v5325, 4
  %v5328 = vshll.u32 %v5066, 16
  %v5330 = vrot.slane %v5328, 5
  %v5331 = vor.u32 %v5327, %v5330
  %v5332 = vsel %vm5081, %v5322, %v5331
  %v5334 = vshrl.u32 %v5067, 16
  %v5336 = vrot.slane %v5334, 4
  %v5337 = vshll.u32 %v5067, 16
  %v5339 = vrot.slane %v5337, 5
  %v5340 = vor.u32 %v5336, %v5339
  %v5341 = vsel %vm5081, %v5331, %v5340
  %v5343 = vshrl.u32 %v5068, 16
  %v5345 = vrot.slane %v5343, 4
  %v5346 = vshll.u32 %v5068, 16
  %v5348 = vrot.slane %v5346, 5
  %v5349 = vor.u32 %v5345, %v5348
  %v5350 = vsel %vm5081, %v5340, %v5349
  %v5352 = vshrl.u32 %v5069, 16
  %v5354 = vrot.slane %v5352, 4
  %v5355 = vshll.u32 %v5069, 16
  %v5357 = vrot.slane %v5355, 5
  %v5358 = vor.u32 %v5354, %v5357
  %v5359 = vsel %vm5081, %v5349, %v5358
  %v5361 = vshrl.u32 %v5070, 16
  %v5363 = vrot.slane %v5361, 4
  %v5364 = vshll.u32 %v5070, 16
  %v5366 = vrot.slane %v5364, 5
  %v5367 = vor.u32 %v5363, %v5366
  %v5368 = vsel %vm5081, %v5358, %v5367
  %v5370 = vshrl.u32 %v5071, 16
  %v5372 = vrot.slane %v5370, 4
  %v5373 = vshll.u32 %v5071, 16
  %v5375 = vrot.slane %v5373, 5
  %v5376 = vor.u32 %v5372, %v5375
  %v5377 = vsel %vm5081, %v5367, %v5376
  %v5379 = vshrl.u32 %v5072, 16
  %v5381 = vrot.slane %v5379, 4
  %v5382 = vshll.u32 %v5072, 16
  %v5384 = vrot.slane %v5382, 5
  %v5385 = vor.u32 %v5381, %v5384
  %v5386 = vsel %vm5081, %v5376, %v5385
  %v5388 = vshrl.u32 %v5073, 16
  %v5390 = vrot.slane %v5388, 4
  %v5391 = vshll.u32 %v5073, 16
  %v5393 = vrot.slane %v5391, 5
  %v5394 = vor.u32 %v5390, %v5393
  %v5395 = vsel %vm5081, %v5385, %v5394
  %v5397 = vshrl.u32 %v5074, 16
  %v5399 = vrot.slane %v5397, 4
  %v5400 = vshll.u32 %v5074, 16
  %v5402 = vrot.slane %v5400, 5
  %v5403 = vor.u32 %v5399, %v5402
  %v5404 = vsel %vm5081, %v5394, %v5403
  %v5406 = vshrl.u32 %v5075, 16
  %v5408 = vrot.slane %v5406, 4
  %v5409 = vshll.u32 %v5075, 16
  %v5411 = vrot.slane %v5409, 5
  %v5412 = vor.u32 %v5408, %v5411
  %v5413 = vsel %vm5081, %v5403, %v5412
  %v5415 = vshrl.u32 %v5076, 16
  %v5417 = vrot.slane %v5415, 4
  %v5418 = vshll.u32 %v5076, 16
  %v5420 = vrot.slane %v5418, 5
  %v5421 = vor.u32 %v5417, %v5420
  %v5422 = vsel %vm5081, %v5412, %v5421
  %v5424 = vshrl.u32 %v5077, 16
  %v5426 = vrot.slane %v5424, 4
  %v5427 = vshll.u32 %v5077, 16
  %v5429 = vrot.slane %v5427, 5
  %v5430 = vor.u32 %v5426, %v5429
  %v5431 = vsel %vm5081, %v5421, %v5430
  %v5433 = vshrl.u32 %v5078, 16
  %v5435 = vrot.slane %v5433, 4
  %v5436 = vshll.u32 %v5078, 16
  %v5438 = vrot.slane %v5436, 5
  %v5439 = vor.u32 %v5435, %v5438
  %v5440 = vsel %vm5081, %v5430, %v5439
  %v5442 = vshrl.u32 %v5079, 16
  %v5444 = vrot.slane %v5442, 4
  %v5445 = vshll.u32 %v5079, 16
  %v5447 = vrot.slane %v5445, 5
  %v5448 = vor.u32 %v5444, %v5447
  %v5449 = vsel %vm5081, %v5439, %v5448
  %v5451 = vunpack.c.l.b16 %v5080
  %v5452 = vpack.c.b16 %v5451, %v5451
  %v5453 = vrot.slane %v5452, 2
  %v5455 = vsel %vm363, %v5098, 0
  %v5458 = vsel %vm363, %v5107, 0
  %v5461 = vsel %vm363, %v5116, 0
  %v5464 = vsel %vm363, %v5125, 0
  %v5467 = vsel %vm363, %v5134, 0
  %v5470 = vsel %vm363, %v5143, 0
  %v5473 = vsel %vm363, %v5152, 0
  %v5476 = vsel %vm363, %v5161, 0
  %v5479 = vsel %vm363, %v5170, 0
  %v5482 = vsel %vm363, %v5179, 0
  %v5485 = vsel %vm363, %v5188, 0
  %v5488 = vsel %vm363, %v5197, 0
  %v5491 = vsel %vm363, %v5206, 0
  %v5494 = vsel %vm363, %v5215, 0
  %v5497 = vsel %vm363, %v5224, 0
  %v5500 = vsel %vm363, %v5233, 0
  %v5503 = vsel %vm363, %v5242, 0
  %v5506 = vsel %vm363, %v5251, 0
  %v5509 = vsel %vm363, %v5260, 0
  %v5512 = vsel %vm363, %v5269, 0
  %v5515 = vsel %vm363, %v5278, 0
  %v5518 = vsel %vm363, %v5287, 0
  %v5521 = vsel %vm363, %v5296, 0
  %v5524 = vsel %vm363, %v5305, 0
  %v5527 = vsel %vm363, %v5314, 0
  %v5530 = vsel %vm363, %v5323, 0
  %v5533 = vsel %vm363, %v5332, 0
  %v5536 = vsel %vm363, %v5341, 0
  %v5539 = vsel %vm363, %v5350, 0
  %v5542 = vsel %vm363, %v5359, 0
  %v5545 = vsel %vm363, %v5368, 0
  %v5548 = vsel %vm363, %v5377, 0
  %v5551 = vsel %vm363, %v5386, 0
  %v5554 = vsel %vm363, %v5395, 0
  %v5557 = vsel %vm363, %v5404, 0
  %v5560 = vsel %vm363, %v5413, 0
  %v5563 = vsel %vm363, %v5422, 0
  %v5566 = vsel %vm363, %v5431, 0
  %v5569 = vsel %vm363, %v5440, 0
  %v5572 = vsel %vm363, %v5449, 0
  %v5575 = vand.u32 %v5453, %v2103
  %5577 = vmatprep.subr.bf16.mxu0 0
  %5578 = vmatpush1.bf16.msra.mxu0 %v5575
  %5579 = vmatprep.subr.bf16.mxu0 0
  %5580 = vmatpush1.bf16.msra.mxu0 0
  %5581 = vmatprep.subr.bf16.mxu0 0
  %5582 = vmatpush1.bf16.msra.mxu0 0
  %5583 = vmatprep.subr.bf16.mxu0 0
  %5584 = vmatpush1.bf16.msra.mxu0 0
  %5585 = vmatprep.subr.bf16.mxu0 0
  %5586 = vmatpush1.bf16.msra.mxu0 0
  %5587 = vmatprep.subr.bf16.mxu0 0
  %5588 = vmatpush1.bf16.msra.mxu0 0
  %5589 = vmatprep.subr.bf16.mxu0 0
  %5590 = vmatpush1.bf16.msra.mxu0 0
  %5591 = vmatprep.subr.bf16.mxu0 0
  %5592 = vmatpush1.bf16.msra.mxu0 0
  %5593 = vmatprep.subr.bf16.mxu0 0
  %5594 = vmatpush1.bf16.msra.mxu0 0
  %5595 = vmatprep.subr.bf16.mxu0 0
  %5596 = vmatpush1.bf16.msra.mxu0 0
  %5597 = vmatprep.subr.bf16.mxu0 0
  %5598 = vmatpush1.bf16.msra.mxu0 0
  %5599 = vmatprep.subr.bf16.mxu0 0
  %5600 = vmatpush1.bf16.msra.mxu0 0
  %5601 = vmatprep.subr.bf16.mxu0 0
  %5602 = vmatpush1.bf16.msra.mxu0 0
  %5603 = vmatprep.subr.bf16.mxu0 0
  %5604 = vmatpush1.bf16.msra.mxu0 0
  %5605 = vmatprep.subr.bf16.mxu0 0
  %5606 = vmatpush1.bf16.msra.mxu0 0
  %5607 = vmatprep.subr.bf16.mxu0 0
  %5608 = vmatpush1.bf16.msra.mxu0 0
  %5609 = vmatprep.mubr.bf16.mxu0 0
  %5610 = vmatmul.mubr.bf16.gmra.mrb[0].mxu0 %v5455
  %v5611 = vpop.f32.mrb[0].mxu0
  %v5612 = vadd.f32 0.0, %v5611
  %v5613 = vpop.f32.mrb[0].mxu0
  %v5614 = vpop.f32.mrb[0].mxu0
  %v5615 = vadd.f32 0.0, %v5614
  %v5616 = vpop.f32.mrb[0].mxu0
  %5617 = vmatprep.mubr.bf16.mxu0 0
  %5618 = vmatmul.mubr.bf16.gmra.mrb[0].mxu0 %v5458
  %v5619 = vpop.f32.mrb[0].mxu0
  %v5620 = vadd.f32 0.0, %v5619
  %v5621 = vpop.f32.mrb[0].mxu0
  %v5622 = vpop.f32.mrb[0].mxu0
  %v5623 = vadd.f32 0.0, %v5622
  %v5624 = vpop.f32.mrb[0].mxu0
  %5625 = vmatprep.mubr.bf16.mxu0 0
  %5626 = vmatmul.mubr.bf16.gmra.mrb[0].mxu0 %v5461
  %v5627 = vpop.f32.mrb[0].mxu0
  %v5628 = vadd.f32 0.0, %v5627
  %v5629 = vpop.f32.mrb[0].mxu0
  %v5630 = vpop.f32.mrb[0].mxu0
  %v5631 = vadd.f32 0.0, %v5630
  %v5632 = vpop.f32.mrb[0].mxu0
  %5633 = vmatprep.mubr.bf16.mxu0 0
  %5634 = vmatmul.mubr.bf16.gmra.mrb[0].mxu0 %v5464
  %v5635 = vpop.f32.mrb[0].mxu0
  %v5636 = vadd.f32 0.0, %v5635
  %v5637 = vpop.f32.mrb[0].mxu0
  %v5638 = vpop.f32.mrb[0].mxu0
  %v5639 = vadd.f32 0.0, %v5638
  %v5640 = vpop.f32.mrb[0].mxu0
  %5641 = vmatprep.mubr.bf16.mxu0 0
  %5642 = vmatmul.mubr.bf16.gmra.mrb[0].mxu0 %v5467
  %v5643 = vpop.f32.mrb[0].mxu0
  %v5644 = vadd.f32 0.0, %v5643
  %v5645 = vpop.f32.mrb[0].mxu0
  %v5646 = vpop.f32.mrb[0].mxu0
  %v5647 = vadd.f32 0.0, %v5646
  %v5648 = vpop.f32.mrb[0].mxu0
  %5649 = vmatprep.mubr.bf16.mxu0 0
  %5650 = vmatmul.mubr.bf16.gmra.mrb[0].mxu0 %v5470
  %v5651 = vpop.f32.mrb[0].mxu0
  %v5652 = vadd.f32 0.0, %v5651
  %v5653 = vpop.f32.mrb[0].mxu0
  %v5654 = vpop.f32.mrb[0].mxu0
  %v5655 = vadd.f32 0.0, %v5654
  %v5656 = vpop.f32.mrb[0].mxu0
  %5657 = vmatprep.mubr.bf16.mxu0 0
  %5658 = vmatmul.mubr.bf16.gmra.mrb[0].mxu0 %v5473
  %v5659 = vpop.f32.mrb[0].mxu0
  %v5660 = vadd.f32 0.0, %v5659
  %v5661 = vpop.f32.mrb[0].mxu0
  %v5662 = vpop.f32.mrb[0].mxu0
  %v5663 = vadd.f32 0.0, %v5662
  %v5664 = vpop.f32.mrb[0].mxu0
  %5665 = vmatprep.mubr.bf16.mxu0 0
  %5666 = vmatmul.mubr.bf16.gmra.mrb[0].mxu0 %v5476
  %v5667 = vpop.f32.mrb[0].mxu0
  %v5668 = vadd.f32 0.0, %v5667
  %v5669 = vpop.f32.mrb[0].mxu0
  %v5670 = vpop.f32.mrb[0].mxu0
  %v5671 = vadd.f32 0.0, %v5670
  %v5672 = vpop.f32.mrb[0].mxu0
  %5673 = vmatprep.mubr.bf16.mxu0 0
  %5674 = vmatmul.mubr.bf16.gmra.mrb[0].mxu0 %v5479
  %v5675 = vpop.f32.mrb[0].mxu0
  %v5676 = vadd.f32 0.0, %v5675
  %v5677 = vpop.f32.mrb[0].mxu0
  %v5678 = vpop.f32.mrb[0].mxu0
  %v5679 = vadd.f32 0.0, %v5678
  %v5680 = vpop.f32.mrb[0].mxu0
  %5681 = vmatprep.mubr.bf16.mxu0 0
  %5682 = vmatmul.mubr.bf16.gmra.mrb[0].mxu0 %v5482
  %v5683 = vpop.f32.mrb[0].mxu0
  %v5684 = vadd.f32 0.0, %v5683
  %v5685 = vpop.f32.mrb[0].mxu0
  %v5686 = vpop.f32.mrb[0].mxu0
  %v5687 = vadd.f32 0.0, %v5686
  %v5688 = vpop.f32.mrb[0].mxu0
  %5689 = vmatprep.mubr.bf16.mxu0 0
  %5690 = vmatmul.mubr.bf16.gmra.mrb[0].mxu0 %v5485
  %v5691 = vpop.f32.mrb[0].mxu0
  %v5692 = vadd.f32 0.0, %v5691
  %v5693 = vpop.f32.mrb[0].mxu0
  %v5694 = vpop.f32.mrb[0].mxu0
  %v5695 = vadd.f32 0.0, %v5694
  %v5696 = vpop.f32.mrb[0].mxu0
  %5697 = vmatprep.mubr.bf16.mxu0 0
  %5698 = vmatmul.mubr.bf16.gmra.mrb[0].mxu0 %v5488
  %v5699 = vpop.f32.mrb[0].mxu0
  %v5700 = vadd.f32 0.0, %v5699
  %v5701 = vpop.f32.mrb[0].mxu0
  %v5702 = vpop.f32.mrb[0].mxu0
  %v5703 = vadd.f32 0.0, %v5702
  %v5704 = vpop.f32.mrb[0].mxu0
  %5705 = vmatprep.mubr.bf16.mxu0 0
  %5706 = vmatmul.mubr.bf16.gmra.mrb[0].mxu0 %v5491
  %v5707 = vpop.f32.mrb[0].mxu0
  %v5708 = vadd.f32 0.0, %v5707
  %v5709 = vpop.f32.mrb[0].mxu0
  %v5710 = vpop.f32.mrb[0].mxu0
  %v5711 = vadd.f32 0.0, %v5710
  %v5712 = vpop.f32.mrb[0].mxu0
  %5713 = vmatprep.mubr.bf16.mxu0 0
  %5714 = vmatmul.mubr.bf16.gmra.mrb[0].mxu0 %v5494
  %v5715 = vpop.f32.mrb[0].mxu0
  %v5716 = vadd.f32 0.0, %v5715
  %v5717 = vpop.f32.mrb[0].mxu0
  %v5718 = vpop.f32.mrb[0].mxu0
  %v5719 = vadd.f32 0.0, %v5718
  %v5720 = vpop.f32.mrb[0].mxu0
  %5721 = vmatprep.mubr.bf16.mxu0 0
  %5722 = vmatmul.mubr.bf16.gmra.mrb[0].mxu0 %v5497
  %v5723 = vpop.f32.mrb[0].mxu0
  %v5724 = vadd.f32 0.0, %v5723
  %v5725 = vpop.f32.mrb[0].mxu0
  %v5726 = vpop.f32.mrb[0].mxu0
  %v5727 = vadd.f32 0.0, %v5726
  %v5728 = vpop.f32.mrb[0].mxu0
  %5729 = vmatprep.mubr.bf16.mxu0 0
  %5730 = vmatmul.mubr.bf16.gmra.mrb[0].mxu0 %v5500
  %v5731 = vpop.f32.mrb[0].mxu0
  %v5732 = vadd.f32 0.0, %v5731
  %v5733 = vpop.f32.mrb[0].mxu0
  %v5734 = vpop.f32.mrb[0].mxu0
  %v5735 = vadd.f32 0.0, %v5734
  %v5736 = vpop.f32.mrb[0].mxu0
  %5737 = vmatprep.mubr.bf16.mxu0 0
  %5738 = vmatmul.mubr.bf16.gmra.mrb[0].mxu0 %v5503
  %v5739 = vpop.f32.mrb[0].mxu0
  %v5740 = vadd.f32 0.0, %v5739
  %v5741 = vpop.f32.mrb[0].mxu0
  %v5742 = vpop.f32.mrb[0].mxu0
  %v5743 = vadd.f32 0.0, %v5742
  %v5744 = vpop.f32.mrb[0].mxu0
  %5745 = vmatprep.mubr.bf16.mxu0 0
  %5746 = vmatmul.mubr.bf16.gmra.mrb[0].mxu0 %v5506
  %v5747 = vpop.f32.mrb[0].mxu0
  %v5748 = vadd.f32 0.0, %v5747
  %v5749 = vpop.f32.mrb[0].mxu0
  %v5750 = vpop.f32.mrb[0].mxu0
  %v5751 = vadd.f32 0.0, %v5750
  %v5752 = vpop.f32.mrb[0].mxu0
  %5753 = vmatprep.mubr.bf16.mxu0 0
  %5754 = vmatmul.mubr.bf16.gmra.mrb[0].mxu0 %v5509
  %v5755 = vpop.f32.mrb[0].mxu0
  %v5756 = vadd.f32 0.0, %v5755
  %v5757 = vpop.f32.mrb[0].mxu0
  %v5758 = vpop.f32.mrb[0].mxu0
  %v5759 = vadd.f32 0.0, %v5758
  %v5760 = vpop.f32.mrb[0].mxu0
  %5761 = vmatprep.mubr.bf16.mxu0 0
  %5762 = vmatmul.mubr.bf16.gmra.mrb[0].mxu0 %v5512
  %v5763 = vpop.f32.mrb[0].mxu0
  %v5764 = vadd.f32 0.0, %v5763
  %v5765 = vpop.f32.mrb[0].mxu0
  %v5766 = vpop.f32.mrb[0].mxu0
  %v5767 = vadd.f32 0.0, %v5766
  %v5768 = vpop.f32.mrb[0].mxu0
  %5769 = vmatprep.mubr.bf16.mxu0 0
  %5770 = vmatmul.mubr.bf16.gmra.mrb[0].mxu0 %v5515
  %v5771 = vpop.f32.mrb[0].mxu0
  %v5772 = vadd.f32 0.0, %v5771
  %v5773 = vpop.f32.mrb[0].mxu0
  %v5774 = vpop.f32.mrb[0].mxu0
  %v5775 = vadd.f32 0.0, %v5774
  %v5776 = vpop.f32.mrb[0].mxu0
  %5777 = vmatprep.mubr.bf16.mxu0 0
  %5778 = vmatmul.mubr.bf16.gmra.mrb[0].mxu0 %v5518
  %v5779 = vpop.f32.mrb[0].mxu0
  %v5780 = vadd.f32 0.0, %v5779
  %v5781 = vpop.f32.mrb[0].mxu0
  %v5782 = vpop.f32.mrb[0].mxu0
  %v5783 = vadd.f32 0.0, %v5782
  %v5784 = vpop.f32.mrb[0].mxu0
  %5785 = vmatprep.mubr.bf16.mxu0 0
  %5786 = vmatmul.mubr.bf16.gmra.mrb[0].mxu0 %v5521
  %v5787 = vpop.f32.mrb[0].mxu0
  %v5788 = vadd.f32 0.0, %v5787
  %v5789 = vpop.f32.mrb[0].mxu0
  %v5790 = vpop.f32.mrb[0].mxu0
  %v5791 = vadd.f32 0.0, %v5790
  %v5792 = vpop.f32.mrb[0].mxu0
  %5793 = vmatprep.mubr.bf16.mxu0 0
  %5794 = vmatmul.mubr.bf16.gmra.mrb[0].mxu0 %v5524
  %v5795 = vpop.f32.mrb[0].mxu0
  %v5796 = vadd.f32 0.0, %v5795
  %v5797 = vpop.f32.mrb[0].mxu0
  %v5798 = vpop.f32.mrb[0].mxu0
  %v5799 = vadd.f32 0.0, %v5798
  %v5800 = vpop.f32.mrb[0].mxu0
  %5801 = vmatprep.mubr.bf16.mxu0 0
  %5802 = vmatmul.mubr.bf16.gmra.mrb[0].mxu0 %v5527
  %v5803 = vpop.f32.mrb[0].mxu0
  %v5804 = vadd.f32 0.0, %v5803
  %v5805 = vpop.f32.mrb[0].mxu0
  %v5806 = vpop.f32.mrb[0].mxu0
  %v5807 = vadd.f32 0.0, %v5806
  %v5808 = vpop.f32.mrb[0].mxu0
  %5809 = vmatprep.mubr.bf16.mxu0 0
  %5810 = vmatmul.mubr.bf16.gmra.mrb[0].mxu0 %v5530
  %v5811 = vpop.f32.mrb[0].mxu0
  %v5812 = vadd.f32 0.0, %v5811
  %v5813 = vpop.f32.mrb[0].mxu0
  %v5814 = vpop.f32.mrb[0].mxu0
  %v5815 = vadd.f32 0.0, %v5814
  %v5816 = vpop.f32.mrb[0].mxu0
  %5817 = vmatprep.mubr.bf16.mxu0 0
  %5818 = vmatmul.mubr.bf16.gmra.mrb[0].mxu0 %v5533
  %v5819 = vpop.f32.mrb[0].mxu0
  %v5820 = vadd.f32 0.0, %v5819
  %v5821 = vpop.f32.mrb[0].mxu0
  %v5822 = vpop.f32.mrb[0].mxu0
  %v5823 = vadd.f32 0.0, %v5822
  %v5824 = vpop.f32.mrb[0].mxu0
  %5825 = vmatprep.mubr.bf16.mxu0 0
  %5826 = vmatmul.mubr.bf16.gmra.mrb[0].mxu0 %v5536
  %v5827 = vpop.f32.mrb[0].mxu0
  %v5828 = vadd.f32 0.0, %v5827
  %v5829 = vpop.f32.mrb[0].mxu0
  %v5830 = vpop.f32.mrb[0].mxu0
  %v5831 = vadd.f32 0.0, %v5830
  %v5832 = vpop.f32.mrb[0].mxu0
  %5833 = vmatprep.mubr.bf16.mxu0 0
  %5834 = vmatmul.mubr.bf16.gmra.mrb[0].mxu0 %v5539
  %v5835 = vpop.f32.mrb[0].mxu0
  %v5836 = vadd.f32 0.0, %v5835
  %v5837 = vpop.f32.mrb[0].mxu0
  %v5838 = vpop.f32.mrb[0].mxu0
  %v5839 = vadd.f32 0.0, %v5838
  %v5840 = vpop.f32.mrb[0].mxu0
  %5841 = vmatprep.mubr.bf16.mxu0 0
  %5842 = vmatmul.mubr.bf16.gmra.mrb[0].mxu0 %v5542
  %v5843 = vpop.f32.mrb[0].mxu0
  %v5844 = vadd.f32 0.0, %v5843
  %v5845 = vpop.f32.mrb[0].mxu0
  %v5846 = vpop.f32.mrb[0].mxu0
  %v5847 = vadd.f32 0.0, %v5846
  %v5848 = vpop.f32.mrb[0].mxu0
  %5849 = vmatprep.mubr.bf16.mxu0 0
  %5850 = vmatmul.mubr.bf16.gmra.mrb[0].mxu0 %v5545
  %v5851 = vpop.f32.mrb[0].mxu0
  %v5852 = vadd.f32 0.0, %v5851
  %v5853 = vpop.f32.mrb[0].mxu0
  %v5854 = vpop.f32.mrb[0].mxu0
  %v5855 = vadd.f32 0.0, %v5854
  %v5856 = vpop.f32.mrb[0].mxu0
  %5857 = vmatprep.mubr.bf16.mxu0 0
  %5858 = vmatmul.mubr.bf16.gmra.mrb[0].mxu0 %v5548
  %v5859 = vpop.f32.mrb[0].mxu0
  %v5860 = vadd.f32 0.0, %v5859
  %v5861 = vpop.f32.mrb[0].mxu0
  %v5862 = vpop.f32.mrb[0].mxu0
  %v5863 = vadd.f32 0.0, %v5862
  %v5864 = vpop.f32.mrb[0].mxu0
  %5865 = vmatprep.mubr.bf16.mxu0 0
  %5866 = vmatmul.mubr.bf16.gmra.mrb[0].mxu0 %v5551
  %v5867 = vpop.f32.mrb[0].mxu0
  %v5868 = vadd.f32 0.0, %v5867
  %v5869 = vpop.f32.mrb[0].mxu0
  %v5870 = vpop.f32.mrb[0].mxu0
  %v5871 = vadd.f32 0.0, %v5870
  %v5872 = vpop.f32.mrb[0].mxu0
  %5873 = vmatprep.mubr.bf16.mxu0 0
  %5874 = vmatmul.mubr.bf16.gmra.mrb[0].mxu0 %v5554
  %v5875 = vpop.f32.mrb[0].mxu0
  %v5876 = vadd.f32 0.0, %v5875
  %v5877 = vpop.f32.mrb[0].mxu0
  %v5878 = vpop.f32.mrb[0].mxu0
  %v5879 = vadd.f32 0.0, %v5878
  %v5880 = vpop.f32.mrb[0].mxu0
  %5881 = vmatprep.mubr.bf16.mxu0 0
  %5882 = vmatmul.mubr.bf16.gmra.mrb[0].mxu0 %v5557
  %v5883 = vpop.f32.mrb[0].mxu0
  %v5884 = vadd.f32 0.0, %v5883
  %v5885 = vpop.f32.mrb[0].mxu0
  %v5886 = vpop.f32.mrb[0].mxu0
  %v5887 = vadd.f32 0.0, %v5886
  %v5888 = vpop.f32.mrb[0].mxu0
  %5889 = vmatprep.mubr.bf16.mxu0 0
  %5890 = vmatmul.mubr.bf16.gmra.mrb[0].mxu0 %v5560
  %v5891 = vpop.f32.mrb[0].mxu0
  %v5892 = vadd.f32 0.0, %v5891
  %v5893 = vpop.f32.mrb[0].mxu0
  %v5894 = vpop.f32.mrb[0].mxu0
  %v5895 = vadd.f32 0.0, %v5894
  %v5896 = vpop.f32.mrb[0].mxu0
  %5897 = vmatprep.mubr.bf16.mxu0 0
  %5898 = vmatmul.mubr.bf16.gmra.mrb[0].mxu0 %v5563
  %v5899 = vpop.f32.mrb[0].mxu0
  %v5900 = vadd.f32 0.0, %v5899
  %v5901 = vpop.f32.mrb[0].mxu0
  %v5902 = vpop.f32.mrb[0].mxu0
  %v5903 = vadd.f32 0.0, %v5902
  %v5904 = vpop.f32.mrb[0].mxu0
  %5905 = vmatprep.mubr.bf16.mxu0 0
  %5906 = vmatmul.mubr.bf16.gmra.mrb[0].mxu0 %v5566
  %v5907 = vpop.f32.mrb[0].mxu0
  %v5908 = vadd.f32 0.0, %v5907
  %v5909 = vpop.f32.mrb[0].mxu0
  %v5910 = vpop.f32.mrb[0].mxu0
  %v5911 = vadd.f32 0.0, %v5910
  %v5912 = vpop.f32.mrb[0].mxu0
  %5913 = vmatprep.mubr.bf16.mxu0 0
  %5914 = vmatmul.mubr.bf16.gmra.mrb[0].mxu0 %v5569
  %v5915 = vpop.f32.mrb[0].mxu0
  %v5916 = vadd.f32 0.0, %v5915
  %v5917 = vpop.f32.mrb[0].mxu0
  %v5918 = vpop.f32.mrb[0].mxu0
  %v5919 = vadd.f32 0.0, %v5918
  %v5920 = vpop.f32.mrb[0].mxu0
  %5921 = vmatprep.mubr.bf16.mxu0 0
  %5922 = vmatmul.mubr.bf16.gmra.mrb[0].mxu0 %v5572
  %v5923 = vpop.f32.mrb[0].mxu0
  %v5924 = vadd.f32 0.0, %v5923
  %v5925 = vpop.f32.mrb[0].mxu0
  %v5926 = vpop.f32.mrb[0].mxu0
  %v5927 = vadd.f32 0.0, %v5926
  %v5928 = vpop.f32.mrb[0].mxu0
  %5929 = vdwg.mxu0
  %v5930 = vadd.f32 %v4675, %v5612
  %v5931 = vadd.f32 %v4676, %v5615
  %v5932 = vadd.f32 %v4677, %v5620
  %v5933 = vadd.f32 %v4678, %v5623
  %v5934 = vadd.f32 %v4679, %v5628
  %v5935 = vadd.f32 %v4680, %v5631
  %v5936 = vadd.f32 %v4681, %v5636
  %v5937 = vadd.f32 %v4682, %v5639
  %v5938 = vadd.f32 %v4683, %v5644
  %v5939 = vadd.f32 %v4684, %v5647
  %v5940 = vadd.f32 %v4685, %v5652
  %v5941 = vadd.f32 %v4686, %v5655
  %v5942 = vadd.f32 %v4687, %v5660
  %v5943 = vadd.f32 %v4688, %v5663
  %v5944 = vadd.f32 %v4689, %v5668
  %v5945 = vadd.f32 %v4690, %v5671
  %v5946 = vadd.f32 %v4691, %v5676
  %v5947 = vadd.f32 %v4692, %v5679
  %v5948 = vadd.f32 %v4693, %v5684
  %v5949 = vadd.f32 %v4694, %v5687
  %v5950 = vadd.f32 %v4695, %v5692
  %v5951 = vadd.f32 %v4696, %v5695
  %v5952 = vadd.f32 %v4697, %v5700
  %v5953 = vadd.f32 %v4698, %v5703
  %v5954 = vadd.f32 %v4699, %v5708
  %v5955 = vadd.f32 %v4700, %v5711
  %v5956 = vadd.f32 %v4701, %v5716
  %v5957 = vadd.f32 %v4702, %v5719
  %v5958 = vadd.f32 %v4703, %v5724
  %v5959 = vadd.f32 %v4704, %v5727
  %v5960 = vadd.f32 %v4705, %v5732
  %v5961 = vadd.f32 %v4706, %v5735
  %v5962 = vadd.f32 %v4707, %v5740
  %v5963 = vadd.f32 %v4708, %v5743
  %v5964 = vadd.f32 %v4709, %v5748
  %v5965 = vadd.f32 %v4710, %v5751
  %v5966 = vadd.f32 %v4711, %v5756
  %v5967 = vadd.f32 %v4712, %v5759
  %v5968 = vadd.f32 %v4713, %v5764
  %v5969 = vadd.f32 %v4714, %v5767
  %v5970 = vadd.f32 %v4715, %v5772
  %v5971 = vadd.f32 %v4716, %v5775
  %v5972 = vadd.f32 %v4717, %v5780
  %v5973 = vadd.f32 %v4718, %v5783
  %v5974 = vadd.f32 %v4719, %v5788
  %v5975 = vadd.f32 %v4720, %v5791
  %v5976 = vadd.f32 %v4721, %v5796
  %v5977 = vadd.f32 %v4722, %v5799
  %v5978 = vadd.f32 %v4723, %v5804
  %v5979 = vadd.f32 %v4724, %v5807
  %v5980 = vadd.f32 %v4725, %v5812
  %v5981 = vadd.f32 %v4726, %v5815
  %v5982 = vadd.f32 %v4727, %v5820
  %v5983 = vadd.f32 %v4728, %v5823
  %v5984 = vadd.f32 %v4729, %v5828
  %v5985 = vadd.f32 %v4730, %v5831
  %v5986 = vadd.f32 %v4731, %v5836
  %v5987 = vadd.f32 %v4732, %v5839
  %v5988 = vadd.f32 %v4733, %v5844
  %v5989 = vadd.f32 %v4734, %v5847
  %v5990 = vadd.f32 %v4735, %v5852
  %v5991 = vadd.f32 %v4736, %v5855
  %v5992 = vadd.f32 %v4737, %v5860
  %v5993 = vadd.f32 %v4738, %v5863
  %v5994 = vadd.f32 %v4739, %v5868
  %v5995 = vadd.f32 %v4740, %v5871
  %v5996 = vadd.f32 %v4741, %v5876
  %v5997 = vadd.f32 %v4742, %v5879
  %v5998 = vadd.f32 %v4743, %v5884
  %v5999 = vadd.f32 %v4744, %v5887
  %v6000 = vadd.f32 %v4745, %v5892
  %v6001 = vadd.f32 %v4746, %v5895
  %v6002 = vadd.f32 %v4747, %v5900
  %v6003 = vadd.f32 %v4748, %v5903
  %v6004 = vadd.f32 %v4749, %v5908
  %v6005 = vadd.f32 %v4750, %v5911
  %v6006 = vadd.f32 %v4751, %v5916
  %v6007 = vadd.f32 %v4752, %v5919
  %v6008 = vadd.f32 %v4753, %v5924
  %v6009 = vadd.f32 %v4754, %v5927
  %v6010 = vld [vmem:[#allocation2] sm:$0xe0]
  %vm6011 = vcmask 1044480
  %v6012 = vrot.slane %v1044, 3
  %v6013 = vrot.slane %v1045, 3
  %v6014 = vsel %vm6011, %v6012, %v6013
  %v6015 = vrot.slane %v1046, 3
  %v6016 = vsel %vm6011, %v6013, %v6015
  %v6017 = vrot.slane %v1047, 3
  %v6018 = vsel %vm6011, %v6015, %v6017
  %v6019 = vrot.slane %v1048, 3
  %v6020 = vsel %vm6011, %v6017, %v6019
  %v6021 = vrot.slane %v1049, 3
  %v6022 = vsel %vm6011, %v6019, %v6021
  %v6023 = vrot.slane %v1050, 3
  %v6024 = vsel %vm6011, %v6021, %v6023
  %v6025 = vrot.slane %v1051, 3
  %v6026 = vsel %vm6011, %v6023, %v6025
  %v6027 = vrot.slane %v1052, 3
  %v6028 = vsel %vm6011, %v6025, %v6027
  %v6029 = vrot.slane %v1053, 3
  %v6030 = vsel %vm6011, %v6027, %v6029
  %v6031 = vrot.slane %v1054, 3
  %v6032 = vsel %vm6011, %v6029, %v6031
  %v6033 = vrot.slane %v1055, 3
  %v6034 = vsel %vm6011, %v6031, %v6033
  %v6035 = vrot.slane %v1056, 3
  %v6036 = vsel %vm6011, %v6033, %v6035
  %v6037 = vrot.slane %v1057, 3
  %v6038 = vsel %vm6011, %v6035, %v6037
  %v6039 = vrot.slane %v1058, 3
  %v6040 = vsel %vm6011, %v6037, %v6039
  %v6041 = vrot.slane %v1059, 3
  %v6042 = vsel %vm6011, %v6039, %v6041
  %v6043 = vrot.slane %v1060, 3
  %v6044 = vsel %vm6011, %v6041, %v6043
  %v6045 = vrot.slane %v1061, 3
  %v6046 = vsel %vm6011, %v6043, %v6045
  %v6047 = vrot.slane %v1062, 3
  %v6048 = vsel %vm6011, %v6045, %v6047
  %v6049 = vrot.slane %v1063, 3
  %v6050 = vsel %vm6011, %v6047, %v6049
  %v6051 = vrot.slane %v1064, 3
  %v6052 = vsel %vm6011, %v6049, %v6051
  %v6053 = vrot.slane %v1065, 3
  %v6054 = vsel %vm6011, %v6051, %v6053
  %v6055 = vrot.slane %v1066, 3
  %v6056 = vsel %vm6011, %v6053, %v6055
  %v6057 = vrot.slane %v1067, 3
  %v6058 = vsel %vm6011, %v6055, %v6057
  %v6059 = vrot.slane %v1068, 3
  %v6060 = vsel %vm6011, %v6057, %v6059
  %v6061 = vrot.slane %v1069, 3
  %v6062 = vsel %vm6011, %v6059, %v6061
  %v6063 = vrot.slane %v1070, 3
  %v6064 = vsel %vm6011, %v6061, %v6063
  %v6065 = vrot.slane %v1071, 3
  %v6066 = vsel %vm6011, %v6063, %v6065
  %v6067 = vrot.slane %v1072, 3
  %v6068 = vsel %vm6011, %v6065, %v6067
  %v6069 = vrot.slane %v1073, 3
  %v6070 = vsel %vm6011, %v6067, %v6069
  %v6071 = vrot.slane %v1074, 3
  %v6072 = vsel %vm6011, %v6069, %v6071
  %v6073 = vrot.slane %v1075, 3
  %v6074 = vsel %vm6011, %v6071, %v6073
  %v6075 = vrot.slane %v1076, 3
  %v6076 = vsel %vm6011, %v6073, %v6075
  %v6077 = vrot.slane %v1077, 3
  %v6078 = vsel %vm6011, %v6075, %v6077
  %v6079 = vrot.slane %v1078, 3
  %v6080 = vsel %vm6011, %v6077, %v6079
  %v6081 = vrot.slane %v1079, 3
  %v6082 = vsel %vm6011, %v6079, %v6081
  %v6083 = vrot.slane %v1080, 3
  %v6084 = vsel %vm6011, %v6081, %v6083
  %v6085 = vrot.slane %v1081, 3
  %v6086 = vsel %vm6011, %v6083, %v6085
  %v6087 = vrot.slane %v1082, 3
  %v6088 = vsel %vm6011, %v6085, %v6087
  %v6089 = vrot.slane %v1083, 3
  %v6090 = vsel %vm6011, %v6087, %v6089
  %6091 = vrot.lane.b32.xlu0 %v6012, 123
  %v6092 = vpop.permute.xlu0 %6091
  %6093 = vrot.lane.b32.xlu0 %v6014, 123
  %v6094 = vpop.permute.xlu0 %6093
  %6095 = vrot.lane.b32.xlu0 %v6016, 123
  %v6096 = vpop.permute.xlu0 %6095
  %6097 = vrot.lane.b32.xlu0 %v6018, 123
  %v6098 = vpop.permute.xlu0 %6097
  %6099 = vrot.lane.b32.xlu0 %v6020, 123
  %v6100 = vpop.permute.xlu0 %6099
  %6101 = vrot.lane.b32.xlu0 %v6022, 123
  %v6102 = vpop.permute.xlu0 %6101
  %6103 = vrot.lane.b32.xlu0 %v6024, 123
  %v6104 = vpop.permute.xlu0 %6103
  %6105 = vrot.lane.b32.xlu0 %v6026, 123
  %v6106 = vpop.permute.xlu0 %6105
  %6107 = vrot.lane.b32.xlu0 %v6028, 123
  %v6108 = vpop.permute.xlu0 %6107
  %6109 = vrot.lane.b32.xlu0 %v6030, 123
  %v6110 = vpop.permute.xlu0 %6109
  %6111 = vrot.lane.b32.xlu0 %v6032, 123
  %v6112 = vpop.permute.xlu0 %6111
  %6113 = vrot.lane.b32.xlu0 %v6034, 123
  %v6114 = vpop.permute.xlu0 %6113
  %6115 = vrot.lane.b32.xlu0 %v6036, 123
  %v6116 = vpop.permute.xlu0 %6115
  %6117 = vrot.lane.b32.xlu0 %v6038, 123
  %v6118 = vpop.permute.xlu0 %6117
  %6119 = vrot.lane.b32.xlu0 %v6040, 123
  %v6120 = vpop.permute.xlu0 %6119
  %6121 = vrot.lane.b32.xlu0 %v6042, 123
  %v6122 = vpop.permute.xlu0 %6121
  %6123 = vrot.lane.b32.xlu0 %v6044, 123
  %v6124 = vpop.permute.xlu0 %6123
  %6125 = vrot.lane.b32.xlu0 %v6046, 123
  %v6126 = vpop.permute.xlu0 %6125
  %6127 = vrot.lane.b32.xlu0 %v6048, 123
  %v6128 = vpop.permute.xlu0 %6127
  %6129 = vrot.lane.b32.xlu0 %v6050, 123
  %v6130 = vpop.permute.xlu0 %6129
  %6131 = vrot.lane.b32.xlu0 %v6052, 123
  %v6132 = vpop.permute.xlu0 %6131
  %6133 = vrot.lane.b32.xlu0 %v6054, 123
  %v6134 = vpop.permute.xlu0 %6133
  %6135 = vrot.lane.b32.xlu0 %v6056, 123
  %v6136 = vpop.permute.xlu0 %6135
  %6137 = vrot.lane.b32.xlu0 %v6058, 123
  %v6138 = vpop.permute.xlu0 %6137
  %6139 = vrot.lane.b32.xlu0 %v6060, 123
  %v6140 = vpop.permute.xlu0 %6139
  %6141 = vrot.lane.b32.xlu0 %v6062, 123
  %v6142 = vpop.permute.xlu0 %6141
  %6143 = vrot.lane.b32.xlu0 %v6064, 123
  %v6144 = vpop.permute.xlu0 %6143
  %6145 = vrot.lane.b32.xlu0 %v6066, 123
  %v6146 = vpop.permute.xlu0 %6145
  %6147 = vrot.lane.b32.xlu0 %v6068, 123
  %v6148 = vpop.permute.xlu0 %6147
  %6149 = vrot.lane.b32.xlu0 %v6070, 123
  %v6150 = vpop.permute.xlu0 %6149
  %6151 = vrot.lane.b32.xlu0 %v6072, 123
  %v6152 = vpop.permute.xlu0 %6151
  %6153 = vrot.lane.b32.xlu0 %v6074, 123
  %v6154 = vpop.permute.xlu0 %6153
  %6155 = vrot.lane.b32.xlu0 %v6076, 123
  %v6156 = vpop.permute.xlu0 %6155
  %6157 = vrot.lane.b32.xlu0 %v6078, 123
  %v6158 = vpop.permute.xlu0 %6157
  %6159 = vrot.lane.b32.xlu0 %v6080, 123
  %v6160 = vpop.permute.xlu0 %6159
  %6161 = vrot.lane.b32.xlu0 %v6082, 123
  %v6162 = vpop.permute.xlu0 %6161
  %6163 = vrot.lane.b32.xlu0 %v6084, 123
  %v6164 = vpop.permute.xlu0 %6163
  %6165 = vrot.lane.b32.xlu0 %v6086, 123
  %v6166 = vpop.permute.xlu0 %6165
  %6167 = vrot.lane.b32.xlu0 %v6088, 123
  %v6168 = vpop.permute.xlu0 %6167
  %6169 = vrot.lane.b32.xlu0 %v6090, 123
  %v6170 = vpop.permute.xlu0 %6169
  %6171 = vrot.lane.b32.xlu0 %v6089, 123
  %v6172 = vpop.permute.xlu0 %6171
  %v6214 = vmul.bf16 %v6010, %v6092
  %v6215 = vmul.bf16 %v845, %v6094
  %v6216 = vmul.bf16 %v846, %v6096
  %v6217 = vmul.bf16 %v847, %v6098
  %v6218 = vmul.bf16 %v848, %v6100
  %v6219 = vmul.bf16 %v849, %v6102
  %v6220 = vmul.bf16 %v850, %v6104
  %v6221 = vmul.bf16 %v851, %v6106
  %v6222 = vmul.bf16 %v852, %v6108
  %v6223 = vmul.bf16 %v853, %v6110
  %v6224 = vmul.bf16 %v854, %v6112
  %v6225 = vmul.bf16 %v855, %v6114
  %v6226 = vmul.bf16 %v856, %v6116
  %v6227 = vmul.bf16 %v857, %v6118
  %v6228 = vmul.bf16 %v858, %v6120
  %v6229 = vmul.bf16 %v859, %v6122
  %v6230 = vmul.bf16 %v860, %v6124
  %v6231 = vmul.bf16 %v861, %v6126
  %v6232 = vmul.bf16 %v862, %v6128
  %v6233 = vmul.bf16 %v863, %v6130
  %v6234 = vmul.bf16 %v864, %v6132
  %v6235 = vmul.bf16 %v865, %v6134
  %v6236 = vmul.bf16 %v866, %v6136
  %v6237 = vmul.bf16 %v867, %v6138
  %v6238 = vmul.bf16 %v868, %v6140
  %v6239 = vmul.bf16 %v869, %v6142
  %v6240 = vmul.bf16 %v870, %v6144
  %v6241 = vmul.bf16 %v871, %v6146
  %v6242 = vmul.bf16 %v872, %v6148
  %v6243 = vmul.bf16 %v873, %v6150
  %v6244 = vmul.bf16 %v874, %v6152
  %v6245 = vmul.bf16 %v875, %v6154
  %v6246 = vmul.bf16 %v876, %v6156
  %v6247 = vmul.bf16 %v877, %v6158
  %v6248 = vmul.bf16 %v878, %v6160
  %v6249 = vmul.bf16 %v879, %v6162
  %v6250 = vmul.bf16 %v880, %v6164
  %v6251 = vmul.bf16 %v881, %v6166
  %v6252 = vmul.bf16 %v882, %v6168
  %v6253 = vmul.bf16 %v883, %v6170
  %v6254 = vmul.bf16 %v4755, %v6172
  %vm6296 = vcmask 1042432
  %v6297 = vrot.slane %v6214, 5
  %v6298 = vrot.slane %v6215, 5
  %v6299 = vsel %vm6296, %v6297, %v6298
  %v6300 = vrot.slane %v6216, 5
  %v6301 = vsel %vm6296, %v6298, %v6300
  %v6302 = vrot.slane %v6217, 5
  %v6303 = vsel %vm6296, %v6300, %v6302
  %v6304 = vrot.slane %v6218, 5
  %v6305 = vsel %vm6296, %v6302, %v6304
  %v6306 = vrot.slane %v6219, 5
  %v6307 = vsel %vm6296, %v6304, %v6306
  %v6308 = vrot.slane %v6220, 5
  %v6309 = vsel %vm6296, %v6306, %v6308
  %v6310 = vrot.slane %v6221, 5
  %v6311 = vsel %vm6296, %v6308, %v6310
  %v6312 = vrot.slane %v6222, 5
  %v6313 = vsel %vm6296, %v6310, %v6312
  %v6314 = vrot.slane %v6223, 5
  %v6315 = vsel %vm6296, %v6312, %v6314
  %v6316 = vrot.slane %v6224, 5
  %v6317 = vsel %vm6296, %v6314, %v6316
  %v6318 = vrot.slane %v6225, 5
  %v6319 = vsel %vm6296, %v6316, %v6318
  %v6320 = vrot.slane %v6226, 5
  %v6321 = vsel %vm6296, %v6318, %v6320
  %v6322 = vrot.slane %v6227, 5
  %v6323 = vsel %vm6296, %v6320, %v6322
  %v6324 = vrot.slane %v6228, 5
  %v6325 = vsel %vm6296, %v6322, %v6324
  %v6326 = vrot.slane %v6229, 5
  %v6327 = vsel %vm6296, %v6324, %v6326
  %v6328 = vrot.slane %v6230, 5
  %v6329 = vsel %vm6296, %v6326, %v6328
  %v6330 = vrot.slane %v6231, 5
  %v6331 = vsel %vm6296, %v6328, %v6330
  %v6332 = vrot.slane %v6232, 5
  %v6333 = vsel %vm6296, %v6330, %v6332
  %v6334 = vrot.slane %v6233, 5
  %v6335 = vsel %vm6296, %v6332, %v6334
  %v6336 = vrot.slane %v6234, 5
  %v6337 = vsel %vm6296, %v6334, %v6336
  %v6338 = vrot.slane %v6235, 5
  %v6339 = vsel %vm6296, %v6336, %v6338
  %v6340 = vrot.slane %v6236, 5
  %v6341 = vsel %vm6296, %v6338, %v6340
  %v6342 = vrot.slane %v6237, 5
  %v6343 = vsel %vm6296, %v6340, %v6342
  %v6344 = vrot.slane %v6238, 5
  %v6345 = vsel %vm6296, %v6342, %v6344
  %v6346 = vrot.slane %v6239, 5
  %v6347 = vsel %vm6296, %v6344, %v6346
  %v6348 = vrot.slane %v6240, 5
  %v6349 = vsel %vm6296, %v6346, %v6348
  %v6350 = vrot.slane %v6241, 5
  %v6351 = vsel %vm6296, %v6348, %v6350
  %v6352 = vrot.slane %v6242, 5
  %v6353 = vsel %vm6296, %v6350, %v6352
  %v6354 = vrot.slane %v6243, 5
  %v6355 = vsel %vm6296, %v6352, %v6354
  %v6356 = vrot.slane %v6244, 5
  %v6357 = vsel %vm6296, %v6354, %v6356
  %v6358 = vrot.slane %v6245, 5
  %v6359 = vsel %vm6296, %v6356, %v6358
  %v6360 = vrot.slane %v6246, 5
  %v6361 = vsel %vm6296, %v6358, %v6360
  %v6362 = vrot.slane %v6247, 5
  %v6363 = vsel %vm6296, %v6360, %v6362
  %v6364 = vrot.slane %v6248, 5
  %v6365 = vsel %vm6296, %v6362, %v6364
  %v6366 = vrot.slane %v6249, 5
  %v6367 = vsel %vm6296, %v6364, %v6366
  %v6368 = vrot.slane %v6250, 5
  %v6369 = vsel %vm6296, %v6366, %v6368
  %v6370 = vrot.slane %v6251, 5
  %v6371 = vsel %vm6296, %v6368, %v6370
  %v6372 = vrot.slane %v6252, 5
  %v6373 = vsel %vm6296, %v6370, %v6372
  %v6374 = vrot.slane %v6253, 5
  %v6375 = vsel %vm6296, %v6372, %v6374
  %v6376 = vrot.slane %v6254, 5
  %v6377 = vsel %vm6296, %v6374, %v6376
  %v6379 = vshrl.u32 %v5452, 16
  %v6381 = vrot.slane %v6379, 2
  %v6383 = vsel %vm363, %v6299, 0
  %v6386 = vsel %vm363, %v6301, 0
  %v6389 = vsel %vm363, %v6303, 0
  %v6392 = vsel %vm363, %v6305, 0
  %v6395 = vsel %vm363, %v6307, 0
  %v6398 = vsel %vm363, %v6309, 0
  %v6401 = vsel %vm363, %v6311, 0
  %v6404 = vsel %vm363, %v6313, 0
  %v6407 = vsel %vm363, %v6315, 0
  %v6410 = vsel %vm363, %v6317, 0
  %v6413 = vsel %vm363, %v6319, 0
  %v6416 = vsel %vm363, %v6321, 0
  %v6419 = vsel %vm363, %v6323, 0
  %v6422 = vsel %vm363, %v6325, 0
  %v6425 = vsel %vm363, %v6327, 0
  %v6428 = vsel %vm363, %v6329, 0
  %v6431 = vsel %vm363, %v6331, 0
  %v6434 = vsel %vm363, %v6333, 0
  %v6437 = vsel %vm363, %v6335, 0
  %v6440 = vsel %vm363, %v6337, 0
  %v6443 = vsel %vm363, %v6339, 0
  %v6446 = vsel %vm363, %v6341, 0
  %v6449 = vsel %vm363, %v6343, 0
  %v6452 = vsel %vm363, %v6345, 0
  %v6455 = vsel %vm363, %v6347, 0
  %v6458 = vsel %vm363, %v6349, 0
  %v6461 = vsel %vm363, %v6351, 0
  %v6464 = vsel %vm363, %v6353, 0
  %v6467 = vsel %vm363, %v6355, 0
  %v6470 = vsel %vm363, %v6357, 0
  %v6473 = vsel %vm363, %v6359, 0
  %v6476 = vsel %vm363, %v6361, 0
  %v6479 = vsel %vm363, %v6363, 0
  %v6482 = vsel %vm363, %v6365, 0
  %v6485 = vsel %vm363, %v6367, 0
  %v6488 = vsel %vm363, %v6369, 0
  %v6491 = vsel %vm363, %v6371, 0
  %v6494 = vsel %vm363, %v6373, 0
  %v6497 = vsel %vm363, %v6375, 0
  %v6500 = vsel %vm363, %v6377, 0
  %v6503 = vand.u32 %v6381, %v2103
  %6505 = vmatprep.subr.bf16.mxu0 0
  %6506 = vmatpush1.bf16.msra.mxu0 %v6503
  %6507 = vmatprep.subr.bf16.mxu0 0
  %6508 = vmatpush1.bf16.msra.mxu0 0
  %6509 = vmatprep.subr.bf16.mxu0 0
  %6510 = vmatpush1.bf16.msra.mxu0 0
  %6511 = vmatprep.subr.bf16.mxu0 0
  %6512 = vmatpush1.bf16.msra.mxu0 0
  %6513 = vmatprep.subr.bf16.mxu0 0
  %6514 = vmatpush1.bf16.msra.mxu0 0
  %6515 = vmatprep.subr.bf16.mxu0 0
  %6516 = vmatpush1.bf16.msra.mxu0 0
  %6517 = vmatprep.subr.bf16.mxu0 0
  %6518 = vmatpush1.bf16.msra.mxu0 0
  %6519 = vmatprep.subr.bf16.mxu0 0
  %6520 = vmatpush1.bf16.msra.mxu0 0
  %6521 = vmatprep.subr.bf16.mxu0 0
  %6522 = vmatpush1.bf16.msra.mxu0 0
  %6523 = vmatprep.subr.bf16.mxu0 0
  %6524 = vmatpush1.bf16.msra.mxu0 0
  %6525 = vmatprep.subr.bf16.mxu0 0
  %6526 = vmatpush1.bf16.msra.mxu0 0
  %6527 = vmatprep.subr.bf16.mxu0 0
  %6528 = vmatpush1.bf16.msra.mxu0 0
  %6529 = vmatprep.subr.bf16.mxu0 0
  %6530 = vmatpush1.bf16.msra.mxu0 0
  %6531 = vmatprep.subr.bf16.mxu0 0
  %6532 = vmatpush1.bf16.msra.mxu0 0
  %6533 = vmatprep.subr.bf16.mxu0 0
  %6534 = vmatpush1.bf16.msra.mxu0 0
  %6535 = vmatprep.subr.bf16.mxu0 0
  %6536 = vmatpush1.bf16.msra.mxu0 0
  %6537 = vmatprep.mubr.bf16.mxu0 0
  %6538 = vmatmul.mubr.bf16.gmra.mrb[0].mxu0 %v6383
  %v6539 = vpop.f32.mrb[0].mxu0
  %v6540 = vadd.f32 0.0, %v6539
  %v6541 = vpop.f32.mrb[0].mxu0
  %v6542 = vpop.f32.mrb[0].mxu0
  %v6543 = vadd.f32 0.0, %v6542
  %v6544 = vpop.f32.mrb[0].mxu0
  %6545 = vmatprep.mubr.bf16.mxu0 0
  %6546 = vmatmul.mubr.bf16.gmra.mrb[0].mxu0 %v6386
  %v6547 = vpop.f32.mrb[0].mxu0
  %v6548 = vadd.f32 0.0, %v6547
  %v6549 = vpop.f32.mrb[0].mxu0
  %v6550 = vpop.f32.mrb[0].mxu0
  %v6551 = vadd.f32 0.0, %v6550
  %v6552 = vpop.f32.mrb[0].mxu0
  %6553 = vmatprep.mubr.bf16.mxu0 0
  %6554 = vmatmul.mubr.bf16.gmra.mrb[0].mxu0 %v6389
  %v6555 = vpop.f32.mrb[0].mxu0
  %v6556 = vadd.f32 0.0, %v6555
  %v6557 = vpop.f32.mrb[0].mxu0
  %v6558 = vpop.f32.mrb[0].mxu0
  %v6559 = vadd.f32 0.0, %v6558
  %v6560 = vpop.f32.mrb[0].mxu0
  %6561 = vmatprep.mubr.bf16.mxu0 0
  %6562 = vmatmul.mubr.bf16.gmra.mrb[0].mxu0 %v6392
  %v6563 = vpop.f32.mrb[0].mxu0
  %v6564 = vadd.f32 0.0, %v6563
  %v6565 = vpop.f32.mrb[0].mxu0
  %v6566 = vpop.f32.mrb[0].mxu0
  %v6567 = vadd.f32 0.0, %v6566
  %v6568 = vpop.f32.mrb[0].mxu0
  %6569 = vmatprep.mubr.bf16.mxu0 0
  %6570 = vmatmul.mubr.bf16.gmra.mrb[0].mxu0 %v6395
  %v6571 = vpop.f32.mrb[0].mxu0
  %v6572 = vadd.f32 0.0, %v6571
  %v6573 = vpop.f32.mrb[0].mxu0
  %v6574 = vpop.f32.mrb[0].mxu0
  %v6575 = vadd.f32 0.0, %v6574
  %v6576 = vpop.f32.mrb[0].mxu0
  %6577 = vmatprep.mubr.bf16.mxu0 0
  %6578 = vmatmul.mubr.bf16.gmra.mrb[0].mxu0 %v6398
  %v6579 = vpop.f32.mrb[0].mxu0
  %v6580 = vadd.f32 0.0, %v6579
  %v6581 = vpop.f32.mrb[0].mxu0
  %v6582 = vpop.f32.mrb[0].mxu0
  %v6583 = vadd.f32 0.0, %v6582
  %v6584 = vpop.f32.mrb[0].mxu0
  %6585 = vmatprep.mubr.bf16.mxu0 0
  %6586 = vmatmul.mubr.bf16.gmra.mrb[0].mxu0 %v6401
  %v6587 = vpop.f32.mrb[0].mxu0
  %v6588 = vadd.f32 0.0, %v6587
  %v6589 = vpop.f32.mrb[0].mxu0
  %v6590 = vpop.f32.mrb[0].mxu0
  %v6591 = vadd.f32 0.0, %v6590
  %v6592 = vpop.f32.mrb[0].mxu0
  %6593 = vmatprep.mubr.bf16.mxu0 0
  %6594 = vmatmul.mubr.bf16.gmra.mrb[0].mxu0 %v6404
  %v6595 = vpop.f32.mrb[0].mxu0
  %v6596 = vadd.f32 0.0, %v6595
  %v6597 = vpop.f32.mrb[0].mxu0
  %v6598 = vpop.f32.mrb[0].mxu0
  %v6599 = vadd.f32 0.0, %v6598
  %v6600 = vpop.f32.mrb[0].mxu0
  %6601 = vmatprep.mubr.bf16.mxu0 0
  %6602 = vmatmul.mubr.bf16.gmra.mrb[0].mxu0 %v6407
  %v6603 = vpop.f32.mrb[0].mxu0
  %v6604 = vadd.f32 0.0, %v6603
  %v6605 = vpop.f32.mrb[0].mxu0
  %v6606 = vpop.f32.mrb[0].mxu0
  %v6607 = vadd.f32 0.0, %v6606
  %v6608 = vpop.f32.mrb[0].mxu0
  %6609 = vmatprep.mubr.bf16.mxu0 0
  %6610 = vmatmul.mubr.bf16.gmra.mrb[0].mxu0 %v6410
  %v6611 = vpop.f32.mrb[0].mxu0
  %v6612 = vadd.f32 0.0, %v6611
  %v6613 = vpop.f32.mrb[0].mxu0
  %v6614 = vpop.f32.mrb[0].mxu0
  %v6615 = vadd.f32 0.0, %v6614
  %v6616 = vpop.f32.mrb[0].mxu0
  %6617 = vmatprep.mubr.bf16.mxu0 0
  %6618 = vmatmul.mubr.bf16.gmra.mrb[0].mxu0 %v6413
  %v6619 = vpop.f32.mrb[0].mxu0
  %v6620 = vadd.f32 0.0, %v6619
  %v6621 = vpop.f32.mrb[0].mxu0
  %v6622 = vpop.f32.mrb[0].mxu0
  %v6623 = vadd.f32 0.0, %v6622
  %v6624 = vpop.f32.mrb[0].mxu0
  %6625 = vmatprep.mubr.bf16.mxu0 0
  %6626 = vmatmul.mubr.bf16.gmra.mrb[0].mxu0 %v6416
  %v6627 = vpop.f32.mrb[0].mxu0
  %v6628 = vadd.f32 0.0, %v6627
  %v6629 = vpop.f32.mrb[0].mxu0
  %v6630 = vpop.f32.mrb[0].mxu0
  %v6631 = vadd.f32 0.0, %v6630
  %v6632 = vpop.f32.mrb[0].mxu0
  %6633 = vmatprep.mubr.bf16.mxu0 0
  %6634 = vmatmul.mubr.bf16.gmra.mrb[0].mxu0 %v6419
  %v6635 = vpop.f32.mrb[0].mxu0
  %v6636 = vadd.f32 0.0, %v6635
  %v6637 = vpop.f32.mrb[0].mxu0
  %v6638 = vpop.f32.mrb[0].mxu0
  %v6639 = vadd.f32 0.0, %v6638
  %v6640 = vpop.f32.mrb[0].mxu0
  %6641 = vmatprep.mubr.bf16.mxu0 0
  %6642 = vmatmul.mubr.bf16.gmra.mrb[0].mxu0 %v6422
  %v6643 = vpop.f32.mrb[0].mxu0
  %v6644 = vadd.f32 0.0, %v6643
  %v6645 = vpop.f32.mrb[0].mxu0
  %v6646 = vpop.f32.mrb[0].mxu0
  %v6647 = vadd.f32 0.0, %v6646
  %v6648 = vpop.f32.mrb[0].mxu0
  %6649 = vmatprep.mubr.bf16.mxu0 0
  %6650 = vmatmul.mubr.bf16.gmra.mrb[0].mxu0 %v6425
  %v6651 = vpop.f32.mrb[0].mxu0
  %v6652 = vadd.f32 0.0, %v6651
  %v6653 = vpop.f32.mrb[0].mxu0
  %v6654 = vpop.f32.mrb[0].mxu0
  %v6655 = vadd.f32 0.0, %v6654
  %v6656 = vpop.f32.mrb[0].mxu0
  %6657 = vmatprep.mubr.bf16.mxu0 0
  %6658 = vmatmul.mubr.bf16.gmra.mrb[0].mxu0 %v6428
  %v6659 = vpop.f32.mrb[0].mxu0
  %v6660 = vadd.f32 0.0, %v6659
  %v6661 = vpop.f32.mrb[0].mxu0
  %v6662 = vpop.f32.mrb[0].mxu0
  %v6663 = vadd.f32 0.0, %v6662
  %v6664 = vpop.f32.mrb[0].mxu0
  %6665 = vmatprep.mubr.bf16.mxu0 0
  %6666 = vmatmul.mubr.bf16.gmra.mrb[0].mxu0 %v6431
  %v6667 = vpop.f32.mrb[0].mxu0
  %v6668 = vadd.f32 0.0, %v6667
  %v6669 = vpop.f32.mrb[0].mxu0
  %v6670 = vpop.f32.mrb[0].mxu0
  %v6671 = vadd.f32 0.0, %v6670
  %v6672 = vpop.f32.mrb[0].mxu0
  %6673 = vmatprep.mubr.bf16.mxu0 0
  %6674 = vmatmul.mubr.bf16.gmra.mrb[0].mxu0 %v6434
  %v6675 = vpop.f32.mrb[0].mxu0
  %v6676 = vadd.f32 0.0, %v6675
  %v6677 = vpop.f32.mrb[0].mxu0
  %v6678 = vpop.f32.mrb[0].mxu0
  %v6679 = vadd.f32 0.0, %v6678
  %v6680 = vpop.f32.mrb[0].mxu0
  %6681 = vmatprep.mubr.bf16.mxu0 0
  %6682 = vmatmul.mubr.bf16.gmra.mrb[0].mxu0 %v6437
  %v6683 = vpop.f32.mrb[0].mxu0
  %v6684 = vadd.f32 0.0, %v6683
  %v6685 = vpop.f32.mrb[0].mxu0
  %v6686 = vpop.f32.mrb[0].mxu0
  %v6687 = vadd.f32 0.0, %v6686
  %v6688 = vpop.f32.mrb[0].mxu0
  %6689 = vmatprep.mubr.bf16.mxu0 0
  %6690 = vmatmul.mubr.bf16.gmra.mrb[0].mxu0 %v6440
  %v6691 = vpop.f32.mrb[0].mxu0
  %v6692 = vadd.f32 0.0, %v6691
  %v6693 = vpop.f32.mrb[0].mxu0
  %v6694 = vpop.f32.mrb[0].mxu0
  %v6695 = vadd.f32 0.0, %v6694
  %v6696 = vpop.f32.mrb[0].mxu0
  %6697 = vmatprep.mubr.bf16.mxu0 0
  %6698 = vmatmul.mubr.bf16.gmra.mrb[0].mxu0 %v6443
  %v6699 = vpop.f32.mrb[0].mxu0
  %v6700 = vadd.f32 0.0, %v6699
  %v6701 = vpop.f32.mrb[0].mxu0
  %v6702 = vpop.f32.mrb[0].mxu0
  %v6703 = vadd.f32 0.0, %v6702
  %v6704 = vpop.f32.mrb[0].mxu0
  %6705 = vmatprep.mubr.bf16.mxu0 0
  %6706 = vmatmul.mubr.bf16.gmra.mrb[0].mxu0 %v6446
  %v6707 = vpop.f32.mrb[0].mxu0
  %v6708 = vadd.f32 0.0, %v6707
  %v6709 = vpop.f32.mrb[0].mxu0
  %v6710 = vpop.f32.mrb[0].mxu0
  %v6711 = vadd.f32 0.0, %v6710
  %v6712 = vpop.f32.mrb[0].mxu0
  %6713 = vmatprep.mubr.bf16.mxu0 0
  %6714 = vmatmul.mubr.bf16.gmra.mrb[0].mxu0 %v6449
  %v6715 = vpop.f32.mrb[0].mxu0
  %v6716 = vadd.f32 0.0, %v6715
  %v6717 = vpop.f32.mrb[0].mxu0
  %v6718 = vpop.f32.mrb[0].mxu0
  %v6719 = vadd.f32 0.0, %v6718
  %v6720 = vpop.f32.mrb[0].mxu0
  %6721 = vmatprep.mubr.bf16.mxu0 0
  %6722 = vmatmul.mubr.bf16.gmra.mrb[0].mxu0 %v6452
  %v6723 = vpop.f32.mrb[0].mxu0
  %v6724 = vadd.f32 0.0, %v6723
  %v6725 = vpop.f32.mrb[0].mxu0
  %v6726 = vpop.f32.mrb[0].mxu0
  %v6727 = vadd.f32 0.0, %v6726
  %v6728 = vpop.f32.mrb[0].mxu0
  %6729 = vmatprep.mubr.bf16.mxu0 0
  %6730 = vmatmul.mubr.bf16.gmra.mrb[0].mxu0 %v6455
  %v6731 = vpop.f32.mrb[0].mxu0
  %v6732 = vadd.f32 0.0, %v6731
  %v6733 = vpop.f32.mrb[0].mxu0
  %v6734 = vpop.f32.mrb[0].mxu0
  %v6735 = vadd.f32 0.0, %v6734
  %v6736 = vpop.f32.mrb[0].mxu0
  %6737 = vmatprep.mubr.bf16.mxu0 0
  %6738 = vmatmul.mubr.bf16.gmra.mrb[0].mxu0 %v6458
  %v6739 = vpop.f32.mrb[0].mxu0
  %v6740 = vadd.f32 0.0, %v6739
  %v6741 = vpop.f32.mrb[0].mxu0
  %v6742 = vpop.f32.mrb[0].mxu0
  %v6743 = vadd.f32 0.0, %v6742
  %v6744 = vpop.f32.mrb[0].mxu0
  %6745 = vmatprep.mubr.bf16.mxu0 0
  %6746 = vmatmul.mubr.bf16.gmra.mrb[0].mxu0 %v6461
  %v6747 = vpop.f32.mrb[0].mxu0
  %v6748 = vadd.f32 0.0, %v6747
  %v6749 = vpop.f32.mrb[0].mxu0
  %v6750 = vpop.f32.mrb[0].mxu0
  %v6751 = vadd.f32 0.0, %v6750
  %v6752 = vpop.f32.mrb[0].mxu0
  %6753 = vmatprep.mubr.bf16.mxu0 0
  %6754 = vmatmul.mubr.bf16.gmra.mrb[0].mxu0 %v6464
  %v6755 = vpop.f32.mrb[0].mxu0
  %v6756 = vadd.f32 0.0, %v6755
  %v6757 = vpop.f32.mrb[0].mxu0
  %v6758 = vpop.f32.mrb[0].mxu0
  %v6759 = vadd.f32 0.0, %v6758
  %v6760 = vpop.f32.mrb[0].mxu0
  %6761 = vmatprep.mubr.bf16.mxu0 0
  %6762 = vmatmul.mubr.bf16.gmra.mrb[0].mxu0 %v6467
  %v6763 = vpop.f32.mrb[0].mxu0
  %v6764 = vadd.f32 0.0, %v6763
  %v6765 = vpop.f32.mrb[0].mxu0
  %v6766 = vpop.f32.mrb[0].mxu0
  %v6767 = vadd.f32 0.0, %v6766
  %v6768 = vpop.f32.mrb[0].mxu0
  %6769 = vmatprep.mubr.bf16.mxu0 0
  %6770 = vmatmul.mubr.bf16.gmra.mrb[0].mxu0 %v6470
  %v6771 = vpop.f32.mrb[0].mxu0
  %v6772 = vadd.f32 0.0, %v6771
  %v6773 = vpop.f32.mrb[0].mxu0
  %v6774 = vpop.f32.mrb[0].mxu0
  %v6775 = vadd.f32 0.0, %v6774
  %v6776 = vpop.f32.mrb[0].mxu0
  %6777 = vmatprep.mubr.bf16.mxu0 0
  %6778 = vmatmul.mubr.bf16.gmra.mrb[0].mxu0 %v6473
  %v6779 = vpop.f32.mrb[0].mxu0
  %v6780 = vadd.f32 0.0, %v6779
  %v6781 = vpop.f32.mrb[0].mxu0
  %v6782 = vpop.f32.mrb[0].mxu0
  %v6783 = vadd.f32 0.0, %v6782
  %v6784 = vpop.f32.mrb[0].mxu0
  %6785 = vmatprep.mubr.bf16.mxu0 0
  %6786 = vmatmul.mubr.bf16.gmra.mrb[0].mxu0 %v6476
  %v6787 = vpop.f32.mrb[0].mxu0
  %v6788 = vadd.f32 0.0, %v6787
  %v6789 = vpop.f32.mrb[0].mxu0
  %v6790 = vpop.f32.mrb[0].mxu0
  %v6791 = vadd.f32 0.0, %v6790
  %v6792 = vpop.f32.mrb[0].mxu0
  %6793 = vmatprep.mubr.bf16.mxu0 0
  %6794 = vmatmul.mubr.bf16.gmra.mrb[0].mxu0 %v6479
  %v6795 = vpop.f32.mrb[0].mxu0
  %v6796 = vadd.f32 0.0, %v6795
  %v6797 = vpop.f32.mrb[0].mxu0
  %v6798 = vpop.f32.mrb[0].mxu0
  %v6799 = vadd.f32 0.0, %v6798
  %v6800 = vpop.f32.mrb[0].mxu0
  %6801 = vmatprep.mubr.bf16.mxu0 0
  %6802 = vmatmul.mubr.bf16.gmra.mrb[0].mxu0 %v6482
  %v6803 = vpop.f32.mrb[0].mxu0
  %v6804 = vadd.f32 0.0, %v6803
  %v6805 = vpop.f32.mrb[0].mxu0
  %v6806 = vpop.f32.mrb[0].mxu0
  %v6807 = vadd.f32 0.0, %v6806
  %v6808 = vpop.f32.mrb[0].mxu0
  %6809 = vmatprep.mubr.bf16.mxu0 0
  %6810 = vmatmul.mubr.bf16.gmra.mrb[0].mxu0 %v6485
  %v6811 = vpop.f32.mrb[0].mxu0
  %v6812 = vadd.f32 0.0, %v6811
  %v6813 = vpop.f32.mrb[0].mxu0
  %v6814 = vpop.f32.mrb[0].mxu0
  %v6815 = vadd.f32 0.0, %v6814
  %v6816 = vpop.f32.mrb[0].mxu0
  %6817 = vmatprep.mubr.bf16.mxu0 0
  %6818 = vmatmul.mubr.bf16.gmra.mrb[0].mxu0 %v6488
  %v6819 = vpop.f32.mrb[0].mxu0
  %v6820 = vadd.f32 0.0, %v6819
  %v6821 = vpop.f32.mrb[0].mxu0
  %v6822 = vpop.f32.mrb[0].mxu0
  %v6823 = vadd.f32 0.0, %v6822
  %v6824 = vpop.f32.mrb[0].mxu0
  %6825 = vmatprep.mubr.bf16.mxu0 0
  %6826 = vmatmul.mubr.bf16.gmra.mrb[0].mxu0 %v6491
  %v6827 = vpop.f32.mrb[0].mxu0
  %v6828 = vadd.f32 0.0, %v6827
  %v6829 = vpop.f32.mrb[0].mxu0
  %v6830 = vpop.f32.mrb[0].mxu0
  %v6831 = vadd.f32 0.0, %v6830
  %v6832 = vpop.f32.mrb[0].mxu0
  %6833 = vmatprep.mubr.bf16.mxu0 0
  %6834 = vmatmul.mubr.bf16.gmra.mrb[0].mxu0 %v6494
  %v6835 = vpop.f32.mrb[0].mxu0
  %v6836 = vadd.f32 0.0, %v6835
  %v6837 = vpop.f32.mrb[0].mxu0
  %v6838 = vpop.f32.mrb[0].mxu0
  %v6839 = vadd.f32 0.0, %v6838
  %v6840 = vpop.f32.mrb[0].mxu0
  %6841 = vmatprep.mubr.bf16.mxu0 0
  %6842 = vmatmul.mubr.bf16.gmra.mrb[0].mxu0 %v6497
  %v6843 = vpop.f32.mrb[0].mxu0
  %v6844 = vadd.f32 0.0, %v6843
  %v6845 = vpop.f32.mrb[0].mxu0
  %v6846 = vpop.f32.mrb[0].mxu0
  %v6847 = vadd.f32 0.0, %v6846
  %v6848 = vpop.f32.mrb[0].mxu0
  %6849 = vmatprep.mubr.bf16.mxu0 0
  %6850 = vmatmul.mubr.bf16.gmra.mrb[0].mxu0 %v6500
  %v6851 = vpop.f32.mrb[0].mxu0
  %v6852 = vadd.f32 0.0, %v6851
  %v6853 = vpop.f32.mrb[0].mxu0
  %v6854 = vpop.f32.mrb[0].mxu0
  %v6855 = vadd.f32 0.0, %v6854
  %v6856 = vpop.f32.mrb[0].mxu0
  %6857 = vdwg.mxu0
  %v6858 = vadd.f32 %v5930, %v6540
  %v6859 = vadd.f32 %v5931, %v6543
  %v6860 = vadd.f32 %v5932, %v6548
  %v6861 = vadd.f32 %v5933, %v6551
  %v6862 = vadd.f32 %v5934, %v6556
  %v6863 = vadd.f32 %v5935, %v6559
  %v6864 = vadd.f32 %v5936, %v6564
  %v6865 = vadd.f32 %v5937, %v6567
  %v6866 = vadd.f32 %v5938, %v6572
  %v6867 = vadd.f32 %v5939, %v6575
  %v6868 = vadd.f32 %v5940, %v6580
  %v6869 = vadd.f32 %v5941, %v6583
  %v6870 = vadd.f32 %v5942, %v6588
  %v6871 = vadd.f32 %v5943, %v6591
  %v6872 = vadd.f32 %v5944, %v6596
  %v6873 = vadd.f32 %v5945, %v6599
  %v6874 = vadd.f32 %v5946, %v6604
  %v6875 = vadd.f32 %v5947, %v6607
  %v6876 = vadd.f32 %v5948, %v6612
  %v6877 = vadd.f32 %v5949, %v6615
  %v6878 = vadd.f32 %v5950, %v6620
  %v6879 = vadd.f32 %v5951, %v6623
  %v6880 = vadd.f32 %v5952, %v6628
  %v6881 = vadd.f32 %v5953, %v6631
  %v6882 = vadd.f32 %v5954, %v6636
  %v6883 = vadd.f32 %v5955, %v6639
  %v6884 = vadd.f32 %v5956, %v6644
  %v6885 = vadd.f32 %v5957, %v6647
  %v6886 = vadd.f32 %v5958, %v6652
  %v6887 = vadd.f32 %v5959, %v6655
  %v6888 = vadd.f32 %v5960, %v6660
  %v6889 = vadd.f32 %v5961, %v6663
  %v6890 = vadd.f32 %v5962, %v6668
  %v6891 = vadd.f32 %v5963, %v6671
  %v6892 = vadd.f32 %v5964, %v6676
  %v6893 = vadd.f32 %v5965, %v6679
  %v6894 = vadd.f32 %v5966, %v6684
  %v6895 = vadd.f32 %v5967, %v6687
  %v6896 = vadd.f32 %v5968, %v6692
  %v6897 = vadd.f32 %v5969, %v6695
  %v6898 = vadd.f32 %v5970, %v6700
  %v6899 = vadd.f32 %v5971, %v6703
  %v6900 = vadd.f32 %v5972, %v6708
  %v6901 = vadd.f32 %v5973, %v6711
  %v6902 = vadd.f32 %v5974, %v6716
  %v6903 = vadd.f32 %v5975, %v6719
  %v6904 = vadd.f32 %v5976, %v6724
  %v6905 = vadd.f32 %v5977, %v6727
  %v6906 = vadd.f32 %v5978, %v6732
  %v6907 = vadd.f32 %v5979, %v6735
  %v6908 = vadd.f32 %v5980, %v6740
  %v6909 = vadd.f32 %v5981, %v6743
  %v6910 = vadd.f32 %v5982, %v6748
  %v6911 = vadd.f32 %v5983, %v6751
  %v6912 = vadd.f32 %v5984, %v6756
  %v6913 = vadd.f32 %v5985, %v6759
  %v6914 = vadd.f32 %v5986, %v6764
  %v6915 = vadd.f32 %v5987, %v6767
  %v6916 = vadd.f32 %v5988, %v6772
  %v6917 = vadd.f32 %v5989, %v6775
  %v6918 = vadd.f32 %v5990, %v6780
  %v6919 = vadd.f32 %v5991, %v6783
  %v6920 = vadd.f32 %v5992, %v6788
  %v6921 = vadd.f32 %v5993, %v6791
  %v6922 = vadd.f32 %v5994, %v6796
  %v6923 = vadd.f32 %v5995, %v6799
  %v6924 = vadd.f32 %v5996, %v6804
  %v6925 = vadd.f32 %v5997, %v6807
  %v6926 = vadd.f32 %v5998, %v6812
  %v6927 = vadd.f32 %v5999, %v6815
  %v6928 = vadd.f32 %v6000, %v6820
  %v6929 = vadd.f32 %v6001, %v6823
  %v6930 = vadd.f32 %v6002, %v6828
  %v6931 = vadd.f32 %v6003, %v6831
  %v6932 = vadd.f32 %v6004, %v6836
  %v6933 = vadd.f32 %v6005, %v6839
  %v6934 = vadd.f32 %v6006, %v6844
  %v6935 = vadd.f32 %v6007, %v6847
  %v6936 = vadd.f32 %v6008, %v6852
  %v6937 = vadd.f32 %v6009, %v6855
  %v6938 = vld [vmem:[#allocation2 + $0x140] sm:$0xff]
  %6939 = vrot.lane.b32.xlu0 %v1044, 122
  %v6940 = vpop.permute.xlu0 %6939
  %6941 = vrot.lane.b32.xlu0 %v1045, 122
  %v6942 = vpop.permute.xlu0 %6941
  %6943 = vrot.lane.b32.xlu0 %v1046, 122
  %v6944 = vpop.permute.xlu0 %6943
  %6945 = vrot.lane.b32.xlu0 %v1047, 122
  %v6946 = vpop.permute.xlu0 %6945
  %6947 = vrot.lane.b32.xlu0 %v1048, 122
  %v6948 = vpop.permute.xlu0 %6947
  %6949 = vrot.lane.b32.xlu0 %v1049, 122
  %v6950 = vpop.permute.xlu0 %6949
  %6951 = vrot.lane.b32.xlu0 %v1050, 122
  %v6952 = vpop.permute.xlu0 %6951
  %6953 = vrot.lane.b32.xlu0 %v1051, 122
  %v6954 = vpop.permute.xlu0 %6953
  %6955 = vrot.lane.b32.xlu0 %v1052, 122
  %v6956 = vpop.permute.xlu0 %6955
  %6957 = vrot.lane.b32.xlu0 %v1053, 122
  %v6958 = vpop.permute.xlu0 %6957
  %6959 = vrot.lane.b32.xlu0 %v1054, 122
  %v6960 = vpop.permute.xlu0 %6959
  %6961 = vrot.lane.b32.xlu0 %v1055, 122
  %v6962 = vpop.permute.xlu0 %6961
  %6963 = vrot.lane.b32.xlu0 %v1056, 122
  %v6964 = vpop.permute.xlu0 %6963
  %6965 = vrot.lane.b32.xlu0 %v1057, 122
  %v6966 = vpop.permute.xlu0 %6965
  %6967 = vrot.lane.b32.xlu0 %v1058, 122
  %v6968 = vpop.permute.xlu0 %6967
  %6969 = vrot.lane.b32.xlu0 %v1059, 122
  %v6970 = vpop.permute.xlu0 %6969
  %6971 = vrot.lane.b32.xlu0 %v1060, 122
  %v6972 = vpop.permute.xlu0 %6971
  %6973 = vrot.lane.b32.xlu0 %v1061, 122
  %v6974 = vpop.permute.xlu0 %6973
  %6975 = vrot.lane.b32.xlu0 %v1062, 122
  %v6976 = vpop.permute.xlu0 %6975
  %6977 = vrot.lane.b32.xlu0 %v1063, 122
  %v6978 = vpop.permute.xlu0 %6977
  %6979 = vrot.lane.b32.xlu0 %v1064, 122
  %v6980 = vpop.permute.xlu0 %6979
  %6981 = vrot.lane.b32.xlu0 %v1065, 122
  %v6982 = vpop.permute.xlu0 %6981
  %6983 = vrot.lane.b32.xlu0 %v1066, 122
  %v6984 = vpop.permute.xlu0 %6983
  %6985 = vrot.lane.b32.xlu0 %v1067, 122
  %v6986 = vpop.permute.xlu0 %6985
  %6987 = vrot.lane.b32.xlu0 %v1068, 122
  %v6988 = vpop.permute.xlu0 %6987
  %6989 = vrot.lane.b32.xlu0 %v1069, 122
  %v6990 = vpop.permute.xlu0 %6989
  %6991 = vrot.lane.b32.xlu0 %v1070, 122
  %v6992 = vpop.permute.xlu0 %6991
  %6993 = vrot.lane.b32.xlu0 %v1071, 122
  %v6994 = vpop.permute.xlu0 %6993
  %6995 = vrot.lane.b32.xlu0 %v1072, 122
  %v6996 = vpop.permute.xlu0 %6995
  %6997 = vrot.lane.b32.xlu0 %v1073, 122
  %v6998 = vpop.permute.xlu0 %6997
  %6999 = vrot.lane.b32.xlu0 %v1074, 122
  %v7000 = vpop.permute.xlu0 %6999
  %7001 = vrot.lane.b32.xlu0 %v1075, 122
  %v7002 = vpop.permute.xlu0 %7001
  %7003 = vrot.lane.b32.xlu0 %v1076, 122
  %v7004 = vpop.permute.xlu0 %7003
  %7005 = vrot.lane.b32.xlu0 %v1077, 122
  %v7006 = vpop.permute.xlu0 %7005
  %7007 = vrot.lane.b32.xlu0 %v1078, 122
  %v7008 = vpop.permute.xlu0 %7007
  %7009 = vrot.lane.b32.xlu0 %v1079, 122
  %v7010 = vpop.permute.xlu0 %7009
  %7011 = vrot.lane.b32.xlu0 %v1080, 122
  %v7012 = vpop.permute.xlu0 %7011
  %7013 = vrot.lane.b32.xlu0 %v1081, 122
  %v7014 = vpop.permute.xlu0 %7013
  %7015 = vrot.lane.b32.xlu0 %v1082, 122
  %v7016 = vpop.permute.xlu0 %7015
  %7017 = vrot.lane.b32.xlu0 %v1083, 122
  %v7018 = vpop.permute.xlu0 %7017
  %v7059 = vmul.bf16 %v845, %v6940
  %v7060 = vmul.bf16 %v846, %v6942
  %v7061 = vmul.bf16 %v847, %v6944
  %v7062 = vmul.bf16 %v848, %v6946
  %v7063 = vmul.bf16 %v849, %v6948
  %v7064 = vmul.bf16 %v850, %v6950
  %v7065 = vmul.bf16 %v851, %v6952
  %v7066 = vmul.bf16 %v852, %v6954
  %v7067 = vmul.bf16 %v853, %v6956
  %v7068 = vmul.bf16 %v854, %v6958
  %v7069 = vmul.bf16 %v855, %v6960
  %v7070 = vmul.bf16 %v856, %v6962
  %v7071 = vmul.bf16 %v857, %v6964
  %v7072 = vmul.bf16 %v858, %v6966
  %v7073 = vmul.bf16 %v859, %v6968
  %v7074 = vmul.bf16 %v860, %v6970
  %v7075 = vmul.bf16 %v861, %v6972
  %v7076 = vmul.bf16 %v862, %v6974
  %v7077 = vmul.bf16 %v863, %v6976
  %v7078 = vmul.bf16 %v864, %v6978
  %v7079 = vmul.bf16 %v865, %v6980
  %v7080 = vmul.bf16 %v866, %v6982
  %v7081 = vmul.bf16 %v867, %v6984
  %v7082 = vmul.bf16 %v868, %v6986
  %v7083 = vmul.bf16 %v869, %v6988
  %v7084 = vmul.bf16 %v870, %v6990
  %v7085 = vmul.bf16 %v871, %v6992
  %v7086 = vmul.bf16 %v872, %v6994
  %v7087 = vmul.bf16 %v873, %v6996
  %v7088 = vmul.bf16 %v874, %v6998
  %v7089 = vmul.bf16 %v875, %v7000
  %v7090 = vmul.bf16 %v876, %v7002
  %v7091 = vmul.bf16 %v877, %v7004
  %v7092 = vmul.bf16 %v878, %v7006
  %v7093 = vmul.bf16 %v879, %v7008
  %v7094 = vmul.bf16 %v880, %v7010
  %v7095 = vmul.bf16 %v881, %v7012
  %v7096 = vmul.bf16 %v882, %v7014
  %v7097 = vmul.bf16 %v883, %v7016
  %v7098 = vmul.bf16 %v6938, %v7018
  %v7099 = vld [vmem:[%s3] sm:$0x8]
  %v7101 = vunpack.c.l.b16 %v7099
  %v7102 = vpack.c.b16 %v7101, %v7101
  %v7103 = vrot.slane %v7102, 3
  %v7105 = vsel %vm363, %v7059, 0
  %v7108 = vsel %vm363, %v7060, 0
  %v7111 = vsel %vm363, %v7061, 0
  %v7114 = vsel %vm363, %v7062, 0
  %v7117 = vsel %vm363, %v7063, 0
  %v7120 = vsel %vm363, %v7064, 0
  %v7123 = vsel %vm363, %v7065, 0
  %v7126 = vsel %vm363, %v7066, 0
  %v7129 = vsel %vm363, %v7067, 0
  %v7132 = vsel %vm363, %v7068, 0
  %v7135 = vsel %vm363, %v7069, 0
  %v7138 = vsel %vm363, %v7070, 0
  %v7141 = vsel %vm363, %v7071, 0
  %v7144 = vsel %vm363, %v7072, 0
  %v7147 = vsel %vm363, %v7073, 0
  %v7150 = vsel %vm363, %v7074, 0
  %v7153 = vsel %vm363, %v7075, 0
  %v7156 = vsel %vm363, %v7076, 0
  %v7159 = vsel %vm363, %v7077, 0
  %v7162 = vsel %vm363, %v7078, 0
  %v7165 = vsel %vm363, %v7079, 0
  %v7168 = vsel %vm363, %v7080, 0
  %v7171 = vsel %vm363, %v7081, 0
  %v7174 = vsel %vm363, %v7082, 0
  %v7177 = vsel %vm363, %v7083, 0
  %v7180 = vsel %vm363, %v7084, 0
  %v7183 = vsel %vm363, %v7085, 0
  %v7186 = vsel %vm363, %v7086, 0
  %v7189 = vsel %vm363, %v7087, 0
  %v7192 = vsel %vm363, %v7088, 0
  %v7195 = vsel %vm363, %v7089, 0
  %v7198 = vsel %vm363, %v7090, 0
  %v7201 = vsel %vm363, %v7091, 0
  %v7204 = vsel %vm363, %v7092, 0
  %v7207 = vsel %vm363, %v7093, 0
  %v7210 = vsel %vm363, %v7094, 0
  %v7213 = vsel %vm363, %v7095, 0
  %v7216 = vsel %vm363, %v7096, 0
  %v7219 = vsel %vm363, %v7097, 0
  %v7222 = vsel %vm363, %v7098, 0
  %v7225 = vand.u32 %v7103, %v2103
  %7227 = vmatprep.subr.bf16.mxu0 0
  %7228 = vmatpush1.bf16.msra.mxu0 %v7225
  %7229 = vmatprep.subr.bf16.mxu0 0
  %7230 = vmatpush1.bf16.msra.mxu0 0
  %7231 = vmatprep.subr.bf16.mxu0 0
  %7232 = vmatpush1.bf16.msra.mxu0 0
  %7233 = vmatprep.subr.bf16.mxu0 0
  %7234 = vmatpush1.bf16.msra.mxu0 0
  %7235 = vmatprep.subr.bf16.mxu0 0
  %7236 = vmatpush1.bf16.msra.mxu0 0
  %7237 = vmatprep.subr.bf16.mxu0 0
  %7238 = vmatpush1.bf16.msra.mxu0 0
  %7239 = vmatprep.subr.bf16.mxu0 0
  %7240 = vmatpush1.bf16.msra.mxu0 0
  %7241 = vmatprep.subr.bf16.mxu0 0
  %7242 = vmatpush1.bf16.msra.mxu0 0
  %7243 = vmatprep.subr.bf16.mxu0 0
  %7244 = vmatpush1.bf16.msra.mxu0 0
  %7245 = vmatprep.subr.bf16.mxu0 0
  %7246 = vmatpush1.bf16.msra.mxu0 0
  %7247 = vmatprep.subr.bf16.mxu0 0
  %7248 = vmatpush1.bf16.msra.mxu0 0
  %7249 = vmatprep.subr.bf16.mxu0 0
  %7250 = vmatpush1.bf16.msra.mxu0 0
  %7251 = vmatprep.subr.bf16.mxu0 0
  %7252 = vmatpush1.bf16.msra.mxu0 0
  %7253 = vmatprep.subr.bf16.mxu0 0
  %7254 = vmatpush1.bf16.msra.mxu0 0
  %7255 = vmatprep.subr.bf16.mxu0 0
  %7256 = vmatpush1.bf16.msra.mxu0 0
  %7257 = vmatprep.subr.bf16.mxu0 0
  %7258 = vmatpush1.bf16.msra.mxu0 0
  %7259 = vmatprep.mubr.bf16.mxu0 0
  %7260 = vmatmul.mubr.bf16.gmra.mrb[0].mxu0 %v7105
  %v7261 = vpop.f32.mrb[0].mxu0
  %v7262 = vadd.f32 0.0, %v7261
  %v7263 = vpop.f32.mrb[0].mxu0
  %v7264 = vpop.f32.mrb[0].mxu0
  %v7265 = vadd.f32 0.0, %v7264
  %v7266 = vpop.f32.mrb[0].mxu0
  %7267 = vmatprep.mubr.bf16.mxu0 0
  %7268 = vmatmul.mubr.bf16.gmra.mrb[0].mxu0 %v7108
  %v7269 = vpop.f32.mrb[0].mxu0
  %v7270 = vadd.f32 0.0, %v7269
  %v7271 = vpop.f32.mrb[0].mxu0
  %v7272 = vpop.f32.mrb[0].mxu0
  %v7273 = vadd.f32 0.0, %v7272
  %v7274 = vpop.f32.mrb[0].mxu0
  %7275 = vmatprep.mubr.bf16.mxu0 0
  %7276 = vmatmul.mubr.bf16.gmra.mrb[0].mxu0 %v7111
  %v7277 = vpop.f32.mrb[0].mxu0
  %v7278 = vadd.f32 0.0, %v7277
  %v7279 = vpop.f32.mrb[0].mxu0
  %v7280 = vpop.f32.mrb[0].mxu0
  %v7281 = vadd.f32 0.0, %v7280
  %v7282 = vpop.f32.mrb[0].mxu0
  %7283 = vmatprep.mubr.bf16.mxu0 0
  %7284 = vmatmul.mubr.bf16.gmra.mrb[0].mxu0 %v7114
  %v7285 = vpop.f32.mrb[0].mxu0
  %v7286 = vadd.f32 0.0, %v7285
  %v7287 = vpop.f32.mrb[0].mxu0
  %v7288 = vpop.f32.mrb[0].mxu0
  %v7289 = vadd.f32 0.0, %v7288
  %v7290 = vpop.f32.mrb[0].mxu0
  %7291 = vmatprep.mubr.bf16.mxu0 0
  %7292 = vmatmul.mubr.bf16.gmra.mrb[0].mxu0 %v7117
  %v7293 = vpop.f32.mrb[0].mxu0
  %v7294 = vadd.f32 0.0, %v7293
  %v7295 = vpop.f32.mrb[0].mxu0
  %v7296 = vpop.f32.mrb[0].mxu0
  %v7297 = vadd.f32 0.0, %v7296
  %v7298 = vpop.f32.mrb[0].mxu0
  %7299 = vmatprep.mubr.bf16.mxu0 0
  %7300 = vmatmul.mubr.bf16.gmra.mrb[0].mxu0 %v7120
  %v7301 = vpop.f32.mrb[0].mxu0
  %v7302 = vadd.f32 0.0, %v7301
  %v7303 = vpop.f32.mrb[0].mxu0
  %v7304 = vpop.f32.mrb[0].mxu0
  %v7305 = vadd.f32 0.0, %v7304
  %v7306 = vpop.f32.mrb[0].mxu0
  %7307 = vmatprep.mubr.bf16.mxu0 0
  %7308 = vmatmul.mubr.bf16.gmra.mrb[0].mxu0 %v7123
  %v7309 = vpop.f32.mrb[0].mxu0
  %v7310 = vadd.f32 0.0, %v7309
  %v7311 = vpop.f32.mrb[0].mxu0
  %v7312 = vpop.f32.mrb[0].mxu0
  %v7313 = vadd.f32 0.0, %v7312
  %v7314 = vpop.f32.mrb[0].mxu0
  %7315 = vmatprep.mubr.bf16.mxu0 0
  %7316 = vmatmul.mubr.bf16.gmra.mrb[0].mxu0 %v7126
  %v7317 = vpop.f32.mrb[0].mxu0
  %v7318 = vadd.f32 0.0, %v7317
  %v7319 = vpop.f32.mrb[0].mxu0
  %v7320 = vpop.f32.mrb[0].mxu0
  %v7321 = vadd.f32 0.0, %v7320
  %v7322 = vpop.f32.mrb[0].mxu0
  %7323 = vmatprep.mubr.bf16.mxu0 0
  %7324 = vmatmul.mubr.bf16.gmra.mrb[0].mxu0 %v7129
  %v7325 = vpop.f32.mrb[0].mxu0
  %v7326 = vadd.f32 0.0, %v7325
  %v7327 = vpop.f32.mrb[0].mxu0
  %v7328 = vpop.f32.mrb[0].mxu0
  %v7329 = vadd.f32 0.0, %v7328
  %v7330 = vpop.f32.mrb[0].mxu0
  %7331 = vmatprep.mubr.bf16.mxu0 0
  %7332 = vmatmul.mubr.bf16.gmra.mrb[0].mxu0 %v7132
  %v7333 = vpop.f32.mrb[0].mxu0
  %v7334 = vadd.f32 0.0, %v7333
  %v7335 = vpop.f32.mrb[0].mxu0
  %v7336 = vpop.f32.mrb[0].mxu0
  %v7337 = vadd.f32 0.0, %v7336
  %v7338 = vpop.f32.mrb[0].mxu0
  %7339 = vmatprep.mubr.bf16.mxu0 0
  %7340 = vmatmul.mubr.bf16.gmra.mrb[0].mxu0 %v7135
  %v7341 = vpop.f32.mrb[0].mxu0
  %v7342 = vadd.f32 0.0, %v7341
  %v7343 = vpop.f32.mrb[0].mxu0
  %v7344 = vpop.f32.mrb[0].mxu0
  %v7345 = vadd.f32 0.0, %v7344
  %v7346 = vpop.f32.mrb[0].mxu0
  %7347 = vmatprep.mubr.bf16.mxu0 0
  %7348 = vmatmul.mubr.bf16.gmra.mrb[0].mxu0 %v7138
  %v7349 = vpop.f32.mrb[0].mxu0
  %v7350 = vadd.f32 0.0, %v7349
  %v7351 = vpop.f32.mrb[0].mxu0
  %v7352 = vpop.f32.mrb[0].mxu0
  %v7353 = vadd.f32 0.0, %v7352
  %v7354 = vpop.f32.mrb[0].mxu0
  %7355 = vmatprep.mubr.bf16.mxu0 0
  %7356 = vmatmul.mubr.bf16.gmra.mrb[0].mxu0 %v7141
  %v7357 = vpop.f32.mrb[0].mxu0
  %v7358 = vadd.f32 0.0, %v7357
  %v7359 = vpop.f32.mrb[0].mxu0
  %v7360 = vpop.f32.mrb[0].mxu0
  %v7361 = vadd.f32 0.0, %v7360
  %v7362 = vpop.f32.mrb[0].mxu0
  %7363 = vmatprep.mubr.bf16.mxu0 0
  %7364 = vmatmul.mubr.bf16.gmra.mrb[0].mxu0 %v7144
  %v7365 = vpop.f32.mrb[0].mxu0
  %v7366 = vadd.f32 0.0, %v7365
  %v7367 = vpop.f32.mrb[0].mxu0
  %v7368 = vpop.f32.mrb[0].mxu0
  %v7369 = vadd.f32 0.0, %v7368
  %v7370 = vpop.f32.mrb[0].mxu0
  %7371 = vmatprep.mubr.bf16.mxu0 0
  %7372 = vmatmul.mubr.bf16.gmra.mrb[0].mxu0 %v7147
  %v7373 = vpop.f32.mrb[0].mxu0
  %v7374 = vadd.f32 0.0, %v7373
  %v7375 = vpop.f32.mrb[0].mxu0
  %v7376 = vpop.f32.mrb[0].mxu0
  %v7377 = vadd.f32 0.0, %v7376
  %v7378 = vpop.f32.mrb[0].mxu0
  %7379 = vmatprep.mubr.bf16.mxu0 0
  %7380 = vmatmul.mubr.bf16.gmra.mrb[0].mxu0 %v7150
  %v7381 = vpop.f32.mrb[0].mxu0
  %v7382 = vadd.f32 0.0, %v7381
  %v7383 = vpop.f32.mrb[0].mxu0
  %v7384 = vpop.f32.mrb[0].mxu0
  %v7385 = vadd.f32 0.0, %v7384
  %v7386 = vpop.f32.mrb[0].mxu0
  %7387 = vmatprep.mubr.bf16.mxu0 0
  %7388 = vmatmul.mubr.bf16.gmra.mrb[0].mxu0 %v7153
  %v7389 = vpop.f32.mrb[0].mxu0
  %v7390 = vadd.f32 0.0, %v7389
  %v7391 = vpop.f32.mrb[0].mxu0
  %v7392 = vpop.f32.mrb[0].mxu0
  %v7393 = vadd.f32 0.0, %v7392
  %v7394 = vpop.f32.mrb[0].mxu0
  %7395 = vmatprep.mubr.bf16.mxu0 0
  %7396 = vmatmul.mubr.bf16.gmra.mrb[0].mxu0 %v7156
  %v7397 = vpop.f32.mrb[0].mxu0
  %v7398 = vadd.f32 0.0, %v7397
  %v7399 = vpop.f32.mrb[0].mxu0
  %v7400 = vpop.f32.mrb[0].mxu0
  %v7401 = vadd.f32 0.0, %v7400
  %v7402 = vpop.f32.mrb[0].mxu0
  %7403 = vmatprep.mubr.bf16.mxu0 0
  %7404 = vmatmul.mubr.bf16.gmra.mrb[0].mxu0 %v7159
  %v7405 = vpop.f32.mrb[0].mxu0
  %v7406 = vadd.f32 0.0, %v7405
  %v7407 = vpop.f32.mrb[0].mxu0
  %v7408 = vpop.f32.mrb[0].mxu0
  %v7409 = vadd.f32 0.0, %v7408
  %v7410 = vpop.f32.mrb[0].mxu0
  %7411 = vmatprep.mubr.bf16.mxu0 0
  %7412 = vmatmul.mubr.bf16.gmra.mrb[0].mxu0 %v7162
  %v7413 = vpop.f32.mrb[0].mxu0
  %v7414 = vadd.f32 0.0, %v7413
  %v7415 = vpop.f32.mrb[0].mxu0
  %v7416 = vpop.f32.mrb[0].mxu0
  %v7417 = vadd.f32 0.0, %v7416
  %v7418 = vpop.f32.mrb[0].mxu0
  %7419 = vmatprep.mubr.bf16.mxu0 0
  %7420 = vmatmul.mubr.bf16.gmra.mrb[0].mxu0 %v7165
  %v7421 = vpop.f32.mrb[0].mxu0
  %v7422 = vadd.f32 0.0, %v7421
  %v7423 = vpop.f32.mrb[0].mxu0
  %v7424 = vpop.f32.mrb[0].mxu0
  %v7425 = vadd.f32 0.0, %v7424
  %v7426 = vpop.f32.mrb[0].mxu0
  %7427 = vmatprep.mubr.bf16.mxu0 0
  %7428 = vmatmul.mubr.bf16.gmra.mrb[0].mxu0 %v7168
  %v7429 = vpop.f32.mrb[0].mxu0
  %v7430 = vadd.f32 0.0, %v7429
  %v7431 = vpop.f32.mrb[0].mxu0
  %v7432 = vpop.f32.mrb[0].mxu0
  %v7433 = vadd.f32 0.0, %v7432
  %v7434 = vpop.f32.mrb[0].mxu0
  %7435 = vmatprep.mubr.bf16.mxu0 0
  %7436 = vmatmul.mubr.bf16.gmra.mrb[0].mxu0 %v7171
  %v7437 = vpop.f32.mrb[0].mxu0
  %v7438 = vadd.f32 0.0, %v7437
  %v7439 = vpop.f32.mrb[0].mxu0
  %v7440 = vpop.f32.mrb[0].mxu0
  %v7441 = vadd.f32 0.0, %v7440
  %v7442 = vpop.f32.mrb[0].mxu0
  %7443 = vmatprep.mubr.bf16.mxu0 0
  %7444 = vmatmul.mubr.bf16.gmra.mrb[0].mxu0 %v7174
  %v7445 = vpop.f32.mrb[0].mxu0
  %v7446 = vadd.f32 0.0, %v7445
  %v7447 = vpop.f32.mrb[0].mxu0
  %v7448 = vpop.f32.mrb[0].mxu0
  %v7449 = vadd.f32 0.0, %v7448
  %v7450 = vpop.f32.mrb[0].mxu0
  %7451 = vmatprep.mubr.bf16.mxu0 0
  %7452 = vmatmul.mubr.bf16.gmra.mrb[0].mxu0 %v7177
  %v7453 = vpop.f32.mrb[0].mxu0
  %v7454 = vadd.f32 0.0, %v7453
  %v7455 = vpop.f32.mrb[0].mxu0
  %v7456 = vpop.f32.mrb[0].mxu0
  %v7457 = vadd.f32 0.0, %v7456
  %v7458 = vpop.f32.mrb[0].mxu0
  %7459 = vmatprep.mubr.bf16.mxu0 0
  %7460 = vmatmul.mubr.bf16.gmra.mrb[0].mxu0 %v7180
  %v7461 = vpop.f32.mrb[0].mxu0
  %v7462 = vadd.f32 0.0, %v7461
  %v7463 = vpop.f32.mrb[0].mxu0
  %v7464 = vpop.f32.mrb[0].mxu0
  %v7465 = vadd.f32 0.0, %v7464
  %v7466 = vpop.f32.mrb[0].mxu0
  %7467 = vmatprep.mubr.bf16.mxu0 0
  %7468 = vmatmul.mubr.bf16.gmra.mrb[0].mxu0 %v7183
  %v7469 = vpop.f32.mrb[0].mxu0
  %v7470 = vadd.f32 0.0, %v7469
  %v7471 = vpop.f32.mrb[0].mxu0
  %v7472 = vpop.f32.mrb[0].mxu0
  %v7473 = vadd.f32 0.0, %v7472
  %v7474 = vpop.f32.mrb[0].mxu0
  %7475 = vmatprep.mubr.bf16.mxu0 0
  %7476 = vmatmul.mubr.bf16.gmra.mrb[0].mxu0 %v7186
  %v7477 = vpop.f32.mrb[0].mxu0
  %v7478 = vadd.f32 0.0, %v7477
  %v7479 = vpop.f32.mrb[0].mxu0
  %v7480 = vpop.f32.mrb[0].mxu0
  %v7481 = vadd.f32 0.0, %v7480
  %v7482 = vpop.f32.mrb[0].mxu0
  %7483 = vmatprep.mubr.bf16.mxu0 0
  %7484 = vmatmul.mubr.bf16.gmra.mrb[0].mxu0 %v7189
  %v7485 = vpop.f32.mrb[0].mxu0
  %v7486 = vadd.f32 0.0, %v7485
  %v7487 = vpop.f32.mrb[0].mxu0
  %v7488 = vpop.f32.mrb[0].mxu0
  %v7489 = vadd.f32 0.0, %v7488
  %v7490 = vpop.f32.mrb[0].mxu0
  %7491 = vmatprep.mubr.bf16.mxu0 0
  %7492 = vmatmul.mubr.bf16.gmra.mrb[0].mxu0 %v7192
  %v7493 = vpop.f32.mrb[0].mxu0
  %v7494 = vadd.f32 0.0, %v7493
  %v7495 = vpop.f32.mrb[0].mxu0
  %v7496 = vpop.f32.mrb[0].mxu0
  %v7497 = vadd.f32 0.0, %v7496
  %v7498 = vpop.f32.mrb[0].mxu0
  %7499 = vmatprep.mubr.bf16.mxu0 0
  %7500 = vmatmul.mubr.bf16.gmra.mrb[0].mxu0 %v7195
  %v7501 = vpop.f32.mrb[0].mxu0
  %v7502 = vadd.f32 0.0, %v7501
  %v7503 = vpop.f32.mrb[0].mxu0
  %v7504 = vpop.f32.mrb[0].mxu0
  %v7505 = vadd.f32 0.0, %v7504
  %v7506 = vpop.f32.mrb[0].mxu0
  %7507 = vmatprep.mubr.bf16.mxu0 0
  %7508 = vmatmul.mubr.bf16.gmra.mrb[0].mxu0 %v7198
  %v7509 = vpop.f32.mrb[0].mxu0
  %v7510 = vadd.f32 0.0, %v7509
  %v7511 = vpop.f32.mrb[0].mxu0
  %v7512 = vpop.f32.mrb[0].mxu0
  %v7513 = vadd.f32 0.0, %v7512
  %v7514 = vpop.f32.mrb[0].mxu0
  %7515 = vmatprep.mubr.bf16.mxu0 0
  %7516 = vmatmul.mubr.bf16.gmra.mrb[0].mxu0 %v7201
  %v7517 = vpop.f32.mrb[0].mxu0
  %v7518 = vadd.f32 0.0, %v7517
  %v7519 = vpop.f32.mrb[0].mxu0
  %v7520 = vpop.f32.mrb[0].mxu0
  %v7521 = vadd.f32 0.0, %v7520
  %v7522 = vpop.f32.mrb[0].mxu0
  %7523 = vmatprep.mubr.bf16.mxu0 0
  %7524 = vmatmul.mubr.bf16.gmra.mrb[0].mxu0 %v7204
  %v7525 = vpop.f32.mrb[0].mxu0
  %v7526 = vadd.f32 0.0, %v7525
  %v7527 = vpop.f32.mrb[0].mxu0
  %v7528 = vpop.f32.mrb[0].mxu0
  %v7529 = vadd.f32 0.0, %v7528
  %v7530 = vpop.f32.mrb[0].mxu0
  %7531 = vmatprep.mubr.bf16.mxu0 0
  %7532 = vmatmul.mubr.bf16.gmra.mrb[0].mxu0 %v7207
  %v7533 = vpop.f32.mrb[0].mxu0
  %v7534 = vadd.f32 0.0, %v7533
  %v7535 = vpop.f32.mrb[0].mxu0
  %v7536 = vpop.f32.mrb[0].mxu0
  %v7537 = vadd.f32 0.0, %v7536
  %v7538 = vpop.f32.mrb[0].mxu0
  %7539 = vmatprep.mubr.bf16.mxu0 0
  %7540 = vmatmul.mubr.bf16.gmra.mrb[0].mxu0 %v7210
  %v7541 = vpop.f32.mrb[0].mxu0
  %v7542 = vadd.f32 0.0, %v7541
  %v7543 = vpop.f32.mrb[0].mxu0
  %v7544 = vpop.f32.mrb[0].mxu0
  %v7545 = vadd.f32 0.0, %v7544
  %v7546 = vpop.f32.mrb[0].mxu0
  %7547 = vmatprep.mubr.bf16.mxu0 0
  %7548 = vmatmul.mubr.bf16.gmra.mrb[0].mxu0 %v7213
  %v7549 = vpop.f32.mrb[0].mxu0
  %v7550 = vadd.f32 0.0, %v7549
  %v7551 = vpop.f32.mrb[0].mxu0
  %v7552 = vpop.f32.mrb[0].mxu0
  %v7553 = vadd.f32 0.0, %v7552
  %v7554 = vpop.f32.mrb[0].mxu0
  %7555 = vmatprep.mubr.bf16.mxu0 0
  %7556 = vmatmul.mubr.bf16.gmra.mrb[0].mxu0 %v7216
  %v7557 = vpop.f32.mrb[0].mxu0
  %v7558 = vadd.f32 0.0, %v7557
  %v7559 = vpop.f32.mrb[0].mxu0
  %v7560 = vpop.f32.mrb[0].mxu0
  %v7561 = vadd.f32 0.0, %v7560
  %v7562 = vpop.f32.mrb[0].mxu0
  %7563 = vmatprep.mubr.bf16.mxu0 0
  %7564 = vmatmul.mubr.bf16.gmra.mrb[0].mxu0 %v7219
  %v7565 = vpop.f32.mrb[0].mxu0
  %v7566 = vadd.f32 0.0, %v7565
  %v7567 = vpop.f32.mrb[0].mxu0
  %v7568 = vpop.f32.mrb[0].mxu0
  %v7569 = vadd.f32 0.0, %v7568
  %v7570 = vpop.f32.mrb[0].mxu0
  %7571 = vmatprep.mubr.bf16.mxu0 0
  %7572 = vmatmul.mubr.bf16.gmra.mrb[0].mxu0 %v7222
  %v7573 = vpop.f32.mrb[0].mxu0
  %v7574 = vadd.f32 0.0, %v7573
  %v7575 = vpop.f32.mrb[0].mxu0
  %v7576 = vpop.f32.mrb[0].mxu0
  %v7577 = vadd.f32 0.0, %v7576
  %v7578 = vpop.f32.mrb[0].mxu0
  %7579 = vdwg.mxu0
  %v7580 = vadd.f32 %v6858, %v7262
  %v7581 = vadd.f32 %v6859, %v7265
  %v7582 = vadd.f32 %v6860, %v7270
  %v7583 = vadd.f32 %v6861, %v7273
  %v7584 = vadd.f32 %v6862, %v7278
  %v7585 = vadd.f32 %v6863, %v7281
  %v7586 = vadd.f32 %v6864, %v7286
  %v7587 = vadd.f32 %v6865, %v7289
  %v7588 = vadd.f32 %v6866, %v7294
  %v7589 = vadd.f32 %v6867, %v7297
  %v7590 = vadd.f32 %v6868, %v7302
  %v7591 = vadd.f32 %v6869, %v7305
  %v7592 = vadd.f32 %v6870, %v7310
  %v7593 = vadd.f32 %v6871, %v7313
  %v7594 = vadd.f32 %v6872, %v7318
  %v7595 = vadd.f32 %v6873, %v7321
  %v7596 = vadd.f32 %v6874, %v7326
  %v7597 = vadd.f32 %v6875, %v7329
  %v7598 = vadd.f32 %v6876, %v7334
  %v7599 = vadd.f32 %v6877, %v7337
  %v7600 = vadd.f32 %v6878, %v7342
  %v7601 = vadd.f32 %v6879, %v7345
  %v7602 = vadd.f32 %v6880, %v7350
  %v7603 = vadd.f32 %v6881, %v7353
  %v7604 = vadd.f32 %v6882, %v7358
  %v7605 = vadd.f32 %v6883, %v7361
  %v7606 = vadd.f32 %v6884, %v7366
  %v7607 = vadd.f32 %v6885, %v7369
  %v7608 = vadd.f32 %v6886, %v7374
  %v7609 = vadd.f32 %v6887, %v7377
  %v7610 = vadd.f32 %v6888, %v7382
  %v7611 = vadd.f32 %v6889, %v7385
  %v7612 = vadd.f32 %v6890, %v7390
  %v7613 = vadd.f32 %v6891, %v7393
  %v7614 = vadd.f32 %v6892, %v7398
  %v7615 = vadd.f32 %v6893, %v7401
  %v7616 = vadd.f32 %v6894, %v7406
  %v7617 = vadd.f32 %v6895, %v7409
  %v7618 = vadd.f32 %v6896, %v7414
  %v7619 = vadd.f32 %v6897, %v7417
  %v7620 = vadd.f32 %v6898, %v7422
  %v7621 = vadd.f32 %v6899, %v7425
  %v7622 = vadd.f32 %v6900, %v7430
  %v7623 = vadd.f32 %v6901, %v7433
  %v7624 = vadd.f32 %v6902, %v7438
  %v7625 = vadd.f32 %v6903, %v7441
  %v7626 = vadd.f32 %v6904, %v7446
  %v7627 = vadd.f32 %v6905, %v7449
  %v7628 = vadd.f32 %v6906, %v7454
  %v7629 = vadd.f32 %v6907, %v7457
  %v7630 = vadd.f32 %v6908, %v7462
  %v7631 = vadd.f32 %v6909, %v7465
  %v7632 = vadd.f32 %v6910, %v7470
  %v7633 = vadd.f32 %v6911, %v7473
  %v7634 = vadd.f32 %v6912, %v7478
  %v7635 = vadd.f32 %v6913, %v7481
  %v7636 = vadd.f32 %v6914, %v7486
  %v7637 = vadd.f32 %v6915, %v7489
  %v7638 = vadd.f32 %v6916, %v7494
  %v7639 = vadd.f32 %v6917, %v7497
  %v7640 = vadd.f32 %v6918, %v7502
  %v7641 = vadd.f32 %v6919, %v7505
  %v7642 = vadd.f32 %v6920, %v7510
  %v7643 = vadd.f32 %v6921, %v7513
  %v7644 = vadd.f32 %v6922, %v7518
  %v7645 = vadd.f32 %v6923, %v7521
  %v7646 = vadd.f32 %v6924, %v7526
  %v7647 = vadd.f32 %v6925, %v7529
  %v7648 = vadd.f32 %v6926, %v7534
  %v7649 = vadd.f32 %v6927, %v7537
  %v7650 = vadd.f32 %v6928, %v7542
  %v7651 = vadd.f32 %v6929, %v7545
  %v7652 = vadd.f32 %v6930, %v7550
  %v7653 = vadd.f32 %v6931, %v7553
  %v7654 = vadd.f32 %v6932, %v7558
  %v7655 = vadd.f32 %v6933, %v7561
  %v7656 = vadd.f32 %v6934, %v7566
  %v7657 = vadd.f32 %v6935, %v7569
  %v7658 = vadd.f32 %v6936, %v7574
  %v7659 = vadd.f32 %v6937, %v7577
  %v7660 = vld [vmem:[#allocation2 + $0x8] sm:$0xff]
  %v7661 = vld [vmem:[#allocation2 + $0x10] sm:$0xff]
  %v7662 = vld [vmem:[#allocation2 + $0x18] sm:$0xff]
  %v7663 = vld [vmem:[#allocation2 + $0x20] sm:$0xff]
  %v7664 = vld [vmem:[#allocation2 + $0x28] sm:$0xff]
  %v7665 = vld [vmem:[#allocation2 + $0x30] sm:$0xff]
  %v7666 = vld [vmem:[#allocation2 + $0x38] sm:$0xff]
  %v7667 = vld [vmem:[#allocation2 + $0x40] sm:$0xff]
  %v7668 = vld [vmem:[#allocation2 + $0x48] sm:$0xff]
  %v7669 = vld [vmem:[#allocation2 + $0x50] sm:$0xff]
  %v7670 = vld [vmem:[#allocation2 + $0x58] sm:$0xff]
  %v7671 = vld [vmem:[#allocation2 + $0x60] sm:$0xff]
  %v7672 = vld [vmem:[#allocation2 + $0x68] sm:$0xff]
  %v7673 = vld [vmem:[#allocation2 + $0x70] sm:$0xff]
  %v7674 = vld [vmem:[#allocation2 + $0x78] sm:$0xff]
  %v7675 = vld [vmem:[#allocation2 + $0x80] sm:$0xff]
  %v7676 = vld [vmem:[#allocation2 + $0x88] sm:$0xff]
  %v7677 = vld [vmem:[#allocation2 + $0x90] sm:$0xff]
  %v7678 = vld [vmem:[#allocation2 + $0x98] sm:$0xff]
  %v7679 = vld [vmem:[#allocation2 + $0xa0] sm:$0xff]
  %v7680 = vld [vmem:[#allocation2 + $0xa8] sm:$0xff]
  %v7681 = vld [vmem:[#allocation2 + $0xb0] sm:$0xff]
  %v7682 = vld [vmem:[#allocation2 + $0xb8] sm:$0xff]
  %v7683 = vld [vmem:[#allocation2 + $0xc0] sm:$0xff]
  %v7684 = vld [vmem:[#allocation2 + $0xc8] sm:$0xff]
  %v7685 = vld [vmem:[#allocation2 + $0xd0] sm:$0xff]
  %v7686 = vld [vmem:[#allocation2 + $0xd8] sm:$0xff]
  %v7687 = vld [vmem:[#allocation2 + $0xe0] sm:$0xff]
  %v7688 = vld [vmem:[#allocation2 + $0xe8] sm:$0xff]
  %v7689 = vld [vmem:[#allocation2 + $0xf0] sm:$0xff]
  %v7690 = vld [vmem:[#allocation2 + $0xf8] sm:$0xff]
  %v7691 = vld [vmem:[#allocation2 + $0x100] sm:$0xff]
  %v7692 = vld [vmem:[#allocation2 + $0x108] sm:$0xff]
  %v7693 = vld [vmem:[#allocation2 + $0x110] sm:$0xff]
  %v7694 = vld [vmem:[#allocation2 + $0x118] sm:$0xff]
  %v7695 = vld [vmem:[#allocation2 + $0x120] sm:$0xff]
  %v7696 = vld [vmem:[#allocation2 + $0x128] sm:$0xff]
  %v7697 = vld [vmem:[#allocation2 + $0x130] sm:$0xff]
  %v7698 = vld [vmem:[#allocation2 + $0x138] sm:$0xff]
  %v7699 = vld [vmem:[#allocation2 + $0x140] sm:$0xff]
  %v7700 = vld [vmem:[#allocation2 + $0x148] sm:$0x1]
  %7701 = vrot.lane.b32.xlu0 %v1173, 121
  %v7702 = vpop.permute.xlu0 %7701
  %7703 = vrot.lane.b32.xlu0 %v1181, 121
  %v7704 = vpop.permute.xlu0 %7703
  %7705 = vrot.lane.b32.xlu0 %v1189, 121
  %v7706 = vpop.permute.xlu0 %7705
  %7707 = vrot.lane.b32.xlu0 %v1197, 121
  %v7708 = vpop.permute.xlu0 %7707
  %7709 = vrot.lane.b32.xlu0 %v1205, 121
  %v7710 = vpop.permute.xlu0 %7709
  %7711 = vrot.lane.b32.xlu0 %v1213, 121
  %v7712 = vpop.permute.xlu0 %7711
  %7713 = vrot.lane.b32.xlu0 %v1221, 121
  %v7714 = vpop.permute.xlu0 %7713
  %7715 = vrot.lane.b32.xlu0 %v1229, 121
  %v7716 = vpop.permute.xlu0 %7715
  %7717 = vrot.lane.b32.xlu0 %v1237, 121
  %v7718 = vpop.permute.xlu0 %7717
  %7719 = vrot.lane.b32.xlu0 %v1245, 121
  %v7720 = vpop.permute.xlu0 %7719
  %7721 = vrot.lane.b32.xlu0 %v1253, 121
  %v7722 = vpop.permute.xlu0 %7721
  %7723 = vrot.lane.b32.xlu0 %v1261, 121
  %v7724 = vpop.permute.xlu0 %7723
  %7725 = vrot.lane.b32.xlu0 %v1269, 121
  %v7726 = vpop.permute.xlu0 %7725
  %7727 = vrot.lane.b32.xlu0 %v1277, 121
  %v7728 = vpop.permute.xlu0 %7727
  %7729 = vrot.lane.b32.xlu0 %v1285, 121
  %v7730 = vpop.permute.xlu0 %7729
  %7731 = vrot.lane.b32.xlu0 %v1293, 121
  %v7732 = vpop.permute.xlu0 %7731
  %7733 = vrot.lane.b32.xlu0 %v1301, 121
  %v7734 = vpop.permute.xlu0 %7733
  %7735 = vrot.lane.b32.xlu0 %v1309, 121
  %v7736 = vpop.permute.xlu0 %7735
  %7737 = vrot.lane.b32.xlu0 %v1317, 121
  %v7738 = vpop.permute.xlu0 %7737
  %7739 = vrot.lane.b32.xlu0 %v1325, 121
  %v7740 = vpop.permute.xlu0 %7739
  %7741 = vrot.lane.b32.xlu0 %v1333, 121
  %v7742 = vpop.permute.xlu0 %7741
  %7743 = vrot.lane.b32.xlu0 %v1341, 121
  %v7744 = vpop.permute.xlu0 %7743
  %7745 = vrot.lane.b32.xlu0 %v1349, 121
  %v7746 = vpop.permute.xlu0 %7745
  %7747 = vrot.lane.b32.xlu0 %v1357, 121
  %v7748 = vpop.permute.xlu0 %7747
  %7749 = vrot.lane.b32.xlu0 %v1365, 121
  %v7750 = vpop.permute.xlu0 %7749
  %7751 = vrot.lane.b32.xlu0 %v1373, 121
  %v7752 = vpop.permute.xlu0 %7751
  %7753 = vrot.lane.b32.xlu0 %v1381, 121
  %v7754 = vpop.permute.xlu0 %7753
  %7755 = vrot.lane.b32.xlu0 %v1389, 121
  %v7756 = vpop.permute.xlu0 %7755
  %7757 = vrot.lane.b32.xlu0 %v1397, 121
  %v7758 = vpop.permute.xlu0 %7757
  %7759 = vrot.lane.b32.xlu0 %v1405, 121
  %v7760 = vpop.permute.xlu0 %7759
  %7761 = vrot.lane.b32.xlu0 %v1413, 121
  %v7762 = vpop.permute.xlu0 %7761
  %7763 = vrot.lane.b32.xlu0 %v1421, 121
  %v7764 = vpop.permute.xlu0 %7763
  %7765 = vrot.lane.b32.xlu0 %v1429, 121
  %v7766 = vpop.permute.xlu0 %7765
  %7767 = vrot.lane.b32.xlu0 %v1437, 121
  %v7768 = vpop.permute.xlu0 %7767
  %7769 = vrot.lane.b32.xlu0 %v1445, 121
  %v7770 = vpop.permute.xlu0 %7769
  %7771 = vrot.lane.b32.xlu0 %v1453, 121
  %v7772 = vpop.permute.xlu0 %7771
  %7773 = vrot.lane.b32.xlu0 %v1461, 121
  %v7774 = vpop.permute.xlu0 %7773
  %7775 = vrot.lane.b32.xlu0 %v1469, 121
  %v7776 = vpop.permute.xlu0 %7775
  %7777 = vrot.lane.b32.xlu0 %v1477, 121
  %v7778 = vpop.permute.xlu0 %7777
  %7779 = vrot.lane.b32.xlu0 %v1485, 121
  %v7780 = vpop.permute.xlu0 %7779
  %7781 = vrot.lane.b32.xlu0 %v1481, 121
  %v7782 = vpop.permute.xlu0 %7781
  %v7824 = vmul.bf16 %v7660, %v7702
  %v7825 = vmul.bf16 %v7661, %v7704
  %v7826 = vmul.bf16 %v7662, %v7706
  %v7827 = vmul.bf16 %v7663, %v7708
  %v7828 = vmul.bf16 %v7664, %v7710
  %v7829 = vmul.bf16 %v7665, %v7712
  %v7830 = vmul.bf16 %v7666, %v7714
  %v7831 = vmul.bf16 %v7667, %v7716
  %v7832 = vmul.bf16 %v7668, %v7718
  %v7833 = vmul.bf16 %v7669, %v7720
  %v7834 = vmul.bf16 %v7670, %v7722
  %v7835 = vmul.bf16 %v7671, %v7724
  %v7836 = vmul.bf16 %v7672, %v7726
  %v7837 = vmul.bf16 %v7673, %v7728
  %v7838 = vmul.bf16 %v7674, %v7730
  %v7839 = vmul.bf16 %v7675, %v7732
  %v7840 = vmul.bf16 %v7676, %v7734
  %v7841 = vmul.bf16 %v7677, %v7736
  %v7842 = vmul.bf16 %v7678, %v7738
  %v7843 = vmul.bf16 %v7679, %v7740
  %v7844 = vmul.bf16 %v7680, %v7742
  %v7845 = vmul.bf16 %v7681, %v7744
  %v7846 = vmul.bf16 %v7682, %v7746
  %v7847 = vmul.bf16 %v7683, %v7748
  %v7848 = vmul.bf16 %v7684, %v7750
  %v7849 = vmul.bf16 %v7685, %v7752
  %v7850 = vmul.bf16 %v7686, %v7754
  %v7851 = vmul.bf16 %v7687, %v7756
  %v7852 = vmul.bf16 %v7688, %v7758
  %v7853 = vmul.bf16 %v7689, %v7760
  %v7854 = vmul.bf16 %v7690, %v7762
  %v7855 = vmul.bf16 %v7691, %v7764
  %v7856 = vmul.bf16 %v7692, %v7766
  %v7857 = vmul.bf16 %v7693, %v7768
  %v7858 = vmul.bf16 %v7694, %v7770
  %v7859 = vmul.bf16 %v7695, %v7772
  %v7860 = vmul.bf16 %v7696, %v7774
  %v7861 = vmul.bf16 %v7697, %v7776
  %v7862 = vmul.bf16 %v7698, %v7778
  %v7863 = vmul.bf16 %v7699, %v7780
  %v7864 = vmul.bf16 %v7700, %v7782
  %v7866 = vshrl.u32 %v7824, 16
  %v7868 = vshll.u32 %v7824, 16
  %v7870 = vrot.slane %v7868, 1
  %v7871 = vor.u32 %v7866, %v7870
  %v7873 = vshll.u32 %v7825, 16
  %v7875 = vrot.slane %v7873, 1
  %v7876 = vsel %vm1650, %v7871, %v7875
  %v7877 = vshrl.u32 %v7825, 16
  %v7879 = vor.u32 %v7877, %v7875
  %v7881 = vshll.u32 %v7826, 16
  %v7883 = vrot.slane %v7881, 1
  %v7884 = vsel %vm1650, %v7879, %v7883
  %v7885 = vshrl.u32 %v7826, 16
  %v7887 = vor.u32 %v7885, %v7883
  %v7889 = vshll.u32 %v7827, 16
  %v7891 = vrot.slane %v7889, 1
  %v7892 = vsel %vm1650, %v7887, %v7891
  %v7893 = vshrl.u32 %v7827, 16
  %v7895 = vor.u32 %v7893, %v7891
  %v7897 = vshll.u32 %v7828, 16
  %v7899 = vrot.slane %v7897, 1
  %v7900 = vsel %vm1650, %v7895, %v7899
  %v7901 = vshrl.u32 %v7828, 16
  %v7903 = vor.u32 %v7901, %v7899
  %v7905 = vshll.u32 %v7829, 16
  %v7907 = vrot.slane %v7905, 1
  %v7908 = vsel %vm1650, %v7903, %v7907
  %v7909 = vshrl.u32 %v7829, 16
  %v7911 = vor.u32 %v7909, %v7907
  %v7913 = vshll.u32 %v7830, 16
  %v7915 = vrot.slane %v7913, 1
  %v7916 = vsel %vm1650, %v7911, %v7915
  %v7917 = vshrl.u32 %v7830, 16
  %v7919 = vor.u32 %v7917, %v7915
  %v7921 = vshll.u32 %v7831, 16
  %v7923 = vrot.slane %v7921, 1
  %v7924 = vsel %vm1650, %v7919, %v7923
  %v7925 = vshrl.u32 %v7831, 16
  %v7927 = vor.u32 %v7925, %v7923
  %v7929 = vshll.u32 %v7832, 16
  %v7931 = vrot.slane %v7929, 1
  %v7932 = vsel %vm1650, %v7927, %v7931
  %v7933 = vshrl.u32 %v7832, 16
  %v7935 = vor.u32 %v7933, %v7931
  %v7937 = vshll.u32 %v7833, 16
  %v7939 = vrot.slane %v7937, 1
  %v7940 = vsel %vm1650, %v7935, %v7939
  %v7941 = vshrl.u32 %v7833, 16
  %v7943 = vor.u32 %v7941, %v7939
  %v7945 = vshll.u32 %v7834, 16
  %v7947 = vrot.slane %v7945, 1
  %v7948 = vsel %vm1650, %v7943, %v7947
  %v7949 = vshrl.u32 %v7834, 16
  %v7951 = vor.u32 %v7949, %v7947
  %v7953 = vshll.u32 %v7835, 16
  %v7955 = vrot.slane %v7953, 1
  %v7956 = vsel %vm1650, %v7951, %v7955
  %v7957 = vshrl.u32 %v7835, 16
  %v7959 = vor.u32 %v7957, %v7955
  %v7961 = vshll.u32 %v7836, 16
  %v7963 = vrot.slane %v7961, 1
  %v7964 = vsel %vm1650, %v7959, %v7963
  %v7965 = vshrl.u32 %v7836, 16
  %v7967 = vor.u32 %v7965, %v7963
  %v7969 = vshll.u32 %v7837, 16
  %v7971 = vrot.slane %v7969, 1
  %v7972 = vsel %vm1650, %v7967, %v7971
  %v7973 = vshrl.u32 %v7837, 16
  %v7975 = vor.u32 %v7973, %v7971
  %v7977 = vshll.u32 %v7838, 16
  %v7979 = vrot.slane %v7977, 1
  %v7980 = vsel %vm1650, %v7975, %v7979
  %v7981 = vshrl.u32 %v7838, 16
  %v7983 = vor.u32 %v7981, %v7979
  %v7985 = vshll.u32 %v7839, 16
  %v7987 = vrot.slane %v7985, 1
  %v7988 = vsel %vm1650, %v7983, %v7987
  %v7989 = vshrl.u32 %v7839, 16
  %v7991 = vor.u32 %v7989, %v7987
  %v7993 = vshll.u32 %v7840, 16
  %v7995 = vrot.slane %v7993, 1
  %v7996 = vsel %vm1650, %v7991, %v7995
  %v7997 = vshrl.u32 %v7840, 16
  %v7999 = vor.u32 %v7997, %v7995
  %v8001 = vshll.u32 %v7841, 16
  %v8003 = vrot.slane %v8001, 1
  %v8004 = vsel %vm1650, %v7999, %v8003
  %v8005 = vshrl.u32 %v7841, 16
  %v8007 = vor.u32 %v8005, %v8003
  %v8009 = vshll.u32 %v7842, 16
  %v8011 = vrot.slane %v8009, 1
  %v8012 = vsel %vm1650, %v8007, %v8011
  %v8013 = vshrl.u32 %v7842, 16
  %v8015 = vor.u32 %v8013, %v8011
  %v8017 = vshll.u32 %v7843, 16
  %v8019 = vrot.slane %v8017, 1
  %v8020 = vsel %vm1650, %v8015, %v8019
  %v8021 = vshrl.u32 %v7843, 16
  %v8023 = vor.u32 %v8021, %v8019
  %v8025 = vshll.u32 %v7844, 16
  %v8027 = vrot.slane %v8025, 1
  %v8028 = vsel %vm1650, %v8023, %v8027
  %v8029 = vshrl.u32 %v7844, 16
  %v8031 = vor.u32 %v8029, %v8027
  %v8033 = vshll.u32 %v7845, 16
  %v8035 = vrot.slane %v8033, 1
  %v8036 = vsel %vm1650, %v8031, %v8035
  %v8037 = vshrl.u32 %v7845, 16
  %v8039 = vor.u32 %v8037, %v8035
  %v8041 = vshll.u32 %v7846, 16
  %v8043 = vrot.slane %v8041, 1
  %v8044 = vsel %vm1650, %v8039, %v8043
  %v8045 = vshrl.u32 %v7846, 16
  %v8047 = vor.u32 %v8045, %v8043
  %v8049 = vshll.u32 %v7847, 16
  %v8051 = vrot.slane %v8049, 1
  %v8052 = vsel %vm1650, %v8047, %v8051
  %v8053 = vshrl.u32 %v7847, 16
  %v8055 = vor.u32 %v8053, %v8051
  %v8057 = vshll.u32 %v7848, 16
  %v8059 = vrot.slane %v8057, 1
  %v8060 = vsel %vm1650, %v8055, %v8059
  %v8061 = vshrl.u32 %v7848, 16
  %v8063 = vor.u32 %v8061, %v8059
  %v8065 = vshll.u32 %v7849, 16
  %v8067 = vrot.slane %v8065, 1
  %v8068 = vsel %vm1650, %v8063, %v8067
  %v8069 = vshrl.u32 %v7849, 16
  %v8071 = vor.u32 %v8069, %v8067
  %v8073 = vshll.u32 %v7850, 16
  %v8075 = vrot.slane %v8073, 1
  %v8076 = vsel %vm1650, %v8071, %v8075
  %v8077 = vshrl.u32 %v7850, 16
  %v8079 = vor.u32 %v8077, %v8075
  %v8081 = vshll.u32 %v7851, 16
  %v8083 = vrot.slane %v8081, 1
  %v8084 = vsel %vm1650, %v8079, %v8083
  %v8085 = vshrl.u32 %v7851, 16
  %v8087 = vor.u32 %v8085, %v8083
  %v8089 = vshll.u32 %v7852, 16
  %v8091 = vrot.slane %v8089, 1
  %v8092 = vsel %vm1650, %v8087, %v8091
  %v8093 = vshrl.u32 %v7852, 16
  %v8095 = vor.u32 %v8093, %v8091
  %v8097 = vshll.u32 %v7853, 16
  %v8099 = vrot.slane %v8097, 1
  %v8100 = vsel %vm1650, %v8095, %v8099
  %v8101 = vshrl.u32 %v7853, 16
  %v8103 = vor.u32 %v8101, %v8099
  %v8105 = vshll.u32 %v7854, 16
  %v8107 = vrot.slane %v8105, 1
  %v8108 = vsel %vm1650, %v8103, %v8107
  %v8109 = vshrl.u32 %v7854, 16
  %v8111 = vor.u32 %v8109, %v8107
  %v8113 = vshll.u32 %v7855, 16
  %v8115 = vrot.slane %v8113, 1
  %v8116 = vsel %vm1650, %v8111, %v8115
  %v8117 = vshrl.u32 %v7855, 16
  %v8119 = vor.u32 %v8117, %v8115
  %v8121 = vshll.u32 %v7856, 16
  %v8123 = vrot.slane %v8121, 1
  %v8124 = vsel %vm1650, %v8119, %v8123
  %v8125 = vshrl.u32 %v7856, 16
  %v8127 = vor.u32 %v8125, %v8123
  %v8129 = vshll.u32 %v7857, 16
  %v8131 = vrot.slane %v8129, 1
  %v8132 = vsel %vm1650, %v8127, %v8131
  %v8133 = vshrl.u32 %v7857, 16
  %v8135 = vor.u32 %v8133, %v8131
  %v8137 = vshll.u32 %v7858, 16
  %v8139 = vrot.slane %v8137, 1
  %v8140 = vsel %vm1650, %v8135, %v8139
  %v8141 = vshrl.u32 %v7858, 16
  %v8143 = vor.u32 %v8141, %v8139
  %v8145 = vshll.u32 %v7859, 16
  %v8147 = vrot.slane %v8145, 1
  %v8148 = vsel %vm1650, %v8143, %v8147
  %v8149 = vshrl.u32 %v7859, 16
  %v8151 = vor.u32 %v8149, %v8147
  %v8153 = vshll.u32 %v7860, 16
  %v8155 = vrot.slane %v8153, 1
  %v8156 = vsel %vm1650, %v8151, %v8155
  %v8157 = vshrl.u32 %v7860, 16
  %v8159 = vor.u32 %v8157, %v8155
  %v8161 = vshll.u32 %v7861, 16
  %v8163 = vrot.slane %v8161, 1
  %v8164 = vsel %vm1650, %v8159, %v8163
  %v8165 = vshrl.u32 %v7861, 16
  %v8167 = vor.u32 %v8165, %v8163
  %v8169 = vshll.u32 %v7862, 16
  %v8171 = vrot.slane %v8169, 1
  %v8172 = vsel %vm1650, %v8167, %v8171
  %v8173 = vshrl.u32 %v7862, 16
  %v8175 = vor.u32 %v8173, %v8171
  %v8177 = vshll.u32 %v7863, 16
  %v8179 = vrot.slane %v8177, 1
  %v8180 = vsel %vm1650, %v8175, %v8179
  %v8181 = vshrl.u32 %v7863, 16
  %v8183 = vor.u32 %v8181, %v8179
  %v8185 = vshll.u32 %v7864, 16
  %v8187 = vrot.slane %v8185, 1
  %v8188 = vsel %vm1650, %v8183, %v8187
  %v8190 = vshrl.u32 %v7102, 16
  %v8192 = vrot.slane %v8190, 3
  %v8194 = vsel %vm363, %v7876, 0
  %v8197 = vsel %vm363, %v7884, 0
  %v8200 = vsel %vm363, %v7892, 0
  %v8203 = vsel %vm363, %v7900, 0
  %v8206 = vsel %vm363, %v7908, 0
  %v8209 = vsel %vm363, %v7916, 0
  %v8212 = vsel %vm363, %v7924, 0
  %v8215 = vsel %vm363, %v7932, 0
  %v8218 = vsel %vm363, %v7940, 0
  %v8221 = vsel %vm363, %v7948, 0
  %v8224 = vsel %vm363, %v7956, 0
  %v8227 = vsel %vm363, %v7964, 0
  %v8230 = vsel %vm363, %v7972, 0
  %v8233 = vsel %vm363, %v7980, 0
  %v8236 = vsel %vm363, %v7988, 0
  %v8239 = vsel %vm363, %v7996, 0
  %v8242 = vsel %vm363, %v8004, 0
  %v8245 = vsel %vm363, %v8012, 0
  %v8248 = vsel %vm363, %v8020, 0
  %v8251 = vsel %vm363, %v8028, 0
  %v8254 = vsel %vm363, %v8036, 0
  %v8257 = vsel %vm363, %v8044, 0
  %v8260 = vsel %vm363, %v8052, 0
  %v8263 = vsel %vm363, %v8060, 0
  %v8266 = vsel %vm363, %v8068, 0
  %v8269 = vsel %vm363, %v8076, 0
  %v8272 = vsel %vm363, %v8084, 0
  %v8275 = vsel %vm363, %v8092, 0
  %v8278 = vsel %vm363, %v8100, 0
  %v8281 = vsel %vm363, %v8108, 0
  %v8284 = vsel %vm363, %v8116, 0
  %v8287 = vsel %vm363, %v8124, 0
  %v8290 = vsel %vm363, %v8132, 0
  %v8293 = vsel %vm363, %v8140, 0
  %v8296 = vsel %vm363, %v8148, 0
  %v8299 = vsel %vm363, %v8156, 0
  %v8302 = vsel %vm363, %v8164, 0
  %v8305 = vsel %vm363, %v8172, 0
  %v8308 = vsel %vm363, %v8180, 0
  %v8311 = vsel %vm363, %v8188, 0
  %v8314 = vand.u32 %v8192, %v2103
  %8316 = vmatprep.subr.bf16.mxu0 0
  %8317 = vmatpush1.bf16.msra.mxu0 %v8314
  %8318 = vmatprep.subr.bf16.mxu0 0
  %8319 = vmatpush1.bf16.msra.mxu0 0
  %8320 = vmatprep.subr.bf16.mxu0 0
  %8321 = vmatpush1.bf16.msra.mxu0 0
  %8322 = vmatprep.subr.bf16.mxu0 0
  %8323 = vmatpush1.bf16.msra.mxu0 0
  %8324 = vmatprep.subr.bf16.mxu0 0
  %8325 = vmatpush1.bf16.msra.mxu0 0
  %8326 = vmatprep.subr.bf16.mxu0 0
  %8327 = vmatpush1.bf16.msra.mxu0 0
  %8328 = vmatprep.subr.bf16.mxu0 0
  %8329 = vmatpush1.bf16.msra.mxu0 0
  %8330 = vmatprep.subr.bf16.mxu0 0
  %8331 = vmatpush1.bf16.msra.mxu0 0
  %8332 = vmatprep.subr.bf16.mxu0 0
  %8333 = vmatpush1.bf16.msra.mxu0 0
  %8334 = vmatprep.subr.bf16.mxu0 0
  %8335 = vmatpush1.bf16.msra.mxu0 0
  %8336 = vmatprep.subr.bf16.mxu0 0
  %8337 = vmatpush1.bf16.msra.mxu0 0
  %8338 = vmatprep.subr.bf16.mxu0 0
  %8339 = vmatpush1.bf16.msra.mxu0 0
  %8340 = vmatprep.subr.bf16.mxu0 0
  %8341 = vmatpush1.bf16.msra.mxu0 0
  %8342 = vmatprep.subr.bf16.mxu0 0
  %8343 = vmatpush1.bf16.msra.mxu0 0
  %8344 = vmatprep.subr.bf16.mxu0 0
  %8345 = vmatpush1.bf16.msra.mxu0 0
  %8346 = vmatprep.subr.bf16.mxu0 0
  %8347 = vmatpush1.bf16.msra.mxu0 0
  %8348 = vmatprep.mubr.bf16.mxu0 0
  %8349 = vmatmul.mubr.bf16.gmra.mrb[0].mxu0 %v8194
  %v8350 = vpop.f32.mrb[0].mxu0
  %v8351 = vadd.f32 0.0, %v8350
  %v8352 = vpop.f32.mrb[0].mxu0
  %v8353 = vpop.f32.mrb[0].mxu0
  %v8354 = vadd.f32 0.0, %v8353
  %v8355 = vpop.f32.mrb[0].mxu0
  %8356 = vmatprep.mubr.bf16.mxu0 0
  %8357 = vmatmul.mubr.bf16.gmra.mrb[0].mxu0 %v8197
  %v8358 = vpop.f32.mrb[0].mxu0
  %v8359 = vadd.f32 0.0, %v8358
  %v8360 = vpop.f32.mrb[0].mxu0
  %v8361 = vpop.f32.mrb[0].mxu0
  %v8362 = vadd.f32 0.0, %v8361
  %v8363 = vpop.f32.mrb[0].mxu0
  %8364 = vmatprep.mubr.bf16.mxu0 0
  %8365 = vmatmul.mubr.bf16.gmra.mrb[0].mxu0 %v8200
  %v8366 = vpop.f32.mrb[0].mxu0
  %v8367 = vadd.f32 0.0, %v8366
  %v8368 = vpop.f32.mrb[0].mxu0
  %v8369 = vpop.f32.mrb[0].mxu0
  %v8370 = vadd.f32 0.0, %v8369
  %v8371 = vpop.f32.mrb[0].mxu0
  %8372 = vmatprep.mubr.bf16.mxu0 0
  %8373 = vmatmul.mubr.bf16.gmra.mrb[0].mxu0 %v8203
  %v8374 = vpop.f32.mrb[0].mxu0
  %v8375 = vadd.f32 0.0, %v8374
  %v8376 = vpop.f32.mrb[0].mxu0
  %v8377 = vpop.f32.mrb[0].mxu0
  %v8378 = vadd.f32 0.0, %v8377
  %v8379 = vpop.f32.mrb[0].mxu0
  %8380 = vmatprep.mubr.bf16.mxu0 0
  %8381 = vmatmul.mubr.bf16.gmra.mrb[0].mxu0 %v8206
  %v8382 = vpop.f32.mrb[0].mxu0
  %v8383 = vadd.f32 0.0, %v8382
  %v8384 = vpop.f32.mrb[0].mxu0
  %v8385 = vpop.f32.mrb[0].mxu0
  %v8386 = vadd.f32 0.0, %v8385
  %v8387 = vpop.f32.mrb[0].mxu0
  %8388 = vmatprep.mubr.bf16.mxu0 0
  %8389 = vmatmul.mubr.bf16.gmra.mrb[0].mxu0 %v8209
  %v8390 = vpop.f32.mrb[0].mxu0
  %v8391 = vadd.f32 0.0, %v8390
  %v8392 = vpop.f32.mrb[0].mxu0
  %v8393 = vpop.f32.mrb[0].mxu0
  %v8394 = vadd.f32 0.0, %v8393
  %v8395 = vpop.f32.mrb[0].mxu0
  %8396 = vmatprep.mubr.bf16.mxu0 0
  %8397 = vmatmul.mubr.bf16.gmra.mrb[0].mxu0 %v8212
  %v8398 = vpop.f32.mrb[0].mxu0
  %v8399 = vadd.f32 0.0, %v8398
  %v8400 = vpop.f32.mrb[0].mxu0
  %v8401 = vpop.f32.mrb[0].mxu0
  %v8402 = vadd.f32 0.0, %v8401
  %v8403 = vpop.f32.mrb[0].mxu0
  %8404 = vmatprep.mubr.bf16.mxu0 0
  %8405 = vmatmul.mubr.bf16.gmra.mrb[0].mxu0 %v8215
  %v8406 = vpop.f32.mrb[0].mxu0
  %v8407 = vadd.f32 0.0, %v8406
  %v8408 = vpop.f32.mrb[0].mxu0
  %v8409 = vpop.f32.mrb[0].mxu0
  %v8410 = vadd.f32 0.0, %v8409
  %v8411 = vpop.f32.mrb[0].mxu0
  %8412 = vmatprep.mubr.bf16.mxu0 0
  %8413 = vmatmul.mubr.bf16.gmra.mrb[0].mxu0 %v8218
  %v8414 = vpop.f32.mrb[0].mxu0
  %v8415 = vadd.f32 0.0, %v8414
  %v8416 = vpop.f32.mrb[0].mxu0
  %v8417 = vpop.f32.mrb[0].mxu0
  %v8418 = vadd.f32 0.0, %v8417
  %v8419 = vpop.f32.mrb[0].mxu0
  %8420 = vmatprep.mubr.bf16.mxu0 0
  %8421 = vmatmul.mubr.bf16.gmra.mrb[0].mxu0 %v8221
  %v8422 = vpop.f32.mrb[0].mxu0
  %v8423 = vadd.f32 0.0, %v8422
  %v8424 = vpop.f32.mrb[0].mxu0
  %v8425 = vpop.f32.mrb[0].mxu0
  %v8426 = vadd.f32 0.0, %v8425
  %v8427 = vpop.f32.mrb[0].mxu0
  %8428 = vmatprep.mubr.bf16.mxu0 0
  %8429 = vmatmul.mubr.bf16.gmra.mrb[0].mxu0 %v8224
  %v8430 = vpop.f32.mrb[0].mxu0
  %v8431 = vadd.f32 0.0, %v8430
  %v8432 = vpop.f32.mrb[0].mxu0
  %v8433 = vpop.f32.mrb[0].mxu0
  %v8434 = vadd.f32 0.0, %v8433
  %v8435 = vpop.f32.mrb[0].mxu0
  %8436 = vmatprep.mubr.bf16.mxu0 0
  %8437 = vmatmul.mubr.bf16.gmra.mrb[0].mxu0 %v8227
  %v8438 = vpop.f32.mrb[0].mxu0
  %v8439 = vadd.f32 0.0, %v8438
  %v8440 = vpop.f32.mrb[0].mxu0
  %v8441 = vpop.f32.mrb[0].mxu0
  %v8442 = vadd.f32 0.0, %v8441
  %v8443 = vpop.f32.mrb[0].mxu0
  %8444 = vmatprep.mubr.bf16.mxu0 0
  %8445 = vmatmul.mubr.bf16.gmra.mrb[0].mxu0 %v8230
  %v8446 = vpop.f32.mrb[0].mxu0
  %v8447 = vadd.f32 0.0, %v8446
  %v8448 = vpop.f32.mrb[0].mxu0
  %v8449 = vpop.f32.mrb[0].mxu0
  %v8450 = vadd.f32 0.0, %v8449
  %v8451 = vpop.f32.mrb[0].mxu0
  %8452 = vmatprep.mubr.bf16.mxu0 0
  %8453 = vmatmul.mubr.bf16.gmra.mrb[0].mxu0 %v8233
  %v8454 = vpop.f32.mrb[0].mxu0
  %v8455 = vadd.f32 0.0, %v8454
  %v8456 = vpop.f32.mrb[0].mxu0
  %v8457 = vpop.f32.mrb[0].mxu0
  %v8458 = vadd.f32 0.0, %v8457
  %v8459 = vpop.f32.mrb[0].mxu0
  %8460 = vmatprep.mubr.bf16.mxu0 0
  %8461 = vmatmul.mubr.bf16.gmra.mrb[0].mxu0 %v8236
  %v8462 = vpop.f32.mrb[0].mxu0
  %v8463 = vadd.f32 0.0, %v8462
  %v8464 = vpop.f32.mrb[0].mxu0
  %v8465 = vpop.f32.mrb[0].mxu0
  %v8466 = vadd.f32 0.0, %v8465
  %v8467 = vpop.f32.mrb[0].mxu0
  %8468 = vmatprep.mubr.bf16.mxu0 0
  %8469 = vmatmul.mubr.bf16.gmra.mrb[0].mxu0 %v8239
  %v8470 = vpop.f32.mrb[0].mxu0
  %v8471 = vadd.f32 0.0, %v8470
  %v8472 = vpop.f32.mrb[0].mxu0
  %v8473 = vpop.f32.mrb[0].mxu0
  %v8474 = vadd.f32 0.0, %v8473
  %v8475 = vpop.f32.mrb[0].mxu0
  %8476 = vmatprep.mubr.bf16.mxu0 0
  %8477 = vmatmul.mubr.bf16.gmra.mrb[0].mxu0 %v8242
  %v8478 = vpop.f32.mrb[0].mxu0
  %v8479 = vadd.f32 0.0, %v8478
  %v8480 = vpop.f32.mrb[0].mxu0
  %v8481 = vpop.f32.mrb[0].mxu0
  %v8482 = vadd.f32 0.0, %v8481
  %v8483 = vpop.f32.mrb[0].mxu0
  %8484 = vmatprep.mubr.bf16.mxu0 0
  %8485 = vmatmul.mubr.bf16.gmra.mrb[0].mxu0 %v8245
  %v8486 = vpop.f32.mrb[0].mxu0
  %v8487 = vadd.f32 0.0, %v8486
  %v8488 = vpop.f32.mrb[0].mxu0
  %v8489 = vpop.f32.mrb[0].mxu0
  %v8490 = vadd.f32 0.0, %v8489
  %v8491 = vpop.f32.mrb[0].mxu0
  %8492 = vmatprep.mubr.bf16.mxu0 0
  %8493 = vmatmul.mubr.bf16.gmra.mrb[0].mxu0 %v8248
  %v8494 = vpop.f32.mrb[0].mxu0
  %v8495 = vadd.f32 0.0, %v8494
  %v8496 = vpop.f32.mrb[0].mxu0
  %v8497 = vpop.f32.mrb[0].mxu0
  %v8498 = vadd.f32 0.0, %v8497
  %v8499 = vpop.f32.mrb[0].mxu0
  %8500 = vmatprep.mubr.bf16.mxu0 0
  %8501 = vmatmul.mubr.bf16.gmra.mrb[0].mxu0 %v8251
  %v8502 = vpop.f32.mrb[0].mxu0
  %v8503 = vadd.f32 0.0, %v8502
  %v8504 = vpop.f32.mrb[0].mxu0
  %v8505 = vpop.f32.mrb[0].mxu0
  %v8506 = vadd.f32 0.0, %v8505
  %v8507 = vpop.f32.mrb[0].mxu0
  %8508 = vmatprep.mubr.bf16.mxu0 0
  %8509 = vmatmul.mubr.bf16.gmra.mrb[0].mxu0 %v8254
  %v8510 = vpop.f32.mrb[0].mxu0
  %v8511 = vadd.f32 0.0, %v8510
  %v8512 = vpop.f32.mrb[0].mxu0
  %v8513 = vpop.f32.mrb[0].mxu0
  %v8514 = vadd.f32 0.0, %v8513
  %v8515 = vpop.f32.mrb[0].mxu0
  %8516 = vmatprep.mubr.bf16.mxu0 0
  %8517 = vmatmul.mubr.bf16.gmra.mrb[0].mxu0 %v8257
  %v8518 = vpop.f32.mrb[0].mxu0
  %v8519 = vadd.f32 0.0, %v8518
  %v8520 = vpop.f32.mrb[0].mxu0
  %v8521 = vpop.f32.mrb[0].mxu0
  %v8522 = vadd.f32 0.0, %v8521
  %v8523 = vpop.f32.mrb[0].mxu0
  %8524 = vmatprep.mubr.bf16.mxu0 0
  %8525 = vmatmul.mubr.bf16.gmra.mrb[0].mxu0 %v8260
  %v8526 = vpop.f32.mrb[0].mxu0
  %v8527 = vadd.f32 0.0, %v8526
  %v8528 = vpop.f32.mrb[0].mxu0
  %v8529 = vpop.f32.mrb[0].mxu0
  %v8530 = vadd.f32 0.0, %v8529
  %v8531 = vpop.f32.mrb[0].mxu0
  %8532 = vmatprep.mubr.bf16.mxu0 0
  %8533 = vmatmul.mubr.bf16.gmra.mrb[0].mxu0 %v8263
  %v8534 = vpop.f32.mrb[0].mxu0
  %v8535 = vadd.f32 0.0, %v8534
  %v8536 = vpop.f32.mrb[0].mxu0
  %v8537 = vpop.f32.mrb[0].mxu0
  %v8538 = vadd.f32 0.0, %v8537
  %v8539 = vpop.f32.mrb[0].mxu0
  %8540 = vmatprep.mubr.bf16.mxu0 0
  %8541 = vmatmul.mubr.bf16.gmra.mrb[0].mxu0 %v8266
  %v8542 = vpop.f32.mrb[0].mxu0
  %v8543 = vadd.f32 0.0, %v8542
  %v8544 = vpop.f32.mrb[0].mxu0
  %v8545 = vpop.f32.mrb[0].mxu0
  %v8546 = vadd.f32 0.0, %v8545
  %v8547 = vpop.f32.mrb[0].mxu0
  %8548 = vmatprep.mubr.bf16.mxu0 0
  %8549 = vmatmul.mubr.bf16.gmra.mrb[0].mxu0 %v8269
  %v8550 = vpop.f32.mrb[0].mxu0
  %v8551 = vadd.f32 0.0, %v8550
  %v8552 = vpop.f32.mrb[0].mxu0
  %v8553 = vpop.f32.mrb[0].mxu0
  %v8554 = vadd.f32 0.0, %v8553
  %v8555 = vpop.f32.mrb[0].mxu0
  %8556 = vmatprep.mubr.bf16.mxu0 0
  %8557 = vmatmul.mubr.bf16.gmra.mrb[0].mxu0 %v8272
  %v8558 = vpop.f32.mrb[0].mxu0
  %v8559 = vadd.f32 0.0, %v8558
  %v8560 = vpop.f32.mrb[0].mxu0
  %v8561 = vpop.f32.mrb[0].mxu0
  %v8562 = vadd.f32 0.0, %v8561
  %v8563 = vpop.f32.mrb[0].mxu0
  %8564 = vmatprep.mubr.bf16.mxu0 0
  %8565 = vmatmul.mubr.bf16.gmra.mrb[0].mxu0 %v8275
  %v8566 = vpop.f32.mrb[0].mxu0
  %v8567 = vadd.f32 0.0, %v8566
  %v8568 = vpop.f32.mrb[0].mxu0
  %v8569 = vpop.f32.mrb[0].mxu0
  %v8570 = vadd.f32 0.0, %v8569
  %v8571 = vpop.f32.mrb[0].mxu0
  %8572 = vmatprep.mubr.bf16.mxu0 0
  %8573 = vmatmul.mubr.bf16.gmra.mrb[0].mxu0 %v8278
  %v8574 = vpop.f32.mrb[0].mxu0
  %v8575 = vadd.f32 0.0, %v8574
  %v8576 = vpop.f32.mrb[0].mxu0
  %v8577 = vpop.f32.mrb[0].mxu0
  %v8578 = vadd.f32 0.0, %v8577
  %v8579 = vpop.f32.mrb[0].mxu0
  %8580 = vmatprep.mubr.bf16.mxu0 0
  %8581 = vmatmul.mubr.bf16.gmra.mrb[0].mxu0 %v8281
  %v8582 = vpop.f32.mrb[0].mxu0
  %v8583 = vadd.f32 0.0, %v8582
  %v8584 = vpop.f32.mrb[0].mxu0
  %v8585 = vpop.f32.mrb[0].mxu0
  %v8586 = vadd.f32 0.0, %v8585
  %v8587 = vpop.f32.mrb[0].mxu0
  %8588 = vmatprep.mubr.bf16.mxu0 0
  %8589 = vmatmul.mubr.bf16.gmra.mrb[0].mxu0 %v8284
  %v8590 = vpop.f32.mrb[0].mxu0
  %v8591 = vadd.f32 0.0, %v8590
  %v8592 = vpop.f32.mrb[0].mxu0
  %v8593 = vpop.f32.mrb[0].mxu0
  %v8594 = vadd.f32 0.0, %v8593
  %v8595 = vpop.f32.mrb[0].mxu0
  %8596 = vmatprep.mubr.bf16.mxu0 0
  %8597 = vmatmul.mubr.bf16.gmra.mrb[0].mxu0 %v8287
  %v8598 = vpop.f32.mrb[0].mxu0
  %v8599 = vadd.f32 0.0, %v8598
  %v8600 = vpop.f32.mrb[0].mxu0
  %v8601 = vpop.f32.mrb[0].mxu0
  %v8602 = vadd.f32 0.0, %v8601
  %v8603 = vpop.f32.mrb[0].mxu0
  %8604 = vmatprep.mubr.bf16.mxu0 0
  %8605 = vmatmul.mubr.bf16.gmra.mrb[0].mxu0 %v8290
  %v8606 = vpop.f32.mrb[0].mxu0
  %v8607 = vadd.f32 0.0, %v8606
  %v8608 = vpop.f32.mrb[0].mxu0
  %v8609 = vpop.f32.mrb[0].mxu0
  %v8610 = vadd.f32 0.0, %v8609
  %v8611 = vpop.f32.mrb[0].mxu0
  %8612 = vmatprep.mubr.bf16.mxu0 0
  %8613 = vmatmul.mubr.bf16.gmra.mrb[0].mxu0 %v8293
  %v8614 = vpop.f32.mrb[0].mxu0
  %v8615 = vadd.f32 0.0, %v8614
  %v8616 = vpop.f32.mrb[0].mxu0
  %v8617 = vpop.f32.mrb[0].mxu0
  %v8618 = vadd.f32 0.0, %v8617
  %v8619 = vpop.f32.mrb[0].mxu0
  %8620 = vmatprep.mubr.bf16.mxu0 0
  %8621 = vmatmul.mubr.bf16.gmra.mrb[0].mxu0 %v8296
  %v8622 = vpop.f32.mrb[0].mxu0
  %v8623 = vadd.f32 0.0, %v8622
  %v8624 = vpop.f32.mrb[0].mxu0
  %v8625 = vpop.f32.mrb[0].mxu0
  %v8626 = vadd.f32 0.0, %v8625
  %v8627 = vpop.f32.mrb[0].mxu0
  %8628 = vmatprep.mubr.bf16.mxu0 0
  %8629 = vmatmul.mubr.bf16.gmra.mrb[0].mxu0 %v8299
  %v8630 = vpop.f32.mrb[0].mxu0
  %v8631 = vadd.f32 0.0, %v8630
  %v8632 = vpop.f32.mrb[0].mxu0
  %v8633 = vpop.f32.mrb[0].mxu0
  %v8634 = vadd.f32 0.0, %v8633
  %v8635 = vpop.f32.mrb[0].mxu0
  %8636 = vmatprep.mubr.bf16.mxu0 0
  %8637 = vmatmul.mubr.bf16.gmra.mrb[0].mxu0 %v8302
  %v8638 = vpop.f32.mrb[0].mxu0
  %v8639 = vadd.f32 0.0, %v8638
  %v8640 = vpop.f32.mrb[0].mxu0
  %v8641 = vpop.f32.mrb[0].mxu0
  %v8642 = vadd.f32 0.0, %v8641
  %v8643 = vpop.f32.mrb[0].mxu0
  %8644 = vmatprep.mubr.bf16.mxu0 0
  %8645 = vmatmul.mubr.bf16.gmra.mrb[0].mxu0 %v8305
  %v8646 = vpop.f32.mrb[0].mxu0
  %v8647 = vadd.f32 0.0, %v8646
  %v8648 = vpop.f32.mrb[0].mxu0
  %v8649 = vpop.f32.mrb[0].mxu0
  %v8650 = vadd.f32 0.0, %v8649
  %v8651 = vpop.f32.mrb[0].mxu0
  %8652 = vmatprep.mubr.bf16.mxu0 0
  %8653 = vmatmul.mubr.bf16.gmra.mrb[0].mxu0 %v8308
  %v8654 = vpop.f32.mrb[0].mxu0
  %v8655 = vadd.f32 0.0, %v8654
  %v8656 = vpop.f32.mrb[0].mxu0
  %v8657 = vpop.f32.mrb[0].mxu0
  %v8658 = vadd.f32 0.0, %v8657
  %v8659 = vpop.f32.mrb[0].mxu0
  %8660 = vmatprep.mubr.bf16.mxu0 0
  %8661 = vmatmul.mubr.bf16.gmra.mrb[0].mxu0 %v8311
  %v8662 = vpop.f32.mrb[0].mxu0
  %v8663 = vadd.f32 0.0, %v8662
  %v8664 = vpop.f32.mrb[0].mxu0
  %v8665 = vpop.f32.mrb[0].mxu0
  %v8666 = vadd.f32 0.0, %v8665
  %v8667 = vpop.f32.mrb[0].mxu0
  %8668 = vdwg.mxu0
  %v8669 = vadd.f32 %v7580, %v8351
  %v8670 = vadd.f32 %v7581, %v8354
  %v8671 = vadd.f32 %v7582, %v8359
  %v8672 = vadd.f32 %v7583, %v8362
  %v8673 = vadd.f32 %v7584, %v8367
  %v8674 = vadd.f32 %v7585, %v8370
  %v8675 = vadd.f32 %v7586, %v8375
  %v8676 = vadd.f32 %v7587, %v8378
  %v8677 = vadd.f32 %v7588, %v8383
  %v8678 = vadd.f32 %v7589, %v8386
  %v8679 = vadd.f32 %v7590, %v8391
  %v8680 = vadd.f32 %v7591, %v8394
  %v8681 = vadd.f32 %v7592, %v8399
  %v8682 = vadd.f32 %v7593, %v8402
  %v8683 = vadd.f32 %v7594, %v8407
  %v8684 = vadd.f32 %v7595, %v8410
  %v8685 = vadd.f32 %v7596, %v8415
  %v8686 = vadd.f32 %v7597, %v8418
  %v8687 = vadd.f32 %v7598, %v8423
  %v8688 = vadd.f32 %v7599, %v8426
  %v8689 = vadd.f32 %v7600, %v8431
  %v8690 = vadd.f32 %v7601, %v8434
  %v8691 = vadd.f32 %v7602, %v8439
  %v8692 = vadd.f32 %v7603, %v8442
  %v8693 = vadd.f32 %v7604, %v8447
  %v8694 = vadd.f32 %v7605, %v8450
  %v8695 = vadd.f32 %v7606, %v8455
  %v8696 = vadd.f32 %v7607, %v8458
  %v8697 = vadd.f32 %v7608, %v8463
  %v8698 = vadd.f32 %v7609, %v8466
  %v8699 = vadd.f32 %v7610, %v8471
  %v8700 = vadd.f32 %v7611, %v8474
  %v8701 = vadd.f32 %v7612, %v8479
  %v8702 = vadd.f32 %v7613, %v8482
  %v8703 = vadd.f32 %v7614, %v8487
  %v8704 = vadd.f32 %v7615, %v8490
  %v8705 = vadd.f32 %v7616, %v8495
  %v8706 = vadd.f32 %v7617, %v8498
  %v8707 = vadd.f32 %v7618, %v8503
  %v8708 = vadd.f32 %v7619, %v8506
  %v8709 = vadd.f32 %v7620, %v8511
  %v8710 = vadd.f32 %v7621, %v8514
  %v8711 = vadd.f32 %v7622, %v8519
  %v8712 = vadd.f32 %v7623, %v8522
  %v8713 = vadd.f32 %v7624, %v8527
  %v8714 = vadd.f32 %v7625, %v8530
  %v8715 = vadd.f32 %v7626, %v8535
  %v8716 = vadd.f32 %v7627, %v8538
  %v8717 = vadd.f32 %v7628, %v8543
  %v8718 = vadd.f32 %v7629, %v8546
  %v8719 = vadd.f32 %v7630, %v8551
  %v8720 = vadd.f32 %v7631, %v8554
  %v8721 = vadd.f32 %v7632, %v8559
  %v8722 = vadd.f32 %v7633, %v8562
  %v8723 = vadd.f32 %v7634, %v8567
  %v8724 = vadd.f32 %v7635, %v8570
  %v8725 = vadd.f32 %v7636, %v8575
  %v8726 = vadd.f32 %v7637, %v8578
  %v8727 = vadd.f32 %v7638, %v8583
  %v8728 = vadd.f32 %v7639, %v8586
  %v8729 = vadd.f32 %v7640, %v8591
  %v8730 = vadd.f32 %v7641, %v8594
  %v8731 = vadd.f32 %v7642, %v8599
  %v8732 = vadd.f32 %v7643, %v8602
  %v8733 = vadd.f32 %v7644, %v8607
  %v8734 = vadd.f32 %v7645, %v8610
  %v8735 = vadd.f32 %v7646, %v8615
  %v8736 = vadd.f32 %v7647, %v8618
  %v8737 = vadd.f32 %v7648, %v8623
  %v8738 = vadd.f32 %v7649, %v8626
  %v8739 = vadd.f32 %v7650, %v8631
  %v8740 = vadd.f32 %v7651, %v8634
  %v8741 = vadd.f32 %v7652, %v8639
  %v8742 = vadd.f32 %v7653, %v8642
  %v8743 = vadd.f32 %v7654, %v8647
  %v8744 = vadd.f32 %v7655, %v8650
  %v8745 = vadd.f32 %v7656, %v8655
  %v8746 = vadd.f32 %v7657, %v8658
  %v8747 = vadd.f32 %v7658, %v8663
  %v8748 = vadd.f32 %v7659, %v8666
  %v8749 = vld [vmem:[#allocation2 + $0x8] sm:$0xfe]
  %8750 = vrot.lane.b32.xlu0 %v2938, 120
  %v8751 = vpop.permute.xlu0 %8750
  %8752 = vrot.lane.b32.xlu0 %v2940, 120
  %v8753 = vpop.permute.xlu0 %8752
  %8754 = vrot.lane.b32.xlu0 %v2942, 120
  %v8755 = vpop.permute.xlu0 %8754
  %8756 = vrot.lane.b32.xlu0 %v2944, 120
  %v8757 = vpop.permute.xlu0 %8756
  %8758 = vrot.lane.b32.xlu0 %v2946, 120
  %v8759 = vpop.permute.xlu0 %8758
  %8760 = vrot.lane.b32.xlu0 %v2948, 120
  %v8761 = vpop.permute.xlu0 %8760
  %8762 = vrot.lane.b32.xlu0 %v2950, 120
  %v8763 = vpop.permute.xlu0 %8762
  %8764 = vrot.lane.b32.xlu0 %v2952, 120
  %v8765 = vpop.permute.xlu0 %8764
  %8766 = vrot.lane.b32.xlu0 %v2954, 120
  %v8767 = vpop.permute.xlu0 %8766
  %8768 = vrot.lane.b32.xlu0 %v2956, 120
  %v8769 = vpop.permute.xlu0 %8768
  %8770 = vrot.lane.b32.xlu0 %v2958, 120
  %v8771 = vpop.permute.xlu0 %8770
  %8772 = vrot.lane.b32.xlu0 %v2960, 120
  %v8773 = vpop.permute.xlu0 %8772
  %8774 = vrot.lane.b32.xlu0 %v2962, 120
  %v8775 = vpop.permute.xlu0 %8774
  %8776 = vrot.lane.b32.xlu0 %v2964, 120
  %v8777 = vpop.permute.xlu0 %8776
  %8778 = vrot.lane.b32.xlu0 %v2966, 120
  %v8779 = vpop.permute.xlu0 %8778
  %8780 = vrot.lane.b32.xlu0 %v2968, 120
  %v8781 = vpop.permute.xlu0 %8780
  %8782 = vrot.lane.b32.xlu0 %v2970, 120
  %v8783 = vpop.permute.xlu0 %8782
  %8784 = vrot.lane.b32.xlu0 %v2972, 120
  %v8785 = vpop.permute.xlu0 %8784
  %8786 = vrot.lane.b32.xlu0 %v2974, 120
  %v8787 = vpop.permute.xlu0 %8786
  %8788 = vrot.lane.b32.xlu0 %v2976, 120
  %v8789 = vpop.permute.xlu0 %8788
  %8790 = vrot.lane.b32.xlu0 %v2978, 120
  %v8791 = vpop.permute.xlu0 %8790
  %8792 = vrot.lane.b32.xlu0 %v2980, 120
  %v8793 = vpop.permute.xlu0 %8792
  %8794 = vrot.lane.b32.xlu0 %v2982, 120
  %v8795 = vpop.permute.xlu0 %8794
  %8796 = vrot.lane.b32.xlu0 %v2984, 120
  %v8797 = vpop.permute.xlu0 %8796
  %8798 = vrot.lane.b32.xlu0 %v2986, 120
  %v8799 = vpop.permute.xlu0 %8798
  %8800 = vrot.lane.b32.xlu0 %v2988, 120
  %v8801 = vpop.permute.xlu0 %8800
  %8802 = vrot.lane.b32.xlu0 %v2990, 120
  %v8803 = vpop.permute.xlu0 %8802
  %8804 = vrot.lane.b32.xlu0 %v2992, 120
  %v8805 = vpop.permute.xlu0 %8804
  %8806 = vrot.lane.b32.xlu0 %v2994, 120
  %v8807 = vpop.permute.xlu0 %8806
  %8808 = vrot.lane.b32.xlu0 %v2996, 120
  %v8809 = vpop.permute.xlu0 %8808
  %8810 = vrot.lane.b32.xlu0 %v2998, 120
  %v8811 = vpop.permute.xlu0 %8810
  %8812 = vrot.lane.b32.xlu0 %v3000, 120
  %v8813 = vpop.permute.xlu0 %8812
  %8814 = vrot.lane.b32.xlu0 %v3002, 120
  %v8815 = vpop.permute.xlu0 %8814
  %8816 = vrot.lane.b32.xlu0 %v3004, 120
  %v8817 = vpop.permute.xlu0 %8816
  %8818 = vrot.lane.b32.xlu0 %v3006, 120
  %v8819 = vpop.permute.xlu0 %8818
  %8820 = vrot.lane.b32.xlu0 %v3008, 120
  %v8821 = vpop.permute.xlu0 %8820
  %8822 = vrot.lane.b32.xlu0 %v3010, 120
  %v8823 = vpop.permute.xlu0 %8822
  %8824 = vrot.lane.b32.xlu0 %v3012, 120
  %v8825 = vpop.permute.xlu0 %8824
  %8826 = vrot.lane.b32.xlu0 %v3014, 120
  %v8827 = vpop.permute.xlu0 %8826
  %8828 = vrot.lane.b32.xlu0 %v3016, 120
  %v8829 = vpop.permute.xlu0 %8828
  %8830 = vrot.lane.b32.xlu0 %v3015, 120
  %v8831 = vpop.permute.xlu0 %8830
  %v8873 = vmul.bf16 %v8749, %v8751
  %v8874 = vmul.bf16 %v7661, %v8753
  %v8875 = vmul.bf16 %v7662, %v8755
  %v8876 = vmul.bf16 %v7663, %v8757
  %v8877 = vmul.bf16 %v7664, %v8759
  %v8878 = vmul.bf16 %v7665, %v8761
  %v8879 = vmul.bf16 %v7666, %v8763
  %v8880 = vmul.bf16 %v7667, %v8765
  %v8881 = vmul.bf16 %v7668, %v8767
  %v8882 = vmul.bf16 %v7669, %v8769
  %v8883 = vmul.bf16 %v7670, %v8771
  %v8884 = vmul.bf16 %v7671, %v8773
  %v8885 = vmul.bf16 %v7672, %v8775
  %v8886 = vmul.bf16 %v7673, %v8777
  %v8887 = vmul.bf16 %v7674, %v8779
  %v8888 = vmul.bf16 %v7675, %v8781
  %v8889 = vmul.bf16 %v7676, %v8783
  %v8890 = vmul.bf16 %v7677, %v8785
  %v8891 = vmul.bf16 %v7678, %v8787
  %v8892 = vmul.bf16 %v7679, %v8789
  %v8893 = vmul.bf16 %v7680, %v8791
  %v8894 = vmul.bf16 %v7681, %v8793
  %v8895 = vmul.bf16 %v7682, %v8795
  %v8896 = vmul.bf16 %v7683, %v8797
  %v8897 = vmul.bf16 %v7684, %v8799
  %v8898 = vmul.bf16 %v7685, %v8801
  %v8899 = vmul.bf16 %v7686, %v8803
  %v8900 = vmul.bf16 %v7687, %v8805
  %v8901 = vmul.bf16 %v7688, %v8807
  %v8902 = vmul.bf16 %v7689, %v8809
  %v8903 = vmul.bf16 %v7690, %v8811
  %v8904 = vmul.bf16 %v7691, %v8813
  %v8905 = vmul.bf16 %v7692, %v8815
  %v8906 = vmul.bf16 %v7693, %v8817
  %v8907 = vmul.bf16 %v7694, %v8819
  %v8908 = vmul.bf16 %v7695, %v8821
  %v8909 = vmul.bf16 %v7696, %v8823
  %v8910 = vmul.bf16 %v7697, %v8825
  %v8911 = vmul.bf16 %v7698, %v8827
  %v8912 = vmul.bf16 %v7699, %v8829
  %v8913 = vmul.bf16 %v7700, %v8831
  %v8914 = vld [vmem:[%s3 + $0x4] sm:$0x1]
  %v8956 = vrot.slane %v8873, 1
  %v8957 = vrot.slane %v8874, 1
  %v8958 = vsel %vm3223, %v8956, %v8957
  %v8959 = vrot.slane %v8875, 1
  %v8960 = vsel %vm3223, %v8957, %v8959
  %v8961 = vrot.slane %v8876, 1
  %v8962 = vsel %vm3223, %v8959, %v8961
  %v8963 = vrot.slane %v8877, 1
  %v8964 = vsel %vm3223, %v8961, %v8963
  %v8965 = vrot.slane %v8878, 1
  %v8966 = vsel %vm3223, %v8963, %v8965
  %v8967 = vrot.slane %v8879, 1
  %v8968 = vsel %vm3223, %v8965, %v8967
  %v8969 = vrot.slane %v8880, 1
  %v8970 = vsel %vm3223, %v8967, %v8969
  %v8971 = vrot.slane %v8881, 1
  %v8972 = vsel %vm3223, %v8969, %v8971
  %v8973 = vrot.slane %v8882, 1
  %v8974 = vsel %vm3223, %v8971, %v8973
  %v8975 = vrot.slane %v8883, 1
  %v8976 = vsel %vm3223, %v8973, %v8975
  %v8977 = vrot.slane %v8884, 1
  %v8978 = vsel %vm3223, %v8975, %v8977
  %v8979 = vrot.slane %v8885, 1
  %v8980 = vsel %vm3223, %v8977, %v8979
  %v8981 = vrot.slane %v8886, 1
  %v8982 = vsel %vm3223, %v8979, %v8981
  %v8983 = vrot.slane %v8887, 1
  %v8984 = vsel %vm3223, %v8981, %v8983
  %v8985 = vrot.slane %v8888, 1
  %v8986 = vsel %vm3223, %v8983, %v8985
  %v8987 = vrot.slane %v8889, 1
  %v8988 = vsel %vm3223, %v8985, %v8987
  %v8989 = vrot.slane %v8890, 1
  %v8990 = vsel %vm3223, %v8987, %v8989
  %v8991 = vrot.slane %v8891, 1
  %v8992 = vsel %vm3223, %v8989, %v8991
  %v8993 = vrot.slane %v8892, 1
  %v8994 = vsel %vm3223, %v8991, %v8993
  %v8995 = vrot.slane %v8893, 1
  %v8996 = vsel %vm3223, %v8993, %v8995
  %v8997 = vrot.slane %v8894, 1
  %v8998 = vsel %vm3223, %v8995, %v8997
  %v8999 = vrot.slane %v8895, 1
  %v9000 = vsel %vm3223, %v8997, %v8999
  %v9001 = vrot.slane %v8896, 1
  %v9002 = vsel %vm3223, %v8999, %v9001
  %v9003 = vrot.slane %v8897, 1
  %v9004 = vsel %vm3223, %v9001, %v9003
  %v9005 = vrot.slane %v8898, 1
  %v9006 = vsel %vm3223, %v9003, %v9005
  %v9007 = vrot.slane %v8899, 1
  %v9008 = vsel %vm3223, %v9005, %v9007
  %v9009 = vrot.slane %v8900, 1
  %v9010 = vsel %vm3223, %v9007, %v9009
  %v9011 = vrot.slane %v8901, 1
  %v9012 = vsel %vm3223, %v9009, %v9011
  %v9013 = vrot.slane %v8902, 1
  %v9014 = vsel %vm3223, %v9011, %v9013
  %v9015 = vrot.slane %v8903, 1
  %v9016 = vsel %vm3223, %v9013, %v9015
  %v9017 = vrot.slane %v8904, 1
  %v9018 = vsel %vm3223, %v9015, %v9017
  %v9019 = vrot.slane %v8905, 1
  %v9020 = vsel %vm3223, %v9017, %v9019
  %v9021 = vrot.slane %v8906, 1
  %v9022 = vsel %vm3223, %v9019, %v9021
  %v9023 = vrot.slane %v8907, 1
  %v9024 = vsel %vm3223, %v9021, %v9023
  %v9025 = vrot.slane %v8908, 1
  %v9026 = vsel %vm3223, %v9023, %v9025
  %v9027 = vrot.slane %v8909, 1
  %v9028 = vsel %vm3223, %v9025, %v9027
  %v9029 = vrot.slane %v8910, 1
  %v9030 = vsel %vm3223, %v9027, %v9029
  %v9031 = vrot.slane %v8911, 1
  %v9032 = vsel %vm3223, %v9029, %v9031
  %v9033 = vrot.slane %v8912, 1
  %v9034 = vsel %vm3223, %v9031, %v9033
  %v9035 = vrot.slane %v8913, 1
  %v9036 = vsel %vm3223, %v9033, %v9035
  %v9038 = vsel %vm363, %v8958, 0
  %v9041 = vsel %vm363, %v8960, 0
  %v9044 = vsel %vm363, %v8962, 0
  %v9047 = vsel %vm363, %v8964, 0
  %v9050 = vsel %vm363, %v8966, 0
  %v9053 = vsel %vm363, %v8968, 0
  %v9056 = vsel %vm363, %v8970, 0
  %v9059 = vsel %vm363, %v8972, 0
  %v9062 = vsel %vm363, %v8974, 0
  %v9065 = vsel %vm363, %v8976, 0
  %v9068 = vsel %vm363, %v8978, 0
  %v9071 = vsel %vm363, %v8980, 0
  %v9074 = vsel %vm363, %v8982, 0
  %v9077 = vsel %vm363, %v8984, 0
  %v9080 = vsel %vm363, %v8986, 0
  %v9083 = vsel %vm363, %v8988, 0
  %v9086 = vsel %vm363, %v8990, 0
  %v9089 = vsel %vm363, %v8992, 0
  %v9092 = vsel %vm363, %v8994, 0
  %v9095 = vsel %vm363, %v8996, 0
  %v9098 = vsel %vm363, %v8998, 0
  %v9101 = vsel %vm363, %v9000, 0
  %v9104 = vsel %vm363, %v9002, 0
  %v9107 = vsel %vm363, %v9004, 0
  %v9110 = vsel %vm363, %v9006, 0
  %v9113 = vsel %vm363, %v9008, 0
  %v9116 = vsel %vm363, %v9010, 0
  %v9119 = vsel %vm363, %v9012, 0
  %v9122 = vsel %vm363, %v9014, 0
  %v9125 = vsel %vm363, %v9016, 0
  %v9128 = vsel %vm363, %v9018, 0
  %v9131 = vsel %vm363, %v9020, 0
  %v9134 = vsel %vm363, %v9022, 0
  %v9137 = vsel %vm363, %v9024, 0
  %v9140 = vsel %vm363, %v9026, 0
  %v9143 = vsel %vm363, %v9028, 0
  %v9146 = vsel %vm363, %v9030, 0
  %v9149 = vsel %vm363, %v9032, 0
  %v9152 = vsel %vm363, %v9034, 0
  %v9155 = vsel %vm363, %v9036, 0
  %v9158 = vand.u32 %v8914, %v2103
  %9160 = vmatprep.subr.bf16.mxu0 0
  %9161 = vmatpush1.bf16.msra.mxu0 %v9158
  %9162 = vmatprep.subr.bf16.mxu0 0
  %9163 = vmatpush1.bf16.msra.mxu0 0
  %9164 = vmatprep.subr.bf16.mxu0 0
  %9165 = vmatpush1.bf16.msra.mxu0 0
  %9166 = vmatprep.subr.bf16.mxu0 0
  %9167 = vmatpush1.bf16.msra.mxu0 0
  %9168 = vmatprep.subr.bf16.mxu0 0
  %9169 = vmatpush1.bf16.msra.mxu0 0
  %9170 = vmatprep.subr.bf16.mxu0 0
  %9171 = vmatpush1.bf16.msra.mxu0 0
  %9172 = vmatprep.subr.bf16.mxu0 0
  %9173 = vmatpush1.bf16.msra.mxu0 0
  %9174 = vmatprep.subr.bf16.mxu0 0
  %9175 = vmatpush1.bf16.msra.mxu0 0
  %9176 = vmatprep.subr.bf16.mxu0 0
  %9177 = vmatpush1.bf16.msra.mxu0 0
  %9178 = vmatprep.subr.bf16.mxu0 0
  %9179 = vmatpush1.bf16.msra.mxu0 0
  %9180 = vmatprep.subr.bf16.mxu0 0
  %9181 = vmatpush1.bf16.msra.mxu0 0
  %9182 = vmatprep.subr.bf16.mxu0 0
  %9183 = vmatpush1.bf16.msra.mxu0 0
  %9184 = vmatprep.subr.bf16.mxu0 0
  %9185 = vmatpush1.bf16.msra.mxu0 0
  %9186 = vmatprep.subr.bf16.mxu0 0
  %9187 = vmatpush1.bf16.msra.mxu0 0
  %9188 = vmatprep.subr.bf16.mxu0 0
  %9189 = vmatpush1.bf16.msra.mxu0 0
  %9190 = vmatprep.subr.bf16.mxu0 0
  %9191 = vmatpush1.bf16.msra.mxu0 0
  %9192 = vmatprep.mubr.bf16.mxu0 0
  %9193 = vmatmul.mubr.bf16.gmra.mrb[0].mxu0 %v9038
  %v9194 = vpop.f32.mrb[0].mxu0
  %v9195 = vadd.f32 0.0, %v9194
  %v9196 = vpop.f32.mrb[0].mxu0
  %v9197 = vpop.f32.mrb[0].mxu0
  %v9198 = vadd.f32 0.0, %v9197
  %v9199 = vpop.f32.mrb[0].mxu0
  %9200 = vmatprep.mubr.bf16.mxu0 0
  %9201 = vmatmul.mubr.bf16.gmra.mrb[0].mxu0 %v9041
  %v9202 = vpop.f32.mrb[0].mxu0
  %v9203 = vadd.f32 0.0, %v9202
  %v9204 = vpop.f32.mrb[0].mxu0
  %v9205 = vpop.f32.mrb[0].mxu0
  %v9206 = vadd.f32 0.0, %v9205
  %v9207 = vpop.f32.mrb[0].mxu0
  %9208 = vmatprep.mubr.bf16.mxu0 0
  %9209 = vmatmul.mubr.bf16.gmra.mrb[0].mxu0 %v9044
  %v9210 = vpop.f32.mrb[0].mxu0
  %v9211 = vadd.f32 0.0, %v9210
  %v9212 = vpop.f32.mrb[0].mxu0
  %v9213 = vpop.f32.mrb[0].mxu0
  %v9214 = vadd.f32 0.0, %v9213
  %v9215 = vpop.f32.mrb[0].mxu0
  %9216 = vmatprep.mubr.bf16.mxu0 0
  %9217 = vmatmul.mubr.bf16.gmra.mrb[0].mxu0 %v9047
  %v9218 = vpop.f32.mrb[0].mxu0
  %v9219 = vadd.f32 0.0, %v9218
  %v9220 = vpop.f32.mrb[0].mxu0
  %v9221 = vpop.f32.mrb[0].mxu0
  %v9222 = vadd.f32 0.0, %v9221
  %v9223 = vpop.f32.mrb[0].mxu0
  %9224 = vmatprep.mubr.bf16.mxu0 0
  %9225 = vmatmul.mubr.bf16.gmra.mrb[0].mxu0 %v9050
  %v9226 = vpop.f32.mrb[0].mxu0
  %v9227 = vadd.f32 0.0, %v9226
  %v9228 = vpop.f32.mrb[0].mxu0
  %v9229 = vpop.f32.mrb[0].mxu0
  %v9230 = vadd.f32 0.0, %v9229
  %v9231 = vpop.f32.mrb[0].mxu0
  %9232 = vmatprep.mubr.bf16.mxu0 0
  %9233 = vmatmul.mubr.bf16.gmra.mrb[0].mxu0 %v9053
  %v9234 = vpop.f32.mrb[0].mxu0
  %v9235 = vadd.f32 0.0, %v9234
  %v9236 = vpop.f32.mrb[0].mxu0
  %v9237 = vpop.f32.mrb[0].mxu0
  %v9238 = vadd.f32 0.0, %v9237
  %v9239 = vpop.f32.mrb[0].mxu0
  %9240 = vmatprep.mubr.bf16.mxu0 0
  %9241 = vmatmul.mubr.bf16.gmra.mrb[0].mxu0 %v9056
  %v9242 = vpop.f32.mrb[0].mxu0
  %v9243 = vadd.f32 0.0, %v9242
  %v9244 = vpop.f32.mrb[0].mxu0
  %v9245 = vpop.f32.mrb[0].mxu0
  %v9246 = vadd.f32 0.0, %v9245
  %v9247 = vpop.f32.mrb[0].mxu0
  %9248 = vmatprep.mubr.bf16.mxu0 0
  %9249 = vmatmul.mubr.bf16.gmra.mrb[0].mxu0 %v9059
  %v9250 = vpop.f32.mrb[0].mxu0
  %v9251 = vadd.f32 0.0, %v9250
  %v9252 = vpop.f32.mrb[0].mxu0
  %v9253 = vpop.f32.mrb[0].mxu0
  %v9254 = vadd.f32 0.0, %v9253
  %v9255 = vpop.f32.mrb[0].mxu0
  %9256 = vmatprep.mubr.bf16.mxu0 0
  %9257 = vmatmul.mubr.bf16.gmra.mrb[0].mxu0 %v9062
  %v9258 = vpop.f32.mrb[0].mxu0
  %v9259 = vadd.f32 0.0, %v9258
  %v9260 = vpop.f32.mrb[0].mxu0
  %v9261 = vpop.f32.mrb[0].mxu0
  %v9262 = vadd.f32 0.0, %v9261
  %v9263 = vpop.f32.mrb[0].mxu0
  %9264 = vmatprep.mubr.bf16.mxu0 0
  %9265 = vmatmul.mubr.bf16.gmra.mrb[0].mxu0 %v9065
  %v9266 = vpop.f32.mrb[0].mxu0
  %v9267 = vadd.f32 0.0, %v9266
  %v9268 = vpop.f32.mrb[0].mxu0
  %v9269 = vpop.f32.mrb[0].mxu0
  %v9270 = vadd.f32 0.0, %v9269
  %v9271 = vpop.f32.mrb[0].mxu0
  %9272 = vmatprep.mubr.bf16.mxu0 0
  %9273 = vmatmul.mubr.bf16.gmra.mrb[0].mxu0 %v9068
  %v9274 = vpop.f32.mrb[0].mxu0
  %v9275 = vadd.f32 0.0, %v9274
  %v9276 = vpop.f32.mrb[0].mxu0
  %v9277 = vpop.f32.mrb[0].mxu0
  %v9278 = vadd.f32 0.0, %v9277
  %v9279 = vpop.f32.mrb[0].mxu0
  %9280 = vmatprep.mubr.bf16.mxu0 0
  %9281 = vmatmul.mubr.bf16.gmra.mrb[0].mxu0 %v9071
  %v9282 = vpop.f32.mrb[0].mxu0
  %v9283 = vadd.f32 0.0, %v9282
  %v9284 = vpop.f32.mrb[0].mxu0
  %v9285 = vpop.f32.mrb[0].mxu0
  %v9286 = vadd.f32 0.0, %v9285
  %v9287 = vpop.f32.mrb[0].mxu0
  %9288 = vmatprep.mubr.bf16.mxu0 0
  %9289 = vmatmul.mubr.bf16.gmra.mrb[0].mxu0 %v9074
  %v9290 = vpop.f32.mrb[0].mxu0
  %v9291 = vadd.f32 0.0, %v9290
  %v9292 = vpop.f32.mrb[0].mxu0
  %v9293 = vpop.f32.mrb[0].mxu0
  %v9294 = vadd.f32 0.0, %v9293
  %v9295 = vpop.f32.mrb[0].mxu0
  %9296 = vmatprep.mubr.bf16.mxu0 0
  %9297 = vmatmul.mubr.bf16.gmra.mrb[0].mxu0 %v9077
  %v9298 = vpop.f32.mrb[0].mxu0
  %v9299 = vadd.f32 0.0, %v9298
  %v9300 = vpop.f32.mrb[0].mxu0
  %v9301 = vpop.f32.mrb[0].mxu0
  %v9302 = vadd.f32 0.0, %v9301
  %v9303 = vpop.f32.mrb[0].mxu0
  %9304 = vmatprep.mubr.bf16.mxu0 0
  %9305 = vmatmul.mubr.bf16.gmra.mrb[0].mxu0 %v9080
  %v9306 = vpop.f32.mrb[0].mxu0
  %v9307 = vadd.f32 0.0, %v9306
  %v9308 = vpop.f32.mrb[0].mxu0
  %v9309 = vpop.f32.mrb[0].mxu0
  %v9310 = vadd.f32 0.0, %v9309
  %v9311 = vpop.f32.mrb[0].mxu0
  %9312 = vmatprep.mubr.bf16.mxu0 0
  %9313 = vmatmul.mubr.bf16.gmra.mrb[0].mxu0 %v9083
  %v9314 = vpop.f32.mrb[0].mxu0
  %v9315 = vadd.f32 0.0, %v9314
  %v9316 = vpop.f32.mrb[0].mxu0
  %v9317 = vpop.f32.mrb[0].mxu0
  %v9318 = vadd.f32 0.0, %v9317
  %v9319 = vpop.f32.mrb[0].mxu0
  %9320 = vmatprep.mubr.bf16.mxu0 0
  %9321 = vmatmul.mubr.bf16.gmra.mrb[0].mxu0 %v9086
  %v9322 = vpop.f32.mrb[0].mxu0
  %v9323 = vadd.f32 0.0, %v9322
  %v9324 = vpop.f32.mrb[0].mxu0
  %v9325 = vpop.f32.mrb[0].mxu0
  %v9326 = vadd.f32 0.0, %v9325
  %v9327 = vpop.f32.mrb[0].mxu0
  %9328 = vmatprep.mubr.bf16.mxu0 0
  %9329 = vmatmul.mubr.bf16.gmra.mrb[0].mxu0 %v9089
  %v9330 = vpop.f32.mrb[0].mxu0
  %v9331 = vadd.f32 0.0, %v9330
  %v9332 = vpop.f32.mrb[0].mxu0
  %v9333 = vpop.f32.mrb[0].mxu0
  %v9334 = vadd.f32 0.0, %v9333
  %v9335 = vpop.f32.mrb[0].mxu0
  %9336 = vmatprep.mubr.bf16.mxu0 0
  %9337 = vmatmul.mubr.bf16.gmra.mrb[0].mxu0 %v9092
  %v9338 = vpop.f32.mrb[0].mxu0
  %v9339 = vadd.f32 0.0, %v9338
  %v9340 = vpop.f32.mrb[0].mxu0
  %v9341 = vpop.f32.mrb[0].mxu0
  %v9342 = vadd.f32 0.0, %v9341
  %v9343 = vpop.f32.mrb[0].mxu0
  %9344 = vmatprep.mubr.bf16.mxu0 0
  %9345 = vmatmul.mubr.bf16.gmra.mrb[0].mxu0 %v9095
  %v9346 = vpop.f32.mrb[0].mxu0
  %v9347 = vadd.f32 0.0, %v9346
  %v9348 = vpop.f32.mrb[0].mxu0
  %v9349 = vpop.f32.mrb[0].mxu0
  %v9350 = vadd.f32 0.0, %v9349
  %v9351 = vpop.f32.mrb[0].mxu0
  %9352 = vmatprep.mubr.bf16.mxu0 0
  %9353 = vmatmul.mubr.bf16.gmra.mrb[0].mxu0 %v9098
  %v9354 = vpop.f32.mrb[0].mxu0
  %v9355 = vadd.f32 0.0, %v9354
  %v9356 = vpop.f32.mrb[0].mxu0
  %v9357 = vpop.f32.mrb[0].mxu0
  %v9358 = vadd.f32 0.0, %v9357
  %v9359 = vpop.f32.mrb[0].mxu0
  %9360 = vmatprep.mubr.bf16.mxu0 0
  %9361 = vmatmul.mubr.bf16.gmra.mrb[0].mxu0 %v9101
  %v9362 = vpop.f32.mrb[0].mxu0
  %v9363 = vadd.f32 0.0, %v9362
  %v9364 = vpop.f32.mrb[0].mxu0
  %v9365 = vpop.f32.mrb[0].mxu0
  %v9366 = vadd.f32 0.0, %v9365
  %v9367 = vpop.f32.mrb[0].mxu0
  %9368 = vmatprep.mubr.bf16.mxu0 0
  %9369 = vmatmul.mubr.bf16.gmra.mrb[0].mxu0 %v9104
  %v9370 = vpop.f32.mrb[0].mxu0
  %v9371 = vadd.f32 0.0, %v9370
  %v9372 = vpop.f32.mrb[0].mxu0
  %v9373 = vpop.f32.mrb[0].mxu0
  %v9374 = vadd.f32 0.0, %v9373
  %v9375 = vpop.f32.mrb[0].mxu0
  %9376 = vmatprep.mubr.bf16.mxu0 0
  %9377 = vmatmul.mubr.bf16.gmra.mrb[0].mxu0 %v9107
  %v9378 = vpop.f32.mrb[0].mxu0
  %v9379 = vadd.f32 0.0, %v9378
  %v9380 = vpop.f32.mrb[0].mxu0
  %v9381 = vpop.f32.mrb[0].mxu0
  %v9382 = vadd.f32 0.0, %v9381
  %v9383 = vpop.f32.mrb[0].mxu0
  %9384 = vmatprep.mubr.bf16.mxu0 0
  %9385 = vmatmul.mubr.bf16.gmra.mrb[0].mxu0 %v9110
  %v9386 = vpop.f32.mrb[0].mxu0
  %v9387 = vadd.f32 0.0, %v9386
  %v9388 = vpop.f32.mrb[0].mxu0
  %v9389 = vpop.f32.mrb[0].mxu0
  %v9390 = vadd.f32 0.0, %v9389
  %v9391 = vpop.f32.mrb[0].mxu0
  %9392 = vmatprep.mubr.bf16.mxu0 0
  %9393 = vmatmul.mubr.bf16.gmra.mrb[0].mxu0 %v9113
  %v9394 = vpop.f32.mrb[0].mxu0
  %v9395 = vadd.f32 0.0, %v9394
  %v9396 = vpop.f32.mrb[0].mxu0
  %v9397 = vpop.f32.mrb[0].mxu0
  %v9398 = vadd.f32 0.0, %v9397
  %v9399 = vpop.f32.mrb[0].mxu0
  %9400 = vmatprep.mubr.bf16.mxu0 0
  %9401 = vmatmul.mubr.bf16.gmra.mrb[0].mxu0 %v9116
  %v9402 = vpop.f32.mrb[0].mxu0
  %v9403 = vadd.f32 0.0, %v9402
  %v9404 = vpop.f32.mrb[0].mxu0
  %v9405 = vpop.f32.mrb[0].mxu0
  %v9406 = vadd.f32 0.0, %v9405
  %v9407 = vpop.f32.mrb[0].mxu0
  %9408 = vmatprep.mubr.bf16.mxu0 0
  %9409 = vmatmul.mubr.bf16.gmra.mrb[0].mxu0 %v9119
  %v9410 = vpop.f32.mrb[0].mxu0
  %v9411 = vadd.f32 0.0, %v9410
  %v9412 = vpop.f32.mrb[0].mxu0
  %v9413 = vpop.f32.mrb[0].mxu0
  %v9414 = vadd.f32 0.0, %v9413
  %v9415 = vpop.f32.mrb[0].mxu0
  %9416 = vmatprep.mubr.bf16.mxu0 0
  %9417 = vmatmul.mubr.bf16.gmra.mrb[0].mxu0 %v9122
  %v9418 = vpop.f32.mrb[0].mxu0
  %v9419 = vadd.f32 0.0, %v9418
  %v9420 = vpop.f32.mrb[0].mxu0
  %v9421 = vpop.f32.mrb[0].mxu0
  %v9422 = vadd.f32 0.0, %v9421
  %v9423 = vpop.f32.mrb[0].mxu0
  %9424 = vmatprep.mubr.bf16.mxu0 0
  %9425 = vmatmul.mubr.bf16.gmra.mrb[0].mxu0 %v9125
  %v9426 = vpop.f32.mrb[0].mxu0
  %v9427 = vadd.f32 0.0, %v9426
  %v9428 = vpop.f32.mrb[0].mxu0
  %v9429 = vpop.f32.mrb[0].mxu0
  %v9430 = vadd.f32 0.0, %v9429
  %v9431 = vpop.f32.mrb[0].mxu0
  %9432 = vmatprep.mubr.bf16.mxu0 0
  %9433 = vmatmul.mubr.bf16.gmra.mrb[0].mxu0 %v9128
  %v9434 = vpop.f32.mrb[0].mxu0
  %v9435 = vadd.f32 0.0, %v9434
  %v9436 = vpop.f32.mrb[0].mxu0
  %v9437 = vpop.f32.mrb[0].mxu0
  %v9438 = vadd.f32 0.0, %v9437
  %v9439 = vpop.f32.mrb[0].mxu0
  %9440 = vmatprep.mubr.bf16.mxu0 0
  %9441 = vmatmul.mubr.bf16.gmra.mrb[0].mxu0 %v9131
  %v9442 = vpop.f32.mrb[0].mxu0
  %v9443 = vadd.f32 0.0, %v9442
  %v9444 = vpop.f32.mrb[0].mxu0
  %v9445 = vpop.f32.mrb[0].mxu0
  %v9446 = vadd.f32 0.0, %v9445
  %v9447 = vpop.f32.mrb[0].mxu0
  %9448 = vmatprep.mubr.bf16.mxu0 0
  %9449 = vmatmul.mubr.bf16.gmra.mrb[0].mxu0 %v9134
  %v9450 = vpop.f32.mrb[0].mxu0
  %v9451 = vadd.f32 0.0, %v9450
  %v9452 = vpop.f32.mrb[0].mxu0
  %v9453 = vpop.f32.mrb[0].mxu0
  %v9454 = vadd.f32 0.0, %v9453
  %v9455 = vpop.f32.mrb[0].mxu0
  %9456 = vmatprep.mubr.bf16.mxu0 0
  %9457 = vmatmul.mubr.bf16.gmra.mrb[0].mxu0 %v9137
  %v9458 = vpop.f32.mrb[0].mxu0
  %v9459 = vadd.f32 0.0, %v9458
  %v9460 = vpop.f32.mrb[0].mxu0
  %v9461 = vpop.f32.mrb[0].mxu0
  %v9462 = vadd.f32 0.0, %v9461
  %v9463 = vpop.f32.mrb[0].mxu0
  %9464 = vmatprep.mubr.bf16.mxu0 0
  %9465 = vmatmul.mubr.bf16.gmra.mrb[0].mxu0 %v9140
  %v9466 = vpop.f32.mrb[0].mxu0
  %v9467 = vadd.f32 0.0, %v9466
  %v9468 = vpop.f32.mrb[0].mxu0
  %v9469 = vpop.f32.mrb[0].mxu0
  %v9470 = vadd.f32 0.0, %v9469
  %v9471 = vpop.f32.mrb[0].mxu0
  %9472 = vmatprep.mubr.bf16.mxu0 0
  %9473 = vmatmul.mubr.bf16.gmra.mrb[0].mxu0 %v9143
  %v9474 = vpop.f32.mrb[0].mxu0
  %v9475 = vadd.f32 0.0, %v9474
  %v9476 = vpop.f32.mrb[0].mxu0
  %v9477 = vpop.f32.mrb[0].mxu0
  %v9478 = vadd.f32 0.0, %v9477
  %v9479 = vpop.f32.mrb[0].mxu0
  %9480 = vmatprep.mubr.bf16.mxu0 0
  %9481 = vmatmul.mubr.bf16.gmra.mrb[0].mxu0 %v9146
  %v9482 = vpop.f32.mrb[0].mxu0
  %v9483 = vadd.f32 0.0, %v9482
  %v9484 = vpop.f32.mrb[0].mxu0
  %v9485 = vpop.f32.mrb[0].mxu0
  %v9486 = vadd.f32 0.0, %v9485
  %v9487 = vpop.f32.mrb[0].mxu0
  %9488 = vmatprep.mubr.bf16.mxu0 0
  %9489 = vmatmul.mubr.bf16.gmra.mrb[0].mxu0 %v9149
  %v9490 = vpop.f32.mrb[0].mxu0
  %v9491 = vadd.f32 0.0, %v9490
  %v9492 = vpop.f32.mrb[0].mxu0
  %v9493 = vpop.f32.mrb[0].mxu0
  %v9494 = vadd.f32 0.0, %v9493
  %v9495 = vpop.f32.mrb[0].mxu0
  %9496 = vmatprep.mubr.bf16.mxu0 0
  %9497 = vmatmul.mubr.bf16.gmra.mrb[0].mxu0 %v9152
  %v9498 = vpop.f32.mrb[0].mxu0
  %v9499 = vadd.f32 0.0, %v9498
  %v9500 = vpop.f32.mrb[0].mxu0
  %v9501 = vpop.f32.mrb[0].mxu0
  %v9502 = vadd.f32 0.0, %v9501
  %v9503 = vpop.f32.mrb[0].mxu0
  %9504 = vmatprep.mubr.bf16.mxu0 0
  %9505 = vmatmul.mubr.bf16.gmra.mrb[0].mxu0 %v9155
  %v9506 = vpop.f32.mrb[0].mxu0
  %v9507 = vadd.f32 0.0, %v9506
  %v9508 = vpop.f32.mrb[0].mxu0
  %v9509 = vpop.f32.mrb[0].mxu0
  %v9510 = vadd.f32 0.0, %v9509
  %v9511 = vpop.f32.mrb[0].mxu0
  %9512 = vdwg.mxu0
  %v9513 = vadd.f32 %v8669, %v9195
  %v9514 = vadd.f32 %v8670, %v9198
  %v9515 = vadd.f32 %v8671, %v9203
  %v9516 = vadd.f32 %v8672, %v9206
  %v9517 = vadd.f32 %v8673, %v9211
  %v9518 = vadd.f32 %v8674, %v9214
  %v9519 = vadd.f32 %v8675, %v9219
  %v9520 = vadd.f32 %v8676, %v9222
  %v9521 = vadd.f32 %v8677, %v9227
  %v9522 = vadd.f32 %v8678, %v9230
  %v9523 = vadd.f32 %v8679, %v9235
  %v9524 = vadd.f32 %v8680, %v9238
  %v9525 = vadd.f32 %v8681, %v9243
  %v9526 = vadd.f32 %v8682, %v9246
  %v9527 = vadd.f32 %v8683, %v9251
  %v9528 = vadd.f32 %v8684, %v9254
  %v9529 = vadd.f32 %v8685, %v9259
  %v9530 = vadd.f32 %v8686, %v9262
  %v9531 = vadd.f32 %v8687, %v9267
  %v9532 = vadd.f32 %v8688, %v9270
  %v9533 = vadd.f32 %v8689, %v9275
  %v9534 = vadd.f32 %v8690, %v9278
  %v9535 = vadd.f32 %v8691, %v9283
  %v9536 = vadd.f32 %v8692, %v9286
  %v9537 = vadd.f32 %v8693, %v9291
  %v9538 = vadd.f32 %v8694, %v9294
  %v9539 = vadd.f32 %v8695, %v9299
  %v9540 = vadd.f32 %v8696, %v9302
  %v9541 = vadd.f32 %v8697, %v9307
  %v9542 = vadd.f32 %v8698, %v9310
  %v9543 = vadd.f32 %v8699, %v9315
  %v9544 = vadd.f32 %v8700, %v9318
  %v9545 = vadd.f32 %v8701, %v9323
  %v9546 = vadd.f32 %v8702, %v9326
  %v9547 = vadd.f32 %v8703, %v9331
  %v9548 = vadd.f32 %v8704, %v9334
  %v9549 = vadd.f32 %v8705, %v9339
  %v9550 = vadd.f32 %v8706, %v9342
  %v9551 = vadd.f32 %v8707, %v9347
  %v9552 = vadd.f32 %v8708, %v9350
  %v9553 = vadd.f32 %v8709, %v9355
  %v9554 = vadd.f32 %v8710, %v9358
  %v9555 = vadd.f32 %v8711, %v9363
  %v9556 = vadd.f32 %v8712, %v9366
  %v9557 = vadd.f32 %v8713, %v9371
  %v9558 = vadd.f32 %v8714, %v9374
  %v9559 = vadd.f32 %v8715, %v9379
  %v9560 = vadd.f32 %v8716, %v9382
  %v9561 = vadd.f32 %v8717, %v9387
  %v9562 = vadd.f32 %v8718, %v9390
  %v9563 = vadd.f32 %v8719, %v9395
  %v9564 = vadd.f32 %v8720, %v9398
  %v9565 = vadd.f32 %v8721, %v9403
  %v9566 = vadd.f32 %v8722, %v9406
  %v9567 = vadd.f32 %v8723, %v9411
  %v9568 = vadd.f32 %v8724, %v9414
  %v9569 = vadd.f32 %v8725, %v9419
  %v9570 = vadd.f32 %v8726, %v9422
  %v9571 = vadd.f32 %v8727, %v9427
  %v9572 = vadd.f32 %v8728, %v9430
  %v9573 = vadd.f32 %v8729, %v9435
  %v9574 = vadd.f32 %v8730, %v9438
  %v9575 = vadd.f32 %v8731, %v9443
  %v9576 = vadd.f32 %v8732, %v9446
  %v9577 = vadd.f32 %v8733, %v9451
  %v9578 = vadd.f32 %v8734, %v9454
  %v9579 = vadd.f32 %v8735, %v9459
  %v9580 = vadd.f32 %v8736, %v9462
  %v9581 = vadd.f32 %v8737, %v9467
  %v9582 = vadd.f32 %v8738, %v9470
  %v9583 = vadd.f32 %v8739, %v9475
  %v9584 = vadd.f32 %v8740, %v9478
  %v9585 = vadd.f32 %v8741, %v9483
  %v9586 = vadd.f32 %v8742, %v9486
  %v9587 = vadd.f32 %v8743, %v9491
  %v9588 = vadd.f32 %v8744, %v9494
  %v9589 = vadd.f32 %v8745, %v9499
  %v9590 = vadd.f32 %v8746, %v9502
  %v9591 = vadd.f32 %v8747, %v9507
  %v9592 = vadd.f32 %v8748, %v9510
  %v9593 = vld [vmem:[%s4] sm:$0x1]
  %v9595 = vlaneseq
  %v9596 = vshrl.u32 %v9595, 7
  %v9597 = vsub.s32 0, %v9596
  %v9598 = vrot.slane %v9593, %v9597
  %v9600 = vadd.f32 %v9513, %v9598
  %v9601 = vadd.f32 %v9514, %v9598
  %v9602 = vadd.f32 %v9515, %v9598
  %v9603 = vadd.f32 %v9516, %v9598
  %v9604 = vadd.f32 %v9517, %v9598
  %v9605 = vadd.f32 %v9518, %v9598
  %v9606 = vadd.f32 %v9519, %v9598
  %v9607 = vadd.f32 %v9520, %v9598
  %v9608 = vadd.f32 %v9521, %v9598
  %v9609 = vadd.f32 %v9522, %v9598
  %v9610 = vadd.f32 %v9523, %v9598
  %v9611 = vadd.f32 %v9524, %v9598
  %v9612 = vadd.f32 %v9525, %v9598
  %v9613 = vadd.f32 %v9526, %v9598
  %v9614 = vadd.f32 %v9527, %v9598
  %v9615 = vadd.f32 %v9528, %v9598
  %v9616 = vadd.f32 %v9529, %v9598
  %v9617 = vadd.f32 %v9530, %v9598
  %v9618 = vadd.f32 %v9531, %v9598
  %v9619 = vadd.f32 %v9532, %v9598
  %v9620 = vadd.f32 %v9533, %v9598
  %v9621 = vadd.f32 %v9534, %v9598
  %v9622 = vadd.f32 %v9535, %v9598
  %v9623 = vadd.f32 %v9536, %v9598
  %v9624 = vadd.f32 %v9537, %v9598
  %v9625 = vadd.f32 %v9538, %v9598
  %v9626 = vadd.f32 %v9539, %v9598
  %v9627 = vadd.f32 %v9540, %v9598
  %v9628 = vadd.f32 %v9541, %v9598
  %v9629 = vadd.f32 %v9542, %v9598
  %v9630 = vadd.f32 %v9543, %v9598
  %v9631 = vadd.f32 %v9544, %v9598
  %v9632 = vadd.f32 %v9545, %v9598
  %v9633 = vadd.f32 %v9546, %v9598
  %v9634 = vadd.f32 %v9547, %v9598
  %v9635 = vadd.f32 %v9548, %v9598
  %v9636 = vadd.f32 %v9549, %v9598
  %v9637 = vadd.f32 %v9550, %v9598
  %v9638 = vadd.f32 %v9551, %v9598
  %v9639 = vadd.f32 %v9552, %v9598
  %v9640 = vadd.f32 %v9553, %v9598
  %v9641 = vadd.f32 %v9554, %v9598
  %v9642 = vadd.f32 %v9555, %v9598
  %v9643 = vadd.f32 %v9556, %v9598
  %v9644 = vadd.f32 %v9557, %v9598
  %v9645 = vadd.f32 %v9558, %v9598
  %v9646 = vadd.f32 %v9559, %v9598
  %v9647 = vadd.f32 %v9560, %v9598
  %v9648 = vadd.f32 %v9561, %v9598
  %v9649 = vadd.f32 %v9562, %v9598
  %v9650 = vadd.f32 %v9563, %v9598
  %v9651 = vadd.f32 %v9564, %v9598
  %v9652 = vadd.f32 %v9565, %v9598
  %v9653 = vadd.f32 %v9566, %v9598
  %v9654 = vadd.f32 %v9567, %v9598
  %v9655 = vadd.f32 %v9568, %v9598
  %v9656 = vadd.f32 %v9569, %v9598
  %v9657 = vadd.f32 %v9570, %v9598
  %v9658 = vadd.f32 %v9571, %v9598
  %v9659 = vadd.f32 %v9572, %v9598
  %v9660 = vadd.f32 %v9573, %v9598
  %v9661 = vadd.f32 %v9574, %v9598
  %v9662 = vadd.f32 %v9575, %v9598
  %v9663 = vadd.f32 %v9576, %v9598
  %v9664 = vadd.f32 %v9577, %v9598
  %v9665 = vadd.f32 %v9578, %v9598
  %v9666 = vadd.f32 %v9579, %v9598
  %v9667 = vadd.f32 %v9580, %v9598
  %v9668 = vadd.f32 %v9581, %v9598
  %v9669 = vadd.f32 %v9582, %v9598
  %v9670 = vadd.f32 %v9583, %v9598
  %v9671 = vadd.f32 %v9584, %v9598
  %v9672 = vadd.f32 %v9585, %v9598
  %v9673 = vadd.f32 %v9586, %v9598
  %v9674 = vadd.f32 %v9587, %v9598
  %v9675 = vadd.f32 %v9588, %v9598
  %v9676 = vadd.f32 %v9589, %v9598
  %v9677 = vadd.f32 %v9590, %v9598
  %v9678 = vadd.f32 %v9591, %v9598
  %v9679 = vadd.f32 %v9592, %v9598
  %v9680 = vmax.f32 %v9600, 0.0
  %v9681 = vmax.f32 %v9601, 0.0
  %v9682 = vmax.f32 %v9602, 0.0
  %v9683 = vmax.f32 %v9603, 0.0
  %v9684 = vmax.f32 %v9604, 0.0
  %v9685 = vmax.f32 %v9605, 0.0
  %v9686 = vmax.f32 %v9606, 0.0
  %v9687 = vmax.f32 %v9607, 0.0
  %v9688 = vmax.f32 %v9608, 0.0
  %v9689 = vmax.f32 %v9609, 0.0
  %v9690 = vmax.f32 %v9610, 0.0
  %v9691 = vmax.f32 %v9611, 0.0
  %v9692 = vmax.f32 %v9612, 0.0
  %v9693 = vmax.f32 %v9613, 0.0
  %v9694 = vmax.f32 %v9614, 0.0
  %v9695 = vmax.f32 %v9615, 0.0
  %v9696 = vmax.f32 %v9616, 0.0
  %v9697 = vmax.f32 %v9617, 0.0
  %v9698 = vmax.f32 %v9618, 0.0
  %v9699 = vmax.f32 %v9619, 0.0
  %v9700 = vmax.f32 %v9620, 0.0
  %v9701 = vmax.f32 %v9621, 0.0
  %v9702 = vmax.f32 %v9622, 0.0
  %v9703 = vmax.f32 %v9623, 0.0
  %v9704 = vmax.f32 %v9624, 0.0
  %v9705 = vmax.f32 %v9625, 0.0
  %v9706 = vmax.f32 %v9626, 0.0
  %v9707 = vmax.f32 %v9627, 0.0
  %v9708 = vmax.f32 %v9628, 0.0
  %v9709 = vmax.f32 %v9629, 0.0
  %v9710 = vmax.f32 %v9630, 0.0
  %v9711 = vmax.f32 %v9631, 0.0
  %v9712 = vmax.f32 %v9632, 0.0
  %v9713 = vmax.f32 %v9633, 0.0
  %v9714 = vmax.f32 %v9634, 0.0
  %v9715 = vmax.f32 %v9635, 0.0
  %v9716 = vmax.f32 %v9636, 0.0
  %v9717 = vmax.f32 %v9637, 0.0
  %v9718 = vmax.f32 %v9638, 0.0
  %v9719 = vmax.f32 %v9639, 0.0
  %v9720 = vmax.f32 %v9640, 0.0
  %v9721 = vmax.f32 %v9641, 0.0
  %v9722 = vmax.f32 %v9642, 0.0
  %v9723 = vmax.f32 %v9643, 0.0
  %v9724 = vmax.f32 %v9644, 0.0
  %v9725 = vmax.f32 %v9645, 0.0
  %v9726 = vmax.f32 %v9646, 0.0
  %v9727 = vmax.f32 %v9647, 0.0
  %v9728 = vmax.f32 %v9648, 0.0
  %v9729 = vmax.f32 %v9649, 0.0
  %v9730 = vmax.f32 %v9650, 0.0
  %v9731 = vmax.f32 %v9651, 0.0
  %v9732 = vmax.f32 %v9652, 0.0
  %v9733 = vmax.f32 %v9653, 0.0
  %v9734 = vmax.f32 %v9654, 0.0
  %v9735 = vmax.f32 %v9655, 0.0
  %v9736 = vmax.f32 %v9656, 0.0
  %v9737 = vmax.f32 %v9657, 0.0
  %v9738 = vmax.f32 %v9658, 0.0
  %v9739 = vmax.f32 %v9659, 0.0
  %v9740 = vmax.f32 %v9660, 0.0
  %v9741 = vmax.f32 %v9661, 0.0
  %v9742 = vmax.f32 %v9662, 0.0
  %v9743 = vmax.f32 %v9663, 0.0
  %v9744 = vmax.f32 %v9664, 0.0
  %v9745 = vmax.f32 %v9665, 0.0
  %v9746 = vmax.f32 %v9666, 0.0
  %v9747 = vmax.f32 %v9667, 0.0
  %v9748 = vmax.f32 %v9668, 0.0
  %v9749 = vmax.f32 %v9669, 0.0
  %v9750 = vmax.f32 %v9670, 0.0
  %v9751 = vmax.f32 %v9671, 0.0
  %v9752 = vmax.f32 %v9672, 0.0
  %v9753 = vmax.f32 %v9673, 0.0
  %v9754 = vmax.f32 %v9674, 0.0
  %v9755 = vmax.f32 %v9675, 0.0
  %v9756 = vmax.f32 %v9676, 0.0
  %v9757 = vmax.f32 %v9677, 0.0
  %v9758 = vmax.f32 %v9678, 0.0
  %v9759 = vmax.f32 %v9679, 0.0
  %v9760 = vpack.c.bf16 %v9681, %v9680
  %v9761 = vpack.c.bf16 %v9683, %v9682
  %v9762 = vpack.c.bf16 %v9685, %v9684
  %v9763 = vpack.c.bf16 %v9687, %v9686
  %v9764 = vpack.c.bf16 %v9689, %v9688
  %v9765 = vpack.c.bf16 %v9691, %v9690
  %v9766 = vpack.c.bf16 %v9693, %v9692
  %v9767 = vpack.c.bf16 %v9695, %v9694
  %v9768 = vpack.c.bf16 %v9697, %v9696
  %v9769 = vpack.c.bf16 %v9699, %v9698
  %v9770 = vpack.c.bf16 %v9701, %v9700
  %v9771 = vpack.c.bf16 %v9703, %v9702
  %v9772 = vpack.c.bf16 %v9705, %v9704
  %v9773 = vpack.c.bf16 %v9707, %v9706
  %v9774 = vpack.c.bf16 %v9709, %v9708
  %v9775 = vpack.c.bf16 %v9711, %v9710
  %v9776 = vpack.c.bf16 %v9713, %v9712
  %v9777 = vpack.c.bf16 %v9715, %v9714
  %v9778 = vpack.c.bf16 %v9717, %v9716
  %v9779 = vpack.c.bf16 %v9719, %v9718
  %v9780 = vpack.c.bf16 %v9721, %v9720
  %v9781 = vpack.c.bf16 %v9723, %v9722
  %v9782 = vpack.c.bf16 %v9725, %v9724
  %v9783 = vpack.c.bf16 %v9727, %v9726
  %v9784 = vpack.c.bf16 %v9729, %v9728
  %v9785 = vpack.c.bf16 %v9731, %v9730
  %v9786 = vpack.c.bf16 %v9733, %v9732
  %v9787 = vpack.c.bf16 %v9735, %v9734
  %v9788 = vpack.c.bf16 %v9737, %v9736
  %v9789 = vpack.c.bf16 %v9739, %v9738
  %v9790 = vpack.c.bf16 %v9741, %v9740
  %v9791 = vpack.c.bf16 %v9743, %v9742
  %v9792 = vpack.c.bf16 %v9745, %v9744
  %v9793 = vpack.c.bf16 %v9747, %v9746
  %v9794 = vpack.c.bf16 %v9749, %v9748
  %v9795 = vpack.c.bf16 %v9751, %v9750
  %v9796 = vpack.c.bf16 %v9753, %v9752
  %v9797 = vpack.c.bf16 %v9755, %v9754
  %v9798 = vpack.c.bf16 %v9757, %v9756
  %v9799 = vpack.c.bf16 %v9759, %v9758
  %v9840 = vunpack.c.l.b16 %v9760
  %v9841 = vunpack.c.h.b16 %v9760
  %v9842 = vunpack.c.l.b16 %v9761
  %v9843 = vunpack.c.h.b16 %v9761
  %v9844 = vunpack.c.l.b16 %v9762
  %v9845 = vunpack.c.h.b16 %v9762
  %v9846 = vunpack.c.l.b16 %v9763
  %v9847 = vunpack.c.h.b16 %v9763
  %v9848 = vunpack.c.l.b16 %v9764
  %v9849 = vunpack.c.h.b16 %v9764
  %v9850 = vunpack.c.l.b16 %v9765
  %v9851 = vunpack.c.h.b16 %v9765
  %v9852 = vunpack.c.l.b16 %v9766
  %v9853 = vunpack.c.h.b16 %v9766
  %v9854 = vunpack.c.l.b16 %v9767
  %v9855 = vunpack.c.h.b16 %v9767
  %v9856 = vunpack.c.l.b16 %v9768
  %v9857 = vunpack.c.h.b16 %v9768
  %v9858 = vunpack.c.l.b16 %v9769
  %v9859 = vunpack.c.h.b16 %v9769
  %v9860 = vunpack.c.l.b16 %v9770
  %v9861 = vunpack.c.h.b16 %v9770
  %v9862 = vunpack.c.l.b16 %v9771
  %v9863 = vunpack.c.h.b16 %v9771
  %v9864 = vunpack.c.l.b16 %v9772
  %v9865 = vunpack.c.h.b16 %v9772
  %v9866 = vunpack.c.l.b16 %v9773
  %v9867 = vunpack.c.h.b16 %v9773
  %v9868 = vunpack.c.l.b16 %v9774
  %v9869 = vunpack.c.h.b16 %v9774
  %v9870 = vunpack.c.l.b16 %v9775
  %v9871 = vunpack.c.h.b16 %v9775
  %v9872 = vunpack.c.l.b16 %v9776
  %v9873 = vunpack.c.h.b16 %v9776
  %v9874 = vunpack.c.l.b16 %v9777
  %v9875 = vunpack.c.h.b16 %v9777
  %v9876 = vunpack.c.l.b16 %v9778
  %v9877 = vunpack.c.h.b16 %v9778
  %v9878 = vunpack.c.l.b16 %v9779
  %v9879 = vunpack.c.h.b16 %v9779
  %v9880 = vunpack.c.l.b16 %v9780
  %v9881 = vunpack.c.h.b16 %v9780
  %v9882 = vunpack.c.l.b16 %v9781
  %v9883 = vunpack.c.h.b16 %v9781
  %v9884 = vunpack.c.l.b16 %v9782
  %v9885 = vunpack.c.h.b16 %v9782
  %v9886 = vunpack.c.l.b16 %v9783
  %v9887 = vunpack.c.h.b16 %v9783
  %v9888 = vunpack.c.l.b16 %v9784
  %v9889 = vunpack.c.h.b16 %v9784
  %v9890 = vunpack.c.l.b16 %v9785
  %v9891 = vunpack.c.h.b16 %v9785
  %v9892 = vunpack.c.l.b16 %v9786
  %v9893 = vunpack.c.h.b16 %v9786
  %v9894 = vunpack.c.l.b16 %v9787
  %v9895 = vunpack.c.h.b16 %v9787
  %v9896 = vunpack.c.l.b16 %v9788
  %v9897 = vunpack.c.h.b16 %v9788
  %v9898 = vunpack.c.l.b16 %v9789
  %v9899 = vunpack.c.h.b16 %v9789
  %v9900 = vunpack.c.l.b16 %v9790
  %v9901 = vunpack.c.h.b16 %v9790
  %v9902 = vunpack.c.l.b16 %v9791
  %v9903 = vunpack.c.h.b16 %v9791
  %v9904 = vunpack.c.l.b16 %v9792
  %v9905 = vunpack.c.h.b16 %v9792
  %v9906 = vunpack.c.l.b16 %v9793
  %v9907 = vunpack.c.h.b16 %v9793
  %v9908 = vunpack.c.l.b16 %v9794
  %v9909 = vunpack.c.h.b16 %v9794
  %v9910 = vunpack.c.l.b16 %v9795
  %v9911 = vunpack.c.h.b16 %v9795
  %v9912 = vunpack.c.l.b16 %v9796
  %v9913 = vunpack.c.h.b16 %v9796
  %v9914 = vunpack.c.l.b16 %v9797
  %v9915 = vunpack.c.h.b16 %v9797
  %v9916 = vunpack.c.l.b16 %v9798
  %v9917 = vunpack.c.h.b16 %v9798
  %v9918 = vunpack.c.l.b16 %v9799
  %v9919 = vunpack.c.h.b16 %v9799
  %v9920 = vpack.c.b16 %v9840, %v9840
  %v9921 = vpack.c.b16 %v9841, %v9841
  %v9922 = vpack.c.b16 %v9842, %v9842
  %v9923 = vpack.c.b16 %v9843, %v9843
  %v9924 = vpack.c.b16 %v9844, %v9844
  %v9925 = vpack.c.b16 %v9845, %v9845
  %v9926 = vpack.c.b16 %v9846, %v9846
  %v9927 = vpack.c.b16 %v9847, %v9847
  %v9928 = vpack.c.b16 %v9848, %v9848
  %v9929 = vpack.c.b16 %v9849, %v9849
  %v9930 = vpack.c.b16 %v9850, %v9850
  %v9931 = vpack.c.b16 %v9851, %v9851
  %v9932 = vpack.c.b16 %v9852, %v9852
  %v9933 = vpack.c.b16 %v9853, %v9853
  %v9934 = vpack.c.b16 %v9854, %v9854
  %v9935 = vpack.c.b16 %v9855, %v9855
  %v9936 = vpack.c.b16 %v9856, %v9856
  %v9937 = vpack.c.b16 %v9857, %v9857
  %v9938 = vpack.c.b16 %v9858, %v9858
  %v9939 = vpack.c.b16 %v9859, %v9859
  %v9940 = vpack.c.b16 %v9860, %v9860
  %v9941 = vpack.c.b16 %v9861, %v9861
  %v9942 = vpack.c.b16 %v9862, %v9862
  %v9943 = vpack.c.b16 %v9863, %v9863
  %v9944 = vpack.c.b16 %v9864, %v9864
  %v9945 = vpack.c.b16 %v9865, %v9865
  %v9946 = vpack.c.b16 %v9866, %v9866
  %v9947 = vpack.c.b16 %v9867, %v9867
  %v9948 = vpack.c.b16 %v9868, %v9868
  %v9949 = vpack.c.b16 %v9869, %v9869
  %v9950 = vpack.c.b16 %v9870, %v9870
  %v9951 = vpack.c.b16 %v9871, %v9871
  %v9952 = vpack.c.b16 %v9872, %v9872
  %v9953 = vpack.c.b16 %v9873, %v9873
  %v9954 = vpack.c.b16 %v9874, %v9874
  %v9955 = vpack.c.b16 %v9875, %v9875
  %v9956 = vpack.c.b16 %v9876, %v9876
  %v9957 = vpack.c.b16 %v9877, %v9877
  %v9958 = vpack.c.b16 %v9878, %v9878
  %v9959 = vpack.c.b16 %v9879, %v9879
  %v9960 = vpack.c.b16 %v9880, %v9880
  %v9961 = vpack.c.b16 %v9881, %v9881
  %v9962 = vpack.c.b16 %v9882, %v9882
  %v9963 = vpack.c.b16 %v9883, %v9883
  %v9964 = vpack.c.b16 %v9884, %v9884
  %v9965 = vpack.c.b16 %v9885, %v9885
  %v9966 = vpack.c.b16 %v9886, %v9886
  %v9967 = vpack.c.b16 %v9887, %v9887
  %v9968 = vpack.c.b16 %v9888, %v9888
  %v9969 = vpack.c.b16 %v9889, %v9889
  %v9970 = vpack.c.b16 %v9890, %v9890
  %v9971 = vpack.c.b16 %v9891, %v9891
  %v9972 = vpack.c.b16 %v9892, %v9892
  %v9973 = vpack.c.b16 %v9893, %v9893
  %v9974 = vpack.c.b16 %v9894, %v9894
  %v9975 = vpack.c.b16 %v9895, %v9895
  %v9976 = vpack.c.b16 %v9896, %v9896
  %v9977 = vpack.c.b16 %v9897, %v9897
  %v9978 = vpack.c.b16 %v9898, %v9898
  %v9979 = vpack.c.b16 %v9899, %v9899
  %v9980 = vpack.c.b16 %v9900, %v9900
  %v9981 = vpack.c.b16 %v9901, %v9901
  %v9982 = vpack.c.b16 %v9902, %v9902
  %v9983 = vpack.c.b16 %v9903, %v9903
  %v9984 = vpack.c.b16 %v9904, %v9904
  %v9985 = vpack.c.b16 %v9905, %v9905
  %v9986 = vpack.c.b16 %v9906, %v9906
  %v9987 = vpack.c.b16 %v9907, %v9907
  %v9988 = vpack.c.b16 %v9908, %v9908
  %v9989 = vpack.c.b16 %v9909, %v9909
  %v9990 = vpack.c.b16 %v9910, %v9910
  %v9991 = vpack.c.b16 %v9911, %v9911
  %v9992 = vpack.c.b16 %v9912, %v9912
  %v9993 = vpack.c.b16 %v9913, %v9913
  %v9994 = vpack.c.b16 %v9914, %v9914
  %v9995 = vpack.c.b16 %v9915, %v9915
  %v9996 = vpack.c.b16 %v9916, %v9916
  %v9997 = vpack.c.b16 %v9917, %v9917
  %v9998 = vpack.c.b16 %v9918, %v9918
  %v9999 = vpack.c.b16 %v9919, %v9919
  %vm10080 = vcmask 257024
  %10081 = vst.msk [vmem:[%s5] sm:$0xf] %vm10080, %v9920
  %10082 = vst.msk [vmem:[%s5 + $0x4] sm:$0xf] %vm10080, %v9921
  %10083 = vst.msk [vmem:[%s5 + $0x8] sm:$0xf] %vm10080, %v9922
  %10084 = vst.msk [vmem:[%s5 + $0xc] sm:$0xf] %vm10080, %v9923
  %10085 = vst.msk [vmem:[%s5 + $0x10] sm:$0xf] %vm10080, %v9924
  %10086 = vst.msk [vmem:[%s5 + $0x14] sm:$0xf] %vm10080, %v9925
  %10087 = vst.msk [vmem:[%s5 + $0x18] sm:$0xf] %vm10080, %v9926
  %10088 = vst.msk [vmem:[%s5 + $0x1c] sm:$0xf] %vm10080, %v9927
  %10089 = vst.msk [vmem:[%s5 + $0x20] sm:$0xf] %vm10080, %v9928
  %10090 = vst.msk [vmem:[%s5 + $0x24] sm:$0xf] %vm10080, %v9929
  %10091 = vst.msk [vmem:[%s5 + $0x28] sm:$0xf] %vm10080, %v9930
  %10092 = vst.msk [vmem:[%s5 + $0x2c] sm:$0xf] %vm10080, %v9931
  %10093 = vst.msk [vmem:[%s5 + $0x30] sm:$0xf] %vm10080, %v9932
  %10094 = vst.msk [vmem:[%s5 + $0x34] sm:$0xf] %vm10080, %v9933
  %10095 = vst.msk [vmem:[%s5 + $0x38] sm:$0xf] %vm10080, %v9934
  %10096 = vst.msk [vmem:[%s5 + $0x3c] sm:$0xf] %vm10080, %v9935
  %10097 = vst.msk [vmem:[%s5 + $0x40] sm:$0xf] %vm10080, %v9936
  %10098 = vst.msk [vmem:[%s5 + $0x44] sm:$0xf] %vm10080, %v9937
  %10099 = vst.msk [vmem:[%s5 + $0x48] sm:$0xf] %vm10080, %v9938
  %10100 = vst.msk [vmem:[%s5 + $0x4c] sm:$0xf] %vm10080, %v9939
  %10101 = vst.msk [vmem:[%s5 + $0x50] sm:$0xf] %vm10080, %v9940
  %10102 = vst.msk [vmem:[%s5 + $0x54] sm:$0xf] %vm10080, %v9941
  %10103 = vst.msk [vmem:[%s5 + $0x58] sm:$0xf] %vm10080, %v9942
  %10104 = vst.msk [vmem:[%s5 + $0x5c] sm:$0xf] %vm10080, %v9943
  %10105 = vst.msk [vmem:[%s5 + $0x60] sm:$0xf] %vm10080, %v9944
  %10106 = vst.msk [vmem:[%s5 + $0x64] sm:$0xf] %vm10080, %v9945
  %10107 = vst.msk [vmem:[%s5 + $0x68] sm:$0xf] %vm10080, %v9946
  %10108 = vst.msk [vmem:[%s5 + $0x6c] sm:$0xf] %vm10080, %v9947
  %10109 = vst.msk [vmem:[%s5 + $0x70] sm:$0xf] %vm10080, %v9948
  %10110 = vst.msk [vmem:[%s5 + $0x74] sm:$0xf] %vm10080, %v9949
  %10111 = vst.msk [vmem:[%s5 + $0x78] sm:$0xf] %vm10080, %v9950
  %10112 = vst.msk [vmem:[%s5 + $0x7c] sm:$0xf] %vm10080, %v9951
  %10113 = vst.msk [vmem:[%s5 + $0x80] sm:$0xf] %vm10080, %v9952
  %10114 = vst.msk [vmem:[%s5 + $0x84] sm:$0xf] %vm10080, %v9953
  %10115 = vst.msk [vmem:[%s5 + $0x88] sm:$0xf] %vm10080, %v9954
  %10116 = vst.msk [vmem:[%s5 + $0x8c] sm:$0xf] %vm10080, %v9955
  %10117 = vst.msk [vmem:[%s5 + $0x90] sm:$0xf] %vm10080, %v9956
  %10118 = vst.msk [vmem:[%s5 + $0x94] sm:$0xf] %vm10080, %v9957
  %10119 = vst.msk [vmem:[%s5 + $0x98] sm:$0xf] %vm10080, %v9958
  %10120 = vst.msk [vmem:[%s5 + $0x9c] sm:$0xf] %vm10080, %v9959
  %10121 = vst.msk [vmem:[%s5 + $0xa0] sm:$0xf] %vm10080, %v9960
  %10122 = vst.msk [vmem:[%s5 + $0xa4] sm:$0xf] %vm10080, %v9961
  %10123 = vst.msk [vmem:[%s5 + $0xa8] sm:$0xf] %vm10080, %v9962
  %10124 = vst.msk [vmem:[%s5 + $0xac] sm:$0xf] %vm10080, %v9963
  %10125 = vst.msk [vmem:[%s5 + $0xb0] sm:$0xf] %vm10080, %v9964
  %10126 = vst.msk [vmem:[%s5 + $0xb4] sm:$0xf] %vm10080, %v9965
  %10127 = vst.msk [vmem:[%s5 + $0xb8] sm:$0xf] %vm10080, %v9966
  %10128 = vst.msk [vmem:[%s5 + $0xbc] sm:$0xf] %vm10080, %v9967
  %10129 = vst.msk [vmem:[%s5 + $0xc0] sm:$0xf] %vm10080, %v9968
  %10130 = vst.msk [vmem:[%s5 + $0xc4] sm:$0xf] %vm10080, %v9969
  %10131 = vst.msk [vmem:[%s5 + $0xc8] sm:$0xf] %vm10080, %v9970
  %10132 = vst.msk [vmem:[%s5 + $0xcc] sm:$0xf] %vm10080, %v9971
  %10133 = vst.msk [vmem:[%s5 + $0xd0] sm:$0xf] %vm10080, %v9972
  %10134 = vst.msk [vmem:[%s5 + $0xd4] sm:$0xf] %vm10080, %v9973
  %10135 = vst.msk [vmem:[%s5 + $0xd8] sm:$0xf] %vm10080, %v9974
  %10136 = vst.msk [vmem:[%s5 + $0xdc] sm:$0xf] %vm10080, %v9975
  %10137 = vst.msk [vmem:[%s5 + $0xe0] sm:$0xf] %vm10080, %v9976
  %10138 = vst.msk [vmem:[%s5 + $0xe4] sm:$0xf] %vm10080, %v9977
  %10139 = vst.msk [vmem:[%s5 + $0xe8] sm:$0xf] %vm10080, %v9978
  %10140 = vst.msk [vmem:[%s5 + $0xec] sm:$0xf] %vm10080, %v9979
  %10141 = vst.msk [vmem:[%s5 + $0xf0] sm:$0xf] %vm10080, %v9980
  %10142 = vst.msk [vmem:[%s5 + $0xf4] sm:$0xf] %vm10080, %v9981
  %10143 = vst.msk [vmem:[%s5 + $0xf8] sm:$0xf] %vm10080, %v9982
  %10144 = vst.msk [vmem:[%s5 + $0xfc] sm:$0xf] %vm10080, %v9983
  %10145 = vst.msk [vmem:[%s5 + $0x100] sm:$0xf] %vm10080, %v9984
  %10146 = vst.msk [vmem:[%s5 + $0x104] sm:$0xf] %vm10080, %v9985
  %10147 = vst.msk [vmem:[%s5 + $0x108] sm:$0xf] %vm10080, %v9986
  %10148 = vst.msk [vmem:[%s5 + $0x10c] sm:$0xf] %vm10080, %v9987
  %10149 = vst.msk [vmem:[%s5 + $0x110] sm:$0xf] %vm10080, %v9988
  %10150 = vst.msk [vmem:[%s5 + $0x114] sm:$0xf] %vm10080, %v9989
  %10151 = vst.msk [vmem:[%s5 + $0x118] sm:$0xf] %vm10080, %v9990
  %10152 = vst.msk [vmem:[%s5 + $0x11c] sm:$0xf] %vm10080, %v9991
  %10153 = vst.msk [vmem:[%s5 + $0x120] sm:$0xf] %vm10080, %v9992
  %10154 = vst.msk [vmem:[%s5 + $0x124] sm:$0xf] %vm10080, %v9993
  %10155 = vst.msk [vmem:[%s5 + $0x128] sm:$0xf] %vm10080, %v9994
  %10156 = vst.msk [vmem:[%s5 + $0x12c] sm:$0xf] %vm10080, %v9995
  %10157 = vst.msk [vmem:[%s5 + $0x130] sm:$0xf] %vm10080, %v9996
  %10158 = vst.msk [vmem:[%s5 + $0x134] sm:$0xf] %vm10080, %v9997
  %10159 = vst.msk [vmem:[%s5 + $0x138] sm:$0xf] %vm10080, %v9998
  %10160 = vst.msk [vmem:[%s5 + $0x13c] sm:$0xf] %vm10080, %v9999
  // Predicated region
  $region22: #{_conv_block_same.1} parent=0 // pred_check
    _
  $region23: #{_conv_block_same.1} parent=0 // pred_check_branch
    %10162 = sbr.rel (0) target = $region25
  $region24: #{_conv_block_same.1} parent=0 // pred_region
    _
  $region25: #{_conv_block_same.1} parent=0 // pred_fallthru
    _
  // Predicated region
  $region26: #{_conv_block_same.1} parent=0 // pred_check
    _
  $region27: #{_conv_block_same.1} parent=0 // pred_check_branch
    %10164 = sbr.rel (0) target = $region29
  $region28: #{_conv_block_same.1} parent=0 // pred_region
    _
  $region29: #{_conv_block_same.1} parent=0 // pred_fallthru
    _

</llo_original>
